<compile_context>
chip_gen: v7x
topology: tpu7x:2x2x1
jax: 0.10.0
libtpu: 0.0.40
codegen_flags: <defaults>
</compile_context>

<pallas_src>
import jax
import jax.numpy as jnp
import numpy as np
from jax import lax
from jax.experimental import pallas as pl
from jax.experimental.pallas import tpu as pltpu


# --------------------------- VMEM sizing helpers ------------------------------

def _round_up(x, m):
    return -(-x // m) * m


def _pb(shape, itemsize=4):
    """Bytes of a VMEM buffer, accounting for (8,128) tiling of the last 2 dims."""
    s = list(shape)
    if len(s) < 2:
        s = [1] * (2 - len(s)) + s
    sub = 8 * max(1, 4 // itemsize)          # f32: 8 sublanes; bf16 packs 16
    lead = 1
    for d in s[:-2]:
        lead *= int(d)
    return lead * _round_up(int(s[-2]), sub) * _round_up(int(s[-1]), 128) * itemsize


def _vmem_budgets():
    """(vmem_limit_bytes, per-tile working-set budget) for the local chip."""
    kind = ""
    try:
        kind = jax.devices()[0].device_kind.lower()
    except Exception:
        pass
    if any(t in kind for t in ("v2", "v3")):
        return 12 * 2**20, 5 * 2**20
    if any(t in kind for t in ("v4", "v5", "v6")):    # 128 MiB physical VMEM
        return 96 * 2**20, 44 * 2**20
    # v7x-class / unknown: assume 64 MiB per TensorCore.
    return 48 * 2**20, 20 * 2**20


def _pick_row_tile(n_rows, tile_bytes_fn, budget_bytes, min_rows=1):
    """Largest divisor of n_rows whose estimated working set fits the budget."""
    divisors = [d for d in range(1, n_rows + 1)
                if n_rows % d == 0 and d >= min_rows]
    fitting = [d for d in divisors if tile_bytes_fn(d) <= budget_bytes]
    if fitting:
        return max(fitting)
    return min(divisors) if divisors else n_rows


# ----------------------------- Pallas kernels ---------------------------------

def _up2x2_kernel(x_ref, w_ref, b_ref, o_ref):
    # ConvTranspose2d(k=2, s=2) on a row block, single fused matmul.
    # x_ref: (1, TH, W, Cin)   w_ref: (Cin, 4*Cout)  columns = (a, b, co)
    # b_ref: (1, 4*Cout)       o_ref: (1, TH, 2, W, 2*Cout) grouped layout with
    #   o[0, r, a, c, b*Cout+co] = up[2r+a, 2c+b, co]
    _, th, w, cin = x_ref.shape
    two_cout = o_ref.shape[-1]
    x2d = x_ref[0].reshape(th * w, cin)                 # free leading-dim merge
    t = jnp.dot(x2d, w_ref[...], preferred_element_type=jnp.float32)
    t = t + b_ref[...]
    o_ref[0, :, 0] = t[:, :two_cout].reshape(th, w, two_cout).astype(o_ref.dtype)
    o_ref[0, :, 1] = t[:, two_cout:].reshape(th, w, two_cout).astype(o_ref.dtype)


def _conv3x3_kernel(x2c_ref, x2h0_ref, x2h1_ref, x1c_ref, x1h0_ref, x1h1_ref,
                    w2_ref, w1_ref, b_ref, o_ref):
    # 3x3 "same" conv over the (virtual) channel-concat of x2 and x1(upsampled)
    # without materializing the concat.  Inputs are pre-padded by 1 pixel in H/W
    # (plus x1's diff pad); the two H-halo rows arrive as 1-row streams.
    #   x?c:  (1, TH, Wp, C?)  current row block, Wp = W2 + 2
    #   x?h0/x?h1: (1, 1, Wp, C?)  the 2 rows directly below the block
    #   w?_ref: (3, C?, 3*Cout)  indexed [ky][ci][kx*Cout+co]
    #   b_ref: (1, Cout)   o_ref: (1, TH, W2, Cout)
    _, th, wp, _ = x2c_ref.shape
    w2_out = o_ref.shape[2]
    cout = o_ref.shape[3]
    m = th * wp

    # Row-extend each part with its 2 halo rows (leading-dim concat, cheap).
    xh2 = jnp.concatenate([x2c_ref[0], x2h0_ref[0], x2h1_ref[0]], axis=0)
    xh1 = jnp.concatenate([x1c_ref[0], x1h0_ref[0], x1h1_ref[0]], axis=0)

    # kx taps live in the matmul N dimension: 6 matmuls (3 ky x 2 parts) with
    # N = 3*Cout, instead of 18 tiny-K/N matmuls, feeding the MXU much better.
    acc3 = None
    for xh, wk_ref in ((xh2, w2_ref), (xh1, w1_ref)):
        cpart = xh.shape[-1]
        for ky in range(3):
            x2d = xh[ky:ky + th].reshape(m, cpart)      # leading-dim slice+merge
            t = jnp.dot(x2d, wk_ref[ky], preferred_element_type=jnp.float32)
            acc3 = t if acc3 is None else acc3 + t

    # Column group kx of acc3 holds sum_{ky,ci} x[r+ky, cpad, ci]*w[ky,kx,ci,:].
    # Align to output column c with a single sublane roll per kx (hoisted: only
    # 2 rolls per tile); wraparound provably lands in the 2 junk columns.
    acc = acc3[:, :cout]
    for kx in (1, 2):
        acc = acc + pltpu.roll(acc3[:, kx * cout:(kx + 1) * cout], m - kx, axis=0)

    out = (acc + b_ref[...]).reshape(th, wp, cout)[:, :w2_out, :]
    o_ref[0] = out.astype(o_ref.dtype)


# -------------------------------- wrappers ------------------------------------

def conv_transpose_2x2_s2(x_nhwc, w_pt, b):
    """ConvTranspose2d(kernel=2, stride=2). w_pt: (Cin, Cout, 2, 2) torch layout."""
    n, h, w, cin = x_nhwc.shape
    cout = w_pt.shape[1]
    itemsize = jnp.dtype(x_nhwc.dtype).itemsize
    vmem_limit, budget = _vmem_budgets()

    # weight -> (Cin, (a, b, co)); bias tiled to 4*Cout.
    w_k = jnp.transpose(w_pt, (0, 2, 3, 1)).reshape(cin, 4 * cout)
    b_k = jnp.tile(b, (4,)).reshape(1, 4 * cout).astype(jnp.float32)

    def tile_bytes(th):
        mm = th * w
        return (2 * _pb((1, th, w, cin), itemsize)              # input (2-buf)
                + 2 * _pb((1, th, 2, w, 2 * cout), itemsize)    # output (2-buf)
                + 2 * _pb((cin, 4 * cout)) + 2 * _pb((1, 4 * cout))
                + _pb((mm, cin)) + 2 * _pb((mm, 4 * cout)))     # in-kernel temps

    th = _pick_row_tile(h, tile_bytes, budget)
    grid = (n, h // th)

    flops = 2 * n * h * w * cin * 4 * cout
    bytes_accessed = itemsize * (x_nhwc.size + n * h * 4 * w * cout) + 4 * w_k.size

    out = pl.pallas_call(
        _up2x2_kernel,
        out_shape=jax.ShapeDtypeStruct((n, h, 2, w, 2 * cout), x_nhwc.dtype),
        grid=grid,
        in_specs=[
            pl.BlockSpec((1, th, w, cin), lambda ni, i: (ni, i, 0, 0)),
            pl.BlockSpec((cin, 4 * cout), lambda ni, i: (0, 0)),
            pl.BlockSpec((1, 4 * cout), lambda ni, i: (0, 0)),
        ],
        out_specs=pl.BlockSpec((1, th, 2, w, 2 * cout),
                               lambda ni, i: (ni, i, 0, 0, 0)),
        compiler_params=pltpu.CompilerParams(
            dimension_semantics=("parallel", "parallel"),
            vmem_limit_bytes=vmem_limit),
        cost_estimate=pl.CostEstimate(flops=int(flops), transcendentals=0,
                                      bytes_accessed=int(bytes_accessed)),
    )(x_nhwc, w_k, b_k)
    # (N, H, 2, W, 2*Cout) row-major is bit-identical to (N, 2H, 2W, Cout):
    # this reshape is a free bitcast (no HBM round trip).
    return out.reshape(n, 2 * h, 2 * w, cout)


def conv3x3_fused(x2, x1u, w_pt, b, extra_pad_hw=((0, 0), (0, 0))):
    """Conv2d(k=3, pad=1) over the channel-concat [x2, x1u] without building the
    concat. w_pt: (Cout, C2+C1, 3, 3) torch layout; extra_pad_hw is the diff pad
    applied (virtually) to x1u before the concat."""
    n, h2, w2, c2 = x2.shape
    c1 = x1u.shape[3]
    cout = w_pt.shape[0]
    (p_t, p_b), (p_l, p_r) = extra_pad_hw
    assert x1u.shape[0] == n
    assert x1u.shape[1] + p_t + p_b == h2
    assert x1u.shape[2] + p_l + p_r == w2
    assert w_pt.shape[1] == c2 + c1
    itemsize = jnp.dtype(x2.dtype).itemsize
    vmem_limit, budget = _vmem_budgets()

    wp = w2 + 2

    # One pad per input: 3x3 halo (+ x1's diff pad) folded together.  No row-tile
    # dependent bottom padding any more (halo rows come via 1-row streams).
    x2p = jnp.pad(x2, ((0, 0), (1, 1), (1, 1), (0, 0)))
    x1p = jnp.pad(x1u, ((0, 0), (1 + p_t, 1 + p_b), (1 + p_l, 1 + p_r), (0, 0)))

    # Pack the kx taps into the matmul N dimension: (ky, Cpart, kx*Cout+co).
    w_hwio = jnp.transpose(w_pt, (2, 3, 1, 0))                      # (ky,kx,ci,co)
    w2_k = jnp.transpose(w_hwio[:, :, :c2, :], (0, 2, 1, 3)).reshape(3, c2, 3 * cout)
    w1_k = jnp.transpose(w_hwio[:, :, c2:, :], (0, 2, 1, 3)).reshape(3, c1, 3 * cout)
    b_k = b.reshape(1, cout).astype(jnp.float32)

    def tile_bytes(th):
        m = th * wp
        return (2 * _pb((1, th, wp, c2), itemsize) + 2 * _pb((1, th, wp, c1), itemsize)
                + 4 * _pb((1, 1, wp, c2), itemsize) + 4 * _pb((1, 1, wp, c1), itemsize)
                + 2 * _pb((3, c2, 3 * cout)) + 2 * _pb((3, c1, 3 * cout))
                + 2 * _pb((1, cout))
                + 2 * _pb((1, th, w2, cout), itemsize)
                + _pb((th + 2, wp, c2)) + _pb((th + 2, wp, c1))      # xh temps
                + _pb((m, max(c2, c1))) + 2 * _pb((m, 3 * cout))
                + _pb((m, cout)) + _pb((th, wp, cout)))

    th = _pick_row_tile(h2, tile_bytes, budget)
    nb = h2 // th

    flops = 2 * n * h2 * w2 * 9 * (c2 + c1) * cout
    bytes_accessed = (itemsize * (x2p.size + x1p.size + n * h2 * w2 * cout)
                      + 4 * (w2_k.size + w1_k.size))

    cur = lambda ni, i: (ni, i, 0, 0)
    halo0 = lambda ni, i: (ni, (i + 1) * th, 0, 0)       # block height 1 => row idx
    halo1 = lambda ni, i: (ni, (i + 1) * th + 1, 0, 0)

    return pl.pallas_call(
        _conv3x3_kernel,
        out_shape=jax.ShapeDtypeStruct((n, h2, w2, cout), x2.dtype),
        grid=(n, nb),
        in_specs=[
            pl.BlockSpec((1, th, wp, c2), cur),
            pl.BlockSpec((1, 1, wp, c2), halo0),
            pl.BlockSpec((1, 1, wp, c2), halo1),
            pl.BlockSpec((1, th, wp, c1), cur),
            pl.BlockSpec((1, 1, wp, c1), halo0),
            pl.BlockSpec((1, 1, wp, c1), halo1),
            pl.BlockSpec((3, c2, 3 * cout), lambda ni, i: (0, 0, 0)),
            pl.BlockSpec((3, c1, 3 * cout), lambda ni, i: (0, 0, 0)),
            pl.BlockSpec((1, cout), lambda ni, i: (0, 0)),
        ],
        out_specs=pl.BlockSpec((1, th, w2, cout), cur),
        compiler_params=pltpu.CompilerParams(
            dimension_semantics=("parallel", "parallel"),
            vmem_limit_bytes=vmem_limit),
        cost_estimate=pl.CostEstimate(flops=int(flops), transcendentals=0,
                                      bytes_accessed=int(bytes_accessed)),
    )(x2p, x2p, x2p, x1p, x1p, x1p, w2_k, w1_k, b_k)


def upconv_forward(params, x1_nchw, x2_nchw):
    """Matches UpConv.forward (bilinear=False). Inputs/outputs are NCHW."""
    x1 = jnp.transpose(x1_nchw, (0, 2, 3, 1))
    x2 = jnp.transpose(x2_nchw, (0, 2, 3, 1))

    x1u = conv_transpose_2x2_s2(x1, params["up_w"], params["up_b"])

    diff_y = x2.shape[1] - x1u.shape[1]
    diff_x = x2.shape[2] - x1u.shape[2]
    y = conv3x3_fused(
        x2, x1u, params["conv_w"], params["conv_b"],
        extra_pad_hw=((diff_y // 2, diff_y - diff_y // 2),
                      (diff_x // 2, diff_x - diff_x // 2)))
    return jnp.transpose(y, (0, 3, 1, 2))   # back to NCHW


# ------------------------- reference (pure lax) --------------------------------

def reference_forward(params, x1_nchw, x2_nchw):
    x1 = jnp.transpose(x1_nchw, (0, 2, 3, 1))
    x2 = jnp.transpose(x2_nchw, (0, 2, 3, 1))

    # ConvTranspose2d(k=2, s=2) == lhs-dilated conv with spatially-flipped kernel
    w_up = params["up_w"]                                         # [Cin, Cout, 2, 2]
    w_flip = jnp.transpose(w_up[:, :, ::-1, ::-1], (2, 3, 0, 1))  # [kH,kW,Cin,Cout]
    up = lax.conv_general_dilated(
        x1, w_flip, window_strides=(1, 1), padding=((1, 1), (1, 1)),
        lhs_dilation=(2, 2), dimension_numbers=("NHWC", "HWIO", "NHWC"),
    ) + params["up_b"]

    diff_y = x2.shape[1] - up.shape[1]
    diff_x = x2.shape[2] - up.shape[2]
    up = jnp.pad(up, ((0, 0),
                      (diff_y // 2, diff_y - diff_y // 2),
                      (diff_x // 2, diff_x - diff_x // 2),
                      (0, 0)))
    xcat = jnp.concatenate([x2, up], axis=-1)

    w_c = jnp.transpose(params["conv_w"], (2, 3, 1, 0))           # [3,3,Cin,Cout]
    out = lax.conv_general_dilated(
        xcat, w_c, window_strides=(1, 1), padding=((1, 1), (1, 1)),
        dimension_numbers=("NHWC", "HWIO", "NHWC"),
    ) + params["conv_b"]
    return jnp.transpose(out, (0, 3, 1, 2))


# --------------------------------- params --------------------------------------

def init_params(key, in_channels):
    c_half = in_channels // 2
    c_cat = in_channels * 3 // 2
    k1, k2, k3, k4 = jax.random.split(key, 4)
    return {
        # ConvTranspose2d weight layout: [in_channels, out_channels, kH, kW]
        "up_w": jax.random.normal(k1, (in_channels, c_half, 2, 2), jnp.float32) * 0.1,
        "up_b": jax.random.normal(k2, (c_half,), jnp.float32) * 0.1,
        # Conv2d weight layout: [out_channels, in_channels, kH, kW]
        "conv_w": jax.random.normal(k3, (c_half, c_cat, 3, 3), jnp.float32) * 0.1,
        "conv_b": jax.random.normal(k4, (c_half,), jnp.float32) * 0.1,
    }


if __name__ == "__main__":
    key = jax.random.PRNGKey(0)
    kp, kx1, kx2 = jax.random.split(key, 3)

    in_channels = 4
    params = init_params(kp, in_channels)

    # x1: deeper feature map (NCHW), x2: skip connection at 2x spatial resolution
    x1 = jax.random.normal(kx1, (2, in_channels, 8, 8), jnp.float32)
    x2 = jax.random.normal(kx2, (2, in_channels, 16, 16), jnp.float32)

    out = jax.jit(upconv_forward)(params, x1, x2)
    out = jax.block_until_ready(out)
    assert out.shape == (2, in_channels // 2, 16, 16), out.shape

    ref = jax.block_until_ready(reference_forward(params, x1, x2))
    np.testing.assert_allclose(np.asarray(out), np.asarray(ref), rtol=1e-4, atol=1e-4)

    print("KERNEL_OK")
</pallas_src>

<mosaic_0001>
module attributes {stable_mosaic.version = 11 : i64} {
  func.func @_up2x2_kernel(%arg0: i32, %arg1: i32, %arg2: memref<1x8x8x4xf32, #tpu.memory_space<vmem>>, %arg3: memref<4x8xf32, #tpu.memory_space<vmem>>, %arg4: memref<1x8xf32, #tpu.memory_space<vmem>>, %arg5: memref<1x8x2x8x4xf32, #tpu.memory_space<vmem>>) attributes {dimension_semantics = [#tpu.dimension_semantics<parallel>, #tpu.dimension_semantics<parallel>], iteration_bounds = array<i64: 2, 1>, scalar_prefetch = 0 : i64, scratch_operands = 0 : i64, tpu.core_type = #tpu.core_type<tc>, window_params = [{transform_indices = @transform_0, window_bounds = array<i64: 1, 8, 8, 4>}, {pipeline_mode = #tpu.pipeline_mode<synchronous>, transform_indices = @transform_1, window_bounds = array<i64: 4, 8>}, {pipeline_mode = #tpu.pipeline_mode<synchronous>, transform_indices = @transform_2, window_bounds = array<i64: 1, 8>}, {transform_indices = @transform_3, window_bounds = array<i64: 1, 8, 2, 8, 4>}]} {
    %c0 = arith.constant 0 : index
    %c0_0 = arith.constant 0 : index
    %c0_1 = arith.constant 0 : index
    %c0_2 = arith.constant 0 : index
    %0 = vector.load %arg2[%c0, %c0_0, %c0_1, %c0_2] : memref<1x8x8x4xf32, #tpu.memory_space<vmem>>, vector<1x8x8x4xf32>
    %1 = vector.shape_cast %0 : vector<1x8x8x4xf32> to vector<8x8x4xf32>
    %2 = vector.shape_cast %1 : vector<8x8x4xf32> to vector<64x4xf32>
    %c0_3 = arith.constant 0 : index
    %c0_4 = arith.constant 0 : index
    %3 = vector.load %arg3[%c0_3, %c0_4] : memref<4x8xf32, #tpu.memory_space<vmem>>, vector<4x8xf32>
    %cst = arith.constant dense<0.000000e+00> : vector<64x8xf32>
    %4 = tpu.matmul %2, %3, %cst {dimension_numbers = #tpu.dot_dimension_numbers<[1], [0], [0], [1], [0, 0, 1, 1], [], []>} : vector<64x4xf32>, vector<4x8xf32>, vector<64x8xf32> -> vector<64x8xf32>
    %c0_5 = arith.constant 0 : index
    %c0_6 = arith.constant 0 : index
    %5 = vector.load %arg4[%c0_5, %c0_6] : memref<1x8xf32, #tpu.memory_space<vmem>>, vector<1x8xf32>
    %6 = vector.broadcast %5 : vector<1x8xf32> to vector<64x8xf32>
    %7 = arith.addf %4, %6 : vector<64x8xf32>
    %8 = vector.extract_strided_slice %7 {offsets = [0, 0], sizes = [64, 4], strides = [1, 1]} : vector<64x8xf32> to vector<64x4xf32>
    %9 = vector.shape_cast %8 : vector<64x4xf32> to vector<8x8x4xf32>
    %c0_7 = arith.constant 0 : index
    %c0_8 = arith.constant 0 : index
    %c0_9 = arith.constant 0 : index
    %c0_10 = arith.constant 0 : index
    %c0_11 = arith.constant 0 : index
    %10 = vector.load %arg5[%c0_7, %c0_8, %c0_9, %c0_10, %c0_11] : memref<1x8x2x8x4xf32, #tpu.memory_space<vmem>>, vector<1x8x1x8x4xf32>
    %11 = vector.shape_cast %10 : vector<1x8x1x8x4xf32> to vector<8x8x4xf32>
    %12 = vector.shape_cast %9 : vector<8x8x4xf32> to vector<1x8x1x8x4xf32>
    tpu.vector_store %arg5[%c0_7, %c0_8, %c0_9, %c0_10, %c0_11], %12 {strides = array<i32>} : memref<1x8x2x8x4xf32, #tpu.memory_space<vmem>>, vector<1x8x1x8x4xf32>,
    %13 = vector.extract_strided_slice %7 {offsets = [0, 4], sizes = [64, 4], strides = [1, 1]} : vector<64x8xf32> to vector<64x4xf32>
    %14 = vector.shape_cast %13 : vector<64x4xf32> to vector<8x8x4xf32>
    %c0_12 = arith.constant 0 : index
    %c0_13 = arith.constant 0 : index
    %c1 = arith.constant 1 : index
    %c0_14 = arith.constant 0 : index
    %c0_15 = arith.constant 0 : index
    %15 = vector.load %arg5[%c0_12, %c0_13, %c1, %c0_14, %c0_15] : memref<1x8x2x8x4xf32, #tpu.memory_space<vmem>>, vector<1x8x1x8x4xf32>
    %16 = vector.shape_cast %15 : vector<1x8x1x8x4xf32> to vector<8x8x4xf32>
    %17 = vector.shape_cast %14 : vector<8x8x4xf32> to vector<1x8x1x8x4xf32>
    tpu.vector_store %arg5[%c0_12, %c0_13, %c1, %c0_14, %c0_15], %17 {strides = array<i32>} : memref<1x8x2x8x4xf32, #tpu.memory_space<vmem>>, vector<1x8x1x8x4xf32>,
    return
  }
  func.func @transform_0(%arg0: i32, %arg1: i32) -> (i32, i32, i32, i32) {
    %c0_i32 = arith.constant 0 : i32
    %c0_i32_0 = arith.constant 0 : i32
    %c0_i32_1 = arith.constant 0 : i32
    return %arg0, %arg1, %c0_i32, %c0_i32_0 : i32, i32, i32, i32
  }
  func.func @transform_1(%arg0: i32, %arg1: i32) -> (i32, i32) {
    %c0_i32 = arith.constant 0 : i32
    %c0_i32_0 = arith.constant 0 : i32
    %c0_i32_1 = arith.constant 0 : i32
    return %c0_i32, %c0_i32_0 : i32, i32
  }
  func.func @transform_2(%arg0: i32, %arg1: i32) -> (i32, i32) {
    %c0_i32 = arith.constant 0 : i32
    %c0_i32_0 = arith.constant 0 : i32
    %c0_i32_1 = arith.constant 0 : i32
    return %c0_i32, %c0_i32_0 : i32, i32
  }
  func.func @transform_3(%arg0: i32, %arg1: i32) -> (i32, i32, i32, i32, i32) {
    %c0_i32 = arith.constant 0 : i32
    %c0_i32_0 = arith.constant 0 : i32
    %c0_i32_1 = arith.constant 0 : i32
    %c0_i32_2 = arith.constant 0 : i32
    return %arg0, %arg1, %c0_i32, %c0_i32_0, %c0_i32_1 : i32, i32, i32, i32, i32
  }
}

module attributes {stable_mosaic.version = 11 : i64} {
  func.func @_conv3x3_kernel(%arg0: i32, %arg1: i32, %arg2: memref<1x16x18x4xf32, #tpu.memory_space<vmem>>, %arg3: memref<1x1x18x4xf32, #tpu.memory_space<vmem>>, %arg4: memref<1x1x18x4xf32, #tpu.memory_space<vmem>>, %arg5: memref<1x16x18x2xf32, #tpu.memory_space<vmem>>, %arg6: memref<1x1x18x2xf32, #tpu.memory_space<vmem>>, %arg7: memref<1x1x18x2xf32, #tpu.memory_space<vmem>>, %arg8: memref<3x4x6xf32, #tpu.memory_space<vmem>>, %arg9: memref<3x2x6xf32, #tpu.memory_space<vmem>>, %arg10: memref<1x2xf32, #tpu.memory_space<vmem>>, %arg11: memref<1x16x16x2xf32, #tpu.memory_space<vmem>>) attributes {dimension_semantics = [#tpu.dimension_semantics<parallel>, #tpu.dimension_semantics<parallel>], iteration_bounds = array<i64: 2, 1>, scalar_prefetch = 0 : i64, scratch_operands = 0 : i64, tpu.core_type = #tpu.core_type<tc>, window_params = [{transform_indices = @transform_0, window_bounds = array<i64: 1, 16, 18, 4>}, {transform_indices = @transform_1, window_bounds = array<i64: 1, 1, 18, 4>}, {transform_indices = @transform_2, window_bounds = array<i64: 1, 1, 18, 4>}, {transform_indices = @transform_3, window_bounds = array<i64: 1, 16, 18, 2>}, {transform_indices = @transform_4, window_bounds = array<i64: 1, 1, 18, 2>}, {transform_indices = @transform_5, window_bounds = array<i64: 1, 1, 18, 2>}, {pipeline_mode = #tpu.pipeline_mode<synchronous>, transform_indices = @transform_6, window_bounds = array<i64: 3, 4, 6>}, {pipeline_mode = #tpu.pipeline_mode<synchronous>, transform_indices = @transform_7, window_bounds = array<i64: 3, 2, 6>}, {pipeline_mode = #tpu.pipeline_mode<synchronous>, transform_indices = @transform_8, window_bounds = array<i64: 1, 2>}, {transform_indices = @transform_9, window_bounds = array<i64: 1, 16, 16, 2>}]} {
    %c0 = arith.constant 0 : index
    %c0_0 = arith.constant 0 : index
    %c0_1 = arith.constant 0 : index
    %c0_2 = arith.constant 0 : index
    %0 = vector.load %arg2[%c0, %c0_0, %c0_1, %c0_2] : memref<1x16x18x4xf32, #tpu.memory_space<vmem>>, vector<1x16x18x4xf32>
    %1 = vector.shape_cast %0 : vector<1x16x18x4xf32> to vector<16x18x4xf32>
    %c0_3 = arith.constant 0 : index
    %c0_4 = arith.constant 0 : index
    %c0_5 = arith.constant 0 : index
    %c0_6 = arith.constant 0 : index
    %2 = vector.load %arg3[%c0_3, %c0_4, %c0_5, %c0_6] : memref<1x1x18x4xf32, #tpu.memory_space<vmem>>, vector<1x1x18x4xf32>
    %3 = vector.shape_cast %2 : vector<1x1x18x4xf32> to vector<1x18x4xf32>
    %c0_7 = arith.constant 0 : index
    %c0_8 = arith.constant 0 : index
    %c0_9 = arith.constant 0 : index
    %c0_10 = arith.constant 0 : index
    %4 = vector.load %arg4[%c0_7, %c0_8, %c0_9, %c0_10] : memref<1x1x18x4xf32, #tpu.memory_space<vmem>>, vector<1x1x18x4xf32>
    %5 = vector.shape_cast %4 : vector<1x1x18x4xf32> to vector<1x18x4xf32>
    %6 = tpu.concatenate %1, %3, %5 in 0 : vector<16x18x4xf32>, vector<1x18x4xf32>, vector<1x18x4xf32> -> vector<18x18x4xf32>
    %c0_11 = arith.constant 0 : index
    %c0_12 = arith.constant 0 : index
    %c0_13 = arith.constant 0 : index
    %c0_14 = arith.constant 0 : index
    %7 = vector.load %arg5[%c0_11, %c0_12, %c0_13, %c0_14] : memref<1x16x18x2xf32, #tpu.memory_space<vmem>>, vector<1x16x18x2xf32>
    %8 = vector.shape_cast %7 : vector<1x16x18x2xf32> to vector<16x18x2xf32>
    %c0_15 = arith.constant 0 : index
    %c0_16 = arith.constant 0 : index
    %c0_17 = arith.constant 0 : index
    %c0_18 = arith.constant 0 : index
    %9 = vector.load %arg6[%c0_15, %c0_16, %c0_17, %c0_18] : memref<1x1x18x2xf32, #tpu.memory_space<vmem>>, vector<1x1x18x2xf32>
    %10 = vector.shape_cast %9 : vector<1x1x18x2xf32> to vector<1x18x2xf32>
    %c0_19 = arith.constant 0 : index
    %c0_20 = arith.constant 0 : index
    %c0_21 = arith.constant 0 : index
    %c0_22 = arith.constant 0 : index
    %11 = vector.load %arg7[%c0_19, %c0_20, %c0_21, %c0_22] : memref<1x1x18x2xf32, #tpu.memory_space<vmem>>, vector<1x1x18x2xf32>
    %12 = vector.shape_cast %11 : vector<1x1x18x2xf32> to vector<1x18x2xf32>
    %13 = tpu.concatenate %8, %10, %12 in 0 : vector<16x18x2xf32>, vector<1x18x2xf32>, vector<1x18x2xf32> -> vector<18x18x2xf32>
    %14 = vector.extract_strided_slice %6 {offsets = [0, 0, 0], sizes = [16, 18, 4], strides = [1, 1, 1]} : vector<18x18x4xf32> to vector<16x18x4xf32>
    %15 = vector.shape_cast %14 : vector<16x18x4xf32> to vector<288x4xf32>
    %c0_23 = arith.constant 0 : index
    %c0_24 = arith.constant 0 : index
    %c0_25 = arith.constant 0 : index
    %16 = vector.load %arg8[%c0_23, %c0_24, %c0_25] : memref<3x4x6xf32, #tpu.memory_space<vmem>>, vector<1x4x6xf32>
    %17 = vector.shape_cast %16 : vector<1x4x6xf32> to vector<4x6xf32>
    %cst = arith.constant dense<0.000000e+00> : vector<288x6xf32>
    %18 = tpu.matmul %15, %17, %cst {dimension_numbers = #tpu.dot_dimension_numbers<[1], [0], [0], [1], [0, 0, 1, 1], [], []>} : vector<288x4xf32>, vector<4x6xf32>, vector<288x6xf32> -> vector<288x6xf32>
    %19 = vector.extract_strided_slice %6 {offsets = [1, 0, 0], sizes = [16, 18, 4], strides = [1, 1, 1]} : vector<18x18x4xf32> to vector<16x18x4xf32>
    %20 = vector.shape_cast %19 : vector<16x18x4xf32> to vector<288x4xf32>
    %c1 = arith.constant 1 : index
    %c0_26 = arith.constant 0 : index
    %c0_27 = arith.constant 0 : index
    %21 = vector.load %arg8[%c1, %c0_26, %c0_27] : memref<3x4x6xf32, #tpu.memory_space<vmem>>, vector<1x4x6xf32>
    %22 = vector.shape_cast %21 : vector<1x4x6xf32> to vector<4x6xf32>
    %cst_28 = arith.constant dense<0.000000e+00> : vector<288x6xf32>
    %23 = tpu.matmul %20, %22, %cst_28 {dimension_numbers = #tpu.dot_dimension_numbers<[1], [0], [0], [1], [0, 0, 1, 1], [], []>} : vector<288x4xf32>, vector<4x6xf32>, vector<288x6xf32> -> vector<288x6xf32>
    %24 = arith.addf %18, %23 : vector<288x6xf32>
    %25 = vector.extract_strided_slice %6 {offsets = [2, 0, 0], sizes = [16, 18, 4], strides = [1, 1, 1]} : vector<18x18x4xf32> to vector<16x18x4xf32>
    %26 = vector.shape_cast %25 : vector<16x18x4xf32> to vector<288x4xf32>
    %c2 = arith.constant 2 : index
    %c0_29 = arith.constant 0 : index
    %c0_30 = arith.constant 0 : index
    %27 = vector.load %arg8[%c2, %c0_29, %c0_30] : memref<3x4x6xf32, #tpu.memory_space<vmem>>, vector<1x4x6xf32>
    %28 = vector.shape_cast %27 : vector<1x4x6xf32> to vector<4x6xf32>
    %cst_31 = arith.constant dense<0.000000e+00> : vector<288x6xf32>
    %29 = tpu.matmul %26, %28, %cst_31 {dimension_numbers = #tpu.dot_dimension_numbers<[1], [0], [0], [1], [0, 0, 1, 1], [], []>} : vector<288x4xf32>, vector<4x6xf32>, vector<288x6xf32> -> vector<288x6xf32>
    %30 = arith.addf %24, %29 : vector<288x6xf32>
    %31 = vector.extract_strided_slice %13 {offsets = [0, 0, 0], sizes = [16, 18, 2], strides = [1, 1, 1]} : vector<18x18x2xf32> to vector<16x18x2xf32>
    %32 = vector.shape_cast %31 : vector<16x18x2xf32> to vector<288x2xf32>
    %c0_32 = arith.constant 0 : index
    %c0_33 = arith.constant 0 : index
    %c0_34 = arith.constant 0 : index
    %33 = vector.load %arg9[%c0_32, %c0_33, %c0_34] : memref<3x2x6xf32, #tpu.memory_space<vmem>>, vector<1x2x6xf32>
    %34 = vector.shape_cast %33 : vector<1x2x6xf32> to vector<2x6xf32>
    %cst_35 = arith.constant dense<0.000000e+00> : vector<288x6xf32>
    %35 = tpu.matmul %32, %34, %cst_35 {dimension_numbers = #tpu.dot_dimension_numbers<[1], [0], [0], [1], [0, 0, 1, 1], [], []>} : vector<288x2xf32>, vector<2x6xf32>, vector<288x6xf32> -> vector<288x6xf32>
    %36 = arith.addf %30, %35 : vector<288x6xf32>
    %37 = vector.extract_strided_slice %13 {offsets = [1, 0, 0], sizes = [16, 18, 2], strides = [1, 1, 1]} : vector<18x18x2xf32> to vector<16x18x2xf32>
    %38 = vector.shape_cast %37 : vector<16x18x2xf32> to vector<288x2xf32>
    %c1_36 = arith.constant 1 : index
    %c0_37 = arith.constant 0 : index
    %c0_38 = arith.constant 0 : index
    %39 = vector.load %arg9[%c1_36, %c0_37, %c0_38] : memref<3x2x6xf32, #tpu.memory_space<vmem>>, vector<1x2x6xf32>
    %40 = vector.shape_cast %39 : vector<1x2x6xf32> to vector<2x6xf32>
    %cst_39 = arith.constant dense<0.000000e+00> : vector<288x6xf32>
    %41 = tpu.matmul %38, %40, %cst_39 {dimension_numbers = #tpu.dot_dimension_numbers<[1], [0], [0], [1], [0, 0, 1, 1], [], []>} : vector<288x2xf32>, vector<2x6xf32>, vector<288x6xf32> -> vector<288x6xf32>
    %42 = arith.addf %36, %41 : vector<288x6xf32>
    %43 = vector.extract_strided_slice %13 {offsets = [2, 0, 0], sizes = [16, 18, 2], strides = [1, 1, 1]} : vector<18x18x2xf32> to vector<16x18x2xf32>
    %44 = vector.shape_cast %43 : vector<16x18x2xf32> to vector<288x2xf32>
    %c2_40 = arith.constant 2 : index
    %c0_41 = arith.constant 0 : index
    %c0_42 = arith.constant 0 : index
    %45 = vector.load %arg9[%c2_40, %c0_41, %c0_42] : memref<3x2x6xf32, #tpu.memory_space<vmem>>, vector<1x2x6xf32>
    %46 = vector.shape_cast %45 : vector<1x2x6xf32> to vector<2x6xf32>
    %cst_43 = arith.constant dense<0.000000e+00> : vector<288x6xf32>
    %47 = tpu.matmul %44, %46, %cst_43 {dimension_numbers = #tpu.dot_dimension_numbers<[1], [0], [0], [1], [0, 0, 1, 1], [], []>} : vector<288x2xf32>, vector<2x6xf32>, vector<288x6xf32> -> vector<288x6xf32>
    %48 = arith.addf %42, %47 : vector<288x6xf32>
    %49 = vector.extract_strided_slice %48 {offsets = [0, 0], sizes = [288, 2], strides = [1, 1]} : vector<288x6xf32> to vector<288x2xf32>
    %50 = vector.extract_strided_slice %48 {offsets = [0, 2], sizes = [288, 2], strides = [1, 1]} : vector<288x6xf32> to vector<288x2xf32>
    %c287_i32 = arith.constant 287 : i32
    %51 = tpu.dynamic_rotate %50 by %c287_i32 dim 0 : vector<288x2xf32>, i32 -> vector<288x2xf32>
    %52 = arith.addf %49, %51 : vector<288x2xf32>
    %53 = vector.extract_strided_slice %48 {offsets = [0, 4], sizes = [288, 2], strides = [1, 1]} : vector<288x6xf32> to vector<288x2xf32>
    %c286_i32 = arith.constant 286 : i32
    %54 = tpu.dynamic_rotate %53 by %c286_i32 dim 0 : vector<288x2xf32>, i32 -> vector<288x2xf32>
    %55 = arith.addf %52, %54 : vector<288x2xf32>
    %c0_44 = arith.constant 0 : index
    %c0_45 = arith.constant 0 : index
    %56 = vector.load %arg10[%c0_44, %c0_45] : memref<1x2xf32, #tpu.memory_space<vmem>>, vector<1x2xf32>
    %57 = vector.broadcast %56 : vector<1x2xf32> to vector<288x2xf32>
    %58 = arith.addf %55, %57 : vector<288x2xf32>
    %59 = vector.shape_cast %58 : vector<288x2xf32> to vector<16x18x2xf32>
    %60 = vector.extract_strided_slice %59 {offsets = [0, 0, 0], sizes = [16, 16, 2], strides = [1, 1, 1]} : vector<16x18x2xf32> to vector<16x16x2xf32>
    %c0_46 = arith.constant 0 : index
    %c0_47 = arith.constant 0 : index
    %c0_48 = arith.constant 0 : index
    %c0_49 = arith.constant 0 : index
    %61 = vector.load %arg11[%c0_46, %c0_47, %c0_48, %c0_49] : memref<1x16x16x2xf32, #tpu.memory_space<vmem>>, vector<1x16x16x2xf32>
    %62 = vector.shape_cast %61 : vector<1x16x16x2xf32> to vector<16x16x2xf32>
    %63 = vector.shape_cast %60 : vector<16x16x2xf32> to vector<1x16x16x2xf32>
    tpu.vector_store %arg11[%c0_46, %c0_47, %c0_48, %c0_49], %63 {strides = array<i32>} : memref<1x16x16x2xf32, #tpu.memory_space<vmem>>, vector<1x16x16x2xf32>,
    return
  }
  func.func @transform_0(%arg0: i32, %arg1: i32) -> (i32, i32, i32, i32) {
    %c0_i32 = arith.constant 0 : i32
    %c0_i32_0 = arith.constant 0 : i32
    %c0_i32_1 = arith.constant 0 : i32
    return %arg0, %arg1, %c0_i32, %c0_i32_0 : i32, i32, i32, i32
  }
  func.func @transform_1(%arg0: i32, %arg1: i32) -> (i32, i32, i32, i32) {
    %c1_i32 = arith.constant 1 : i32
    %0 = arith.addi %arg1, %c1_i32 : i32
    %c16_i32 = arith.constant 16 : i32
    %1 = arith.muli %0, %c16_i32 : i32
    %c0_i32 = arith.constant 0 : i32
    %c0_i32_0 = arith.constant 0 : i32
    %c0_i32_1 = arith.constant 0 : i32
    return %arg0, %1, %c0_i32, %c0_i32_0 : i32, i32, i32, i32
  }
  func.func @transform_2(%arg0: i32, %arg1: i32) -> (i32, i32, i32, i32) {
    %c1_i32 = arith.constant 1 : i32
    %0 = arith.addi %arg1, %c1_i32 : i32
    %c16_i32 = arith.constant 16 : i32
    %1 = arith.muli %0, %c16_i32 : i32
    %c1_i32_0 = arith.constant 1 : i32
    %2 = arith.addi %1, %c1_i32_0 : i32
    %c0_i32 = arith.constant 0 : i32
    %c0_i32_1 = arith.constant 0 : i32
    %c0_i32_2 = arith.constant 0 : i32
    return %arg0, %2, %c0_i32, %c0_i32_1 : i32, i32, i32, i32
  }
  func.func @transform_3(%arg0: i32, %arg1: i32) -> (i32, i32, i32, i32) {
    %c0_i32 = arith.constant 0 : i32
    %c0_i32_0 = arith.constant 0 : i32
    %c0_i32_1 = arith.constant 0 : i32
    return %arg0, %arg1, %c0_i32, %c0_i32_0 : i32, i32, i32, i32
  }
  func.func @transform_4(%arg0: i32, %arg1: i32) -> (i32, i32, i32, i32) {
    %c1_i32 = arith.constant 1 : i32
    %0 = arith.addi %arg1, %c1_i32 : i32
    %c16_i32 = arith.constant 16 : i32
    %1 = arith.muli %0, %c16_i32 : i32
    %c0_i32 = arith.constant 0 : i32
    %c0_i32_0 = arith.constant 0 : i32
    %c0_i32_1 = arith.constant 0 : i32
    return %arg0, %1, %c0_i32, %c0_i32_0 : i32, i32, i32, i32
  }
  func.func @transform_5(%arg0: i32, %arg1: i32) -> (i32, i32, i32, i32) {
    %c1_i32 = arith.constant 1 : i32
    %0 = arith.addi %arg1, %c1_i32 : i32
    %c16_i32 = arith.constant 16 : i32
    %1 = arith.muli %0, %c16_i32 : i32
    %c1_i32_0 = arith.constant 1 : i32
    %2 = arith.addi %1, %c1_i32_0 : i32
    %c0_i32 = arith.constant 0 : i32
    %c0_i32_1 = arith.constant 0 : i32
    %c0_i32_2 = arith.constant 0 : i32
    return %arg0, %2, %c0_i32, %c0_i32_1 : i32, i32, i32, i32
  }
  func.func @transform_6(%arg0: i32, %arg1: i32) -> (i32, i32, i32) {
    %c0_i32 = arith.constant 0 : i32
    %c0_i32_0 = arith.constant 0 : i32
    %c0_i32_1 = arith.constant 0 : i32
    %c0_i32_2 = arith.constant 0 : i32
    return %c0_i32, %c0_i32_0, %c0_i32_1 : i32, i32, i32
  }
  func.func @transform_7(%arg0: i32, %arg1: i32) -> (i32, i32, i32) {
    %c0_i32 = arith.constant 0 : i32
    %c0_i32_0 = arith.constant 0 : i32
    %c0_i32_1 = arith.constant 0 : i32
    %c0_i32_2 = arith.constant 0 : i32
    return %c0_i32, %c0_i32_0, %c0_i32_1 : i32, i32, i32
  }
  func.func @transform_8(%arg0: i32, %arg1: i32) -> (i32, i32) {
    %c0_i32 = arith.constant 0 : i32
    %c0_i32_0 = arith.constant 0 : i32
    %c0_i32_1 = arith.constant 0 : i32
    return %c0_i32, %c0_i32_0 : i32, i32
  }
  func.func @transform_9(%arg0: i32, %arg1: i32) -> (i32, i32, i32, i32) {
    %c0_i32 = arith.constant 0 : i32
    %c0_i32_0 = arith.constant 0 : i32
    %c0_i32_1 = arith.constant 0 : i32
    return %arg0, %arg1, %c0_i32, %c0_i32_0 : i32, i32, i32, i32
  }
}

</mosaic_0001>

<llo_original>
// kernel: tile.9
$region0: #{tile.9}
  %s0 = inlined_call_operand.vmem [shape: f32[4,2], index: 0, kind: input, shape index: {}]
  %s1 = inlined_call_operand.vmem [shape: f32[1,8], index: 1, kind: output, shape index: {}]
  $region1: #{tile.9} parent=0
    #allocation0 [shape = 'u8[4096]{0}', space=vmem, size = 0x1000, scoped, tag = 'scoped mem for output reshape']
    #allocation1 [shape = 'u8[4096]{0}', space=vmem, size = 0x1000, scoped, tag = 'scoped mem for input reshape']
    %s3 = sshllo.u32 0, 4
    %v4 = vld [vmem:[%s0] sm:%s3]
    %5 = vst [vmem:[#allocation1] sm:%s3] %v4
    %v6 = vld [vmem:[#allocation1] sm:$0x1]
    %vm7 = vcmask 15360
    %8 = vst.msk [vmem:[#allocation0] sm:$0x1] %vm7, %v6
    %s9 = scalar_lea.vmem [#allocation1], 3
    %v10 = vld [vmem:[%s9] sm:$0x1]
    %11 = vrot.lane.b32.xlu0 %v10, 6
    %v12 = vpop.permute.xlu0 %11
    %vm13 = vcmask 64560
    %14 = vst.msk [vmem:[#allocation0] sm:$0x1] %vm13, %v12
    %s15 = scalar_lea.vmem [#allocation1], 2
    %v16 = vld [vmem:[%s15] sm:$0x1]
    %17 = vrot.lane.b32.xlu0 %v16, 4
    %v18 = vpop.permute.xlu0 %17
    %vm19 = vcmask 48160
    %20 = vst.msk [vmem:[#allocation0] sm:$0x1] %vm19, %v18
    %s21 = scalar_lea.vmem [#allocation1], 1
    %v22 = vld [vmem:[%s21] sm:$0x1]
    %23 = vrot.lane.b32.xlu0 %v22, 2
    %v24 = vpop.permute.xlu0 %23
    %vm25 = vcmask 31760
    %26 = vst.msk [vmem:[#allocation0] sm:$0x1] %vm25, %v24
    %s28 = sshllo.u32 0, 1
    %v30 = vld [vmem:[#allocation0] sm:%s28]
    %s31 = sshllo.u32 0, 1
    %32 = vst [vmem:[%s1] sm:%s31] %v30

// kernel: tile.8
$region0: #{tile.8}
  #allocation0 [shape = 's32[1]{0}', space=sflag, size = 0x4, scoped, tag = 'scoped memory for tile.8']
  %s0 = inlined_call_operand.vmem [shape: f32[2], index: 0, kind: input, shape index: {}]
  %s1 = inlined_call_operand.vmem [shape: f32[4,2], index: 1, kind: output, shape index: {}]
  // Predicated region
  $region2: #{tile.8} parent=0 // pred_check
    _
  $region3: #{tile.8} parent=0 // pred_check_branch
    %3 = sbr.rel (0) target = $region5
  $region4: #{tile.8} parent=0 // pred_region
    _
  $region5: #{tile.8} parent=0 // pred_fallthru
    _
  %v4 = vld [vmem:[%s0] ss:$0 sm:$0xff]
  %5 = vst [vmem:[%s1] sm:$0xf] %v4

// kernel: upconv_forward.2
$region0: #{upconv_forward.2}
  #allocation0 [shape = 'u32[]', space=smem, size = 0x4, offset = 0x4, fixed_abs, tag = 'smem constant byte address 0x4 - core index']
  #allocation1 [shape = 'u32[144,128]{1,0:T(1,128)}', space=vmem, size = 0x12000, scoped, tag = 'internal scratch']
  %s0 = inlined_call_operand.vmem [shape: f32[2,8,8,4], index: 0, kind: input, shape index: {}]
  %s1 = inlined_call_operand.vmem [shape: f32[4,8], index: 1, kind: input, shape index: {}]
  %s2 = inlined_call_operand.vmem [shape: f32[1,8], index: 2, kind: input, shape index: {}]
  %s3 = inlined_call_operand.vmem [shape: f32[2,8,2,8,4], index: 3, kind: output, shape index: {}]
  %s4 = sld [smem:[#allocation0]]
  $region45: #{upconv_forward.2} parent=0
    _
  %s6 = ssub.s32 1, %s4
  %s7 = scalar_select 0, %s6, %s4
  loop: start=0, step=1, limit=4
  $region2: #{upconv_forward.2} parent=0 // loop_pre_header
    _
  $region3: #{upconv_forward.2} parent=0 // loop_header
    %s9 = sphi 0, %s13
    %p10 = scmp.ge.s32.totalorder %s9, 4
    %s16 = sphi 0, %s28
    %s17 = sphi 0, %s24
    %s18 = sphi 0, %s16
    %s19 = sphi 0, %s17
    %s20 = sphi 0, %s18
    %s21 = sphi 0, %s19
    %s33 = sphi 0, %s35
    %s36 = sphi 0, %s33
    %s37 = sphi 0, %s36
    %s53 = sphi 0, %s37
    %s57 = sphi 0, %s57
    %s59 = sphi 0, %s57
    %s60 = sphi 0, %s59
    %s74 = sphi 0, %s60
    %s78 = sphi 0, %s78
    %s80 = sphi 0, %s78
    %s81 = sphi 0, %s80
    %s95 = sphi 0, %s81
    %s103 = sphi 0, %s105
    %s106 = sphi 0, %s103
    %s107 = sphi 0, %s106
    %s123 = sphi 0, %s107
  $region4: #{upconv_forward.2} parent=0 // loop_header_branch
    %12 = sbr.rel (%p10) target = $region8
  $region5: #{upconv_forward.2} parent=0 // loop_body
    %s14 = ssub.s32 %s9, 1
    %s15 = ssub.s32 %s9, 2
    %s22 = sadd.s32 1, %s17
    %p23 = scmp.ge.s32.totalorder %s22, 1
    %s24 = scalar_select %p23, 0, %s22
    %s25 = sadd.s32 1, %s16
    %s26 = scalar_select %p23, %s25, %s16
    %p27 = scmp.ge.s32.totalorder %s26, 2
    %s28 = scalar_select %p27, 0, %s26
    %s29 = ssub.s32 %s16, %s28
    %s30 = ssub.s32 %s17, %s24
    %s31 = sor.u32 %s29, %s30
    %p32 = scmp.eq.s32.totalorder %s31, 0
    %s34 = sadd.s32 %s33, 1
    %s35 = scalar_select %p32, %s33, %s34
    %p38 = pneg %p32
    %p39 = scmp.eq.s32.totalorder %s9, 1
    %p40 = por %p38, %p39
    %p41 = scmp.ne.s32.totalorder %s33, %s36
    %p42 = scmp.eq.s32.totalorder %s9, 0
    %p43 = por %p41, %p42
    %p44 = scmp.ne.s32.totalorder %s33, %s36
    %p45 = scmp.eq.s32.totalorder %s14, 1
    %p46 = por %p44, %p45
    %p47 = scmp.ne.s32.totalorder %s36, %s37
    %p48 = scmp.eq.s32.totalorder %s14, 0
    %p49 = por %p47, %p48
    %p50 = scmp.ne.s32.totalorder %s36, %s37
    %p51 = scmp.eq.s32.totalorder %s15, 1
    %p52 = por %p50, %p51
    %p54 = scmp.ne.s32.totalorder %s37, %s53
    %p55 = scmp.eq.s32.totalorder %s15, 0
    %p56 = por %p54, %p55
    %s58 = sadd.s32 %s57, 1
    %p61 = scmp.eq.s32.totalorder %s9, 1
    %p62 = scmp.ne.s32.totalorder %s57, %s59
    %p63 = scmp.eq.s32.totalorder %s9, 0
    %p64 = por %p62, %p63
    %p65 = scmp.ne.s32.totalorder %s57, %s59
    %p66 = scmp.eq.s32.totalorder %s14, 1
    %p67 = por %p65, %p66
    %p68 = scmp.ne.s32.totalorder %s59, %s60
    %p69 = scmp.eq.s32.totalorder %s14, 0
    %p70 = por %p68, %p69
    %p71 = scmp.ne.s32.totalorder %s59, %s60
    %p72 = scmp.eq.s32.totalorder %s15, 1
    %p73 = por %p71, %p72
    %p75 = scmp.ne.s32.totalorder %s60, %s74
    %p76 = scmp.eq.s32.totalorder %s15, 0
    %p77 = por %p75, %p76
    %s79 = sadd.s32 %s78, 1
    %p82 = scmp.eq.s32.totalorder %s9, 1
    %p83 = scmp.ne.s32.totalorder %s78, %s80
    %p84 = scmp.eq.s32.totalorder %s9, 0
    %p85 = por %p83, %p84
    %p86 = scmp.ne.s32.totalorder %s78, %s80
    %p87 = scmp.eq.s32.totalorder %s14, 1
    %p88 = por %p86, %p87
    %p89 = scmp.ne.s32.totalorder %s80, %s81
    %p90 = scmp.eq.s32.totalorder %s14, 0
    %p91 = por %p89, %p90
    %p92 = scmp.ne.s32.totalorder %s80, %s81
    %p93 = scmp.eq.s32.totalorder %s15, 1
    %p94 = por %p92, %p93
    %p96 = scmp.ne.s32.totalorder %s81, %s95
    %p97 = scmp.eq.s32.totalorder %s15, 0
    %p98 = por %p96, %p97
    %s99 = ssub.s32 %s16, %s28
    %s100 = ssub.s32 %s17, %s24
    %s101 = sor.u32 %s99, %s100
    %p102 = scmp.eq.s32.totalorder %s101, 0
    %s104 = sadd.s32 %s103, 1
    %s105 = scalar_select %p102, %s103, %s104
    %p108 = pneg %p102
    %p109 = scmp.eq.s32.totalorder %s9, 1
    %p110 = por %p108, %p109
    %p111 = scmp.ne.s32.totalorder %s103, %s106
    %p112 = scmp.eq.s32.totalorder %s9, 0
    %p113 = por %p111, %p112
    %p114 = scmp.ne.s32.totalorder %s103, %s106
    %p115 = scmp.eq.s32.totalorder %s14, 1
    %p116 = por %p114, %p115
    %p117 = scmp.ne.s32.totalorder %s106, %s107
    %p118 = scmp.eq.s32.totalorder %s14, 0
    %p119 = por %p117, %p118
    %p120 = scmp.ne.s32.totalorder %s106, %s107
    %p121 = scmp.eq.s32.totalorder %s15, 1
    %p122 = por %p120, %p121
    %p124 = scmp.ne.s32.totalorder %s107, %s123
    %p125 = scmp.eq.s32.totalorder %s15, 0
    %p126 = por %p124, %p125
    %p127 = scmp.le.s32.totalorder 1, %s9
    %p128 = scmp.lt.s32.totalorder %s9, 3
    %p129 = pnand %p127, %p128
    %p130 = pneg %p129
    // Predicated region
    $region9: #{upconv_forward.2} parent=5 // pred_check
      _
    $region10: #{upconv_forward.2} parent=5 // pred_check_branch
      %132 = sbr.rel (%p129) target = $region12
    $region11: #{upconv_forward.2} parent=5 // pred_region
      %s133 = ssub.s32 %s9, 1
      // Predicated region
      $region13: #{upconv_forward.2} parent=11 // pred_check
        %p134 = pneg %p70
      $region14: #{upconv_forward.2} parent=11 // pred_check_branch
        %136 = sbr.rel (%p134) target = $region16
      $region15: #{upconv_forward.2} parent=11 // pred_region
        _
      $region16: #{upconv_forward.2} parent=11 // pred_fallthru
        _
      // Predicated region
      $region17: #{upconv_forward.2} parent=11 // pred_check
        %p137 = pneg %p91
      $region18: #{upconv_forward.2} parent=11 // pred_check_branch
        %139 = sbr.rel (%p137) target = $region20
      $region19: #{upconv_forward.2} parent=11 // pred_region
        _
      $region20: #{upconv_forward.2} parent=11 // pred_fallthru
        _
    $region12: #{upconv_forward.2} parent=5 // pred_fallthru
      _
    %p140 = scmp.lt.s32.totalorder %s9, 2
    // Predicated region
    $region21: #{upconv_forward.2} parent=5 // pred_check
      %p141 = pneg %p140
    $region22: #{upconv_forward.2} parent=5 // pred_check_branch
      %143 = sbr.rel (%p141) target = $region24
    $region23: #{upconv_forward.2} parent=5 // pred_region
      // Predicated region
      $region25: #{upconv_forward.2} parent=23 // pred_check
        %p144 = pneg %p43
      $region26: #{upconv_forward.2} parent=23 // pred_check_branch
        %146 = sbr.rel (%p144) target = $region28
      $region27: #{upconv_forward.2} parent=23 // pred_region
        %s147 = smul.u32 8, %s17
        %p148 = scmp.lt.s32.totalorder %s16, 1
        %s149 = scalar_select %p148, %s16, 1
        %p150 = scmp.lt.s32.totalorder %s147, 7
        %s151 = scalar_select %p150, %s147, 7
        %s152 = smul.addr %s149, 8
        %s153 = sadd.s32 %s151, %s152
        %s154 = smul.addr %s153, 8
        %s155 = scalar_lea.vmem %s0, %s154
        %s156 = smul.u32 8, %s17
      $region28: #{upconv_forward.2} parent=23 // pred_fallthru
        _
    $region24: #{upconv_forward.2} parent=5 // pred_fallthru
      _
    %p157 = scmp.le.s32.totalorder 1, %s9
    %p158 = scmp.lt.s32.totalorder %s9, 3
    %p159 = pnand %p157, %p158
    %p160 = pneg %p159
    // Predicated region
    $region29: #{upconv_forward.2} parent=5 // pred_check
      _
    $region30: #{upconv_forward.2} parent=5 // pred_check_branch
      %162 = sbr.rel (%p159) target = $region32
    $region31: #{upconv_forward.2} parent=5 // pred_region
      %s163 = ssub.s32 %s9, 1
      %s164 = smul.u32 8, %s19
      %p165 = scmp.lt.s32.totalorder %s18, 1
      %s166 = scalar_select %p165, %s18, 1
      %p167 = scmp.lt.s32.totalorder %s164, 7
      %s168 = scalar_select %p167, %s164, 7
      %s169 = smul.addr %s166, 8
      %s170 = sadd.s32 %s168, %s169
      %s171 = smul.addr %s170, 8
      %s172 = scalar_lea.vmem %s0, %s171
      %p173 = pneg %p49
      %p174 = pneg %p46
      %p175 = pneg %p70
      %p176 = pneg %p67
      %p177 = pneg %p91
      %p178 = pneg %p88
      %p179 = pneg %p119
      %p180 = pneg %p116
      %s181 = smul.u32 8, %s19
      %p182 = scmp.lt.s32.totalorder %s18, 1
      %s183 = scalar_select %p182, %s18, 1
      %p184 = scmp.lt.s32.totalorder %s181, 7
      %s185 = scalar_select %p184, %s181, 7
      %s186 = smul.addr %s185, 2
      %s187 = smul.addr %s183, 16
      %s188 = sadd.s32 %s186, %s187
      %s189 = smul.addr %s188, 8
      %s190 = scalar_lea.vmem %s3, %s189
      %s191 = smul.u32 8, %s19
      %p192 = scmp.lt.s32.totalorder %s18, 1
      %s193 = scalar_select %p192, %s18, 1
      %p194 = scmp.lt.s32.totalorder %s191, 7
      %s195 = scalar_select %p194, %s191, 7
      %s196 = smul.addr %s193, 8
      %s197 = sadd.s32 %s195, %s196
      %s198 = smul.addr %s197, 8
      %s199 = scalar_lea.vmem %s0, %s198
      %s200 = smul.u32 8, %s19
      %s201 = smul.u32 8, %s19
      %p202 = scmp.lt.s32.totalorder %s18, 1
      %s203 = scalar_select %p202, %s18, 1
      %p204 = scmp.lt.s32.totalorder %s201, 7
      %s205 = scalar_select %p204, %s201, 7
      %s206 = smul.addr %s205, 2
      %s207 = smul.addr %s203, 16
      %s208 = sadd.s32 %s206, %s207
      %s209 = smul.addr %s208, 8
      %s210 = scalar_lea.vmem %s3, %s209
      %s211 = smul.u32 8, %s19
      %v212 = vld [vmem:[%s199] sm:$0xff]
      %v213 = vld [vmem:[%s199 + $0x8] sm:$0xff]
      %v214 = vld [vmem:[%s199 + $0x10] sm:$0xff]
      %v215 = vld [vmem:[%s199 + $0x18] sm:$0xff]
      %v216 = vld [vmem:[%s199 + $0x20] sm:$0xff]
      %v217 = vld [vmem:[%s199 + $0x28] sm:$0xff]
      %v218 = vld [vmem:[%s199 + $0x30] sm:$0xff]
      %v219 = vld [vmem:[%s199 + $0x38] sm:$0xff]
      %v220 = vld [vmem:[%s1] sm:$0xf]
      %v221 = vld [vmem:[%s2] sm:$0x1]
      %v223 = vlaneseq
      %v224 = vshrl.u32 %v223, 7
      %v225 = vsub.s32 0, %v224
      %v226 = vrot.slane %v221, %v225
      %vm228 = vcmask 31744
      %v230 = vsel %vm228, %v212, 0
      %v233 = vsel %vm228, %v213, 0
      %v236 = vsel %vm228, %v214, 0
      %v239 = vsel %vm228, %v215, 0
      %v242 = vsel %vm228, %v216, 0
      %v245 = vsel %vm228, %v217, 0
      %v248 = vsel %vm228, %v218, 0
      %v251 = vsel %vm228, %v219, 0
      %vm253 = vcmask 1043456
      %v255 = vsel %vm253, %v220, 0
      %257 = vmatprep.subr.mxu0 0.0
      %258 = vmatpush1.msra.mxu0 %v255
      %259 = vmatprep.subr.mxu0 0.0
      %260 = vmatpush1.msra.mxu0 0.0
      %261 = vmatprep.subr.mxu0 0.0
      %262 = vmatpush1.msra.mxu0 0.0
      %263 = vmatprep.subr.mxu0 0.0
      %264 = vmatpush1.msra.mxu0 0.0
      %265 = vmatprep.subr.mxu0 0.0
      %266 = vmatpush1.msra.mxu0 0.0
      %267 = vmatprep.subr.mxu0 0.0
      %268 = vmatpush1.msra.mxu0 0.0
      %269 = vmatprep.subr.mxu0 0.0
      %270 = vmatpush1.msra.mxu0 0.0
      %271 = vmatprep.subr.mxu0 0.0
      %272 = vmatpush1.msra.mxu0 0.0
      %273 = vmatprep.subr.mxu0 0.0
      %274 = vmatpush1.msra.mxu0 0.0
      %275 = vmatprep.subr.mxu0 0.0
      %276 = vmatpush1.msra.mxu0 0.0
      %277 = vmatprep.subr.mxu0 0.0
      %278 = vmatpush1.msra.mxu0 0.0
      %279 = vmatprep.subr.mxu0 0.0
      %280 = vmatpush1.msra.mxu0 0.0
      %281 = vmatprep.subr.mxu0 0.0
      %282 = vmatpush1.msra.mxu0 0.0
      %283 = vmatprep.subr.mxu0 0.0
      %284 = vmatpush1.msra.mxu0 0.0
      %285 = vmatprep.subr.mxu0 0.0
      %286 = vmatpush1.msra.mxu0 0.0
      %287 = vmatprep.subr.mxu0 0.0
      %288 = vmatpush1.msra.mxu0 0.0
      %289 = vmatprep.subr.mxu0 0.0
      %290 = vmatpush1.msra.mxu0 0.0
      %291 = vmatprep.subr.mxu0 0.0
      %292 = vmatpush1.msra.mxu0 0.0
      %293 = vmatprep.subr.mxu0 0.0
      %294 = vmatpush1.msra.mxu0 0.0
      %295 = vmatprep.subr.mxu0 0.0
      %296 = vmatpush1.msra.mxu0 0.0
      %297 = vmatprep.subr.mxu0 0.0
      %298 = vmatpush1.msra.mxu0 0.0
      %299 = vmatprep.subr.mxu0 0.0
      %300 = vmatpush1.msra.mxu0 0.0
      %301 = vmatprep.subr.mxu0 0.0
      %302 = vmatpush1.msra.mxu0 0.0
      %303 = vmatprep.subr.mxu0 0.0
      %304 = vmatpush1.msra.mxu0 0.0
      %305 = vmatprep.subr.mxu0 0.0
      %306 = vmatpush1.msra.mxu0 0.0
      %307 = vmatprep.subr.mxu0 0.0
      %308 = vmatpush1.msra.mxu0 0.0
      %309 = vmatprep.subr.mxu0 0.0
      %310 = vmatpush1.msra.mxu0 0.0
      %311 = vmatprep.subr.mxu0 0.0
      %312 = vmatpush1.msra.mxu0 0.0
      %313 = vmatprep.subr.mxu0 0.0
      %314 = vmatpush1.msra.mxu0 0.0
      %315 = vmatprep.subr.mxu0 0.0
      %316 = vmatpush1.msra.mxu0 0.0
      %317 = vmatprep.subr.mxu0 0.0
      %318 = vmatpush1.msra.mxu0 0.0
      %319 = vmatprep.subr.mxu0 0.0
      %320 = vmatpush1.msra.mxu0 0.0
      %321 = vmatprep.mubr.f32.mxu0 0.0
      %322 = vmatmul.mubr.f32.gmra.mrb[0].mxu0 %v230
      %v323 = vpop.f32.mrb[0].mxu0
      %v324 = vadd.f32 %v226, %v323
      %v325 = vpop.f32.mrb[0].mxu0
      %326 = vmatprep.mubr.f32.mxu0 0.0
      %327 = vmatmul.mubr.f32.gmra.mrb[0].mxu0 %v233
      %v328 = vpop.f32.mrb[0].mxu0
      %v329 = vadd.f32 %v226, %v328
      %v330 = vpop.f32.mrb[0].mxu0
      %331 = vmatprep.mubr.f32.mxu0 0.0
      %332 = vmatmul.mubr.f32.gmra.mrb[0].mxu0 %v236
      %v333 = vpop.f32.mrb[0].mxu0
      %v334 = vadd.f32 %v226, %v333
      %v335 = vpop.f32.mrb[0].mxu0
      %336 = vmatprep.mubr.f32.mxu0 0.0
      %337 = vmatmul.mubr.f32.gmra.mrb[0].mxu0 %v239
      %v338 = vpop.f32.mrb[0].mxu0
      %v339 = vadd.f32 %v226, %v338
      %v340 = vpop.f32.mrb[0].mxu0
      %341 = vmatprep.mubr.f32.mxu0 0.0
      %342 = vmatmul.mubr.f32.gmra.mrb[0].mxu0 %v242
      %v343 = vpop.f32.mrb[0].mxu0
      %v344 = vadd.f32 %v226, %v343
      %v345 = vpop.f32.mrb[0].mxu0
      %346 = vmatprep.mubr.f32.mxu0 0.0
      %347 = vmatmul.mubr.f32.gmra.mrb[0].mxu0 %v245
      %v348 = vpop.f32.mrb[0].mxu0
      %v349 = vadd.f32 %v226, %v348
      %v350 = vpop.f32.mrb[0].mxu0
      %351 = vmatprep.mubr.f32.mxu0 0.0
      %352 = vmatmul.mubr.f32.gmra.mrb[0].mxu0 %v248
      %v353 = vpop.f32.mrb[0].mxu0
      %v354 = vadd.f32 %v226, %v353
      %v355 = vpop.f32.mrb[0].mxu0
      %356 = vmatprep.mubr.f32.mxu0 0.0
      %357 = vmatmul.mubr.f32.gmra.mrb[0].mxu0 %v251
      %v358 = vpop.f32.mrb[0].mxu0
      %v359 = vadd.f32 %v226, %v358
      %v360 = vpop.f32.mrb[0].mxu0
      %361 = vdwg.mxu0
      %362 = vst.msk [vmem:[%s210] sm:$0xff] %vm228, %v324
      %363 = vst.msk [vmem:[%s210 + $0x10] sm:$0xff] %vm228, %v329
      %364 = vst.msk [vmem:[%s210 + $0x20] sm:$0xff] %vm228, %v334
      %365 = vst.msk [vmem:[%s210 + $0x30] sm:$0xff] %vm228, %v339
      %366 = vst.msk [vmem:[%s210 + $0x40] sm:$0xff] %vm228, %v344
      %367 = vst.msk [vmem:[%s210 + $0x50] sm:$0xff] %vm228, %v349
      %368 = vst.msk [vmem:[%s210 + $0x60] sm:$0xff] %vm228, %v354
      %369 = vst.msk [vmem:[%s210 + $0x70] sm:$0xff] %vm228, %v359
      %378 = vrot.lane.b32.xlu0 %v324, 124
      %v379 = vpop.permute.xlu0 %378
      %380 = vrot.lane.b32.xlu0 %v329, 124
      %v381 = vpop.permute.xlu0 %380
      %382 = vrot.lane.b32.xlu0 %v334, 124
      %v383 = vpop.permute.xlu0 %382
      %384 = vrot.lane.b32.xlu0 %v339, 124
      %v385 = vpop.permute.xlu0 %384
      %386 = vrot.lane.b32.xlu0 %v344, 124
      %v387 = vpop.permute.xlu0 %386
      %388 = vrot.lane.b32.xlu0 %v349, 124
      %v389 = vpop.permute.xlu0 %388
      %390 = vrot.lane.b32.xlu0 %v354, 124
      %v391 = vpop.permute.xlu0 %390
      %392 = vrot.lane.b32.xlu0 %v359, 124
      %v393 = vpop.permute.xlu0 %392
      %s402 = scalar_lea.vmem %s210, 8
      %403 = vst.msk [vmem:[%s402] sm:$0xff] %vm228, %v379
      %404 = vst.msk [vmem:[%s402 + $0x10] sm:$0xff] %vm228, %v381
      %405 = vst.msk [vmem:[%s402 + $0x20] sm:$0xff] %vm228, %v383
      %406 = vst.msk [vmem:[%s402 + $0x30] sm:$0xff] %vm228, %v385
      %407 = vst.msk [vmem:[%s402 + $0x40] sm:$0xff] %vm228, %v387
      %408 = vst.msk [vmem:[%s402 + $0x50] sm:$0xff] %vm228, %v389
      %409 = vst.msk [vmem:[%s402 + $0x60] sm:$0xff] %vm228, %v391
      %410 = vst.msk [vmem:[%s402 + $0x70] sm:$0xff] %vm228, %v393
      %s411 = smul.u32 8, %s19
      %p412 = scmp.lt.s32.totalorder %s18, 1
      %s413 = scalar_select %p412, %s18, 1
      %p414 = scmp.lt.s32.totalorder %s411, 7
      %s415 = scalar_select %p414, %s411, 7
      %s416 = smul.addr %s415, 2
      %s417 = smul.addr %s413, 16
      %s418 = sadd.s32 %s416, %s417
      %s419 = smul.addr %s418, 8
      %s420 = scalar_lea.vmem %s3, %s419
      // Predicated region
      $region33: #{upconv_forward.2} parent=31 // pred_check
        %p421 = pneg %p116
      $region34: #{upconv_forward.2} parent=31 // pred_check_branch
        %423 = sbr.rel (%p421) target = $region36
      $region35: #{upconv_forward.2} parent=31 // pred_region
        %s424 = smul.u32 8, %s19
      $region36: #{upconv_forward.2} parent=31 // pred_fallthru
        _
    $region32: #{upconv_forward.2} parent=5 // pred_fallthru
      _
    %p425 = scmp.le.s32.totalorder 2, %s9
    // Predicated region
    $region37: #{upconv_forward.2} parent=5 // pred_check
      %p426 = pneg %p425
    $region38: #{upconv_forward.2} parent=5 // pred_check_branch
      %428 = sbr.rel (%p426) target = $region40
    $region39: #{upconv_forward.2} parent=5 // pred_region
      %s429 = ssub.s32 %s9, 2
      // Predicated region
      $region41: #{upconv_forward.2} parent=39 // pred_check
        %p430 = pneg %p122
      $region42: #{upconv_forward.2} parent=39 // pred_check_branch
        %432 = sbr.rel (%p430) target = $region44
      $region43: #{upconv_forward.2} parent=39 // pred_region
        %s433 = smul.u32 8, %s21
        %p434 = scmp.lt.s32.totalorder %s20, 1
        %s435 = scalar_select %p434, %s20, 1
        %p436 = scmp.lt.s32.totalorder %s433, 7
        %s437 = scalar_select %p436, %s433, 7
        %s438 = smul.addr %s437, 2
        %s439 = smul.addr %s435, 16
        %s440 = sadd.s32 %s438, %s439
        %s441 = smul.addr %s440, 8
        %s442 = scalar_lea.vmem %s3, %s441
      $region44: #{upconv_forward.2} parent=39 // pred_fallthru
        _
    $region40: #{upconv_forward.2} parent=5 // pred_fallthru
      _
  $region6: #{upconv_forward.2} parent=0 // loop_footer
    %s13 = sadd.s32 1, %s9
  $region7: #{upconv_forward.2} parent=0 // loop_footer_branch
    %8 = sbr.rel target = $region3
  $region8: #{upconv_forward.2} parent=0 // loop_exit
    _

// kernel: upconv_forward.3
$region0: #{upconv_forward.3}
  #allocation0 [shape = 'u32[]', space=smem, size = 0x4, offset = 0x4, fixed_abs, tag = 'smem constant byte address 0x4 - core index']
  #allocation1 [shape = 'u32[144,128]{1,0:T(1,128)}', space=vmem, size = 0x12000, scoped, tag = 'internal scratch']
  %s0 = inlined_call_operand.vmem [shape: f32[2,18,18,4], index: 0, kind: input, shape index: {}, may-alias: {0,1,2}]
  %s1 = inlined_call_operand.vmem [shape: f32[2,18,18,4], index: 1, kind: input, shape index: {}, may-alias: {0,1,2}]
  %s2 = inlined_call_operand.vmem [shape: f32[2,18,18,4], index: 2, kind: input, shape index: {}, may-alias: {0,1,2}]
  %s3 = inlined_call_operand.vmem [shape: f32[2,18,18,2], index: 3, kind: input, shape index: {}, may-alias: {3,4,5}]
  %s4 = inlined_call_operand.vmem [shape: f32[2,18,18,2], index: 4, kind: input, shape index: {}, may-alias: {3,4,5}]
  %s5 = inlined_call_operand.vmem [shape: f32[2,18,18,2], index: 5, kind: input, shape index: {}, may-alias: {3,4,5}]
  %s6 = inlined_call_operand.vmem [shape: f32[3,4,6], index: 6, kind: input, shape index: {}]
  %s7 = inlined_call_operand.vmem [shape: f32[3,2,6], index: 7, kind: input, shape index: {}]
  %s8 = inlined_call_operand.vmem [shape: f32[1,2], index: 8, kind: input, shape index: {}]
  %s9 = inlined_call_operand.vmem [shape: f32[2,16,16,2], index: 9, kind: output, shape index: {}]
  %s10 = sld [smem:[#allocation0]]
  $region69: #{upconv_forward.3} parent=0
    _
  %s12 = ssub.s32 1, %s10
  %s13 = scalar_select 0, %s12, %s10
  loop: start=0, step=1, limit=4
  $region2: #{upconv_forward.3} parent=0 // loop_pre_header
    _
  $region3: #{upconv_forward.3} parent=0 // loop_header
    %s15 = sphi 0, %s19
    %p16 = scmp.ge.s32.totalorder %s15, 4
    %s22 = sphi 0, %s34
    %s23 = sphi 0, %s30
    %s24 = sphi 0, %s22
    %s25 = sphi 0, %s23
    %s26 = sphi 0, %s24
    %s27 = sphi 0, %s25
    %s39 = sphi 0, %s41
    %s42 = sphi 0, %s39
    %s43 = sphi 0, %s42
    %s59 = sphi 0, %s43
    %s71 = sphi 0, %s73
    %s74 = sphi 0, %s71
    %s75 = sphi 0, %s74
    %s91 = sphi 0, %s75
    %s105 = sphi 0, %s107
    %s108 = sphi 0, %s105
    %s109 = sphi 0, %s108
    %s125 = sphi 0, %s109
    %s133 = sphi 0, %s135
    %s136 = sphi 0, %s133
    %s137 = sphi 0, %s136
    %s153 = sphi 0, %s137
    %s165 = sphi 0, %s167
    %s168 = sphi 0, %s165
    %s169 = sphi 0, %s168
    %s185 = sphi 0, %s169
    %s199 = sphi 0, %s201
    %s202 = sphi 0, %s199
    %s203 = sphi 0, %s202
    %s219 = sphi 0, %s203
    %s223 = sphi 0, %s223
    %s225 = sphi 0, %s223
    %s226 = sphi 0, %s225
    %s240 = sphi 0, %s226
    %s244 = sphi 0, %s244
    %s246 = sphi 0, %s244
    %s247 = sphi 0, %s246
    %s261 = sphi 0, %s247
    %s265 = sphi 0, %s265
    %s267 = sphi 0, %s265
    %s268 = sphi 0, %s267
    %s282 = sphi 0, %s268
    %s290 = sphi 0, %s292
    %s293 = sphi 0, %s290
    %s294 = sphi 0, %s293
    %s310 = sphi 0, %s294
  $region4: #{upconv_forward.3} parent=0 // loop_header_branch
    %18 = sbr.rel (%p16) target = $region8
  $region5: #{upconv_forward.3} parent=0 // loop_body
    %s20 = ssub.s32 %s15, 1
    %s21 = ssub.s32 %s15, 2
    %s28 = sadd.s32 1, %s23
    %p29 = scmp.ge.s32.totalorder %s28, 1
    %s30 = scalar_select %p29, 0, %s28
    %s31 = sadd.s32 1, %s22
    %s32 = scalar_select %p29, %s31, %s22
    %p33 = scmp.ge.s32.totalorder %s32, 2
    %s34 = scalar_select %p33, 0, %s32
    %s35 = ssub.s32 %s22, %s34
    %s36 = ssub.s32 %s23, %s30
    %s37 = sor.u32 %s35, %s36
    %p38 = scmp.eq.s32.totalorder %s37, 0
    %s40 = sadd.s32 %s39, 1
    %s41 = scalar_select %p38, %s39, %s40
    %p44 = pneg %p38
    %p45 = scmp.eq.s32.totalorder %s15, 1
    %p46 = por %p44, %p45
    %p47 = scmp.ne.s32.totalorder %s39, %s42
    %p48 = scmp.eq.s32.totalorder %s15, 0
    %p49 = por %p47, %p48
    %p50 = scmp.ne.s32.totalorder %s39, %s42
    %p51 = scmp.eq.s32.totalorder %s20, 1
    %p52 = por %p50, %p51
    %p53 = scmp.ne.s32.totalorder %s42, %s43
    %p54 = scmp.eq.s32.totalorder %s20, 0
    %p55 = por %p53, %p54
    %p56 = scmp.ne.s32.totalorder %s42, %s43
    %p57 = scmp.eq.s32.totalorder %s21, 1
    %p58 = por %p56, %p57
    %p60 = scmp.ne.s32.totalorder %s43, %s59
    %p61 = scmp.eq.s32.totalorder %s21, 0
    %p62 = por %p60, %p61
    %s63 = sadd.s32 %s23, 1
    %s64 = smul.u32 %s63, 16
    %s65 = sadd.s32 %s30, 1
    %s66 = smul.u32 %s65, 16
    %s67 = ssub.s32 %s22, %s34
    %s68 = ssub.s32 %s64, %s66
    %s69 = sor.u32 %s67, %s68
    %p70 = scmp.eq.s32.totalorder %s69, 0
    %s72 = sadd.s32 %s71, 1
    %s73 = scalar_select %p70, %s71, %s72
    %p76 = pneg %p70
    %p77 = scmp.eq.s32.totalorder %s15, 1
    %p78 = por %p76, %p77
    %p79 = scmp.ne.s32.totalorder %s71, %s74
    %p80 = scmp.eq.s32.totalorder %s15, 0
    %p81 = por %p79, %p80
    %p82 = scmp.ne.s32.totalorder %s71, %s74
    %p83 = scmp.eq.s32.totalorder %s20, 1
    %p84 = por %p82, %p83
    %p85 = scmp.ne.s32.totalorder %s74, %s75
    %p86 = scmp.eq.s32.totalorder %s20, 0
    %p87 = por %p85, %p86
    %p88 = scmp.ne.s32.totalorder %s74, %s75
    %p89 = scmp.eq.s32.totalorder %s21, 1
    %p90 = por %p88, %p89
    %p92 = scmp.ne.s32.totalorder %s75, %s91
    %p93 = scmp.eq.s32.totalorder %s21, 0
    %p94 = por %p92, %p93
    %s95 = sadd.s32 %s23, 1
    %s96 = smul.u32 %s95, 16
    %s97 = sadd.s32 %s96, 1
    %s98 = sadd.s32 %s30, 1
    %s99 = smul.u32 %s98, 16
    %s100 = sadd.s32 %s99, 1
    %s101 = ssub.s32 %s22, %s34
    %s102 = ssub.s32 %s97, %s100
    %s103 = sor.u32 %s101, %s102
    %p104 = scmp.eq.s32.totalorder %s103, 0
    %s106 = sadd.s32 %s105, 1
    %s107 = scalar_select %p104, %s105, %s106
    %p110 = pneg %p104
    %p111 = scmp.eq.s32.totalorder %s15, 1
    %p112 = por %p110, %p111
    %p113 = scmp.ne.s32.totalorder %s105, %s108
    %p114 = scmp.eq.s32.totalorder %s15, 0
    %p115 = por %p113, %p114
    %p116 = scmp.ne.s32.totalorder %s105, %s108
    %p117 = scmp.eq.s32.totalorder %s20, 1
    %p118 = por %p116, %p117
    %p119 = scmp.ne.s32.totalorder %s108, %s109
    %p120 = scmp.eq.s32.totalorder %s20, 0
    %p121 = por %p119, %p120
    %p122 = scmp.ne.s32.totalorder %s108, %s109
    %p123 = scmp.eq.s32.totalorder %s21, 1
    %p124 = por %p122, %p123
    %p126 = scmp.ne.s32.totalorder %s109, %s125
    %p127 = scmp.eq.s32.totalorder %s21, 0
    %p128 = por %p126, %p127
    %s129 = ssub.s32 %s22, %s34
    %s130 = ssub.s32 %s23, %s30
    %s131 = sor.u32 %s129, %s130
    %p132 = scmp.eq.s32.totalorder %s131, 0
    %s134 = sadd.s32 %s133, 1
    %s135 = scalar_select %p132, %s133, %s134
    %p138 = pneg %p132
    %p139 = scmp.eq.s32.totalorder %s15, 1
    %p140 = por %p138, %p139
    %p141 = scmp.ne.s32.totalorder %s133, %s136
    %p142 = scmp.eq.s32.totalorder %s15, 0
    %p143 = por %p141, %p142
    %p144 = scmp.ne.s32.totalorder %s133, %s136
    %p145 = scmp.eq.s32.totalorder %s20, 1
    %p146 = por %p144, %p145
    %p147 = scmp.ne.s32.totalorder %s136, %s137
    %p148 = scmp.eq.s32.totalorder %s20, 0
    %p149 = por %p147, %p148
    %p150 = scmp.ne.s32.totalorder %s136, %s137
    %p151 = scmp.eq.s32.totalorder %s21, 1
    %p152 = por %p150, %p151
    %p154 = scmp.ne.s32.totalorder %s137, %s153
    %p155 = scmp.eq.s32.totalorder %s21, 0
    %p156 = por %p154, %p155
    %s157 = sadd.s32 %s23, 1
    %s158 = smul.u32 %s157, 16
    %s159 = sadd.s32 %s30, 1
    %s160 = smul.u32 %s159, 16
    %s161 = ssub.s32 %s22, %s34
    %s162 = ssub.s32 %s158, %s160
    %s163 = sor.u32 %s161, %s162
    %p164 = scmp.eq.s32.totalorder %s163, 0
    %s166 = sadd.s32 %s165, 1
    %s167 = scalar_select %p164, %s165, %s166
    %p170 = pneg %p164
    %p171 = scmp.eq.s32.totalorder %s15, 1
    %p172 = por %p170, %p171
    %p173 = scmp.ne.s32.totalorder %s165, %s168
    %p174 = scmp.eq.s32.totalorder %s15, 0
    %p175 = por %p173, %p174
    %p176 = scmp.ne.s32.totalorder %s165, %s168
    %p177 = scmp.eq.s32.totalorder %s20, 1
    %p178 = por %p176, %p177
    %p179 = scmp.ne.s32.totalorder %s168, %s169
    %p180 = scmp.eq.s32.totalorder %s20, 0
    %p181 = por %p179, %p180
    %p182 = scmp.ne.s32.totalorder %s168, %s169
    %p183 = scmp.eq.s32.totalorder %s21, 1
    %p184 = por %p182, %p183
    %p186 = scmp.ne.s32.totalorder %s169, %s185
    %p187 = scmp.eq.s32.totalorder %s21, 0
    %p188 = por %p186, %p187
    %s189 = sadd.s32 %s23, 1
    %s190 = smul.u32 %s189, 16
    %s191 = sadd.s32 %s190, 1
    %s192 = sadd.s32 %s30, 1
    %s193 = smul.u32 %s192, 16
    %s194 = sadd.s32 %s193, 1
    %s195 = ssub.s32 %s22, %s34
    %s196 = ssub.s32 %s191, %s194
    %s197 = sor.u32 %s195, %s196
    %p198 = scmp.eq.s32.totalorder %s197, 0
    %s200 = sadd.s32 %s199, 1
    %s201 = scalar_select %p198, %s199, %s200
    %p204 = pneg %p198
    %p205 = scmp.eq.s32.totalorder %s15, 1
    %p206 = por %p204, %p205
    %p207 = scmp.ne.s32.totalorder %s199, %s202
    %p208 = scmp.eq.s32.totalorder %s15, 0
    %p209 = por %p207, %p208
    %p210 = scmp.ne.s32.totalorder %s199, %s202
    %p211 = scmp.eq.s32.totalorder %s20, 1
    %p212 = por %p210, %p211
    %p213 = scmp.ne.s32.totalorder %s202, %s203
    %p214 = scmp.eq.s32.totalorder %s20, 0
    %p215 = por %p213, %p214
    %p216 = scmp.ne.s32.totalorder %s202, %s203
    %p217 = scmp.eq.s32.totalorder %s21, 1
    %p218 = por %p216, %p217
    %p220 = scmp.ne.s32.totalorder %s203, %s219
    %p221 = scmp.eq.s32.totalorder %s21, 0
    %p222 = por %p220, %p221
    %s224 = sadd.s32 %s223, 1
    %p227 = scmp.eq.s32.totalorder %s15, 1
    %p228 = scmp.ne.s32.totalorder %s223, %s225
    %p229 = scmp.eq.s32.totalorder %s15, 0
    %p230 = por %p228, %p229
    %p231 = scmp.ne.s32.totalorder %s223, %s225
    %p232 = scmp.eq.s32.totalorder %s20, 1
    %p233 = por %p231, %p232
    %p234 = scmp.ne.s32.totalorder %s225, %s226
    %p235 = scmp.eq.s32.totalorder %s20, 0
    %p236 = por %p234, %p235
    %p237 = scmp.ne.s32.totalorder %s225, %s226
    %p238 = scmp.eq.s32.totalorder %s21, 1
    %p239 = por %p237, %p238
    %p241 = scmp.ne.s32.totalorder %s226, %s240
    %p242 = scmp.eq.s32.totalorder %s21, 0
    %p243 = por %p241, %p242
    %s245 = sadd.s32 %s244, 1
    %p248 = scmp.eq.s32.totalorder %s15, 1
    %p249 = scmp.ne.s32.totalorder %s244, %s246
    %p250 = scmp.eq.s32.totalorder %s15, 0
    %p251 = por %p249, %p250
    %p252 = scmp.ne.s32.totalorder %s244, %s246
    %p253 = scmp.eq.s32.totalorder %s20, 1
    %p254 = por %p252, %p253
    %p255 = scmp.ne.s32.totalorder %s246, %s247
    %p256 = scmp.eq.s32.totalorder %s20, 0
    %p257 = por %p255, %p256
    %p258 = scmp.ne.s32.totalorder %s246, %s247
    %p259 = scmp.eq.s32.totalorder %s21, 1
    %p260 = por %p258, %p259
    %p262 = scmp.ne.s32.totalorder %s247, %s261
    %p263 = scmp.eq.s32.totalorder %s21, 0
    %p264 = por %p262, %p263
    %s266 = sadd.s32 %s265, 1
    %p269 = scmp.eq.s32.totalorder %s15, 1
    %p270 = scmp.ne.s32.totalorder %s265, %s267
    %p271 = scmp.eq.s32.totalorder %s15, 0
    %p272 = por %p270, %p271
    %p273 = scmp.ne.s32.totalorder %s265, %s267
    %p274 = scmp.eq.s32.totalorder %s20, 1
    %p275 = por %p273, %p274
    %p276 = scmp.ne.s32.totalorder %s267, %s268
    %p277 = scmp.eq.s32.totalorder %s20, 0
    %p278 = por %p276, %p277
    %p279 = scmp.ne.s32.totalorder %s267, %s268
    %p280 = scmp.eq.s32.totalorder %s21, 1
    %p281 = por %p279, %p280
    %p283 = scmp.ne.s32.totalorder %s268, %s282
    %p284 = scmp.eq.s32.totalorder %s21, 0
    %p285 = por %p283, %p284
    %s286 = ssub.s32 %s22, %s34
    %s287 = ssub.s32 %s23, %s30
    %s288 = sor.u32 %s286, %s287
    %p289 = scmp.eq.s32.totalorder %s288, 0
    %s291 = sadd.s32 %s290, 1
    %s292 = scalar_select %p289, %s290, %s291
    %p295 = pneg %p289
    %p296 = scmp.eq.s32.totalorder %s15, 1
    %p297 = por %p295, %p296
    %p298 = scmp.ne.s32.totalorder %s290, %s293
    %p299 = scmp.eq.s32.totalorder %s15, 0
    %p300 = por %p298, %p299
    %p301 = scmp.ne.s32.totalorder %s290, %s293
    %p302 = scmp.eq.s32.totalorder %s20, 1
    %p303 = por %p301, %p302
    %p304 = scmp.ne.s32.totalorder %s293, %s294
    %p305 = scmp.eq.s32.totalorder %s20, 0
    %p306 = por %p304, %p305
    %p307 = scmp.ne.s32.totalorder %s293, %s294
    %p308 = scmp.eq.s32.totalorder %s21, 1
    %p309 = por %p307, %p308
    %p311 = scmp.ne.s32.totalorder %s294, %s310
    %p312 = scmp.eq.s32.totalorder %s21, 0
    %p313 = por %p311, %p312
    %p314 = scmp.le.s32.totalorder 1, %s15
    %p315 = scmp.lt.s32.totalorder %s15, 3
    %p316 = pnand %p314, %p315
    %p317 = pneg %p316
    // Predicated region
    $region9: #{upconv_forward.3} parent=5 // pred_check
      _
    $region10: #{upconv_forward.3} parent=5 // pred_check_branch
      %319 = sbr.rel (%p316) target = $region12
    $region11: #{upconv_forward.3} parent=5 // pred_region
      %s320 = ssub.s32 %s15, 1
      // Predicated region
      $region13: #{upconv_forward.3} parent=11 // pred_check
        %p321 = pneg %p236
      $region14: #{upconv_forward.3} parent=11 // pred_check_branch
        %323 = sbr.rel (%p321) target = $region16
      $region15: #{upconv_forward.3} parent=11 // pred_region
        _
      $region16: #{upconv_forward.3} parent=11 // pred_fallthru
        _
      // Predicated region
      $region17: #{upconv_forward.3} parent=11 // pred_check
        %p324 = pneg %p257
      $region18: #{upconv_forward.3} parent=11 // pred_check_branch
        %326 = sbr.rel (%p324) target = $region20
      $region19: #{upconv_forward.3} parent=11 // pred_region
        _
      $region20: #{upconv_forward.3} parent=11 // pred_fallthru
        _
      // Predicated region
      $region21: #{upconv_forward.3} parent=11 // pred_check
        %p327 = pneg %p278
      $region22: #{upconv_forward.3} parent=11 // pred_check_branch
        %329 = sbr.rel (%p327) target = $region24
      $region23: #{upconv_forward.3} parent=11 // pred_region
        _
      $region24: #{upconv_forward.3} parent=11 // pred_fallthru
        _
    $region12: #{upconv_forward.3} parent=5 // pred_fallthru
      _
    %p330 = scmp.lt.s32.totalorder %s15, 2
    // Predicated region
    $region25: #{upconv_forward.3} parent=5 // pred_check
      %p331 = pneg %p330
    $region26: #{upconv_forward.3} parent=5 // pred_check_branch
      %333 = sbr.rel (%p331) target = $region28
    $region27: #{upconv_forward.3} parent=5 // pred_region
      // Predicated region
      $region29: #{upconv_forward.3} parent=27 // pred_check
        %p334 = pneg %p49
      $region30: #{upconv_forward.3} parent=27 // pred_check_branch
        %336 = sbr.rel (%p334) target = $region32
      $region31: #{upconv_forward.3} parent=27 // pred_region
        %s337 = smul.u32 16, %s23
        %s338 = ssub.s32 18, %s337
        %p339 = scmp.lt.s32.totalorder %s338, 16
        %s340 = scalar_select %p339, %s338, 16
        %s341 = smul.u32 128, %s340
        %s342 = smul.u32 %s341, 3
        %p343 = scmp.lt.s32.totalorder %s22, 1
        %s344 = scalar_select %p343, %s22, 1
        %p345 = scmp.lt.s32.totalorder %s337, 17
        %s346 = scalar_select %p345, %s337, 17
        %s347 = smul.addr %s346, 3
        %s348 = smul.addr %s344, 54
        %s349 = sadd.s32 %s347, %s348
        %s350 = smul.addr %s349, 8
        %s351 = scalar_lea.vmem %s0, %s350
        %s352 = smul.u32 16, %s23
        %s353 = ssub.s32 18, %s352
        %p354 = scmp.lt.s32.totalorder %s353, 16
        %s355 = scalar_select %p354, %s353, 16
        %s356 = smul.u32 128, %s355
        %s357 = smul.u32 %s356, 3
      $region32: #{upconv_forward.3} parent=27 // pred_fallthru
        _
      // Predicated region
      $region33: #{upconv_forward.3} parent=27 // pred_check
        %p358 = pneg %p81
      $region34: #{upconv_forward.3} parent=27 // pred_check_branch
        %360 = sbr.rel (%p358) target = $region36
      $region35: #{upconv_forward.3} parent=27 // pred_region
        %s361 = sadd.s32 %s23, 1
        %s362 = smul.u32 %s361, 16
        %p363 = scmp.lt.s32.totalorder %s22, 1
        %s364 = scalar_select %p363, %s22, 1
        %p365 = scmp.lt.s32.totalorder %s362, 17
        %s366 = scalar_select %p365, %s362, 17
        %s367 = smul.addr %s366, 3
        %s368 = smul.addr %s364, 54
        %s369 = sadd.s32 %s367, %s368
        %s370 = smul.addr %s369, 8
        %s371 = scalar_lea.vmem %s1, %s370
        %s372 = sadd.s32 %s23, 1
        %s373 = smul.u32 %s372, 16
      $region36: #{upconv_forward.3} parent=27 // pred_fallthru
        _
      // Predicated region
      $region37: #{upconv_forward.3} parent=27 // pred_check
        %p374 = pneg %p115
      $region38: #{upconv_forward.3} parent=27 // pred_check_branch
        %376 = sbr.rel (%p374) target = $region40
      $region39: #{upconv_forward.3} parent=27 // pred_region
        %s377 = sadd.s32 %s23, 1
        %s378 = smul.u32 %s377, 16
        %s379 = sadd.s32 %s378, 1
        %p380 = scmp.lt.s32.totalorder %s22, 1
        %s381 = scalar_select %p380, %s22, 1
        %p382 = scmp.lt.s32.totalorder %s379, 17
        %s383 = scalar_select %p382, %s379, 17
        %s384 = smul.addr %s383, 3
        %s385 = smul.addr %s381, 54
        %s386 = sadd.s32 %s384, %s385
        %s387 = smul.addr %s386, 8
        %s388 = scalar_lea.vmem %s2, %s387
        %s389 = sadd.s32 %s23, 1
        %s390 = smul.u32 %s389, 16
        %s391 = sadd.s32 %s390, 1
      $region40: #{upconv_forward.3} parent=27 // pred_fallthru
        _
      // Predicated region
      $region41: #{upconv_forward.3} parent=27 // pred_check
        %p392 = pneg %p143
      $region42: #{upconv_forward.3} parent=27 // pred_check_branch
        %394 = sbr.rel (%p392) target = $region44
      $region43: #{upconv_forward.3} parent=27 // pred_region
        %s395 = smul.u32 16, %s23
        %s396 = ssub.s32 18, %s395
        %p397 = scmp.lt.s32.totalorder %s396, 16
        %s398 = scalar_select %p397, %s396, 16
        %s399 = smul.u32 128, %s398
        %s400 = smul.u32 %s399, 3
        %p401 = scmp.lt.s32.totalorder %s22, 1
        %s402 = scalar_select %p401, %s22, 1
        %p403 = scmp.lt.s32.totalorder %s395, 17
        %s404 = scalar_select %p403, %s395, 17
        %s405 = smul.addr %s404, 3
        %s406 = smul.addr %s402, 54
        %s407 = sadd.s32 %s405, %s406
        %s408 = smul.addr %s407, 8
        %s409 = scalar_lea.vmem %s3, %s408
        %s410 = smul.u32 16, %s23
        %s411 = ssub.s32 18, %s410
        %p412 = scmp.lt.s32.totalorder %s411, 16
        %s413 = scalar_select %p412, %s411, 16
        %s414 = smul.u32 128, %s413
        %s415 = smul.u32 %s414, 3
      $region44: #{upconv_forward.3} parent=27 // pred_fallthru
        _
      // Predicated region
      $region45: #{upconv_forward.3} parent=27 // pred_check
        %p416 = pneg %p175
      $region46: #{upconv_forward.3} parent=27 // pred_check_branch
        %418 = sbr.rel (%p416) target = $region48
      $region47: #{upconv_forward.3} parent=27 // pred_region
        %s419 = sadd.s32 %s23, 1
        %s420 = smul.u32 %s419, 16
        %p421 = scmp.lt.s32.totalorder %s22, 1
        %s422 = scalar_select %p421, %s22, 1
        %p423 = scmp.lt.s32.totalorder %s420, 17
        %s424 = scalar_select %p423, %s420, 17
        %s425 = smul.addr %s424, 3
        %s426 = smul.addr %s422, 54
        %s427 = sadd.s32 %s425, %s426
        %s428 = smul.addr %s427, 8
        %s429 = scalar_lea.vmem %s4, %s428
        %s430 = sadd.s32 %s23, 1
        %s431 = smul.u32 %s430, 16
      $region48: #{upconv_forward.3} parent=27 // pred_fallthru
        _
      // Predicated region
      $region49: #{upconv_forward.3} parent=27 // pred_check
        %p432 = pneg %p209
      $region50: #{upconv_forward.3} parent=27 // pred_check_branch
        %434 = sbr.rel (%p432) target = $region52
      $region51: #{upconv_forward.3} parent=27 // pred_region
        %s435 = sadd.s32 %s23, 1
        %s436 = smul.u32 %s435, 16
        %s437 = sadd.s32 %s436, 1
        %p438 = scmp.lt.s32.totalorder %s22, 1
        %s439 = scalar_select %p438, %s22, 1
        %p440 = scmp.lt.s32.totalorder %s437, 17
        %s441 = scalar_select %p440, %s437, 17
        %s442 = smul.addr %s441, 3
        %s443 = smul.addr %s439, 54
        %s444 = sadd.s32 %s442, %s443
        %s445 = smul.addr %s444, 8
        %s446 = scalar_lea.vmem %s5, %s445
        %s447 = sadd.s32 %s23, 1
        %s448 = smul.u32 %s447, 16
        %s449 = sadd.s32 %s448, 1
      $region52: #{upconv_forward.3} parent=27 // pred_fallthru
        _
    $region28: #{upconv_forward.3} parent=5 // pred_fallthru
      _
    %p450 = scmp.le.s32.totalorder 1, %s15
    %p451 = scmp.lt.s32.totalorder %s15, 3
    %p452 = pnand %p450, %p451
    %p453 = pneg %p452
    // Predicated region
    $region53: #{upconv_forward.3} parent=5 // pred_check
      _
    $region54: #{upconv_forward.3} parent=5 // pred_check_branch
      %455 = sbr.rel (%p452) target = $region56
    $region55: #{upconv_forward.3} parent=5 // pred_region
      %s456 = ssub.s32 %s15, 1
      %s457 = smul.u32 16, %s25
      %s458 = ssub.s32 18, %s457
      %p459 = scmp.lt.s32.totalorder %s458, 16
      %s460 = scalar_select %p459, %s458, 16
      %s461 = smul.u32 128, %s460
      %s462 = smul.u32 %s461, 3
      %p463 = scmp.lt.s32.totalorder %s24, 1
      %s464 = scalar_select %p463, %s24, 1
      %p465 = scmp.lt.s32.totalorder %s457, 17
      %s466 = scalar_select %p465, %s457, 17
      %s467 = smul.addr %s466, 3
      %s468 = smul.addr %s464, 54
      %s469 = sadd.s32 %s467, %s468
      %s470 = smul.addr %s469, 8
      %s471 = scalar_lea.vmem %s0, %s470
      %p472 = pneg %p55
      %p473 = pneg %p52
      %s474 = sadd.s32 %s25, 1
      %s475 = smul.u32 %s474, 16
      %p476 = scmp.lt.s32.totalorder %s24, 1
      %s477 = scalar_select %p476, %s24, 1
      %p478 = scmp.lt.s32.totalorder %s475, 17
      %s479 = scalar_select %p478, %s475, 17
      %s480 = smul.addr %s479, 3
      %s481 = smul.addr %s477, 54
      %s482 = sadd.s32 %s480, %s481
      %s483 = smul.addr %s482, 8
      %s484 = scalar_lea.vmem %s1, %s483
      %p485 = pneg %p87
      %p486 = pneg %p84
      %s487 = sadd.s32 %s25, 1
      %s488 = smul.u32 %s487, 16
      %s489 = sadd.s32 %s488, 1
      %p490 = scmp.lt.s32.totalorder %s24, 1
      %s491 = scalar_select %p490, %s24, 1
      %p492 = scmp.lt.s32.totalorder %s489, 17
      %s493 = scalar_select %p492, %s489, 17
      %s494 = smul.addr %s493, 3
      %s495 = smul.addr %s491, 54
      %s496 = sadd.s32 %s494, %s495
      %s497 = smul.addr %s496, 8
      %s498 = scalar_lea.vmem %s2, %s497
      %p499 = pneg %p121
      %p500 = pneg %p118
      %s501 = smul.u32 16, %s25
      %s502 = ssub.s32 18, %s501
      %p503 = scmp.lt.s32.totalorder %s502, 16
      %s504 = scalar_select %p503, %s502, 16
      %s505 = smul.u32 128, %s504
      %s506 = smul.u32 %s505, 3
      %p507 = scmp.lt.s32.totalorder %s24, 1
      %s508 = scalar_select %p507, %s24, 1
      %p509 = scmp.lt.s32.totalorder %s501, 17
      %s510 = scalar_select %p509, %s501, 17
      %s511 = smul.addr %s510, 3
      %s512 = smul.addr %s508, 54
      %s513 = sadd.s32 %s511, %s512
      %s514 = smul.addr %s513, 8
      %s515 = scalar_lea.vmem %s3, %s514
      %p516 = pneg %p149
      %p517 = pneg %p146
      %s518 = sadd.s32 %s25, 1
      %s519 = smul.u32 %s518, 16
      %p520 = scmp.lt.s32.totalorder %s24, 1
      %s521 = scalar_select %p520, %s24, 1
      %p522 = scmp.lt.s32.totalorder %s519, 17
      %s523 = scalar_select %p522, %s519, 17
      %s524 = smul.addr %s523, 3
      %s525 = smul.addr %s521, 54
      %s526 = sadd.s32 %s524, %s525
      %s527 = smul.addr %s526, 8
      %s528 = scalar_lea.vmem %s4, %s527
      %p529 = pneg %p181
      %p530 = pneg %p178
      %s531 = sadd.s32 %s25, 1
      %s532 = smul.u32 %s531, 16
      %s533 = sadd.s32 %s532, 1
      %p534 = scmp.lt.s32.totalorder %s24, 1
      %s535 = scalar_select %p534, %s24, 1
      %p536 = scmp.lt.s32.totalorder %s533, 17
      %s537 = scalar_select %p536, %s533, 17
      %s538 = smul.addr %s537, 3
      %s539 = smul.addr %s535, 54
      %s540 = sadd.s32 %s538, %s539
      %s541 = smul.addr %s540, 8
      %s542 = scalar_lea.vmem %s5, %s541
      %p543 = pneg %p215
      %p544 = pneg %p212
      %p545 = pneg %p236
      %p546 = pneg %p233
      %p547 = pneg %p257
      %p548 = pneg %p254
      %p549 = pneg %p278
      %p550 = pneg %p275
      %p551 = pneg %p306
      %p552 = pneg %p303
      %s553 = smul.u32 16, %s25
      %p554 = scmp.lt.s32.totalorder %s24, 1
      %s555 = scalar_select %p554, %s24, 1
      %p556 = scmp.lt.s32.totalorder %s553, 15
      %s557 = scalar_select %p556, %s553, 15
      %s558 = smul.addr %s557, 2
      %s559 = smul.addr %s555, 32
      %s560 = sadd.s32 %s558, %s559
      %s561 = smul.addr %s560, 8
      %s562 = scalar_lea.vmem %s9, %s561
      %s563 = smul.u32 16, %s25
      %s564 = ssub.s32 18, %s563
      %p565 = scmp.lt.s32.totalorder %s564, 16
      %s566 = scalar_select %p565, %s564, 16
      %s567 = smul.u32 128, %s566
      %s568 = smul.u32 %s567, 3
      %p569 = scmp.lt.s32.totalorder %s24, 1
      %s570 = scalar_select %p569, %s24, 1
      %p571 = scmp.lt.s32.totalorder %s563, 17
      %s572 = scalar_select %p571, %s563, 17
      %s573 = smul.addr %s572, 3
      %s574 = smul.addr %s570, 54
      %s575 = sadd.s32 %s573, %s574
      %s576 = smul.addr %s575, 8
      %s577 = scalar_lea.vmem %s0, %s576
      %s578 = smul.u32 16, %s25
      %s579 = ssub.s32 18, %s578
      %p580 = scmp.lt.s32.totalorder %s579, 16
      %s581 = scalar_select %p580, %s579, 16
      %s582 = smul.u32 128, %s581
      %s583 = smul.u32 %s582, 3
      %s584 = sadd.s32 %s25, 1
      %s585 = smul.u32 %s584, 16
      %p586 = scmp.lt.s32.totalorder %s24, 1
      %s587 = scalar_select %p586, %s24, 1
      %p588 = scmp.lt.s32.totalorder %s585, 17
      %s589 = scalar_select %p588, %s585, 17
      %s590 = smul.addr %s589, 3
      %s591 = smul.addr %s587, 54
      %s592 = sadd.s32 %s590, %s591
      %s593 = smul.addr %s592, 8
      %s594 = scalar_lea.vmem %s1, %s593
      %s595 = sadd.s32 %s25, 1
      %s596 = smul.u32 %s595, 16
      %s597 = sadd.s32 %s25, 1
      %s598 = smul.u32 %s597, 16
      %s599 = sadd.s32 %s598, 1
      %p600 = scmp.lt.s32.totalorder %s24, 1
      %s601 = scalar_select %p600, %s24, 1
      %p602 = scmp.lt.s32.totalorder %s599, 17
      %s603 = scalar_select %p602, %s599, 17
      %s604 = smul.addr %s603, 3
      %s605 = smul.addr %s601, 54
      %s606 = sadd.s32 %s604, %s605
      %s607 = smul.addr %s606, 8
      %s608 = scalar_lea.vmem %s2, %s607
      %s609 = sadd.s32 %s25, 1
      %s610 = smul.u32 %s609, 16
      %s611 = sadd.s32 %s610, 1
      %s612 = smul.u32 16, %s25
      %s613 = ssub.s32 18, %s612
      %p614 = scmp.lt.s32.totalorder %s613, 16
      %s615 = scalar_select %p614, %s613, 16
      %s616 = smul.u32 128, %s615
      %s617 = smul.u32 %s616, 3
      %p618 = scmp.lt.s32.totalorder %s24, 1
      %s619 = scalar_select %p618, %s24, 1
      %p620 = scmp.lt.s32.totalorder %s612, 17
      %s621 = scalar_select %p620, %s612, 17
      %s622 = smul.addr %s621, 3
      %s623 = smul.addr %s619, 54
      %s624 = sadd.s32 %s622, %s623
      %s625 = smul.addr %s624, 8
      %s626 = scalar_lea.vmem %s3, %s625
      %s627 = smul.u32 16, %s25
      %s628 = ssub.s32 18, %s627
      %p629 = scmp.lt.s32.totalorder %s628, 16
      %s630 = scalar_select %p629, %s628, 16
      %s631 = smul.u32 128, %s630
      %s632 = smul.u32 %s631, 3
      %s633 = sadd.s32 %s25, 1
      %s634 = smul.u32 %s633, 16
      %p635 = scmp.lt.s32.totalorder %s24, 1
      %s636 = scalar_select %p635, %s24, 1
      %p637 = scmp.lt.s32.totalorder %s634, 17
      %s638 = scalar_select %p637, %s634, 17
      %s639 = smul.addr %s638, 3
      %s640 = smul.addr %s636, 54
      %s641 = sadd.s32 %s639, %s640
      %s642 = smul.addr %s641, 8
      %s643 = scalar_lea.vmem %s4, %s642
      %s644 = sadd.s32 %s25, 1
      %s645 = smul.u32 %s644, 16
      %s646 = sadd.s32 %s25, 1
      %s647 = smul.u32 %s646, 16
      %s648 = sadd.s32 %s647, 1
      %p649 = scmp.lt.s32.totalorder %s24, 1
      %s650 = scalar_select %p649, %s24, 1
      %p651 = scmp.lt.s32.totalorder %s648, 17
      %s652 = scalar_select %p651, %s648, 17
      %s653 = smul.addr %s652, 3
      %s654 = smul.addr %s650, 54
      %s655 = sadd.s32 %s653, %s654
      %s656 = smul.addr %s655, 8
      %s657 = scalar_lea.vmem %s5, %s656
      %s658 = sadd.s32 %s25, 1
      %s659 = smul.u32 %s658, 16
      %s660 = sadd.s32 %s659, 1
      %s661 = smul.u32 16, %s25
      %p662 = scmp.lt.s32.totalorder %s24, 1
      %s663 = scalar_select %p662, %s24, 1
      %p664 = scmp.lt.s32.totalorder %s661, 15
      %s665 = scalar_select %p664, %s661, 15
      %s666 = smul.addr %s665, 2
      %s667 = smul.addr %s663, 32
      %s668 = sadd.s32 %s666, %s667
      %s669 = smul.addr %s668, 8
      %s670 = scalar_lea.vmem %s9, %s669
      %s671 = smul.u32 16, %s25
      %v672 = vld [vmem:[%s577] sm:$0xff]
      %v673 = vld [vmem:[%s577 + $0x8] sm:$0xff]
      %v674 = vld [vmem:[%s577 + $0x10] sm:$0x3]
      %v675 = vld [vmem:[%s577 + $0x18] sm:$0xff]
      %v676 = vld [vmem:[%s577 + $0x20] sm:$0xff]
      %v677 = vld [vmem:[%s577 + $0x28] sm:$0x3]
      %v678 = vld [vmem:[%s577 + $0x30] sm:$0xff]
      %v679 = vld [vmem:[%s577 + $0x38] sm:$0xff]
      %v680 = vld [vmem:[%s577 + $0x40] sm:$0x3]
      %v681 = vld [vmem:[%s577 + $0x48] sm:$0xff]
      %v682 = vld [vmem:[%s577 + $0x50] sm:$0xff]
      %v683 = vld [vmem:[%s577 + $0x58] sm:$0x3]
      %v684 = vld [vmem:[%s577 + $0x60] sm:$0xff]
      %v685 = vld [vmem:[%s577 + $0x68] sm:$0xff]
      %v686 = vld [vmem:[%s577 + $0x70] sm:$0x3]
      %v687 = vld [vmem:[%s577 + $0x78] sm:$0xff]
      %v688 = vld [vmem:[%s577 + $0x80] sm:$0xff]
      %v689 = vld [vmem:[%s577 + $0x88] sm:$0x3]
      %v690 = vld [vmem:[%s577 + $0x90] sm:$0xff]
      %v691 = vld [vmem:[%s577 + $0x98] sm:$0xff]
      %v692 = vld [vmem:[%s577 + $0xa0] sm:$0x3]
      %v693 = vld [vmem:[%s577 + $0xa8] sm:$0xff]
      %v694 = vld [vmem:[%s577 + $0xb0] sm:$0xff]
      %v695 = vld [vmem:[%s577 + $0xb8] sm:$0x3]
      %v696 = vld [vmem:[%s577 + $0xc0] sm:$0xff]
      %v697 = vld [vmem:[%s577 + $0xc8] sm:$0xff]
      %v698 = vld [vmem:[%s577 + $0xd0] sm:$0x3]
      %v699 = vld [vmem:[%s577 + $0xd8] sm:$0xff]
      %v700 = vld [vmem:[%s577 + $0xe0] sm:$0xff]
      %v701 = vld [vmem:[%s577 + $0xe8] sm:$0x3]
      %v702 = vld [vmem:[%s577 + $0xf0] sm:$0xff]
      %v703 = vld [vmem:[%s577 + $0xf8] sm:$0xff]
      %v704 = vld [vmem:[%s577 + $0x100] sm:$0x3]
      %v705 = vld [vmem:[%s577 + $0x108] sm:$0xff]
      %v706 = vld [vmem:[%s577 + $0x110] sm:$0xff]
      %v707 = vld [vmem:[%s577 + $0x118] sm:$0x3]
      %v708 = vld [vmem:[%s577 + $0x120] sm:$0xff]
      %v709 = vld [vmem:[%s577 + $0x128] sm:$0xff]
      %v710 = vld [vmem:[%s577 + $0x130] sm:$0x3]
      %v711 = vld [vmem:[%s577 + $0x138] sm:$0xff]
      %v712 = vld [vmem:[%s577 + $0x140] sm:$0xff]
      %v713 = vld [vmem:[%s577 + $0x148] sm:$0x3]
      %v714 = vld [vmem:[%s577 + $0x150] sm:$0xff]
      %v715 = vld [vmem:[%s577 + $0x158] sm:$0xff]
      %v716 = vld [vmem:[%s577 + $0x160] sm:$0x3]
      %v717 = vld [vmem:[%s577 + $0x168] sm:$0xff]
      %v718 = vld [vmem:[%s577 + $0x170] sm:$0xff]
      %v719 = vld [vmem:[%s577 + $0x178] sm:$0x3]
      %v720 = vld [vmem:[%s594] sm:$0xff]
      %v721 = vld [vmem:[%s594 + $0x8] sm:$0xff]
      %v722 = vld [vmem:[%s594 + $0x10] sm:$0x3]
      %v723 = vld [vmem:[%s608] sm:$0xff]
      %v724 = vld [vmem:[%s608 + $0x8] sm:$0xff]
      %v725 = vld [vmem:[%s608 + $0x10] sm:$0x3]
      %v726 = vld [vmem:[%s626] sm:$0xff]
      %v727 = vld [vmem:[%s626 + $0x8] sm:$0xff]
      %v728 = vld [vmem:[%s626 + $0x10] sm:$0x3]
      %v729 = vld [vmem:[%s626 + $0x18] sm:$0xff]
      %v730 = vld [vmem:[%s626 + $0x20] sm:$0xff]
      %v731 = vld [vmem:[%s626 + $0x28] sm:$0x3]
      %v732 = vld [vmem:[%s626 + $0x30] sm:$0xff]
      %v733 = vld [vmem:[%s626 + $0x38] sm:$0xff]
      %v734 = vld [vmem:[%s626 + $0x40] sm:$0x3]
      %v735 = vld [vmem:[%s626 + $0x48] sm:$0xff]
      %v736 = vld [vmem:[%s626 + $0x50] sm:$0xff]
      %v737 = vld [vmem:[%s626 + $0x58] sm:$0x3]
      %v738 = vld [vmem:[%s626 + $0x60] sm:$0xff]
      %v739 = vld [vmem:[%s626 + $0x68] sm:$0xff]
      %v740 = vld [vmem:[%s626 + $0x70] sm:$0x3]
      %v741 = vld [vmem:[%s626 + $0x78] sm:$0xff]
      %v742 = vld [vmem:[%s626 + $0x80] sm:$0xff]
      %v743 = vld [vmem:[%s626 + $0x88] sm:$0x3]
      %v744 = vld [vmem:[%s626 + $0x90] sm:$0xff]
      %v745 = vld [vmem:[%s626 + $0x98] sm:$0xff]
      %v746 = vld [vmem:[%s626 + $0xa0] sm:$0x3]
      %v747 = vld [vmem:[%s626 + $0xa8] sm:$0xff]
      %v748 = vld [vmem:[%s626 + $0xb0] sm:$0xff]
      %v749 = vld [vmem:[%s626 + $0xb8] sm:$0x3]
      %v750 = vld [vmem:[%s626 + $0xc0] sm:$0xff]
      %v751 = vld [vmem:[%s626 + $0xc8] sm:$0xff]
      %v752 = vld [vmem:[%s626 + $0xd0] sm:$0x3]
      %v753 = vld [vmem:[%s626 + $0xd8] sm:$0xff]
      %v754 = vld [vmem:[%s626 + $0xe0] sm:$0xff]
      %v755 = vld [vmem:[%s626 + $0xe8] sm:$0x3]
      %v756 = vld [vmem:[%s626 + $0xf0] sm:$0xff]
      %v757 = vld [vmem:[%s626 + $0xf8] sm:$0xff]
      %v758 = vld [vmem:[%s626 + $0x100] sm:$0x3]
      %v759 = vld [vmem:[%s626 + $0x108] sm:$0xff]
      %v760 = vld [vmem:[%s626 + $0x110] sm:$0xff]
      %v761 = vld [vmem:[%s626 + $0x118] sm:$0x3]
      %v762 = vld [vmem:[%s626 + $0x120] sm:$0xff]
      %v763 = vld [vmem:[%s626 + $0x128] sm:$0xff]
      %v764 = vld [vmem:[%s626 + $0x130] sm:$0x3]
      %v765 = vld [vmem:[%s626 + $0x138] sm:$0xff]
      %v766 = vld [vmem:[%s626 + $0x140] sm:$0xff]
      %v767 = vld [vmem:[%s626 + $0x148] sm:$0x3]
      %v768 = vld [vmem:[%s626 + $0x150] sm:$0xff]
      %v769 = vld [vmem:[%s626 + $0x158] sm:$0xff]
      %v770 = vld [vmem:[%s626 + $0x160] sm:$0x3]
      %v771 = vld [vmem:[%s626 + $0x168] sm:$0xff]
      %v772 = vld [vmem:[%s626 + $0x170] sm:$0xff]
      %v773 = vld [vmem:[%s626 + $0x178] sm:$0x3]
      %v774 = vld [vmem:[%s643] sm:$0xff]
      %v775 = vld [vmem:[%s643 + $0x8] sm:$0xff]
      %v776 = vld [vmem:[%s643 + $0x10] sm:$0x3]
      %v777 = vld [vmem:[%s657] sm:$0xff]
      %v778 = vld [vmem:[%s657 + $0x8] sm:$0xff]
      %v779 = vld [vmem:[%s657 + $0x10] sm:$0x3]
      %v828 = vcombine.high %v672, %v672
      %v830 = vunpack.c.l.s4 1983009808
      %v831 = vunpack.c.0.s8 %v830
      %v832 = vlaneseq
      %v833 = vshrl.u32 %v832, 7
      %v834 = vsub.s32 %v831, %v833
      %v835 = vrot.slane %v672, %v834
      %v837 = vunpack.c.l.s4 1983009808
      %v838 = vunpack.c.0.s8 %v837
      %v839 = vlaneseq
      %v840 = vshrl.u32 %v839, 7
      %v841 = vsub.s32 %v838, %v840
      %v842 = vrot.slane %v828, %v841
      %v843 = vcombine.high %v835, %v835
      %v844 = vcombine.high %v842, %v842
      %v845 = vcombine.high %v673, %v673
      %v847 = vunpack.c.l.s4 1983009808
      %v848 = vunpack.c.0.s8 %v847
      %v849 = vlaneseq
      %v850 = vshrl.u32 %v849, 7
      %v851 = vsub.s32 %v848, %v850
      %v852 = vrot.slane %v673, %v851
      %v854 = vunpack.c.l.s4 1983009808
      %v855 = vunpack.c.0.s8 %v854
      %v856 = vlaneseq
      %v857 = vshrl.u32 %v856, 7
      %v858 = vsub.s32 %v855, %v857
      %v859 = vrot.slane %v845, %v858
      %v860 = vcombine.high %v852, %v852
      %v861 = vcombine.high %v859, %v859
      %v863 = vunpack.c.l.s4 1983009808
      %v864 = vunpack.c.0.s8 %v863
      %v865 = vlaneseq
      %v866 = vshrl.u32 %v865, 7
      %v867 = vsub.s32 %v864, %v866
      %v868 = vrot.slane %v674, %v867
      %v869 = vcombine.high %v675, %v675
      %v871 = vunpack.c.l.s4 1983009808
      %v872 = vunpack.c.0.s8 %v871
      %v873 = vlaneseq
      %v874 = vshrl.u32 %v873, 7
      %v875 = vsub.s32 %v872, %v874
      %v876 = vrot.slane %v675, %v875
      %v878 = vunpack.c.l.s4 1983009808
      %v879 = vunpack.c.0.s8 %v878
      %v880 = vlaneseq
      %v881 = vshrl.u32 %v880, 7
      %v882 = vsub.s32 %v879, %v881
      %v883 = vrot.slane %v869, %v882
      %v884 = vcombine.high %v876, %v876
      %v885 = vcombine.high %v883, %v883
      %v886 = vcombine.high %v676, %v676
      %v888 = vunpack.c.l.s4 1983009808
      %v889 = vunpack.c.0.s8 %v888
      %v890 = vlaneseq
      %v891 = vshrl.u32 %v890, 7
      %v892 = vsub.s32 %v889, %v891
      %v893 = vrot.slane %v676, %v892
      %v895 = vunpack.c.l.s4 1983009808
      %v896 = vunpack.c.0.s8 %v895
      %v897 = vlaneseq
      %v898 = vshrl.u32 %v897, 7
      %v899 = vsub.s32 %v896, %v898
      %v900 = vrot.slane %v886, %v899
      %v901 = vcombine.high %v893, %v893
      %v902 = vcombine.high %v900, %v900
      %v904 = vunpack.c.l.s4 1983009808
      %v905 = vunpack.c.0.s8 %v904
      %v906 = vlaneseq
      %v907 = vshrl.u32 %v906, 7
      %v908 = vsub.s32 %v905, %v907
      %v909 = vrot.slane %v677, %v908
      %v910 = vcombine.high %v678, %v678
      %v912 = vunpack.c.l.s4 1983009808
      %v913 = vunpack.c.0.s8 %v912
      %v914 = vlaneseq
      %v915 = vshrl.u32 %v914, 7
      %v916 = vsub.s32 %v913, %v915
      %v917 = vrot.slane %v678, %v916
      %v919 = vunpack.c.l.s4 1983009808
      %v920 = vunpack.c.0.s8 %v919
      %v921 = vlaneseq
      %v922 = vshrl.u32 %v921, 7
      %v923 = vsub.s32 %v920, %v922
      %v924 = vrot.slane %v910, %v923
      %v925 = vcombine.high %v917, %v917
      %v926 = vcombine.high %v924, %v924
      %v927 = vcombine.high %v679, %v679
      %v929 = vunpack.c.l.s4 1983009808
      %v930 = vunpack.c.0.s8 %v929
      %v931 = vlaneseq
      %v932 = vshrl.u32 %v931, 7
      %v933 = vsub.s32 %v930, %v932
      %v934 = vrot.slane %v679, %v933
      %v936 = vunpack.c.l.s4 1983009808
      %v937 = vunpack.c.0.s8 %v936
      %v938 = vlaneseq
      %v939 = vshrl.u32 %v938, 7
      %v940 = vsub.s32 %v937, %v939
      %v941 = vrot.slane %v927, %v940
      %v942 = vcombine.high %v934, %v934
      %v943 = vcombine.high %v941, %v941
      %v945 = vunpack.c.l.s4 1983009808
      %v946 = vunpack.c.0.s8 %v945
      %v947 = vlaneseq
      %v948 = vshrl.u32 %v947, 7
      %v949 = vsub.s32 %v946, %v948
      %v950 = vrot.slane %v680, %v949
      %v951 = vcombine.high %v681, %v681
      %v953 = vunpack.c.l.s4 1983009808
      %v954 = vunpack.c.0.s8 %v953
      %v955 = vlaneseq
      %v956 = vshrl.u32 %v955, 7
      %v957 = vsub.s32 %v954, %v956
      %v958 = vrot.slane %v681, %v957
      %v960 = vunpack.c.l.s4 1983009808
      %v961 = vunpack.c.0.s8 %v960
      %v962 = vlaneseq
      %v963 = vshrl.u32 %v962, 7
      %v964 = vsub.s32 %v961, %v963
      %v965 = vrot.slane %v951, %v964
      %v966 = vcombine.high %v958, %v958
      %v967 = vcombine.high %v965, %v965
      %v968 = vcombine.high %v682, %v682
      %v970 = vunpack.c.l.s4 1983009808
      %v971 = vunpack.c.0.s8 %v970
      %v972 = vlaneseq
      %v973 = vshrl.u32 %v972, 7
      %v974 = vsub.s32 %v971, %v973
      %v975 = vrot.slane %v682, %v974
      %v977 = vunpack.c.l.s4 1983009808
      %v978 = vunpack.c.0.s8 %v977
      %v979 = vlaneseq
      %v980 = vshrl.u32 %v979, 7
      %v981 = vsub.s32 %v978, %v980
      %v982 = vrot.slane %v968, %v981
      %v983 = vcombine.high %v975, %v975
      %v984 = vcombine.high %v982, %v982
      %v986 = vunpack.c.l.s4 1983009808
      %v987 = vunpack.c.0.s8 %v986
      %v988 = vlaneseq
      %v989 = vshrl.u32 %v988, 7
      %v990 = vsub.s32 %v987, %v989
      %v991 = vrot.slane %v683, %v990
      %v992 = vcombine.high %v684, %v684
      %v994 = vunpack.c.l.s4 1983009808
      %v995 = vunpack.c.0.s8 %v994
      %v996 = vlaneseq
      %v997 = vshrl.u32 %v996, 7
      %v998 = vsub.s32 %v995, %v997
      %v999 = vrot.slane %v684, %v998
      %v1001 = vunpack.c.l.s4 1983009808
      %v1002 = vunpack.c.0.s8 %v1001
      %v1003 = vlaneseq
      %v1004 = vshrl.u32 %v1003, 7
      %v1005 = vsub.s32 %v1002, %v1004
      %v1006 = vrot.slane %v992, %v1005
      %v1007 = vcombine.high %v999, %v999
      %v1008 = vcombine.high %v1006, %v1006
      %v1009 = vcombine.high %v685, %v685
      %v1011 = vunpack.c.l.s4 1983009808
      %v1012 = vunpack.c.0.s8 %v1011
      %v1013 = vlaneseq
      %v1014 = vshrl.u32 %v1013, 7
      %v1015 = vsub.s32 %v1012, %v1014
      %v1016 = vrot.slane %v685, %v1015
      %v1018 = vunpack.c.l.s4 1983009808
      %v1019 = vunpack.c.0.s8 %v1018
      %v1020 = vlaneseq
      %v1021 = vshrl.u32 %v1020, 7
      %v1022 = vsub.s32 %v1019, %v1021
      %v1023 = vrot.slane %v1009, %v1022
      %v1024 = vcombine.high %v1016, %v1016
      %v1025 = vcombine.high %v1023, %v1023
      %v1027 = vunpack.c.l.s4 1983009808
      %v1028 = vunpack.c.0.s8 %v1027
      %v1029 = vlaneseq
      %v1030 = vshrl.u32 %v1029, 7
      %v1031 = vsub.s32 %v1028, %v1030
      %v1032 = vrot.slane %v686, %v1031
      %v1033 = vcombine.high %v687, %v687
      %v1035 = vunpack.c.l.s4 1983009808
      %v1036 = vunpack.c.0.s8 %v1035
      %v1037 = vlaneseq
      %v1038 = vshrl.u32 %v1037, 7
      %v1039 = vsub.s32 %v1036, %v1038
      %v1040 = vrot.slane %v687, %v1039
      %v1042 = vunpack.c.l.s4 1983009808
      %v1043 = vunpack.c.0.s8 %v1042
      %v1044 = vlaneseq
      %v1045 = vshrl.u32 %v1044, 7
      %v1046 = vsub.s32 %v1043, %v1045
      %v1047 = vrot.slane %v1033, %v1046
      %v1048 = vcombine.high %v1040, %v1040
      %v1049 = vcombine.high %v1047, %v1047
      %v1050 = vcombine.high %v688, %v688
      %v1052 = vunpack.c.l.s4 1983009808
      %v1053 = vunpack.c.0.s8 %v1052
      %v1054 = vlaneseq
      %v1055 = vshrl.u32 %v1054, 7
      %v1056 = vsub.s32 %v1053, %v1055
      %v1057 = vrot.slane %v688, %v1056
      %v1059 = vunpack.c.l.s4 1983009808
      %v1060 = vunpack.c.0.s8 %v1059
      %v1061 = vlaneseq
      %v1062 = vshrl.u32 %v1061, 7
      %v1063 = vsub.s32 %v1060, %v1062
      %v1064 = vrot.slane %v1050, %v1063
      %v1065 = vcombine.high %v1057, %v1057
      %v1066 = vcombine.high %v1064, %v1064
      %v1068 = vunpack.c.l.s4 1983009808
      %v1069 = vunpack.c.0.s8 %v1068
      %v1070 = vlaneseq
      %v1071 = vshrl.u32 %v1070, 7
      %v1072 = vsub.s32 %v1069, %v1071
      %v1073 = vrot.slane %v689, %v1072
      %v1074 = vcombine.high %v690, %v690
      %v1076 = vunpack.c.l.s4 1983009808
      %v1077 = vunpack.c.0.s8 %v1076
      %v1078 = vlaneseq
      %v1079 = vshrl.u32 %v1078, 7
      %v1080 = vsub.s32 %v1077, %v1079
      %v1081 = vrot.slane %v690, %v1080
      %v1083 = vunpack.c.l.s4 1983009808
      %v1084 = vunpack.c.0.s8 %v1083
      %v1085 = vlaneseq
      %v1086 = vshrl.u32 %v1085, 7
      %v1087 = vsub.s32 %v1084, %v1086
      %v1088 = vrot.slane %v1074, %v1087
      %v1089 = vcombine.high %v1081, %v1081
      %v1090 = vcombine.high %v1088, %v1088
      %v1091 = vcombine.high %v691, %v691
      %v1093 = vunpack.c.l.s4 1983009808
      %v1094 = vunpack.c.0.s8 %v1093
      %v1095 = vlaneseq
      %v1096 = vshrl.u32 %v1095, 7
      %v1097 = vsub.s32 %v1094, %v1096
      %v1098 = vrot.slane %v691, %v1097
      %v1100 = vunpack.c.l.s4 1983009808
      %v1101 = vunpack.c.0.s8 %v1100
      %v1102 = vlaneseq
      %v1103 = vshrl.u32 %v1102, 7
      %v1104 = vsub.s32 %v1101, %v1103
      %v1105 = vrot.slane %v1091, %v1104
      %v1106 = vcombine.high %v1098, %v1098
      %v1107 = vcombine.high %v1105, %v1105
      %v1109 = vunpack.c.l.s4 1983009808
      %v1110 = vunpack.c.0.s8 %v1109
      %v1111 = vlaneseq
      %v1112 = vshrl.u32 %v1111, 7
      %v1113 = vsub.s32 %v1110, %v1112
      %v1114 = vrot.slane %v692, %v1113
      %v1115 = vcombine.high %v693, %v693
      %v1117 = vunpack.c.l.s4 1983009808
      %v1118 = vunpack.c.0.s8 %v1117
      %v1119 = vlaneseq
      %v1120 = vshrl.u32 %v1119, 7
      %v1121 = vsub.s32 %v1118, %v1120
      %v1122 = vrot.slane %v693, %v1121
      %v1124 = vunpack.c.l.s4 1983009808
      %v1125 = vunpack.c.0.s8 %v1124
      %v1126 = vlaneseq
      %v1127 = vshrl.u32 %v1126, 7
      %v1128 = vsub.s32 %v1125, %v1127
      %v1129 = vrot.slane %v1115, %v1128
      %v1130 = vcombine.high %v1122, %v1122
      %v1131 = vcombine.high %v1129, %v1129
      %v1132 = vcombine.high %v694, %v694
      %v1134 = vunpack.c.l.s4 1983009808
      %v1135 = vunpack.c.0.s8 %v1134
      %v1136 = vlaneseq
      %v1137 = vshrl.u32 %v1136, 7
      %v1138 = vsub.s32 %v1135, %v1137
      %v1139 = vrot.slane %v694, %v1138
      %v1141 = vunpack.c.l.s4 1983009808
      %v1142 = vunpack.c.0.s8 %v1141
      %v1143 = vlaneseq
      %v1144 = vshrl.u32 %v1143, 7
      %v1145 = vsub.s32 %v1142, %v1144
      %v1146 = vrot.slane %v1132, %v1145
      %v1147 = vcombine.high %v1139, %v1139
      %v1148 = vcombine.high %v1146, %v1146
      %v1150 = vunpack.c.l.s4 1983009808
      %v1151 = vunpack.c.0.s8 %v1150
      %v1152 = vlaneseq
      %v1153 = vshrl.u32 %v1152, 7
      %v1154 = vsub.s32 %v1151, %v1153
      %v1155 = vrot.slane %v695, %v1154
      %v1156 = vcombine.high %v696, %v696
      %v1158 = vunpack.c.l.s4 1983009808
      %v1159 = vunpack.c.0.s8 %v1158
      %v1160 = vlaneseq
      %v1161 = vshrl.u32 %v1160, 7
      %v1162 = vsub.s32 %v1159, %v1161
      %v1163 = vrot.slane %v696, %v1162
      %v1165 = vunpack.c.l.s4 1983009808
      %v1166 = vunpack.c.0.s8 %v1165
      %v1167 = vlaneseq
      %v1168 = vshrl.u32 %v1167, 7
      %v1169 = vsub.s32 %v1166, %v1168
      %v1170 = vrot.slane %v1156, %v1169
      %v1171 = vcombine.high %v1163, %v1163
      %v1172 = vcombine.high %v1170, %v1170
      %v1173 = vcombine.high %v697, %v697
      %v1175 = vunpack.c.l.s4 1983009808
      %v1176 = vunpack.c.0.s8 %v1175
      %v1177 = vlaneseq
      %v1178 = vshrl.u32 %v1177, 7
      %v1179 = vsub.s32 %v1176, %v1178
      %v1180 = vrot.slane %v697, %v1179
      %v1182 = vunpack.c.l.s4 1983009808
      %v1183 = vunpack.c.0.s8 %v1182
      %v1184 = vlaneseq
      %v1185 = vshrl.u32 %v1184, 7
      %v1186 = vsub.s32 %v1183, %v1185
      %v1187 = vrot.slane %v1173, %v1186
      %v1188 = vcombine.high %v1180, %v1180
      %v1189 = vcombine.high %v1187, %v1187
      %v1191 = vunpack.c.l.s4 1983009808
      %v1192 = vunpack.c.0.s8 %v1191
      %v1193 = vlaneseq
      %v1194 = vshrl.u32 %v1193, 7
      %v1195 = vsub.s32 %v1192, %v1194
      %v1196 = vrot.slane %v698, %v1195
      %v1197 = vcombine.high %v699, %v699
      %v1199 = vunpack.c.l.s4 1983009808
      %v1200 = vunpack.c.0.s8 %v1199
      %v1201 = vlaneseq
      %v1202 = vshrl.u32 %v1201, 7
      %v1203 = vsub.s32 %v1200, %v1202
      %v1204 = vrot.slane %v699, %v1203
      %v1206 = vunpack.c.l.s4 1983009808
      %v1207 = vunpack.c.0.s8 %v1206
      %v1208 = vlaneseq
      %v1209 = vshrl.u32 %v1208, 7
      %v1210 = vsub.s32 %v1207, %v1209
      %v1211 = vrot.slane %v1197, %v1210
      %v1212 = vcombine.high %v1204, %v1204
      %v1213 = vcombine.high %v1211, %v1211
      %v1214 = vcombine.high %v700, %v700
      %v1216 = vunpack.c.l.s4 1983009808
      %v1217 = vunpack.c.0.s8 %v1216
      %v1218 = vlaneseq
      %v1219 = vshrl.u32 %v1218, 7
      %v1220 = vsub.s32 %v1217, %v1219
      %v1221 = vrot.slane %v700, %v1220
      %v1223 = vunpack.c.l.s4 1983009808
      %v1224 = vunpack.c.0.s8 %v1223
      %v1225 = vlaneseq
      %v1226 = vshrl.u32 %v1225, 7
      %v1227 = vsub.s32 %v1224, %v1226
      %v1228 = vrot.slane %v1214, %v1227
      %v1229 = vcombine.high %v1221, %v1221
      %v1230 = vcombine.high %v1228, %v1228
      %v1232 = vunpack.c.l.s4 1983009808
      %v1233 = vunpack.c.0.s8 %v1232
      %v1234 = vlaneseq
      %v1235 = vshrl.u32 %v1234, 7
      %v1236 = vsub.s32 %v1233, %v1235
      %v1237 = vrot.slane %v701, %v1236
      %v1238 = vcombine.high %v702, %v702
      %v1240 = vunpack.c.l.s4 1983009808
      %v1241 = vunpack.c.0.s8 %v1240
      %v1242 = vlaneseq
      %v1243 = vshrl.u32 %v1242, 7
      %v1244 = vsub.s32 %v1241, %v1243
      %v1245 = vrot.slane %v702, %v1244
      %v1247 = vunpack.c.l.s4 1983009808
      %v1248 = vunpack.c.0.s8 %v1247
      %v1249 = vlaneseq
      %v1250 = vshrl.u32 %v1249, 7
      %v1251 = vsub.s32 %v1248, %v1250
      %v1252 = vrot.slane %v1238, %v1251
      %v1253 = vcombine.high %v1245, %v1245
      %v1254 = vcombine.high %v1252, %v1252
      %v1255 = vcombine.high %v703, %v703
      %v1257 = vunpack.c.l.s4 1983009808
      %v1258 = vunpack.c.0.s8 %v1257
      %v1259 = vlaneseq
      %v1260 = vshrl.u32 %v1259, 7
      %v1261 = vsub.s32 %v1258, %v1260
      %v1262 = vrot.slane %v703, %v1261
      %v1264 = vunpack.c.l.s4 1983009808
      %v1265 = vunpack.c.0.s8 %v1264
      %v1266 = vlaneseq
      %v1267 = vshrl.u32 %v1266, 7
      %v1268 = vsub.s32 %v1265, %v1267
      %v1269 = vrot.slane %v1255, %v1268
      %v1270 = vcombine.high %v1262, %v1262
      %v1271 = vcombine.high %v1269, %v1269
      %v1273 = vunpack.c.l.s4 1983009808
      %v1274 = vunpack.c.0.s8 %v1273
      %v1275 = vlaneseq
      %v1276 = vshrl.u32 %v1275, 7
      %v1277 = vsub.s32 %v1274, %v1276
      %v1278 = vrot.slane %v704, %v1277
      %v1279 = vcombine.high %v705, %v705
      %v1281 = vunpack.c.l.s4 1983009808
      %v1282 = vunpack.c.0.s8 %v1281
      %v1283 = vlaneseq
      %v1284 = vshrl.u32 %v1283, 7
      %v1285 = vsub.s32 %v1282, %v1284
      %v1286 = vrot.slane %v705, %v1285
      %v1288 = vunpack.c.l.s4 1983009808
      %v1289 = vunpack.c.0.s8 %v1288
      %v1290 = vlaneseq
      %v1291 = vshrl.u32 %v1290, 7
      %v1292 = vsub.s32 %v1289, %v1291
      %v1293 = vrot.slane %v1279, %v1292
      %v1294 = vcombine.high %v1286, %v1286
      %v1295 = vcombine.high %v1293, %v1293
      %v1296 = vcombine.high %v706, %v706
      %v1298 = vunpack.c.l.s4 1983009808
      %v1299 = vunpack.c.0.s8 %v1298
      %v1300 = vlaneseq
      %v1301 = vshrl.u32 %v1300, 7
      %v1302 = vsub.s32 %v1299, %v1301
      %v1303 = vrot.slane %v706, %v1302
      %v1305 = vunpack.c.l.s4 1983009808
      %v1306 = vunpack.c.0.s8 %v1305
      %v1307 = vlaneseq
      %v1308 = vshrl.u32 %v1307, 7
      %v1309 = vsub.s32 %v1306, %v1308
      %v1310 = vrot.slane %v1296, %v1309
      %v1311 = vcombine.high %v1303, %v1303
      %v1312 = vcombine.high %v1310, %v1310
      %v1314 = vunpack.c.l.s4 1983009808
      %v1315 = vunpack.c.0.s8 %v1314
      %v1316 = vlaneseq
      %v1317 = vshrl.u32 %v1316, 7
      %v1318 = vsub.s32 %v1315, %v1317
      %v1319 = vrot.slane %v707, %v1318
      %v1320 = vcombine.high %v708, %v708
      %v1322 = vunpack.c.l.s4 1983009808
      %v1323 = vunpack.c.0.s8 %v1322
      %v1324 = vlaneseq
      %v1325 = vshrl.u32 %v1324, 7
      %v1326 = vsub.s32 %v1323, %v1325
      %v1327 = vrot.slane %v708, %v1326
      %v1329 = vunpack.c.l.s4 1983009808
      %v1330 = vunpack.c.0.s8 %v1329
      %v1331 = vlaneseq
      %v1332 = vshrl.u32 %v1331, 7
      %v1333 = vsub.s32 %v1330, %v1332
      %v1334 = vrot.slane %v1320, %v1333
      %v1335 = vcombine.high %v1327, %v1327
      %v1336 = vcombine.high %v1334, %v1334
      %v1337 = vcombine.high %v709, %v709
      %v1339 = vunpack.c.l.s4 1983009808
      %v1340 = vunpack.c.0.s8 %v1339
      %v1341 = vlaneseq
      %v1342 = vshrl.u32 %v1341, 7
      %v1343 = vsub.s32 %v1340, %v1342
      %v1344 = vrot.slane %v709, %v1343
      %v1346 = vunpack.c.l.s4 1983009808
      %v1347 = vunpack.c.0.s8 %v1346
      %v1348 = vlaneseq
      %v1349 = vshrl.u32 %v1348, 7
      %v1350 = vsub.s32 %v1347, %v1349
      %v1351 = vrot.slane %v1337, %v1350
      %v1352 = vcombine.high %v1344, %v1344
      %v1353 = vcombine.high %v1351, %v1351
      %v1355 = vunpack.c.l.s4 1983009808
      %v1356 = vunpack.c.0.s8 %v1355
      %v1357 = vlaneseq
      %v1358 = vshrl.u32 %v1357, 7
      %v1359 = vsub.s32 %v1356, %v1358
      %v1360 = vrot.slane %v710, %v1359
      %v1361 = vcombine.high %v711, %v711
      %v1363 = vunpack.c.l.s4 1983009808
      %v1364 = vunpack.c.0.s8 %v1363
      %v1365 = vlaneseq
      %v1366 = vshrl.u32 %v1365, 7
      %v1367 = vsub.s32 %v1364, %v1366
      %v1368 = vrot.slane %v711, %v1367
      %v1370 = vunpack.c.l.s4 1983009808
      %v1371 = vunpack.c.0.s8 %v1370
      %v1372 = vlaneseq
      %v1373 = vshrl.u32 %v1372, 7
      %v1374 = vsub.s32 %v1371, %v1373
      %v1375 = vrot.slane %v1361, %v1374
      %v1376 = vcombine.high %v1368, %v1368
      %v1377 = vcombine.high %v1375, %v1375
      %v1378 = vcombine.high %v712, %v712
      %v1380 = vunpack.c.l.s4 1983009808
      %v1381 = vunpack.c.0.s8 %v1380
      %v1382 = vlaneseq
      %v1383 = vshrl.u32 %v1382, 7
      %v1384 = vsub.s32 %v1381, %v1383
      %v1385 = vrot.slane %v712, %v1384
      %v1387 = vunpack.c.l.s4 1983009808
      %v1388 = vunpack.c.0.s8 %v1387
      %v1389 = vlaneseq
      %v1390 = vshrl.u32 %v1389, 7
      %v1391 = vsub.s32 %v1388, %v1390
      %v1392 = vrot.slane %v1378, %v1391
      %v1393 = vcombine.high %v1385, %v1385
      %v1394 = vcombine.high %v1392, %v1392
      %v1396 = vunpack.c.l.s4 1983009808
      %v1397 = vunpack.c.0.s8 %v1396
      %v1398 = vlaneseq
      %v1399 = vshrl.u32 %v1398, 7
      %v1400 = vsub.s32 %v1397, %v1399
      %v1401 = vrot.slane %v713, %v1400
      %v1402 = vcombine.high %v714, %v714
      %v1404 = vunpack.c.l.s4 1983009808
      %v1405 = vunpack.c.0.s8 %v1404
      %v1406 = vlaneseq
      %v1407 = vshrl.u32 %v1406, 7
      %v1408 = vsub.s32 %v1405, %v1407
      %v1409 = vrot.slane %v714, %v1408
      %v1411 = vunpack.c.l.s4 1983009808
      %v1412 = vunpack.c.0.s8 %v1411
      %v1413 = vlaneseq
      %v1414 = vshrl.u32 %v1413, 7
      %v1415 = vsub.s32 %v1412, %v1414
      %v1416 = vrot.slane %v1402, %v1415
      %v1417 = vcombine.high %v1409, %v1409
      %v1418 = vcombine.high %v1416, %v1416
      %v1419 = vcombine.high %v715, %v715
      %v1421 = vunpack.c.l.s4 1983009808
      %v1422 = vunpack.c.0.s8 %v1421
      %v1423 = vlaneseq
      %v1424 = vshrl.u32 %v1423, 7
      %v1425 = vsub.s32 %v1422, %v1424
      %v1426 = vrot.slane %v715, %v1425
      %v1428 = vunpack.c.l.s4 1983009808
      %v1429 = vunpack.c.0.s8 %v1428
      %v1430 = vlaneseq
      %v1431 = vshrl.u32 %v1430, 7
      %v1432 = vsub.s32 %v1429, %v1431
      %v1433 = vrot.slane %v1419, %v1432
      %v1434 = vcombine.high %v1426, %v1426
      %v1435 = vcombine.high %v1433, %v1433
      %v1437 = vunpack.c.l.s4 1983009808
      %v1438 = vunpack.c.0.s8 %v1437
      %v1439 = vlaneseq
      %v1440 = vshrl.u32 %v1439, 7
      %v1441 = vsub.s32 %v1438, %v1440
      %v1442 = vrot.slane %v716, %v1441
      %v1443 = vcombine.high %v717, %v717
      %v1445 = vunpack.c.l.s4 1983009808
      %v1446 = vunpack.c.0.s8 %v1445
      %v1447 = vlaneseq
      %v1448 = vshrl.u32 %v1447, 7
      %v1449 = vsub.s32 %v1446, %v1448
      %v1450 = vrot.slane %v717, %v1449
      %v1452 = vunpack.c.l.s4 1983009808
      %v1453 = vunpack.c.0.s8 %v1452
      %v1454 = vlaneseq
      %v1455 = vshrl.u32 %v1454, 7
      %v1456 = vsub.s32 %v1453, %v1455
      %v1457 = vrot.slane %v1443, %v1456
      %v1458 = vcombine.high %v1450, %v1450
      %v1459 = vcombine.high %v1457, %v1457
      %v1460 = vcombine.high %v718, %v718
      %v1462 = vunpack.c.l.s4 1983009808
      %v1463 = vunpack.c.0.s8 %v1462
      %v1464 = vlaneseq
      %v1465 = vshrl.u32 %v1464, 7
      %v1466 = vsub.s32 %v1463, %v1465
      %v1467 = vrot.slane %v718, %v1466
      %v1469 = vunpack.c.l.s4 1983009808
      %v1470 = vunpack.c.0.s8 %v1469
      %v1471 = vlaneseq
      %v1472 = vshrl.u32 %v1471, 7
      %v1473 = vsub.s32 %v1470, %v1472
      %v1474 = vrot.slane %v1460, %v1473
      %v1475 = vcombine.high %v1467, %v1467
      %v1476 = vcombine.high %v1474, %v1474
      %v1478 = vunpack.c.l.s4 1983009808
      %v1479 = vunpack.c.0.s8 %v1478
      %v1480 = vlaneseq
      %v1481 = vshrl.u32 %v1480, 7
      %v1482 = vsub.s32 %v1479, %v1481
      %v1483 = vrot.slane %v719, %v1482
      %v1484 = vld [vmem:[%s6] sm:$0xf]
      %v1488 = vcombine.high %v720, %v720
      %v1490 = vunpack.c.l.s4 1983009808
      %v1491 = vunpack.c.0.s8 %v1490
      %v1492 = vlaneseq
      %v1493 = vshrl.u32 %v1492, 7
      %v1494 = vsub.s32 %v1491, %v1493
      %v1495 = vrot.slane %v720, %v1494
      %v1497 = vunpack.c.l.s4 1983009808
      %v1498 = vunpack.c.0.s8 %v1497
      %v1499 = vlaneseq
      %v1500 = vshrl.u32 %v1499, 7
      %v1501 = vsub.s32 %v1498, %v1500
      %v1502 = vrot.slane %v1488, %v1501
      %v1503 = vcombine.high %v1495, %v1495
      %v1504 = vcombine.high %v1502, %v1502
      %v1505 = vcombine.high %v721, %v721
      %v1507 = vunpack.c.l.s4 1983009808
      %v1508 = vunpack.c.0.s8 %v1507
      %v1509 = vlaneseq
      %v1510 = vshrl.u32 %v1509, 7
      %v1511 = vsub.s32 %v1508, %v1510
      %v1512 = vrot.slane %v721, %v1511
      %v1514 = vunpack.c.l.s4 1983009808
      %v1515 = vunpack.c.0.s8 %v1514
      %v1516 = vlaneseq
      %v1517 = vshrl.u32 %v1516, 7
      %v1518 = vsub.s32 %v1515, %v1517
      %v1519 = vrot.slane %v1505, %v1518
      %v1520 = vcombine.high %v1512, %v1512
      %v1521 = vcombine.high %v1519, %v1519
      %v1523 = vunpack.c.l.s4 1983009808
      %v1524 = vunpack.c.0.s8 %v1523
      %v1525 = vlaneseq
      %v1526 = vshrl.u32 %v1525, 7
      %v1527 = vsub.s32 %v1524, %v1526
      %v1528 = vrot.slane %v722, %v1527
      %s1529 = scalar_lea.vmem %s6, 4
      %v1530 = vld [vmem:[%s1529] sm:$0xf]
      %v1531 = vcombine.low %v876, %v884
      %v1532 = vcombine.low %v883, %v885
      %v1534 = vunpack.c.l.s4 1983009808
      %v1535 = vunpack.c.0.s8 %v1534
      %v1536 = vlaneseq
      %v1537 = vshrl.u32 %v1536, 7
      %v1538 = vsub.s32 %v1535, %v1537
      %v1539 = vrot.slane %v1531, %v1538
      %v1541 = vunpack.c.l.s4 1983009808
      %v1542 = vunpack.c.0.s8 %v1541
      %v1543 = vlaneseq
      %v1544 = vshrl.u32 %v1543, 7
      %v1545 = vsub.s32 %v1542, %v1544
      %v1546 = vrot.slane %v1532, %v1545
      %v1547 = vcombine.low %v1539, %v1546
      %v1548 = vcombine.low %v893, %v901
      %v1549 = vcombine.low %v900, %v902
      %v1551 = vunpack.c.l.s4 1983009808
      %v1552 = vunpack.c.0.s8 %v1551
      %v1553 = vlaneseq
      %v1554 = vshrl.u32 %v1553, 7
      %v1555 = vsub.s32 %v1552, %v1554
      %v1556 = vrot.slane %v1548, %v1555
      %v1558 = vunpack.c.l.s4 1983009808
      %v1559 = vunpack.c.0.s8 %v1558
      %v1560 = vlaneseq
      %v1561 = vshrl.u32 %v1560, 7
      %v1562 = vsub.s32 %v1559, %v1561
      %v1563 = vrot.slane %v1549, %v1562
      %v1564 = vcombine.low %v1556, %v1563
      %v1565 = vcombine.low %v909, %v917
      %v1566 = vcombine.low %v925, %v924
      %v1568 = vunpack.c.l.s4 1983009808
      %v1569 = vunpack.c.0.s8 %v1568
      %v1570 = vlaneseq
      %v1571 = vshrl.u32 %v1570, 7
      %v1572 = vsub.s32 %v1569, %v1571
      %v1573 = vrot.slane %v1565, %v1572
      %v1575 = vunpack.c.l.s4 1983009808
      %v1576 = vunpack.c.0.s8 %v1575
      %v1577 = vlaneseq
      %v1578 = vshrl.u32 %v1577, 7
      %v1579 = vsub.s32 %v1576, %v1578
      %v1580 = vrot.slane %v1566, %v1579
      %v1581 = vcombine.low %v1573, %v1580
      %v1582 = vcombine.low %v926, %v934
      %v1583 = vcombine.low %v942, %v941
      %v1585 = vunpack.c.l.s4 1983009808
      %v1586 = vunpack.c.0.s8 %v1585
      %v1587 = vlaneseq
      %v1588 = vshrl.u32 %v1587, 7
      %v1589 = vsub.s32 %v1586, %v1588
      %v1590 = vrot.slane %v1582, %v1589
      %v1592 = vunpack.c.l.s4 1983009808
      %v1593 = vunpack.c.0.s8 %v1592
      %v1594 = vlaneseq
      %v1595 = vshrl.u32 %v1594, 7
      %v1596 = vsub.s32 %v1593, %v1595
      %v1597 = vrot.slane %v1583, %v1596
      %v1598 = vcombine.low %v1590, %v1597
      %v1599 = vcombine.low %v943, %v950
      %v1600 = vcombine.low %v958, %v966
      %v1602 = vunpack.c.l.s4 1983009808
      %v1603 = vunpack.c.0.s8 %v1602
      %v1604 = vlaneseq
      %v1605 = vshrl.u32 %v1604, 7
      %v1606 = vsub.s32 %v1603, %v1605
      %v1607 = vrot.slane %v1599, %v1606
      %v1609 = vunpack.c.l.s4 1983009808
      %v1610 = vunpack.c.0.s8 %v1609
      %v1611 = vlaneseq
      %v1612 = vshrl.u32 %v1611, 7
      %v1613 = vsub.s32 %v1610, %v1612
      %v1614 = vrot.slane %v1600, %v1613
      %v1615 = vcombine.low %v1607, %v1614
      %v1616 = vcombine.low %v965, %v967
      %v1617 = vcombine.low %v975, %v983
      %v1619 = vunpack.c.l.s4 1983009808
      %v1620 = vunpack.c.0.s8 %v1619
      %v1621 = vlaneseq
      %v1622 = vshrl.u32 %v1621, 7
      %v1623 = vsub.s32 %v1620, %v1622
      %v1624 = vrot.slane %v1616, %v1623
      %v1626 = vunpack.c.l.s4 1983009808
      %v1627 = vunpack.c.0.s8 %v1626
      %v1628 = vlaneseq
      %v1629 = vshrl.u32 %v1628, 7
      %v1630 = vsub.s32 %v1627, %v1629
      %v1631 = vrot.slane %v1617, %v1630
      %v1632 = vcombine.low %v1624, %v1631
      %v1633 = vcombine.low %v982, %v984
      %v1634 = vcombine.low %v991, %v999
      %v1636 = vunpack.c.l.s4 1983009808
      %v1637 = vunpack.c.0.s8 %v1636
      %v1638 = vlaneseq
      %v1639 = vshrl.u32 %v1638, 7
      %v1640 = vsub.s32 %v1637, %v1639
      %v1641 = vrot.slane %v1633, %v1640
      %v1643 = vunpack.c.l.s4 1983009808
      %v1644 = vunpack.c.0.s8 %v1643
      %v1645 = vlaneseq
      %v1646 = vshrl.u32 %v1645, 7
      %v1647 = vsub.s32 %v1644, %v1646
      %v1648 = vrot.slane %v1634, %v1647
      %v1649 = vcombine.low %v1641, %v1648
      %v1650 = vcombine.low %v1007, %v1006
      %v1651 = vcombine.low %v1008, %v1016
      %v1653 = vunpack.c.l.s4 1983009808
      %v1654 = vunpack.c.0.s8 %v1653
      %v1655 = vlaneseq
      %v1656 = vshrl.u32 %v1655, 7
      %v1657 = vsub.s32 %v1654, %v1656
      %v1658 = vrot.slane %v1650, %v1657
      %v1660 = vunpack.c.l.s4 1983009808
      %v1661 = vunpack.c.0.s8 %v1660
      %v1662 = vlaneseq
      %v1663 = vshrl.u32 %v1662, 7
      %v1664 = vsub.s32 %v1661, %v1663
      %v1665 = vrot.slane %v1651, %v1664
      %v1666 = vcombine.low %v1658, %v1665
      %v1667 = vcombine.low %v1024, %v1023
      %v1668 = vcombine.low %v1025, %v1032
      %v1670 = vunpack.c.l.s4 1983009808
      %v1671 = vunpack.c.0.s8 %v1670
      %v1672 = vlaneseq
      %v1673 = vshrl.u32 %v1672, 7
      %v1674 = vsub.s32 %v1671, %v1673
      %v1675 = vrot.slane %v1667, %v1674
      %v1677 = vunpack.c.l.s4 1983009808
      %v1678 = vunpack.c.0.s8 %v1677
      %v1679 = vlaneseq
      %v1680 = vshrl.u32 %v1679, 7
      %v1681 = vsub.s32 %v1678, %v1680
      %v1682 = vrot.slane %v1668, %v1681
      %v1683 = vcombine.low %v1675, %v1682
      %v1684 = vcombine.low %v1040, %v1048
      %v1685 = vcombine.low %v1047, %v1049
      %v1687 = vunpack.c.l.s4 1983009808
      %v1688 = vunpack.c.0.s8 %v1687
      %v1689 = vlaneseq
      %v1690 = vshrl.u32 %v1689, 7
      %v1691 = vsub.s32 %v1688, %v1690
      %v1692 = vrot.slane %v1684, %v1691
      %v1694 = vunpack.c.l.s4 1983009808
      %v1695 = vunpack.c.0.s8 %v1694
      %v1696 = vlaneseq
      %v1697 = vshrl.u32 %v1696, 7
      %v1698 = vsub.s32 %v1695, %v1697
      %v1699 = vrot.slane %v1685, %v1698
      %v1700 = vcombine.low %v1692, %v1699
      %v1701 = vcombine.low %v1057, %v1065
      %v1702 = vcombine.low %v1064, %v1066
      %v1704 = vunpack.c.l.s4 1983009808
      %v1705 = vunpack.c.0.s8 %v1704
      %v1706 = vlaneseq
      %v1707 = vshrl.u32 %v1706, 7
      %v1708 = vsub.s32 %v1705, %v1707
      %v1709 = vrot.slane %v1701, %v1708
      %v1711 = vunpack.c.l.s4 1983009808
      %v1712 = vunpack.c.0.s8 %v1711
      %v1713 = vlaneseq
      %v1714 = vshrl.u32 %v1713, 7
      %v1715 = vsub.s32 %v1712, %v1714
      %v1716 = vrot.slane %v1702, %v1715
      %v1717 = vcombine.low %v1709, %v1716
      %v1718 = vcombine.low %v1073, %v1081
      %v1719 = vcombine.low %v1089, %v1088
      %v1721 = vunpack.c.l.s4 1983009808
      %v1722 = vunpack.c.0.s8 %v1721
      %v1723 = vlaneseq
      %v1724 = vshrl.u32 %v1723, 7
      %v1725 = vsub.s32 %v1722, %v1724
      %v1726 = vrot.slane %v1718, %v1725
      %v1728 = vunpack.c.l.s4 1983009808
      %v1729 = vunpack.c.0.s8 %v1728
      %v1730 = vlaneseq
      %v1731 = vshrl.u32 %v1730, 7
      %v1732 = vsub.s32 %v1729, %v1731
      %v1733 = vrot.slane %v1719, %v1732
      %v1734 = vcombine.low %v1726, %v1733
      %v1735 = vcombine.low %v1090, %v1098
      %v1736 = vcombine.low %v1106, %v1105
      %v1738 = vunpack.c.l.s4 1983009808
      %v1739 = vunpack.c.0.s8 %v1738
      %v1740 = vlaneseq
      %v1741 = vshrl.u32 %v1740, 7
      %v1742 = vsub.s32 %v1739, %v1741
      %v1743 = vrot.slane %v1735, %v1742
      %v1745 = vunpack.c.l.s4 1983009808
      %v1746 = vunpack.c.0.s8 %v1745
      %v1747 = vlaneseq
      %v1748 = vshrl.u32 %v1747, 7
      %v1749 = vsub.s32 %v1746, %v1748
      %v1750 = vrot.slane %v1736, %v1749
      %v1751 = vcombine.low %v1743, %v1750
      %v1752 = vcombine.low %v1107, %v1114
      %v1753 = vcombine.low %v1122, %v1130
      %v1755 = vunpack.c.l.s4 1983009808
      %v1756 = vunpack.c.0.s8 %v1755
      %v1757 = vlaneseq
      %v1758 = vshrl.u32 %v1757, 7
      %v1759 = vsub.s32 %v1756, %v1758
      %v1760 = vrot.slane %v1752, %v1759
      %v1762 = vunpack.c.l.s4 1983009808
      %v1763 = vunpack.c.0.s8 %v1762
      %v1764 = vlaneseq
      %v1765 = vshrl.u32 %v1764, 7
      %v1766 = vsub.s32 %v1763, %v1765
      %v1767 = vrot.slane %v1753, %v1766
      %v1768 = vcombine.low %v1760, %v1767
      %v1769 = vcombine.low %v1129, %v1131
      %v1770 = vcombine.low %v1139, %v1147
      %v1772 = vunpack.c.l.s4 1983009808
      %v1773 = vunpack.c.0.s8 %v1772
      %v1774 = vlaneseq
      %v1775 = vshrl.u32 %v1774, 7
      %v1776 = vsub.s32 %v1773, %v1775
      %v1777 = vrot.slane %v1769, %v1776
      %v1779 = vunpack.c.l.s4 1983009808
      %v1780 = vunpack.c.0.s8 %v1779
      %v1781 = vlaneseq
      %v1782 = vshrl.u32 %v1781, 7
      %v1783 = vsub.s32 %v1780, %v1782
      %v1784 = vrot.slane %v1770, %v1783
      %v1785 = vcombine.low %v1777, %v1784
      %v1786 = vcombine.low %v1146, %v1148
      %v1787 = vcombine.low %v1155, %v1163
      %v1789 = vunpack.c.l.s4 1983009808
      %v1790 = vunpack.c.0.s8 %v1789
      %v1791 = vlaneseq
      %v1792 = vshrl.u32 %v1791, 7
      %v1793 = vsub.s32 %v1790, %v1792
      %v1794 = vrot.slane %v1786, %v1793
      %v1796 = vunpack.c.l.s4 1983009808
      %v1797 = vunpack.c.0.s8 %v1796
      %v1798 = vlaneseq
      %v1799 = vshrl.u32 %v1798, 7
      %v1800 = vsub.s32 %v1797, %v1799
      %v1801 = vrot.slane %v1787, %v1800
      %v1802 = vcombine.low %v1794, %v1801
      %v1803 = vcombine.low %v1171, %v1170
      %v1804 = vcombine.low %v1172, %v1180
      %v1806 = vunpack.c.l.s4 1983009808
      %v1807 = vunpack.c.0.s8 %v1806
      %v1808 = vlaneseq
      %v1809 = vshrl.u32 %v1808, 7
      %v1810 = vsub.s32 %v1807, %v1809
      %v1811 = vrot.slane %v1803, %v1810
      %v1813 = vunpack.c.l.s4 1983009808
      %v1814 = vunpack.c.0.s8 %v1813
      %v1815 = vlaneseq
      %v1816 = vshrl.u32 %v1815, 7
      %v1817 = vsub.s32 %v1814, %v1816
      %v1818 = vrot.slane %v1804, %v1817
      %v1819 = vcombine.low %v1811, %v1818
      %v1820 = vcombine.low %v1188, %v1187
      %v1821 = vcombine.low %v1189, %v1196
      %v1823 = vunpack.c.l.s4 1983009808
      %v1824 = vunpack.c.0.s8 %v1823
      %v1825 = vlaneseq
      %v1826 = vshrl.u32 %v1825, 7
      %v1827 = vsub.s32 %v1824, %v1826
      %v1828 = vrot.slane %v1820, %v1827
      %v1830 = vunpack.c.l.s4 1983009808
      %v1831 = vunpack.c.0.s8 %v1830
      %v1832 = vlaneseq
      %v1833 = vshrl.u32 %v1832, 7
      %v1834 = vsub.s32 %v1831, %v1833
      %v1835 = vrot.slane %v1821, %v1834
      %v1836 = vcombine.low %v1828, %v1835
      %v1837 = vcombine.low %v1204, %v1212
      %v1838 = vcombine.low %v1211, %v1213
      %v1840 = vunpack.c.l.s4 1983009808
      %v1841 = vunpack.c.0.s8 %v1840
      %v1842 = vlaneseq
      %v1843 = vshrl.u32 %v1842, 7
      %v1844 = vsub.s32 %v1841, %v1843
      %v1845 = vrot.slane %v1837, %v1844
      %v1847 = vunpack.c.l.s4 1983009808
      %v1848 = vunpack.c.0.s8 %v1847
      %v1849 = vlaneseq
      %v1850 = vshrl.u32 %v1849, 7
      %v1851 = vsub.s32 %v1848, %v1850
      %v1852 = vrot.slane %v1838, %v1851
      %v1853 = vcombine.low %v1845, %v1852
      %v1854 = vcombine.low %v1221, %v1229
      %v1855 = vcombine.low %v1228, %v1230
      %v1857 = vunpack.c.l.s4 1983009808
      %v1858 = vunpack.c.0.s8 %v1857
      %v1859 = vlaneseq
      %v1860 = vshrl.u32 %v1859, 7
      %v1861 = vsub.s32 %v1858, %v1860
      %v1862 = vrot.slane %v1854, %v1861
      %v1864 = vunpack.c.l.s4 1983009808
      %v1865 = vunpack.c.0.s8 %v1864
      %v1866 = vlaneseq
      %v1867 = vshrl.u32 %v1866, 7
      %v1868 = vsub.s32 %v1865, %v1867
      %v1869 = vrot.slane %v1855, %v1868
      %v1870 = vcombine.low %v1862, %v1869
      %v1871 = vcombine.low %v1237, %v1245
      %v1872 = vcombine.low %v1253, %v1252
      %v1874 = vunpack.c.l.s4 1983009808
      %v1875 = vunpack.c.0.s8 %v1874
      %v1876 = vlaneseq
      %v1877 = vshrl.u32 %v1876, 7
      %v1878 = vsub.s32 %v1875, %v1877
      %v1879 = vrot.slane %v1871, %v1878
      %v1881 = vunpack.c.l.s4 1983009808
      %v1882 = vunpack.c.0.s8 %v1881
      %v1883 = vlaneseq
      %v1884 = vshrl.u32 %v1883, 7
      %v1885 = vsub.s32 %v1882, %v1884
      %v1886 = vrot.slane %v1872, %v1885
      %v1887 = vcombine.low %v1879, %v1886
      %v1888 = vcombine.low %v1254, %v1262
      %v1889 = vcombine.low %v1270, %v1269
      %v1891 = vunpack.c.l.s4 1983009808
      %v1892 = vunpack.c.0.s8 %v1891
      %v1893 = vlaneseq
      %v1894 = vshrl.u32 %v1893, 7
      %v1895 = vsub.s32 %v1892, %v1894
      %v1896 = vrot.slane %v1888, %v1895
      %v1898 = vunpack.c.l.s4 1983009808
      %v1899 = vunpack.c.0.s8 %v1898
      %v1900 = vlaneseq
      %v1901 = vshrl.u32 %v1900, 7
      %v1902 = vsub.s32 %v1899, %v1901
      %v1903 = vrot.slane %v1889, %v1902
      %v1904 = vcombine.low %v1896, %v1903
      %v1905 = vcombine.low %v1271, %v1278
      %v1906 = vcombine.low %v1286, %v1294
      %v1908 = vunpack.c.l.s4 1983009808
      %v1909 = vunpack.c.0.s8 %v1908
      %v1910 = vlaneseq
      %v1911 = vshrl.u32 %v1910, 7
      %v1912 = vsub.s32 %v1909, %v1911
      %v1913 = vrot.slane %v1905, %v1912
      %v1915 = vunpack.c.l.s4 1983009808
      %v1916 = vunpack.c.0.s8 %v1915
      %v1917 = vlaneseq
      %v1918 = vshrl.u32 %v1917, 7
      %v1919 = vsub.s32 %v1916, %v1918
      %v1920 = vrot.slane %v1906, %v1919
      %v1921 = vcombine.low %v1913, %v1920
      %v1922 = vcombine.low %v1293, %v1295
      %v1923 = vcombine.low %v1303, %v1311
      %v1925 = vunpack.c.l.s4 1983009808
      %v1926 = vunpack.c.0.s8 %v1925
      %v1927 = vlaneseq
      %v1928 = vshrl.u32 %v1927, 7
      %v1929 = vsub.s32 %v1926, %v1928
      %v1930 = vrot.slane %v1922, %v1929
      %v1932 = vunpack.c.l.s4 1983009808
      %v1933 = vunpack.c.0.s8 %v1932
      %v1934 = vlaneseq
      %v1935 = vshrl.u32 %v1934, 7
      %v1936 = vsub.s32 %v1933, %v1935
      %v1937 = vrot.slane %v1923, %v1936
      %v1938 = vcombine.low %v1930, %v1937
      %v1939 = vcombine.low %v1310, %v1312
      %v1940 = vcombine.low %v1319, %v1327
      %v1942 = vunpack.c.l.s4 1983009808
      %v1943 = vunpack.c.0.s8 %v1942
      %v1944 = vlaneseq
      %v1945 = vshrl.u32 %v1944, 7
      %v1946 = vsub.s32 %v1943, %v1945
      %v1947 = vrot.slane %v1939, %v1946
      %v1949 = vunpack.c.l.s4 1983009808
      %v1950 = vunpack.c.0.s8 %v1949
      %v1951 = vlaneseq
      %v1952 = vshrl.u32 %v1951, 7
      %v1953 = vsub.s32 %v1950, %v1952
      %v1954 = vrot.slane %v1940, %v1953
      %v1955 = vcombine.low %v1947, %v1954
      %v1956 = vcombine.low %v1335, %v1334
      %v1957 = vcombine.low %v1336, %v1344
      %v1959 = vunpack.c.l.s4 1983009808
      %v1960 = vunpack.c.0.s8 %v1959
      %v1961 = vlaneseq
      %v1962 = vshrl.u32 %v1961, 7
      %v1963 = vsub.s32 %v1960, %v1962
      %v1964 = vrot.slane %v1956, %v1963
      %v1966 = vunpack.c.l.s4 1983009808
      %v1967 = vunpack.c.0.s8 %v1966
      %v1968 = vlaneseq
      %v1969 = vshrl.u32 %v1968, 7
      %v1970 = vsub.s32 %v1967, %v1969
      %v1971 = vrot.slane %v1957, %v1970
      %v1972 = vcombine.low %v1964, %v1971
      %v1973 = vcombine.low %v1352, %v1351
      %v1974 = vcombine.low %v1353, %v1360
      %v1976 = vunpack.c.l.s4 1983009808
      %v1977 = vunpack.c.0.s8 %v1976
      %v1978 = vlaneseq
      %v1979 = vshrl.u32 %v1978, 7
      %v1980 = vsub.s32 %v1977, %v1979
      %v1981 = vrot.slane %v1973, %v1980
      %v1983 = vunpack.c.l.s4 1983009808
      %v1984 = vunpack.c.0.s8 %v1983
      %v1985 = vlaneseq
      %v1986 = vshrl.u32 %v1985, 7
      %v1987 = vsub.s32 %v1984, %v1986
      %v1988 = vrot.slane %v1974, %v1987
      %v1989 = vcombine.low %v1981, %v1988
      %v1990 = vcombine.low %v1368, %v1376
      %v1991 = vcombine.low %v1375, %v1377
      %v1993 = vunpack.c.l.s4 1983009808
      %v1994 = vunpack.c.0.s8 %v1993
      %v1995 = vlaneseq
      %v1996 = vshrl.u32 %v1995, 7
      %v1997 = vsub.s32 %v1994, %v1996
      %v1998 = vrot.slane %v1990, %v1997
      %v2000 = vunpack.c.l.s4 1983009808
      %v2001 = vunpack.c.0.s8 %v2000
      %v2002 = vlaneseq
      %v2003 = vshrl.u32 %v2002, 7
      %v2004 = vsub.s32 %v2001, %v2003
      %v2005 = vrot.slane %v1991, %v2004
      %v2006 = vcombine.low %v1998, %v2005
      %v2007 = vcombine.low %v1385, %v1393
      %v2008 = vcombine.low %v1392, %v1394
      %v2010 = vunpack.c.l.s4 1983009808
      %v2011 = vunpack.c.0.s8 %v2010
      %v2012 = vlaneseq
      %v2013 = vshrl.u32 %v2012, 7
      %v2014 = vsub.s32 %v2011, %v2013
      %v2015 = vrot.slane %v2007, %v2014
      %v2017 = vunpack.c.l.s4 1983009808
      %v2018 = vunpack.c.0.s8 %v2017
      %v2019 = vlaneseq
      %v2020 = vshrl.u32 %v2019, 7
      %v2021 = vsub.s32 %v2018, %v2020
      %v2022 = vrot.slane %v2008, %v2021
      %v2023 = vcombine.low %v2015, %v2022
      %v2024 = vcombine.low %v1401, %v1409
      %v2025 = vcombine.low %v1417, %v1416
      %v2027 = vunpack.c.l.s4 1983009808
      %v2028 = vunpack.c.0.s8 %v2027
      %v2029 = vlaneseq
      %v2030 = vshrl.u32 %v2029, 7
      %v2031 = vsub.s32 %v2028, %v2030
      %v2032 = vrot.slane %v2024, %v2031
      %v2034 = vunpack.c.l.s4 1983009808
      %v2035 = vunpack.c.0.s8 %v2034
      %v2036 = vlaneseq
      %v2037 = vshrl.u32 %v2036, 7
      %v2038 = vsub.s32 %v2035, %v2037
      %v2039 = vrot.slane %v2025, %v2038
      %v2040 = vcombine.low %v2032, %v2039
      %v2041 = vcombine.low %v1418, %v1426
      %v2042 = vcombine.low %v1434, %v1433
      %v2044 = vunpack.c.l.s4 1983009808
      %v2045 = vunpack.c.0.s8 %v2044
      %v2046 = vlaneseq
      %v2047 = vshrl.u32 %v2046, 7
      %v2048 = vsub.s32 %v2045, %v2047
      %v2049 = vrot.slane %v2041, %v2048
      %v2051 = vunpack.c.l.s4 1983009808
      %v2052 = vunpack.c.0.s8 %v2051
      %v2053 = vlaneseq
      %v2054 = vshrl.u32 %v2053, 7
      %v2055 = vsub.s32 %v2052, %v2054
      %v2056 = vrot.slane %v2042, %v2055
      %v2057 = vcombine.low %v2049, %v2056
      %v2058 = vcombine.low %v1435, %v1442
      %v2059 = vcombine.low %v1450, %v1458
      %v2061 = vunpack.c.l.s4 1983009808
      %v2062 = vunpack.c.0.s8 %v2061
      %v2063 = vlaneseq
      %v2064 = vshrl.u32 %v2063, 7
      %v2065 = vsub.s32 %v2062, %v2064
      %v2066 = vrot.slane %v2058, %v2065
      %v2068 = vunpack.c.l.s4 1983009808
      %v2069 = vunpack.c.0.s8 %v2068
      %v2070 = vlaneseq
      %v2071 = vshrl.u32 %v2070, 7
      %v2072 = vsub.s32 %v2069, %v2071
      %v2073 = vrot.slane %v2059, %v2072
      %v2074 = vcombine.low %v2066, %v2073
      %v2075 = vcombine.low %v1457, %v1459
      %v2076 = vcombine.low %v1467, %v1475
      %v2078 = vunpack.c.l.s4 1983009808
      %v2079 = vunpack.c.0.s8 %v2078
      %v2080 = vlaneseq
      %v2081 = vshrl.u32 %v2080, 7
      %v2082 = vsub.s32 %v2079, %v2081
      %v2083 = vrot.slane %v2075, %v2082
      %v2085 = vunpack.c.l.s4 1983009808
      %v2086 = vunpack.c.0.s8 %v2085
      %v2087 = vlaneseq
      %v2088 = vshrl.u32 %v2087, 7
      %v2089 = vsub.s32 %v2086, %v2088
      %v2090 = vrot.slane %v2076, %v2089
      %v2091 = vcombine.low %v2083, %v2090
      %v2092 = vcombine.low %v1474, %v1476
      %v2093 = vcombine.low %v1483, %v1495
      %v2095 = vunpack.c.l.s4 1983009808
      %v2096 = vunpack.c.0.s8 %v2095
      %v2097 = vlaneseq
      %v2098 = vshrl.u32 %v2097, 7
      %v2099 = vsub.s32 %v2096, %v2098
      %v2100 = vrot.slane %v2092, %v2099
      %v2102 = vunpack.c.l.s4 1983009808
      %v2103 = vunpack.c.0.s8 %v2102
      %v2104 = vlaneseq
      %v2105 = vshrl.u32 %v2104, 7
      %v2106 = vsub.s32 %v2103, %v2105
      %v2107 = vrot.slane %v2093, %v2106
      %v2108 = vcombine.low %v2100, %v2107
      %v2109 = vcombine.low %v1503, %v1502
      %v2110 = vcombine.low %v1504, %v1512
      %v2112 = vunpack.c.l.s4 1983009808
      %v2113 = vunpack.c.0.s8 %v2112
      %v2114 = vlaneseq
      %v2115 = vshrl.u32 %v2114, 7
      %v2116 = vsub.s32 %v2113, %v2115
      %v2117 = vrot.slane %v2109, %v2116
      %v2119 = vunpack.c.l.s4 1983009808
      %v2120 = vunpack.c.0.s8 %v2119
      %v2121 = vlaneseq
      %v2122 = vshrl.u32 %v2121, 7
      %v2123 = vsub.s32 %v2120, %v2122
      %v2124 = vrot.slane %v2110, %v2123
      %v2125 = vcombine.low %v2117, %v2124
      %v2126 = vcombine.low %v1520, %v1519
      %v2127 = vcombine.low %v1521, %v1528
      %v2129 = vunpack.c.l.s4 1983009808
      %v2130 = vunpack.c.0.s8 %v2129
      %v2131 = vlaneseq
      %v2132 = vshrl.u32 %v2131, 7
      %v2133 = vsub.s32 %v2130, %v2132
      %v2134 = vrot.slane %v2126, %v2133
      %v2136 = vunpack.c.l.s4 1983009808
      %v2137 = vunpack.c.0.s8 %v2136
      %v2138 = vlaneseq
      %v2139 = vshrl.u32 %v2138, 7
      %v2140 = vsub.s32 %v2137, %v2139
      %v2141 = vrot.slane %v2127, %v2140
      %v2142 = vcombine.low %v2134, %v2141
      %vm2143 = vcmask 31744
      %v2144 = vsel %vm2143, %v1547, 0
      %v2146 = vsel %vm2143, %v1564, 0
      %v2148 = vsel %vm2143, %v1581, 0
      %v2150 = vsel %vm2143, %v1598, 0
      %v2152 = vsel %vm2143, %v1615, 0
      %v2154 = vsel %vm2143, %v1632, 0
      %v2156 = vsel %vm2143, %v1649, 0
      %v2158 = vsel %vm2143, %v1666, 0
      %v2160 = vsel %vm2143, %v1683, 0
      %v2162 = vsel %vm2143, %v1700, 0
      %v2164 = vsel %vm2143, %v1717, 0
      %v2166 = vsel %vm2143, %v1734, 0
      %v2168 = vsel %vm2143, %v1751, 0
      %v2170 = vsel %vm2143, %v1768, 0
      %v2172 = vsel %vm2143, %v1785, 0
      %v2174 = vsel %vm2143, %v1802, 0
      %v2176 = vsel %vm2143, %v1819, 0
      %v2178 = vsel %vm2143, %v1836, 0
      %v2180 = vsel %vm2143, %v1853, 0
      %v2182 = vsel %vm2143, %v1870, 0
      %v2184 = vsel %vm2143, %v1887, 0
      %v2186 = vsel %vm2143, %v1904, 0
      %v2188 = vsel %vm2143, %v1921, 0
      %v2190 = vsel %vm2143, %v1938, 0
      %v2192 = vsel %vm2143, %v1955, 0
      %v2194 = vsel %vm2143, %v1972, 0
      %v2196 = vsel %vm2143, %v1989, 0
      %v2198 = vsel %vm2143, %v2006, 0
      %v2200 = vsel %vm2143, %v2023, 0
      %v2202 = vsel %vm2143, %v2040, 0
      %v2204 = vsel %vm2143, %v2057, 0
      %v2206 = vsel %vm2143, %v2074, 0
      %v2208 = vsel %vm2143, %v2091, 0
      %v2210 = vsel %vm2143, %v2108, 0
      %v2212 = vsel %vm2143, %v2125, 0
      %v2214 = vsel %vm2143, %v2142, 0
      %vm2216 = vcmask 1043456
      %v2218 = vsel %vm2216, %v1530, 0
      %2220 = vmatprep.subr.mxu0 0.0
      %2221 = vmatpush1.msra.mxu0 %v2218
      %2222 = vmatprep.subr.mxu0 0.0
      %2223 = vmatpush1.msra.mxu0 0.0
      %2224 = vmatprep.subr.mxu0 0.0
      %2225 = vmatpush1.msra.mxu0 0.0
      %2226 = vmatprep.subr.mxu0 0.0
      %2227 = vmatpush1.msra.mxu0 0.0
      %2228 = vmatprep.subr.mxu0 0.0
      %2229 = vmatpush1.msra.mxu0 0.0
      %2230 = vmatprep.subr.mxu0 0.0
      %2231 = vmatpush1.msra.mxu0 0.0
      %2232 = vmatprep.subr.mxu0 0.0
      %2233 = vmatpush1.msra.mxu0 0.0
      %2234 = vmatprep.subr.mxu0 0.0
      %2235 = vmatpush1.msra.mxu0 0.0
      %2236 = vmatprep.subr.mxu0 0.0
      %2237 = vmatpush1.msra.mxu0 0.0
      %2238 = vmatprep.subr.mxu0 0.0
      %2239 = vmatpush1.msra.mxu0 0.0
      %2240 = vmatprep.subr.mxu0 0.0
      %2241 = vmatpush1.msra.mxu0 0.0
      %2242 = vmatprep.subr.mxu0 0.0
      %2243 = vmatpush1.msra.mxu0 0.0
      %2244 = vmatprep.subr.mxu0 0.0
      %2245 = vmatpush1.msra.mxu0 0.0
      %2246 = vmatprep.subr.mxu0 0.0
      %2247 = vmatpush1.msra.mxu0 0.0
      %2248 = vmatprep.subr.mxu0 0.0
      %2249 = vmatpush1.msra.mxu0 0.0
      %2250 = vmatprep.subr.mxu0 0.0
      %2251 = vmatpush1.msra.mxu0 0.0
      %2252 = vmatprep.subr.mxu0 0.0
      %2253 = vmatpush1.msra.mxu0 0.0
      %2254 = vmatprep.subr.mxu0 0.0
      %2255 = vmatpush1.msra.mxu0 0.0
      %2256 = vmatprep.subr.mxu0 0.0
      %2257 = vmatpush1.msra.mxu0 0.0
      %2258 = vmatprep.subr.mxu0 0.0
      %2259 = vmatpush1.msra.mxu0 0.0
      %2260 = vmatprep.subr.mxu0 0.0
      %2261 = vmatpush1.msra.mxu0 0.0
      %2262 = vmatprep.subr.mxu0 0.0
      %2263 = vmatpush1.msra.mxu0 0.0
      %2264 = vmatprep.subr.mxu0 0.0
      %2265 = vmatpush1.msra.mxu0 0.0
      %2266 = vmatprep.subr.mxu0 0.0
      %2267 = vmatpush1.msra.mxu0 0.0
      %2268 = vmatprep.subr.mxu0 0.0
      %2269 = vmatpush1.msra.mxu0 0.0
      %2270 = vmatprep.subr.mxu0 0.0
      %2271 = vmatpush1.msra.mxu0 0.0
      %2272 = vmatprep.subr.mxu0 0.0
      %2273 = vmatpush1.msra.mxu0 0.0
      %2274 = vmatprep.subr.mxu0 0.0
      %2275 = vmatpush1.msra.mxu0 0.0
      %2276 = vmatprep.subr.mxu0 0.0
      %2277 = vmatpush1.msra.mxu0 0.0
      %2278 = vmatprep.subr.mxu0 0.0
      %2279 = vmatpush1.msra.mxu0 0.0
      %2280 = vmatprep.subr.mxu0 0.0
      %2281 = vmatpush1.msra.mxu0 0.0
      %2282 = vmatprep.subr.mxu0 0.0
      %2283 = vmatpush1.msra.mxu0 0.0
      %2284 = vmatprep.mubr.f32.mxu0 0.0
      %2285 = vmatmul.mubr.f32.gmra.mrb[0].mxu0 %v2144
      %v2286 = vpop.f32.mrb[0].mxu0
      %v2287 = vadd.f32 0.0, %v2286
      %v2288 = vpop.f32.mrb[0].mxu0
      %2289 = vmatprep.mubr.f32.mxu0 0.0
      %2290 = vmatmul.mubr.f32.gmra.mrb[0].mxu0 %v2146
      %v2291 = vpop.f32.mrb[0].mxu0
      %v2292 = vadd.f32 0.0, %v2291
      %v2293 = vpop.f32.mrb[0].mxu0
      %2294 = vmatprep.mubr.f32.mxu0 0.0
      %2295 = vmatmul.mubr.f32.gmra.mrb[0].mxu0 %v2148
      %v2296 = vpop.f32.mrb[0].mxu0
      %v2297 = vadd.f32 0.0, %v2296
      %v2298 = vpop.f32.mrb[0].mxu0
      %2299 = vmatprep.mubr.f32.mxu0 0.0
      %2300 = vmatmul.mubr.f32.gmra.mrb[0].mxu0 %v2150
      %v2301 = vpop.f32.mrb[0].mxu0
      %v2302 = vadd.f32 0.0, %v2301
      %v2303 = vpop.f32.mrb[0].mxu0
      %2304 = vmatprep.mubr.f32.mxu0 0.0
      %2305 = vmatmul.mubr.f32.gmra.mrb[0].mxu0 %v2152
      %v2306 = vpop.f32.mrb[0].mxu0
      %v2307 = vadd.f32 0.0, %v2306
      %v2308 = vpop.f32.mrb[0].mxu0
      %2309 = vmatprep.mubr.f32.mxu0 0.0
      %2310 = vmatmul.mubr.f32.gmra.mrb[0].mxu0 %v2154
      %v2311 = vpop.f32.mrb[0].mxu0
      %v2312 = vadd.f32 0.0, %v2311
      %v2313 = vpop.f32.mrb[0].mxu0
      %2314 = vmatprep.mubr.f32.mxu0 0.0
      %2315 = vmatmul.mubr.f32.gmra.mrb[0].mxu0 %v2156
      %v2316 = vpop.f32.mrb[0].mxu0
      %v2317 = vadd.f32 0.0, %v2316
      %v2318 = vpop.f32.mrb[0].mxu0
      %2319 = vmatprep.mubr.f32.mxu0 0.0
      %2320 = vmatmul.mubr.f32.gmra.mrb[0].mxu0 %v2158
      %v2321 = vpop.f32.mrb[0].mxu0
      %v2322 = vadd.f32 0.0, %v2321
      %v2323 = vpop.f32.mrb[0].mxu0
      %2324 = vmatprep.mubr.f32.mxu0 0.0
      %2325 = vmatmul.mubr.f32.gmra.mrb[0].mxu0 %v2160
      %v2326 = vpop.f32.mrb[0].mxu0
      %v2327 = vadd.f32 0.0, %v2326
      %v2328 = vpop.f32.mrb[0].mxu0
      %2329 = vmatprep.mubr.f32.mxu0 0.0
      %2330 = vmatmul.mubr.f32.gmra.mrb[0].mxu0 %v2162
      %v2331 = vpop.f32.mrb[0].mxu0
      %v2332 = vadd.f32 0.0, %v2331
      %v2333 = vpop.f32.mrb[0].mxu0
      %2334 = vmatprep.mubr.f32.mxu0 0.0
      %2335 = vmatmul.mubr.f32.gmra.mrb[0].mxu0 %v2164
      %v2336 = vpop.f32.mrb[0].mxu0
      %v2337 = vadd.f32 0.0, %v2336
      %v2338 = vpop.f32.mrb[0].mxu0
      %2339 = vmatprep.mubr.f32.mxu0 0.0
      %2340 = vmatmul.mubr.f32.gmra.mrb[0].mxu0 %v2166
      %v2341 = vpop.f32.mrb[0].mxu0
      %v2342 = vadd.f32 0.0, %v2341
      %v2343 = vpop.f32.mrb[0].mxu0
      %2344 = vmatprep.mubr.f32.mxu0 0.0
      %2345 = vmatmul.mubr.f32.gmra.mrb[0].mxu0 %v2168
      %v2346 = vpop.f32.mrb[0].mxu0
      %v2347 = vadd.f32 0.0, %v2346
      %v2348 = vpop.f32.mrb[0].mxu0
      %2349 = vmatprep.mubr.f32.mxu0 0.0
      %2350 = vmatmul.mubr.f32.gmra.mrb[0].mxu0 %v2170
      %v2351 = vpop.f32.mrb[0].mxu0
      %v2352 = vadd.f32 0.0, %v2351
      %v2353 = vpop.f32.mrb[0].mxu0
      %2354 = vmatprep.mubr.f32.mxu0 0.0
      %2355 = vmatmul.mubr.f32.gmra.mrb[0].mxu0 %v2172
      %v2356 = vpop.f32.mrb[0].mxu0
      %v2357 = vadd.f32 0.0, %v2356
      %v2358 = vpop.f32.mrb[0].mxu0
      %2359 = vmatprep.mubr.f32.mxu0 0.0
      %2360 = vmatmul.mubr.f32.gmra.mrb[0].mxu0 %v2174
      %v2361 = vpop.f32.mrb[0].mxu0
      %v2362 = vadd.f32 0.0, %v2361
      %v2363 = vpop.f32.mrb[0].mxu0
      %2364 = vmatprep.mubr.f32.mxu0 0.0
      %2365 = vmatmul.mubr.f32.gmra.mrb[0].mxu0 %v2176
      %v2366 = vpop.f32.mrb[0].mxu0
      %v2367 = vadd.f32 0.0, %v2366
      %v2368 = vpop.f32.mrb[0].mxu0
      %2369 = vmatprep.mubr.f32.mxu0 0.0
      %2370 = vmatmul.mubr.f32.gmra.mrb[0].mxu0 %v2178
      %v2371 = vpop.f32.mrb[0].mxu0
      %v2372 = vadd.f32 0.0, %v2371
      %v2373 = vpop.f32.mrb[0].mxu0
      %2374 = vmatprep.mubr.f32.mxu0 0.0
      %2375 = vmatmul.mubr.f32.gmra.mrb[0].mxu0 %v2180
      %v2376 = vpop.f32.mrb[0].mxu0
      %v2377 = vadd.f32 0.0, %v2376
      %v2378 = vpop.f32.mrb[0].mxu0
      %2379 = vmatprep.mubr.f32.mxu0 0.0
      %2380 = vmatmul.mubr.f32.gmra.mrb[0].mxu0 %v2182
      %v2381 = vpop.f32.mrb[0].mxu0
      %v2382 = vadd.f32 0.0, %v2381
      %v2383 = vpop.f32.mrb[0].mxu0
      %2384 = vmatprep.mubr.f32.mxu0 0.0
      %2385 = vmatmul.mubr.f32.gmra.mrb[0].mxu0 %v2184
      %v2386 = vpop.f32.mrb[0].mxu0
      %v2387 = vadd.f32 0.0, %v2386
      %v2388 = vpop.f32.mrb[0].mxu0
      %2389 = vmatprep.mubr.f32.mxu0 0.0
      %2390 = vmatmul.mubr.f32.gmra.mrb[0].mxu0 %v2186
      %v2391 = vpop.f32.mrb[0].mxu0
      %v2392 = vadd.f32 0.0, %v2391
      %v2393 = vpop.f32.mrb[0].mxu0
      %2394 = vmatprep.mubr.f32.mxu0 0.0
      %2395 = vmatmul.mubr.f32.gmra.mrb[0].mxu0 %v2188
      %v2396 = vpop.f32.mrb[0].mxu0
      %v2397 = vadd.f32 0.0, %v2396
      %v2398 = vpop.f32.mrb[0].mxu0
      %2399 = vmatprep.mubr.f32.mxu0 0.0
      %2400 = vmatmul.mubr.f32.gmra.mrb[0].mxu0 %v2190
      %v2401 = vpop.f32.mrb[0].mxu0
      %v2402 = vadd.f32 0.0, %v2401
      %v2403 = vpop.f32.mrb[0].mxu0
      %2404 = vmatprep.mubr.f32.mxu0 0.0
      %2405 = vmatmul.mubr.f32.gmra.mrb[0].mxu0 %v2192
      %v2406 = vpop.f32.mrb[0].mxu0
      %v2407 = vadd.f32 0.0, %v2406
      %v2408 = vpop.f32.mrb[0].mxu0
      %2409 = vmatprep.mubr.f32.mxu0 0.0
      %2410 = vmatmul.mubr.f32.gmra.mrb[0].mxu0 %v2194
      %v2411 = vpop.f32.mrb[0].mxu0
      %v2412 = vadd.f32 0.0, %v2411
      %v2413 = vpop.f32.mrb[0].mxu0
      %2414 = vmatprep.mubr.f32.mxu0 0.0
      %2415 = vmatmul.mubr.f32.gmra.mrb[0].mxu0 %v2196
      %v2416 = vpop.f32.mrb[0].mxu0
      %v2417 = vadd.f32 0.0, %v2416
      %v2418 = vpop.f32.mrb[0].mxu0
      %2419 = vmatprep.mubr.f32.mxu0 0.0
      %2420 = vmatmul.mubr.f32.gmra.mrb[0].mxu0 %v2198
      %v2421 = vpop.f32.mrb[0].mxu0
      %v2422 = vadd.f32 0.0, %v2421
      %v2423 = vpop.f32.mrb[0].mxu0
      %2424 = vmatprep.mubr.f32.mxu0 0.0
      %2425 = vmatmul.mubr.f32.gmra.mrb[0].mxu0 %v2200
      %v2426 = vpop.f32.mrb[0].mxu0
      %v2427 = vadd.f32 0.0, %v2426
      %v2428 = vpop.f32.mrb[0].mxu0
      %2429 = vmatprep.mubr.f32.mxu0 0.0
      %2430 = vmatmul.mubr.f32.gmra.mrb[0].mxu0 %v2202
      %v2431 = vpop.f32.mrb[0].mxu0
      %v2432 = vadd.f32 0.0, %v2431
      %v2433 = vpop.f32.mrb[0].mxu0
      %2434 = vmatprep.mubr.f32.mxu0 0.0
      %2435 = vmatmul.mubr.f32.gmra.mrb[0].mxu0 %v2204
      %v2436 = vpop.f32.mrb[0].mxu0
      %v2437 = vadd.f32 0.0, %v2436
      %v2438 = vpop.f32.mrb[0].mxu0
      %2439 = vmatprep.mubr.f32.mxu0 0.0
      %2440 = vmatmul.mubr.f32.gmra.mrb[0].mxu0 %v2206
      %v2441 = vpop.f32.mrb[0].mxu0
      %v2442 = vadd.f32 0.0, %v2441
      %v2443 = vpop.f32.mrb[0].mxu0
      %2444 = vmatprep.mubr.f32.mxu0 0.0
      %2445 = vmatmul.mubr.f32.gmra.mrb[0].mxu0 %v2208
      %v2446 = vpop.f32.mrb[0].mxu0
      %v2447 = vadd.f32 0.0, %v2446
      %v2448 = vpop.f32.mrb[0].mxu0
      %2449 = vmatprep.mubr.f32.mxu0 0.0
      %2450 = vmatmul.mubr.f32.gmra.mrb[0].mxu0 %v2210
      %v2451 = vpop.f32.mrb[0].mxu0
      %v2452 = vadd.f32 0.0, %v2451
      %v2453 = vpop.f32.mrb[0].mxu0
      %2454 = vmatprep.mubr.f32.mxu0 0.0
      %2455 = vmatmul.mubr.f32.gmra.mrb[0].mxu0 %v2212
      %v2456 = vpop.f32.mrb[0].mxu0
      %v2457 = vadd.f32 0.0, %v2456
      %v2458 = vpop.f32.mrb[0].mxu0
      %2459 = vmatprep.mubr.f32.mxu0 0.0
      %2460 = vmatmul.mubr.f32.gmra.mrb[0].mxu0 %v2214
      %v2461 = vpop.f32.mrb[0].mxu0
      %v2462 = vadd.f32 0.0, %v2461
      %v2463 = vpop.f32.mrb[0].mxu0
      %2464 = vdwg.mxu0
      %v2465 = vcombine.low %v835, %v843
      %v2466 = vcombine.low %v842, %v844
      %v2468 = vunpack.c.l.s4 1983009808
      %v2469 = vunpack.c.0.s8 %v2468
      %v2470 = vlaneseq
      %v2471 = vshrl.u32 %v2470, 7
      %v2472 = vsub.s32 %v2469, %v2471
      %v2473 = vrot.slane %v2465, %v2472
      %v2475 = vunpack.c.l.s4 1983009808
      %v2476 = vunpack.c.0.s8 %v2475
      %v2477 = vlaneseq
      %v2478 = vshrl.u32 %v2477, 7
      %v2479 = vsub.s32 %v2476, %v2478
      %v2480 = vrot.slane %v2466, %v2479
      %v2481 = vcombine.low %v2473, %v2480
      %v2482 = vcombine.low %v852, %v860
      %v2483 = vcombine.low %v859, %v861
      %v2485 = vunpack.c.l.s4 1983009808
      %v2486 = vunpack.c.0.s8 %v2485
      %v2487 = vlaneseq
      %v2488 = vshrl.u32 %v2487, 7
      %v2489 = vsub.s32 %v2486, %v2488
      %v2490 = vrot.slane %v2482, %v2489
      %v2492 = vunpack.c.l.s4 1983009808
      %v2493 = vunpack.c.0.s8 %v2492
      %v2494 = vlaneseq
      %v2495 = vshrl.u32 %v2494, 7
      %v2496 = vsub.s32 %v2493, %v2495
      %v2497 = vrot.slane %v2483, %v2496
      %v2498 = vcombine.low %v2490, %v2497
      %v2499 = vcombine.low %v868, %v876
      %v2500 = vcombine.low %v884, %v883
      %v2502 = vunpack.c.l.s4 1983009808
      %v2503 = vunpack.c.0.s8 %v2502
      %v2504 = vlaneseq
      %v2505 = vshrl.u32 %v2504, 7
      %v2506 = vsub.s32 %v2503, %v2505
      %v2507 = vrot.slane %v2499, %v2506
      %v2509 = vunpack.c.l.s4 1983009808
      %v2510 = vunpack.c.0.s8 %v2509
      %v2511 = vlaneseq
      %v2512 = vshrl.u32 %v2511, 7
      %v2513 = vsub.s32 %v2510, %v2512
      %v2514 = vrot.slane %v2500, %v2513
      %v2515 = vcombine.low %v2507, %v2514
      %v2516 = vcombine.low %v885, %v893
      %v2517 = vcombine.low %v901, %v900
      %v2519 = vunpack.c.l.s4 1983009808
      %v2520 = vunpack.c.0.s8 %v2519
      %v2521 = vlaneseq
      %v2522 = vshrl.u32 %v2521, 7
      %v2523 = vsub.s32 %v2520, %v2522
      %v2524 = vrot.slane %v2516, %v2523
      %v2526 = vunpack.c.l.s4 1983009808
      %v2527 = vunpack.c.0.s8 %v2526
      %v2528 = vlaneseq
      %v2529 = vshrl.u32 %v2528, 7
      %v2530 = vsub.s32 %v2527, %v2529
      %v2531 = vrot.slane %v2517, %v2530
      %v2532 = vcombine.low %v2524, %v2531
      %v2533 = vcombine.low %v902, %v909
      %v2534 = vcombine.low %v917, %v925
      %v2536 = vunpack.c.l.s4 1983009808
      %v2537 = vunpack.c.0.s8 %v2536
      %v2538 = vlaneseq
      %v2539 = vshrl.u32 %v2538, 7
      %v2540 = vsub.s32 %v2537, %v2539
      %v2541 = vrot.slane %v2533, %v2540
      %v2543 = vunpack.c.l.s4 1983009808
      %v2544 = vunpack.c.0.s8 %v2543
      %v2545 = vlaneseq
      %v2546 = vshrl.u32 %v2545, 7
      %v2547 = vsub.s32 %v2544, %v2546
      %v2548 = vrot.slane %v2534, %v2547
      %v2549 = vcombine.low %v2541, %v2548
      %v2550 = vcombine.low %v924, %v926
      %v2551 = vcombine.low %v934, %v942
      %v2553 = vunpack.c.l.s4 1983009808
      %v2554 = vunpack.c.0.s8 %v2553
      %v2555 = vlaneseq
      %v2556 = vshrl.u32 %v2555, 7
      %v2557 = vsub.s32 %v2554, %v2556
      %v2558 = vrot.slane %v2550, %v2557
      %v2560 = vunpack.c.l.s4 1983009808
      %v2561 = vunpack.c.0.s8 %v2560
      %v2562 = vlaneseq
      %v2563 = vshrl.u32 %v2562, 7
      %v2564 = vsub.s32 %v2561, %v2563
      %v2565 = vrot.slane %v2551, %v2564
      %v2566 = vcombine.low %v2558, %v2565
      %v2567 = vcombine.low %v941, %v943
      %v2568 = vcombine.low %v950, %v958
      %v2570 = vunpack.c.l.s4 1983009808
      %v2571 = vunpack.c.0.s8 %v2570
      %v2572 = vlaneseq
      %v2573 = vshrl.u32 %v2572, 7
      %v2574 = vsub.s32 %v2571, %v2573
      %v2575 = vrot.slane %v2567, %v2574
      %v2577 = vunpack.c.l.s4 1983009808
      %v2578 = vunpack.c.0.s8 %v2577
      %v2579 = vlaneseq
      %v2580 = vshrl.u32 %v2579, 7
      %v2581 = vsub.s32 %v2578, %v2580
      %v2582 = vrot.slane %v2568, %v2581
      %v2583 = vcombine.low %v2575, %v2582
      %v2584 = vcombine.low %v966, %v965
      %v2585 = vcombine.low %v967, %v975
      %v2587 = vunpack.c.l.s4 1983009808
      %v2588 = vunpack.c.0.s8 %v2587
      %v2589 = vlaneseq
      %v2590 = vshrl.u32 %v2589, 7
      %v2591 = vsub.s32 %v2588, %v2590
      %v2592 = vrot.slane %v2584, %v2591
      %v2594 = vunpack.c.l.s4 1983009808
      %v2595 = vunpack.c.0.s8 %v2594
      %v2596 = vlaneseq
      %v2597 = vshrl.u32 %v2596, 7
      %v2598 = vsub.s32 %v2595, %v2597
      %v2599 = vrot.slane %v2585, %v2598
      %v2600 = vcombine.low %v2592, %v2599
      %v2601 = vcombine.low %v983, %v982
      %v2602 = vcombine.low %v984, %v991
      %v2604 = vunpack.c.l.s4 1983009808
      %v2605 = vunpack.c.0.s8 %v2604
      %v2606 = vlaneseq
      %v2607 = vshrl.u32 %v2606, 7
      %v2608 = vsub.s32 %v2605, %v2607
      %v2609 = vrot.slane %v2601, %v2608
      %v2611 = vunpack.c.l.s4 1983009808
      %v2612 = vunpack.c.0.s8 %v2611
      %v2613 = vlaneseq
      %v2614 = vshrl.u32 %v2613, 7
      %v2615 = vsub.s32 %v2612, %v2614
      %v2616 = vrot.slane %v2602, %v2615
      %v2617 = vcombine.low %v2609, %v2616
      %v2618 = vcombine.low %v999, %v1007
      %v2619 = vcombine.low %v1006, %v1008
      %v2621 = vunpack.c.l.s4 1983009808
      %v2622 = vunpack.c.0.s8 %v2621
      %v2623 = vlaneseq
      %v2624 = vshrl.u32 %v2623, 7
      %v2625 = vsub.s32 %v2622, %v2624
      %v2626 = vrot.slane %v2618, %v2625
      %v2628 = vunpack.c.l.s4 1983009808
      %v2629 = vunpack.c.0.s8 %v2628
      %v2630 = vlaneseq
      %v2631 = vshrl.u32 %v2630, 7
      %v2632 = vsub.s32 %v2629, %v2631
      %v2633 = vrot.slane %v2619, %v2632
      %v2634 = vcombine.low %v2626, %v2633
      %v2635 = vcombine.low %v1016, %v1024
      %v2636 = vcombine.low %v1023, %v1025
      %v2638 = vunpack.c.l.s4 1983009808
      %v2639 = vunpack.c.0.s8 %v2638
      %v2640 = vlaneseq
      %v2641 = vshrl.u32 %v2640, 7
      %v2642 = vsub.s32 %v2639, %v2641
      %v2643 = vrot.slane %v2635, %v2642
      %v2645 = vunpack.c.l.s4 1983009808
      %v2646 = vunpack.c.0.s8 %v2645
      %v2647 = vlaneseq
      %v2648 = vshrl.u32 %v2647, 7
      %v2649 = vsub.s32 %v2646, %v2648
      %v2650 = vrot.slane %v2636, %v2649
      %v2651 = vcombine.low %v2643, %v2650
      %v2652 = vcombine.low %v1032, %v1040
      %v2653 = vcombine.low %v1048, %v1047
      %v2655 = vunpack.c.l.s4 1983009808
      %v2656 = vunpack.c.0.s8 %v2655
      %v2657 = vlaneseq
      %v2658 = vshrl.u32 %v2657, 7
      %v2659 = vsub.s32 %v2656, %v2658
      %v2660 = vrot.slane %v2652, %v2659
      %v2662 = vunpack.c.l.s4 1983009808
      %v2663 = vunpack.c.0.s8 %v2662
      %v2664 = vlaneseq
      %v2665 = vshrl.u32 %v2664, 7
      %v2666 = vsub.s32 %v2663, %v2665
      %v2667 = vrot.slane %v2653, %v2666
      %v2668 = vcombine.low %v2660, %v2667
      %v2669 = vcombine.low %v1049, %v1057
      %v2670 = vcombine.low %v1065, %v1064
      %v2672 = vunpack.c.l.s4 1983009808
      %v2673 = vunpack.c.0.s8 %v2672
      %v2674 = vlaneseq
      %v2675 = vshrl.u32 %v2674, 7
      %v2676 = vsub.s32 %v2673, %v2675
      %v2677 = vrot.slane %v2669, %v2676
      %v2679 = vunpack.c.l.s4 1983009808
      %v2680 = vunpack.c.0.s8 %v2679
      %v2681 = vlaneseq
      %v2682 = vshrl.u32 %v2681, 7
      %v2683 = vsub.s32 %v2680, %v2682
      %v2684 = vrot.slane %v2670, %v2683
      %v2685 = vcombine.low %v2677, %v2684
      %v2686 = vcombine.low %v1066, %v1073
      %v2687 = vcombine.low %v1081, %v1089
      %v2689 = vunpack.c.l.s4 1983009808
      %v2690 = vunpack.c.0.s8 %v2689
      %v2691 = vlaneseq
      %v2692 = vshrl.u32 %v2691, 7
      %v2693 = vsub.s32 %v2690, %v2692
      %v2694 = vrot.slane %v2686, %v2693
      %v2696 = vunpack.c.l.s4 1983009808
      %v2697 = vunpack.c.0.s8 %v2696
      %v2698 = vlaneseq
      %v2699 = vshrl.u32 %v2698, 7
      %v2700 = vsub.s32 %v2697, %v2699
      %v2701 = vrot.slane %v2687, %v2700
      %v2702 = vcombine.low %v2694, %v2701
      %v2703 = vcombine.low %v1088, %v1090
      %v2704 = vcombine.low %v1098, %v1106
      %v2706 = vunpack.c.l.s4 1983009808
      %v2707 = vunpack.c.0.s8 %v2706
      %v2708 = vlaneseq
      %v2709 = vshrl.u32 %v2708, 7
      %v2710 = vsub.s32 %v2707, %v2709
      %v2711 = vrot.slane %v2703, %v2710
      %v2713 = vunpack.c.l.s4 1983009808
      %v2714 = vunpack.c.0.s8 %v2713
      %v2715 = vlaneseq
      %v2716 = vshrl.u32 %v2715, 7
      %v2717 = vsub.s32 %v2714, %v2716
      %v2718 = vrot.slane %v2704, %v2717
      %v2719 = vcombine.low %v2711, %v2718
      %v2720 = vcombine.low %v1105, %v1107
      %v2721 = vcombine.low %v1114, %v1122
      %v2723 = vunpack.c.l.s4 1983009808
      %v2724 = vunpack.c.0.s8 %v2723
      %v2725 = vlaneseq
      %v2726 = vshrl.u32 %v2725, 7
      %v2727 = vsub.s32 %v2724, %v2726
      %v2728 = vrot.slane %v2720, %v2727
      %v2730 = vunpack.c.l.s4 1983009808
      %v2731 = vunpack.c.0.s8 %v2730
      %v2732 = vlaneseq
      %v2733 = vshrl.u32 %v2732, 7
      %v2734 = vsub.s32 %v2731, %v2733
      %v2735 = vrot.slane %v2721, %v2734
      %v2736 = vcombine.low %v2728, %v2735
      %v2737 = vcombine.low %v1130, %v1129
      %v2738 = vcombine.low %v1131, %v1139
      %v2740 = vunpack.c.l.s4 1983009808
      %v2741 = vunpack.c.0.s8 %v2740
      %v2742 = vlaneseq
      %v2743 = vshrl.u32 %v2742, 7
      %v2744 = vsub.s32 %v2741, %v2743
      %v2745 = vrot.slane %v2737, %v2744
      %v2747 = vunpack.c.l.s4 1983009808
      %v2748 = vunpack.c.0.s8 %v2747
      %v2749 = vlaneseq
      %v2750 = vshrl.u32 %v2749, 7
      %v2751 = vsub.s32 %v2748, %v2750
      %v2752 = vrot.slane %v2738, %v2751
      %v2753 = vcombine.low %v2745, %v2752
      %v2754 = vcombine.low %v1147, %v1146
      %v2755 = vcombine.low %v1148, %v1155
      %v2757 = vunpack.c.l.s4 1983009808
      %v2758 = vunpack.c.0.s8 %v2757
      %v2759 = vlaneseq
      %v2760 = vshrl.u32 %v2759, 7
      %v2761 = vsub.s32 %v2758, %v2760
      %v2762 = vrot.slane %v2754, %v2761
      %v2764 = vunpack.c.l.s4 1983009808
      %v2765 = vunpack.c.0.s8 %v2764
      %v2766 = vlaneseq
      %v2767 = vshrl.u32 %v2766, 7
      %v2768 = vsub.s32 %v2765, %v2767
      %v2769 = vrot.slane %v2755, %v2768
      %v2770 = vcombine.low %v2762, %v2769
      %v2771 = vcombine.low %v1163, %v1171
      %v2772 = vcombine.low %v1170, %v1172
      %v2774 = vunpack.c.l.s4 1983009808
      %v2775 = vunpack.c.0.s8 %v2774
      %v2776 = vlaneseq
      %v2777 = vshrl.u32 %v2776, 7
      %v2778 = vsub.s32 %v2775, %v2777
      %v2779 = vrot.slane %v2771, %v2778
      %v2781 = vunpack.c.l.s4 1983009808
      %v2782 = vunpack.c.0.s8 %v2781
      %v2783 = vlaneseq
      %v2784 = vshrl.u32 %v2783, 7
      %v2785 = vsub.s32 %v2782, %v2784
      %v2786 = vrot.slane %v2772, %v2785
      %v2787 = vcombine.low %v2779, %v2786
      %v2788 = vcombine.low %v1180, %v1188
      %v2789 = vcombine.low %v1187, %v1189
      %v2791 = vunpack.c.l.s4 1983009808
      %v2792 = vunpack.c.0.s8 %v2791
      %v2793 = vlaneseq
      %v2794 = vshrl.u32 %v2793, 7
      %v2795 = vsub.s32 %v2792, %v2794
      %v2796 = vrot.slane %v2788, %v2795
      %v2798 = vunpack.c.l.s4 1983009808
      %v2799 = vunpack.c.0.s8 %v2798
      %v2800 = vlaneseq
      %v2801 = vshrl.u32 %v2800, 7
      %v2802 = vsub.s32 %v2799, %v2801
      %v2803 = vrot.slane %v2789, %v2802
      %v2804 = vcombine.low %v2796, %v2803
      %v2805 = vcombine.low %v1196, %v1204
      %v2806 = vcombine.low %v1212, %v1211
      %v2808 = vunpack.c.l.s4 1983009808
      %v2809 = vunpack.c.0.s8 %v2808
      %v2810 = vlaneseq
      %v2811 = vshrl.u32 %v2810, 7
      %v2812 = vsub.s32 %v2809, %v2811
      %v2813 = vrot.slane %v2805, %v2812
      %v2815 = vunpack.c.l.s4 1983009808
      %v2816 = vunpack.c.0.s8 %v2815
      %v2817 = vlaneseq
      %v2818 = vshrl.u32 %v2817, 7
      %v2819 = vsub.s32 %v2816, %v2818
      %v2820 = vrot.slane %v2806, %v2819
      %v2821 = vcombine.low %v2813, %v2820
      %v2822 = vcombine.low %v1213, %v1221
      %v2823 = vcombine.low %v1229, %v1228
      %v2825 = vunpack.c.l.s4 1983009808
      %v2826 = vunpack.c.0.s8 %v2825
      %v2827 = vlaneseq
      %v2828 = vshrl.u32 %v2827, 7
      %v2829 = vsub.s32 %v2826, %v2828
      %v2830 = vrot.slane %v2822, %v2829
      %v2832 = vunpack.c.l.s4 1983009808
      %v2833 = vunpack.c.0.s8 %v2832
      %v2834 = vlaneseq
      %v2835 = vshrl.u32 %v2834, 7
      %v2836 = vsub.s32 %v2833, %v2835
      %v2837 = vrot.slane %v2823, %v2836
      %v2838 = vcombine.low %v2830, %v2837
      %v2839 = vcombine.low %v1230, %v1237
      %v2840 = vcombine.low %v1245, %v1253
      %v2842 = vunpack.c.l.s4 1983009808
      %v2843 = vunpack.c.0.s8 %v2842
      %v2844 = vlaneseq
      %v2845 = vshrl.u32 %v2844, 7
      %v2846 = vsub.s32 %v2843, %v2845
      %v2847 = vrot.slane %v2839, %v2846
      %v2849 = vunpack.c.l.s4 1983009808
      %v2850 = vunpack.c.0.s8 %v2849
      %v2851 = vlaneseq
      %v2852 = vshrl.u32 %v2851, 7
      %v2853 = vsub.s32 %v2850, %v2852
      %v2854 = vrot.slane %v2840, %v2853
      %v2855 = vcombine.low %v2847, %v2854
      %v2856 = vcombine.low %v1252, %v1254
      %v2857 = vcombine.low %v1262, %v1270
      %v2859 = vunpack.c.l.s4 1983009808
      %v2860 = vunpack.c.0.s8 %v2859
      %v2861 = vlaneseq
      %v2862 = vshrl.u32 %v2861, 7
      %v2863 = vsub.s32 %v2860, %v2862
      %v2864 = vrot.slane %v2856, %v2863
      %v2866 = vunpack.c.l.s4 1983009808
      %v2867 = vunpack.c.0.s8 %v2866
      %v2868 = vlaneseq
      %v2869 = vshrl.u32 %v2868, 7
      %v2870 = vsub.s32 %v2867, %v2869
      %v2871 = vrot.slane %v2857, %v2870
      %v2872 = vcombine.low %v2864, %v2871
      %v2873 = vcombine.low %v1269, %v1271
      %v2874 = vcombine.low %v1278, %v1286
      %v2876 = vunpack.c.l.s4 1983009808
      %v2877 = vunpack.c.0.s8 %v2876
      %v2878 = vlaneseq
      %v2879 = vshrl.u32 %v2878, 7
      %v2880 = vsub.s32 %v2877, %v2879
      %v2881 = vrot.slane %v2873, %v2880
      %v2883 = vunpack.c.l.s4 1983009808
      %v2884 = vunpack.c.0.s8 %v2883
      %v2885 = vlaneseq
      %v2886 = vshrl.u32 %v2885, 7
      %v2887 = vsub.s32 %v2884, %v2886
      %v2888 = vrot.slane %v2874, %v2887
      %v2889 = vcombine.low %v2881, %v2888
      %v2890 = vcombine.low %v1294, %v1293
      %v2891 = vcombine.low %v1295, %v1303
      %v2893 = vunpack.c.l.s4 1983009808
      %v2894 = vunpack.c.0.s8 %v2893
      %v2895 = vlaneseq
      %v2896 = vshrl.u32 %v2895, 7
      %v2897 = vsub.s32 %v2894, %v2896
      %v2898 = vrot.slane %v2890, %v2897
      %v2900 = vunpack.c.l.s4 1983009808
      %v2901 = vunpack.c.0.s8 %v2900
      %v2902 = vlaneseq
      %v2903 = vshrl.u32 %v2902, 7
      %v2904 = vsub.s32 %v2901, %v2903
      %v2905 = vrot.slane %v2891, %v2904
      %v2906 = vcombine.low %v2898, %v2905
      %v2907 = vcombine.low %v1311, %v1310
      %v2908 = vcombine.low %v1312, %v1319
      %v2910 = vunpack.c.l.s4 1983009808
      %v2911 = vunpack.c.0.s8 %v2910
      %v2912 = vlaneseq
      %v2913 = vshrl.u32 %v2912, 7
      %v2914 = vsub.s32 %v2911, %v2913
      %v2915 = vrot.slane %v2907, %v2914
      %v2917 = vunpack.c.l.s4 1983009808
      %v2918 = vunpack.c.0.s8 %v2917
      %v2919 = vlaneseq
      %v2920 = vshrl.u32 %v2919, 7
      %v2921 = vsub.s32 %v2918, %v2920
      %v2922 = vrot.slane %v2908, %v2921
      %v2923 = vcombine.low %v2915, %v2922
      %v2924 = vcombine.low %v1327, %v1335
      %v2925 = vcombine.low %v1334, %v1336
      %v2927 = vunpack.c.l.s4 1983009808
      %v2928 = vunpack.c.0.s8 %v2927
      %v2929 = vlaneseq
      %v2930 = vshrl.u32 %v2929, 7
      %v2931 = vsub.s32 %v2928, %v2930
      %v2932 = vrot.slane %v2924, %v2931
      %v2934 = vunpack.c.l.s4 1983009808
      %v2935 = vunpack.c.0.s8 %v2934
      %v2936 = vlaneseq
      %v2937 = vshrl.u32 %v2936, 7
      %v2938 = vsub.s32 %v2935, %v2937
      %v2939 = vrot.slane %v2925, %v2938
      %v2940 = vcombine.low %v2932, %v2939
      %v2941 = vcombine.low %v1344, %v1352
      %v2942 = vcombine.low %v1351, %v1353
      %v2944 = vunpack.c.l.s4 1983009808
      %v2945 = vunpack.c.0.s8 %v2944
      %v2946 = vlaneseq
      %v2947 = vshrl.u32 %v2946, 7
      %v2948 = vsub.s32 %v2945, %v2947
      %v2949 = vrot.slane %v2941, %v2948
      %v2951 = vunpack.c.l.s4 1983009808
      %v2952 = vunpack.c.0.s8 %v2951
      %v2953 = vlaneseq
      %v2954 = vshrl.u32 %v2953, 7
      %v2955 = vsub.s32 %v2952, %v2954
      %v2956 = vrot.slane %v2942, %v2955
      %v2957 = vcombine.low %v2949, %v2956
      %v2958 = vcombine.low %v1360, %v1368
      %v2959 = vcombine.low %v1376, %v1375
      %v2961 = vunpack.c.l.s4 1983009808
      %v2962 = vunpack.c.0.s8 %v2961
      %v2963 = vlaneseq
      %v2964 = vshrl.u32 %v2963, 7
      %v2965 = vsub.s32 %v2962, %v2964
      %v2966 = vrot.slane %v2958, %v2965
      %v2968 = vunpack.c.l.s4 1983009808
      %v2969 = vunpack.c.0.s8 %v2968
      %v2970 = vlaneseq
      %v2971 = vshrl.u32 %v2970, 7
      %v2972 = vsub.s32 %v2969, %v2971
      %v2973 = vrot.slane %v2959, %v2972
      %v2974 = vcombine.low %v2966, %v2973
      %v2975 = vcombine.low %v1377, %v1385
      %v2976 = vcombine.low %v1393, %v1392
      %v2978 = vunpack.c.l.s4 1983009808
      %v2979 = vunpack.c.0.s8 %v2978
      %v2980 = vlaneseq
      %v2981 = vshrl.u32 %v2980, 7
      %v2982 = vsub.s32 %v2979, %v2981
      %v2983 = vrot.slane %v2975, %v2982
      %v2985 = vunpack.c.l.s4 1983009808
      %v2986 = vunpack.c.0.s8 %v2985
      %v2987 = vlaneseq
      %v2988 = vshrl.u32 %v2987, 7
      %v2989 = vsub.s32 %v2986, %v2988
      %v2990 = vrot.slane %v2976, %v2989
      %v2991 = vcombine.low %v2983, %v2990
      %v2992 = vcombine.low %v1394, %v1401
      %v2993 = vcombine.low %v1409, %v1417
      %v2995 = vunpack.c.l.s4 1983009808
      %v2996 = vunpack.c.0.s8 %v2995
      %v2997 = vlaneseq
      %v2998 = vshrl.u32 %v2997, 7
      %v2999 = vsub.s32 %v2996, %v2998
      %v3000 = vrot.slane %v2992, %v2999
      %v3002 = vunpack.c.l.s4 1983009808
      %v3003 = vunpack.c.0.s8 %v3002
      %v3004 = vlaneseq
      %v3005 = vshrl.u32 %v3004, 7
      %v3006 = vsub.s32 %v3003, %v3005
      %v3007 = vrot.slane %v2993, %v3006
      %v3008 = vcombine.low %v3000, %v3007
      %v3009 = vcombine.low %v1416, %v1418
      %v3010 = vcombine.low %v1426, %v1434
      %v3012 = vunpack.c.l.s4 1983009808
      %v3013 = vunpack.c.0.s8 %v3012
      %v3014 = vlaneseq
      %v3015 = vshrl.u32 %v3014, 7
      %v3016 = vsub.s32 %v3013, %v3015
      %v3017 = vrot.slane %v3009, %v3016
      %v3019 = vunpack.c.l.s4 1983009808
      %v3020 = vunpack.c.0.s8 %v3019
      %v3021 = vlaneseq
      %v3022 = vshrl.u32 %v3021, 7
      %v3023 = vsub.s32 %v3020, %v3022
      %v3024 = vrot.slane %v3010, %v3023
      %v3025 = vcombine.low %v3017, %v3024
      %v3026 = vcombine.low %v1433, %v1435
      %v3027 = vcombine.low %v1442, %v1450
      %v3029 = vunpack.c.l.s4 1983009808
      %v3030 = vunpack.c.0.s8 %v3029
      %v3031 = vlaneseq
      %v3032 = vshrl.u32 %v3031, 7
      %v3033 = vsub.s32 %v3030, %v3032
      %v3034 = vrot.slane %v3026, %v3033
      %v3036 = vunpack.c.l.s4 1983009808
      %v3037 = vunpack.c.0.s8 %v3036
      %v3038 = vlaneseq
      %v3039 = vshrl.u32 %v3038, 7
      %v3040 = vsub.s32 %v3037, %v3039
      %v3041 = vrot.slane %v3027, %v3040
      %v3042 = vcombine.low %v3034, %v3041
      %v3043 = vcombine.low %v1458, %v1457
      %v3044 = vcombine.low %v1459, %v1467
      %v3046 = vunpack.c.l.s4 1983009808
      %v3047 = vunpack.c.0.s8 %v3046
      %v3048 = vlaneseq
      %v3049 = vshrl.u32 %v3048, 7
      %v3050 = vsub.s32 %v3047, %v3049
      %v3051 = vrot.slane %v3043, %v3050
      %v3053 = vunpack.c.l.s4 1983009808
      %v3054 = vunpack.c.0.s8 %v3053
      %v3055 = vlaneseq
      %v3056 = vshrl.u32 %v3055, 7
      %v3057 = vsub.s32 %v3054, %v3056
      %v3058 = vrot.slane %v3044, %v3057
      %v3059 = vcombine.low %v3051, %v3058
      %v3060 = vcombine.low %v1475, %v1474
      %v3061 = vcombine.low %v1476, %v1483
      %v3063 = vunpack.c.l.s4 1983009808
      %v3064 = vunpack.c.0.s8 %v3063
      %v3065 = vlaneseq
      %v3066 = vshrl.u32 %v3065, 7
      %v3067 = vsub.s32 %v3064, %v3066
      %v3068 = vrot.slane %v3060, %v3067
      %v3070 = vunpack.c.l.s4 1983009808
      %v3071 = vunpack.c.0.s8 %v3070
      %v3072 = vlaneseq
      %v3073 = vshrl.u32 %v3072, 7
      %v3074 = vsub.s32 %v3071, %v3073
      %v3075 = vrot.slane %v3061, %v3074
      %v3076 = vcombine.low %v3068, %v3075
      %v3077 = vsel %vm2143, %v2481, 0
      %v3079 = vsel %vm2143, %v2498, 0
      %v3081 = vsel %vm2143, %v2515, 0
      %v3083 = vsel %vm2143, %v2532, 0
      %v3085 = vsel %vm2143, %v2549, 0
      %v3087 = vsel %vm2143, %v2566, 0
      %v3089 = vsel %vm2143, %v2583, 0
      %v3091 = vsel %vm2143, %v2600, 0
      %v3093 = vsel %vm2143, %v2617, 0
      %v3095 = vsel %vm2143, %v2634, 0
      %v3097 = vsel %vm2143, %v2651, 0
      %v3099 = vsel %vm2143, %v2668, 0
      %v3101 = vsel %vm2143, %v2685, 0
      %v3103 = vsel %vm2143, %v2702, 0
      %v3105 = vsel %vm2143, %v2719, 0
      %v3107 = vsel %vm2143, %v2736, 0
      %v3109 = vsel %vm2143, %v2753, 0
      %v3111 = vsel %vm2143, %v2770, 0
      %v3113 = vsel %vm2143, %v2787, 0
      %v3115 = vsel %vm2143, %v2804, 0
      %v3117 = vsel %vm2143, %v2821, 0
      %v3119 = vsel %vm2143, %v2838, 0
      %v3121 = vsel %vm2143, %v2855, 0
      %v3123 = vsel %vm2143, %v2872, 0
      %v3125 = vsel %vm2143, %v2889, 0
      %v3127 = vsel %vm2143, %v2906, 0
      %v3129 = vsel %vm2143, %v2923, 0
      %v3131 = vsel %vm2143, %v2940, 0
      %v3133 = vsel %vm2143, %v2957, 0
      %v3135 = vsel %vm2143, %v2974, 0
      %v3137 = vsel %vm2143, %v2991, 0
      %v3139 = vsel %vm2143, %v3008, 0
      %v3141 = vsel %vm2143, %v3025, 0
      %v3143 = vsel %vm2143, %v3042, 0
      %v3145 = vsel %vm2143, %v3059, 0
      %v3147 = vsel %vm2143, %v3076, 0
      %v3150 = vsel %vm2216, %v1484, 0
      %3152 = vmatprep.subr.mxu0 0.0
      %3153 = vmatpush1.msra.mxu0 %v3150
      %3154 = vmatprep.subr.mxu0 0.0
      %3155 = vmatpush1.msra.mxu0 0.0
      %3156 = vmatprep.subr.mxu0 0.0
      %3157 = vmatpush1.msra.mxu0 0.0
      %3158 = vmatprep.subr.mxu0 0.0
      %3159 = vmatpush1.msra.mxu0 0.0
      %3160 = vmatprep.subr.mxu0 0.0
      %3161 = vmatpush1.msra.mxu0 0.0
      %3162 = vmatprep.subr.mxu0 0.0
      %3163 = vmatpush1.msra.mxu0 0.0
      %3164 = vmatprep.subr.mxu0 0.0
      %3165 = vmatpush1.msra.mxu0 0.0
      %3166 = vmatprep.subr.mxu0 0.0
      %3167 = vmatpush1.msra.mxu0 0.0
      %3168 = vmatprep.subr.mxu0 0.0
      %3169 = vmatpush1.msra.mxu0 0.0
      %3170 = vmatprep.subr.mxu0 0.0
      %3171 = vmatpush1.msra.mxu0 0.0
      %3172 = vmatprep.subr.mxu0 0.0
      %3173 = vmatpush1.msra.mxu0 0.0
      %3174 = vmatprep.subr.mxu0 0.0
      %3175 = vmatpush1.msra.mxu0 0.0
      %3176 = vmatprep.subr.mxu0 0.0
      %3177 = vmatpush1.msra.mxu0 0.0
      %3178 = vmatprep.subr.mxu0 0.0
      %3179 = vmatpush1.msra.mxu0 0.0
      %3180 = vmatprep.subr.mxu0 0.0
      %3181 = vmatpush1.msra.mxu0 0.0
      %3182 = vmatprep.subr.mxu0 0.0
      %3183 = vmatpush1.msra.mxu0 0.0
      %3184 = vmatprep.subr.mxu0 0.0
      %3185 = vmatpush1.msra.mxu0 0.0
      %3186 = vmatprep.subr.mxu0 0.0
      %3187 = vmatpush1.msra.mxu0 0.0
      %3188 = vmatprep.subr.mxu0 0.0
      %3189 = vmatpush1.msra.mxu0 0.0
      %3190 = vmatprep.subr.mxu0 0.0
      %3191 = vmatpush1.msra.mxu0 0.0
      %3192 = vmatprep.subr.mxu0 0.0
      %3193 = vmatpush1.msra.mxu0 0.0
      %3194 = vmatprep.subr.mxu0 0.0
      %3195 = vmatpush1.msra.mxu0 0.0
      %3196 = vmatprep.subr.mxu0 0.0
      %3197 = vmatpush1.msra.mxu0 0.0
      %3198 = vmatprep.subr.mxu0 0.0
      %3199 = vmatpush1.msra.mxu0 0.0
      %3200 = vmatprep.subr.mxu0 0.0
      %3201 = vmatpush1.msra.mxu0 0.0
      %3202 = vmatprep.subr.mxu0 0.0
      %3203 = vmatpush1.msra.mxu0 0.0
      %3204 = vmatprep.subr.mxu0 0.0
      %3205 = vmatpush1.msra.mxu0 0.0
      %3206 = vmatprep.subr.mxu0 0.0
      %3207 = vmatpush1.msra.mxu0 0.0
      %3208 = vmatprep.subr.mxu0 0.0
      %3209 = vmatpush1.msra.mxu0 0.0
      %3210 = vmatprep.subr.mxu0 0.0
      %3211 = vmatpush1.msra.mxu0 0.0
      %3212 = vmatprep.subr.mxu0 0.0
      %3213 = vmatpush1.msra.mxu0 0.0
      %3214 = vmatprep.subr.mxu0 0.0
      %3215 = vmatpush1.msra.mxu0 0.0
      %3216 = vmatprep.mubr.f32.mxu0 0.0
      %3217 = vmatmul.mubr.f32.gmra.mrb[0].mxu0 %v3077
      %v3218 = vpop.f32.mrb[0].mxu0
      %v3219 = vadd.f32 %v2287, %v3218
      %v3220 = vpop.f32.mrb[0].mxu0
      %3221 = vmatprep.mubr.f32.mxu0 0.0
      %3222 = vmatmul.mubr.f32.gmra.mrb[0].mxu0 %v3079
      %v3223 = vpop.f32.mrb[0].mxu0
      %v3224 = vadd.f32 %v2292, %v3223
      %v3225 = vpop.f32.mrb[0].mxu0
      %3226 = vmatprep.mubr.f32.mxu0 0.0
      %3227 = vmatmul.mubr.f32.gmra.mrb[0].mxu0 %v3081
      %v3228 = vpop.f32.mrb[0].mxu0
      %v3229 = vadd.f32 %v2297, %v3228
      %v3230 = vpop.f32.mrb[0].mxu0
      %3231 = vmatprep.mubr.f32.mxu0 0.0
      %3232 = vmatmul.mubr.f32.gmra.mrb[0].mxu0 %v3083
      %v3233 = vpop.f32.mrb[0].mxu0
      %v3234 = vadd.f32 %v2302, %v3233
      %v3235 = vpop.f32.mrb[0].mxu0
      %3236 = vmatprep.mubr.f32.mxu0 0.0
      %3237 = vmatmul.mubr.f32.gmra.mrb[0].mxu0 %v3085
      %v3238 = vpop.f32.mrb[0].mxu0
      %v3239 = vadd.f32 %v2307, %v3238
      %v3240 = vpop.f32.mrb[0].mxu0
      %3241 = vmatprep.mubr.f32.mxu0 0.0
      %3242 = vmatmul.mubr.f32.gmra.mrb[0].mxu0 %v3087
      %v3243 = vpop.f32.mrb[0].mxu0
      %v3244 = vadd.f32 %v2312, %v3243
      %v3245 = vpop.f32.mrb[0].mxu0
      %3246 = vmatprep.mubr.f32.mxu0 0.0
      %3247 = vmatmul.mubr.f32.gmra.mrb[0].mxu0 %v3089
      %v3248 = vpop.f32.mrb[0].mxu0
      %v3249 = vadd.f32 %v2317, %v3248
      %v3250 = vpop.f32.mrb[0].mxu0
      %3251 = vmatprep.mubr.f32.mxu0 0.0
      %3252 = vmatmul.mubr.f32.gmra.mrb[0].mxu0 %v3091
      %v3253 = vpop.f32.mrb[0].mxu0
      %v3254 = vadd.f32 %v2322, %v3253
      %v3255 = vpop.f32.mrb[0].mxu0
      %3256 = vmatprep.mubr.f32.mxu0 0.0
      %3257 = vmatmul.mubr.f32.gmra.mrb[0].mxu0 %v3093
      %v3258 = vpop.f32.mrb[0].mxu0
      %v3259 = vadd.f32 %v2327, %v3258
      %v3260 = vpop.f32.mrb[0].mxu0
      %3261 = vmatprep.mubr.f32.mxu0 0.0
      %3262 = vmatmul.mubr.f32.gmra.mrb[0].mxu0 %v3095
      %v3263 = vpop.f32.mrb[0].mxu0
      %v3264 = vadd.f32 %v2332, %v3263
      %v3265 = vpop.f32.mrb[0].mxu0
      %3266 = vmatprep.mubr.f32.mxu0 0.0
      %3267 = vmatmul.mubr.f32.gmra.mrb[0].mxu0 %v3097
      %v3268 = vpop.f32.mrb[0].mxu0
      %v3269 = vadd.f32 %v2337, %v3268
      %v3270 = vpop.f32.mrb[0].mxu0
      %3271 = vmatprep.mubr.f32.mxu0 0.0
      %3272 = vmatmul.mubr.f32.gmra.mrb[0].mxu0 %v3099
      %v3273 = vpop.f32.mrb[0].mxu0
      %v3274 = vadd.f32 %v2342, %v3273
      %v3275 = vpop.f32.mrb[0].mxu0
      %3276 = vmatprep.mubr.f32.mxu0 0.0
      %3277 = vmatmul.mubr.f32.gmra.mrb[0].mxu0 %v3101
      %v3278 = vpop.f32.mrb[0].mxu0
      %v3279 = vadd.f32 %v2347, %v3278
      %v3280 = vpop.f32.mrb[0].mxu0
      %3281 = vmatprep.mubr.f32.mxu0 0.0
      %3282 = vmatmul.mubr.f32.gmra.mrb[0].mxu0 %v3103
      %v3283 = vpop.f32.mrb[0].mxu0
      %v3284 = vadd.f32 %v2352, %v3283
      %v3285 = vpop.f32.mrb[0].mxu0
      %3286 = vmatprep.mubr.f32.mxu0 0.0
      %3287 = vmatmul.mubr.f32.gmra.mrb[0].mxu0 %v3105
      %v3288 = vpop.f32.mrb[0].mxu0
      %v3289 = vadd.f32 %v2357, %v3288
      %v3290 = vpop.f32.mrb[0].mxu0
      %3291 = vmatprep.mubr.f32.mxu0 0.0
      %3292 = vmatmul.mubr.f32.gmra.mrb[0].mxu0 %v3107
      %v3293 = vpop.f32.mrb[0].mxu0
      %v3294 = vadd.f32 %v2362, %v3293
      %v3295 = vpop.f32.mrb[0].mxu0
      %3296 = vmatprep.mubr.f32.mxu0 0.0
      %3297 = vmatmul.mubr.f32.gmra.mrb[0].mxu0 %v3109
      %v3298 = vpop.f32.mrb[0].mxu0
      %v3299 = vadd.f32 %v2367, %v3298
      %v3300 = vpop.f32.mrb[0].mxu0
      %3301 = vmatprep.mubr.f32.mxu0 0.0
      %3302 = vmatmul.mubr.f32.gmra.mrb[0].mxu0 %v3111
      %v3303 = vpop.f32.mrb[0].mxu0
      %v3304 = vadd.f32 %v2372, %v3303
      %v3305 = vpop.f32.mrb[0].mxu0
      %3306 = vmatprep.mubr.f32.mxu0 0.0
      %3307 = vmatmul.mubr.f32.gmra.mrb[0].mxu0 %v3113
      %v3308 = vpop.f32.mrb[0].mxu0
      %v3309 = vadd.f32 %v2377, %v3308
      %v3310 = vpop.f32.mrb[0].mxu0
      %3311 = vmatprep.mubr.f32.mxu0 0.0
      %3312 = vmatmul.mubr.f32.gmra.mrb[0].mxu0 %v3115
      %v3313 = vpop.f32.mrb[0].mxu0
      %v3314 = vadd.f32 %v2382, %v3313
      %v3315 = vpop.f32.mrb[0].mxu0
      %3316 = vmatprep.mubr.f32.mxu0 0.0
      %3317 = vmatmul.mubr.f32.gmra.mrb[0].mxu0 %v3117
      %v3318 = vpop.f32.mrb[0].mxu0
      %v3319 = vadd.f32 %v2387, %v3318
      %v3320 = vpop.f32.mrb[0].mxu0
      %3321 = vmatprep.mubr.f32.mxu0 0.0
      %3322 = vmatmul.mubr.f32.gmra.mrb[0].mxu0 %v3119
      %v3323 = vpop.f32.mrb[0].mxu0
      %v3324 = vadd.f32 %v2392, %v3323
      %v3325 = vpop.f32.mrb[0].mxu0
      %3326 = vmatprep.mubr.f32.mxu0 0.0
      %3327 = vmatmul.mubr.f32.gmra.mrb[0].mxu0 %v3121
      %v3328 = vpop.f32.mrb[0].mxu0
      %v3329 = vadd.f32 %v2397, %v3328
      %v3330 = vpop.f32.mrb[0].mxu0
      %3331 = vmatprep.mubr.f32.mxu0 0.0
      %3332 = vmatmul.mubr.f32.gmra.mrb[0].mxu0 %v3123
      %v3333 = vpop.f32.mrb[0].mxu0
      %v3334 = vadd.f32 %v2402, %v3333
      %v3335 = vpop.f32.mrb[0].mxu0
      %3336 = vmatprep.mubr.f32.mxu0 0.0
      %3337 = vmatmul.mubr.f32.gmra.mrb[0].mxu0 %v3125
      %v3338 = vpop.f32.mrb[0].mxu0
      %v3339 = vadd.f32 %v2407, %v3338
      %v3340 = vpop.f32.mrb[0].mxu0
      %3341 = vmatprep.mubr.f32.mxu0 0.0
      %3342 = vmatmul.mubr.f32.gmra.mrb[0].mxu0 %v3127
      %v3343 = vpop.f32.mrb[0].mxu0
      %v3344 = vadd.f32 %v2412, %v3343
      %v3345 = vpop.f32.mrb[0].mxu0
      %3346 = vmatprep.mubr.f32.mxu0 0.0
      %3347 = vmatmul.mubr.f32.gmra.mrb[0].mxu0 %v3129
      %v3348 = vpop.f32.mrb[0].mxu0
      %v3349 = vadd.f32 %v2417, %v3348
      %v3350 = vpop.f32.mrb[0].mxu0
      %3351 = vmatprep.mubr.f32.mxu0 0.0
      %3352 = vmatmul.mubr.f32.gmra.mrb[0].mxu0 %v3131
      %v3353 = vpop.f32.mrb[0].mxu0
      %v3354 = vadd.f32 %v2422, %v3353
      %v3355 = vpop.f32.mrb[0].mxu0
      %3356 = vmatprep.mubr.f32.mxu0 0.0
      %3357 = vmatmul.mubr.f32.gmra.mrb[0].mxu0 %v3133
      %v3358 = vpop.f32.mrb[0].mxu0
      %v3359 = vadd.f32 %v2427, %v3358
      %v3360 = vpop.f32.mrb[0].mxu0
      %3361 = vmatprep.mubr.f32.mxu0 0.0
      %3362 = vmatmul.mubr.f32.gmra.mrb[0].mxu0 %v3135
      %v3363 = vpop.f32.mrb[0].mxu0
      %v3364 = vadd.f32 %v2432, %v3363
      %v3365 = vpop.f32.mrb[0].mxu0
      %3366 = vmatprep.mubr.f32.mxu0 0.0
      %3367 = vmatmul.mubr.f32.gmra.mrb[0].mxu0 %v3137
      %v3368 = vpop.f32.mrb[0].mxu0
      %v3369 = vadd.f32 %v2437, %v3368
      %v3370 = vpop.f32.mrb[0].mxu0
      %3371 = vmatprep.mubr.f32.mxu0 0.0
      %3372 = vmatmul.mubr.f32.gmra.mrb[0].mxu0 %v3139
      %v3373 = vpop.f32.mrb[0].mxu0
      %v3374 = vadd.f32 %v2442, %v3373
      %v3375 = vpop.f32.mrb[0].mxu0
      %3376 = vmatprep.mubr.f32.mxu0 0.0
      %3377 = vmatmul.mubr.f32.gmra.mrb[0].mxu0 %v3141
      %v3378 = vpop.f32.mrb[0].mxu0
      %v3379 = vadd.f32 %v2447, %v3378
      %v3380 = vpop.f32.mrb[0].mxu0
      %3381 = vmatprep.mubr.f32.mxu0 0.0
      %3382 = vmatmul.mubr.f32.gmra.mrb[0].mxu0 %v3143
      %v3383 = vpop.f32.mrb[0].mxu0
      %v3384 = vadd.f32 %v2452, %v3383
      %v3385 = vpop.f32.mrb[0].mxu0
      %3386 = vmatprep.mubr.f32.mxu0 0.0
      %3387 = vmatmul.mubr.f32.gmra.mrb[0].mxu0 %v3145
      %v3388 = vpop.f32.mrb[0].mxu0
      %v3389 = vadd.f32 %v2457, %v3388
      %v3390 = vpop.f32.mrb[0].mxu0
      %3391 = vmatprep.mubr.f32.mxu0 0.0
      %3392 = vmatmul.mubr.f32.gmra.mrb[0].mxu0 %v3147
      %v3393 = vpop.f32.mrb[0].mxu0
      %v3394 = vadd.f32 %v2462, %v3393
      %v3395 = vpop.f32.mrb[0].mxu0
      %3396 = vdwg.mxu0
      %v3400 = vcombine.high %v723, %v723
      %v3402 = vunpack.c.l.s4 1983009808
      %v3403 = vunpack.c.0.s8 %v3402
      %v3404 = vlaneseq
      %v3405 = vshrl.u32 %v3404, 7
      %v3406 = vsub.s32 %v3403, %v3405
      %v3407 = vrot.slane %v723, %v3406
      %v3409 = vunpack.c.l.s4 1983009808
      %v3410 = vunpack.c.0.s8 %v3409
      %v3411 = vlaneseq
      %v3412 = vshrl.u32 %v3411, 7
      %v3413 = vsub.s32 %v3410, %v3412
      %v3414 = vrot.slane %v3400, %v3413
      %v3415 = vcombine.high %v3407, %v3407
      %v3416 = vcombine.high %v3414, %v3414
      %v3417 = vcombine.high %v724, %v724
      %v3419 = vunpack.c.l.s4 1983009808
      %v3420 = vunpack.c.0.s8 %v3419
      %v3421 = vlaneseq
      %v3422 = vshrl.u32 %v3421, 7
      %v3423 = vsub.s32 %v3420, %v3422
      %v3424 = vrot.slane %v724, %v3423
      %v3426 = vunpack.c.l.s4 1983009808
      %v3427 = vunpack.c.0.s8 %v3426
      %v3428 = vlaneseq
      %v3429 = vshrl.u32 %v3428, 7
      %v3430 = vsub.s32 %v3427, %v3429
      %v3431 = vrot.slane %v3417, %v3430
      %v3432 = vcombine.high %v3424, %v3424
      %v3433 = vcombine.high %v3431, %v3431
      %v3435 = vunpack.c.l.s4 1983009808
      %v3436 = vunpack.c.0.s8 %v3435
      %v3437 = vlaneseq
      %v3438 = vshrl.u32 %v3437, 7
      %v3439 = vsub.s32 %v3436, %v3438
      %v3440 = vrot.slane %v725, %v3439
      %s3441 = scalar_lea.vmem %s6, 8
      %v3442 = vld [vmem:[%s3441] sm:$0xf]
      %v3443 = vcombine.low %v2548, %v2558
      %v3444 = vcombine.low %v2565, %v2575
      %v3445 = vcombine.low %v2582, %v2592
      %v3446 = vcombine.low %v2599, %v2609
      %v3447 = vcombine.low %v2616, %v2626
      %v3448 = vcombine.low %v2633, %v2643
      %v3449 = vcombine.low %v2650, %v2660
      %v3450 = vcombine.low %v2667, %v2677
      %v3451 = vcombine.low %v2684, %v2694
      %v3452 = vcombine.low %v2701, %v2711
      %v3453 = vcombine.low %v2718, %v2728
      %v3454 = vcombine.low %v2735, %v2745
      %v3455 = vcombine.low %v2752, %v2762
      %v3456 = vcombine.low %v2769, %v2779
      %v3457 = vcombine.low %v2786, %v2796
      %v3458 = vcombine.low %v2803, %v2813
      %v3459 = vcombine.low %v2820, %v2830
      %v3460 = vcombine.low %v2837, %v2847
      %v3461 = vcombine.low %v2854, %v2864
      %v3462 = vcombine.low %v2871, %v2881
      %v3463 = vcombine.low %v2888, %v2898
      %v3464 = vcombine.low %v2905, %v2915
      %v3465 = vcombine.low %v2922, %v2932
      %v3466 = vcombine.low %v2939, %v2949
      %v3467 = vcombine.low %v2956, %v2966
      %v3468 = vcombine.low %v2973, %v2983
      %v3469 = vcombine.low %v2990, %v3000
      %v3470 = vcombine.low %v3007, %v3017
      %v3471 = vcombine.low %v3024, %v3034
      %v3472 = vcombine.low %v3041, %v3051
      %v3473 = vcombine.low %v3058, %v3068
      %v3474 = vcombine.low %v1495, %v1503
      %v3476 = vunpack.c.l.s4 1983009808
      %v3477 = vunpack.c.0.s8 %v3476
      %v3478 = vlaneseq
      %v3479 = vshrl.u32 %v3478, 7
      %v3480 = vsub.s32 %v3477, %v3479
      %v3481 = vrot.slane %v3474, %v3480
      %v3482 = vcombine.low %v3075, %v3481
      %v3483 = vcombine.low %v1502, %v1504
      %v3484 = vcombine.low %v1512, %v1520
      %v3486 = vunpack.c.l.s4 1983009808
      %v3487 = vunpack.c.0.s8 %v3486
      %v3488 = vlaneseq
      %v3489 = vshrl.u32 %v3488, 7
      %v3490 = vsub.s32 %v3487, %v3489
      %v3491 = vrot.slane %v3483, %v3490
      %v3493 = vunpack.c.l.s4 1983009808
      %v3494 = vunpack.c.0.s8 %v3493
      %v3495 = vlaneseq
      %v3496 = vshrl.u32 %v3495, 7
      %v3497 = vsub.s32 %v3494, %v3496
      %v3498 = vrot.slane %v3484, %v3497
      %v3499 = vcombine.low %v3491, %v3498
      %v3500 = vcombine.low %v1519, %v1521
      %v3501 = vcombine.low %v1528, %v3407
      %v3503 = vunpack.c.l.s4 1983009808
      %v3504 = vunpack.c.0.s8 %v3503
      %v3505 = vlaneseq
      %v3506 = vshrl.u32 %v3505, 7
      %v3507 = vsub.s32 %v3504, %v3506
      %v3508 = vrot.slane %v3500, %v3507
      %v3510 = vunpack.c.l.s4 1983009808
      %v3511 = vunpack.c.0.s8 %v3510
      %v3512 = vlaneseq
      %v3513 = vshrl.u32 %v3512, 7
      %v3514 = vsub.s32 %v3511, %v3513
      %v3515 = vrot.slane %v3501, %v3514
      %v3516 = vcombine.low %v3508, %v3515
      %v3517 = vcombine.low %v3415, %v3414
      %v3518 = vcombine.low %v3416, %v3424
      %v3520 = vunpack.c.l.s4 1983009808
      %v3521 = vunpack.c.0.s8 %v3520
      %v3522 = vlaneseq
      %v3523 = vshrl.u32 %v3522, 7
      %v3524 = vsub.s32 %v3521, %v3523
      %v3525 = vrot.slane %v3517, %v3524
      %v3527 = vunpack.c.l.s4 1983009808
      %v3528 = vunpack.c.0.s8 %v3527
      %v3529 = vlaneseq
      %v3530 = vshrl.u32 %v3529, 7
      %v3531 = vsub.s32 %v3528, %v3530
      %v3532 = vrot.slane %v3518, %v3531
      %v3533 = vcombine.low %v3525, %v3532
      %v3534 = vcombine.low %v3432, %v3431
      %v3535 = vcombine.low %v3433, %v3440
      %v3537 = vunpack.c.l.s4 1983009808
      %v3538 = vunpack.c.0.s8 %v3537
      %v3539 = vlaneseq
      %v3540 = vshrl.u32 %v3539, 7
      %v3541 = vsub.s32 %v3538, %v3540
      %v3542 = vrot.slane %v3534, %v3541
      %v3544 = vunpack.c.l.s4 1983009808
      %v3545 = vunpack.c.0.s8 %v3544
      %v3546 = vlaneseq
      %v3547 = vshrl.u32 %v3546, 7
      %v3548 = vsub.s32 %v3545, %v3547
      %v3549 = vrot.slane %v3535, %v3548
      %v3550 = vcombine.low %v3542, %v3549
      %v3551 = vsel %vm2143, %v3443, 0
      %v3553 = vsel %vm2143, %v3444, 0
      %v3555 = vsel %vm2143, %v3445, 0
      %v3557 = vsel %vm2143, %v3446, 0
      %v3559 = vsel %vm2143, %v3447, 0
      %v3561 = vsel %vm2143, %v3448, 0
      %v3563 = vsel %vm2143, %v3449, 0
      %v3565 = vsel %vm2143, %v3450, 0
      %v3567 = vsel %vm2143, %v3451, 0
      %v3569 = vsel %vm2143, %v3452, 0
      %v3571 = vsel %vm2143, %v3453, 0
      %v3573 = vsel %vm2143, %v3454, 0
      %v3575 = vsel %vm2143, %v3455, 0
      %v3577 = vsel %vm2143, %v3456, 0
      %v3579 = vsel %vm2143, %v3457, 0
      %v3581 = vsel %vm2143, %v3458, 0
      %v3583 = vsel %vm2143, %v3459, 0
      %v3585 = vsel %vm2143, %v3460, 0
      %v3587 = vsel %vm2143, %v3461, 0
      %v3589 = vsel %vm2143, %v3462, 0
      %v3591 = vsel %vm2143, %v3463, 0
      %v3593 = vsel %vm2143, %v3464, 0
      %v3595 = vsel %vm2143, %v3465, 0
      %v3597 = vsel %vm2143, %v3466, 0
      %v3599 = vsel %vm2143, %v3467, 0
      %v3601 = vsel %vm2143, %v3468, 0
      %v3603 = vsel %vm2143, %v3469, 0
      %v3605 = vsel %vm2143, %v3470, 0
      %v3607 = vsel %vm2143, %v3471, 0
      %v3609 = vsel %vm2143, %v3472, 0
      %v3611 = vsel %vm2143, %v3473, 0
      %v3613 = vsel %vm2143, %v3482, 0
      %v3615 = vsel %vm2143, %v3499, 0
      %v3617 = vsel %vm2143, %v3516, 0
      %v3619 = vsel %vm2143, %v3533, 0
      %v3621 = vsel %vm2143, %v3550, 0
      %v3624 = vsel %vm2216, %v3442, 0
      %3626 = vmatprep.subr.mxu0 0.0
      %3627 = vmatpush1.msra.mxu0 %v3624
      %3628 = vmatprep.subr.mxu0 0.0
      %3629 = vmatpush1.msra.mxu0 0.0
      %3630 = vmatprep.subr.mxu0 0.0
      %3631 = vmatpush1.msra.mxu0 0.0
      %3632 = vmatprep.subr.mxu0 0.0
      %3633 = vmatpush1.msra.mxu0 0.0
      %3634 = vmatprep.subr.mxu0 0.0
      %3635 = vmatpush1.msra.mxu0 0.0
      %3636 = vmatprep.subr.mxu0 0.0
      %3637 = vmatpush1.msra.mxu0 0.0
      %3638 = vmatprep.subr.mxu0 0.0
      %3639 = vmatpush1.msra.mxu0 0.0
      %3640 = vmatprep.subr.mxu0 0.0
      %3641 = vmatpush1.msra.mxu0 0.0
      %3642 = vmatprep.subr.mxu0 0.0
      %3643 = vmatpush1.msra.mxu0 0.0
      %3644 = vmatprep.subr.mxu0 0.0
      %3645 = vmatpush1.msra.mxu0 0.0
      %3646 = vmatprep.subr.mxu0 0.0
      %3647 = vmatpush1.msra.mxu0 0.0
      %3648 = vmatprep.subr.mxu0 0.0
      %3649 = vmatpush1.msra.mxu0 0.0
      %3650 = vmatprep.subr.mxu0 0.0
      %3651 = vmatpush1.msra.mxu0 0.0
      %3652 = vmatprep.subr.mxu0 0.0
      %3653 = vmatpush1.msra.mxu0 0.0
      %3654 = vmatprep.subr.mxu0 0.0
      %3655 = vmatpush1.msra.mxu0 0.0
      %3656 = vmatprep.subr.mxu0 0.0
      %3657 = vmatpush1.msra.mxu0 0.0
      %3658 = vmatprep.subr.mxu0 0.0
      %3659 = vmatpush1.msra.mxu0 0.0
      %3660 = vmatprep.subr.mxu0 0.0
      %3661 = vmatpush1.msra.mxu0 0.0
      %3662 = vmatprep.subr.mxu0 0.0
      %3663 = vmatpush1.msra.mxu0 0.0
      %3664 = vmatprep.subr.mxu0 0.0
      %3665 = vmatpush1.msra.mxu0 0.0
      %3666 = vmatprep.subr.mxu0 0.0
      %3667 = vmatpush1.msra.mxu0 0.0
      %3668 = vmatprep.subr.mxu0 0.0
      %3669 = vmatpush1.msra.mxu0 0.0
      %3670 = vmatprep.subr.mxu0 0.0
      %3671 = vmatpush1.msra.mxu0 0.0
      %3672 = vmatprep.subr.mxu0 0.0
      %3673 = vmatpush1.msra.mxu0 0.0
      %3674 = vmatprep.subr.mxu0 0.0
      %3675 = vmatpush1.msra.mxu0 0.0
      %3676 = vmatprep.subr.mxu0 0.0
      %3677 = vmatpush1.msra.mxu0 0.0
      %3678 = vmatprep.subr.mxu0 0.0
      %3679 = vmatpush1.msra.mxu0 0.0
      %3680 = vmatprep.subr.mxu0 0.0
      %3681 = vmatpush1.msra.mxu0 0.0
      %3682 = vmatprep.subr.mxu0 0.0
      %3683 = vmatpush1.msra.mxu0 0.0
      %3684 = vmatprep.subr.mxu0 0.0
      %3685 = vmatpush1.msra.mxu0 0.0
      %3686 = vmatprep.subr.mxu0 0.0
      %3687 = vmatpush1.msra.mxu0 0.0
      %3688 = vmatprep.subr.mxu0 0.0
      %3689 = vmatpush1.msra.mxu0 0.0
      %3690 = vmatprep.mubr.f32.mxu0 0.0
      %3691 = vmatmul.mubr.f32.gmra.mrb[0].mxu0 %v3551
      %v3692 = vpop.f32.mrb[0].mxu0
      %v3693 = vadd.f32 0.0, %v3692
      %v3694 = vpop.f32.mrb[0].mxu0
      %3695 = vmatprep.mubr.f32.mxu0 0.0
      %3696 = vmatmul.mubr.f32.gmra.mrb[0].mxu0 %v3553
      %v3697 = vpop.f32.mrb[0].mxu0
      %v3698 = vadd.f32 0.0, %v3697
      %v3699 = vpop.f32.mrb[0].mxu0
      %3700 = vmatprep.mubr.f32.mxu0 0.0
      %3701 = vmatmul.mubr.f32.gmra.mrb[0].mxu0 %v3555
      %v3702 = vpop.f32.mrb[0].mxu0
      %v3703 = vadd.f32 0.0, %v3702
      %v3704 = vpop.f32.mrb[0].mxu0
      %3705 = vmatprep.mubr.f32.mxu0 0.0
      %3706 = vmatmul.mubr.f32.gmra.mrb[0].mxu0 %v3557
      %v3707 = vpop.f32.mrb[0].mxu0
      %v3708 = vadd.f32 0.0, %v3707
      %v3709 = vpop.f32.mrb[0].mxu0
      %3710 = vmatprep.mubr.f32.mxu0 0.0
      %3711 = vmatmul.mubr.f32.gmra.mrb[0].mxu0 %v3559
      %v3712 = vpop.f32.mrb[0].mxu0
      %v3713 = vadd.f32 0.0, %v3712
      %v3714 = vpop.f32.mrb[0].mxu0
      %3715 = vmatprep.mubr.f32.mxu0 0.0
      %3716 = vmatmul.mubr.f32.gmra.mrb[0].mxu0 %v3561
      %v3717 = vpop.f32.mrb[0].mxu0
      %v3718 = vadd.f32 0.0, %v3717
      %v3719 = vpop.f32.mrb[0].mxu0
      %3720 = vmatprep.mubr.f32.mxu0 0.0
      %3721 = vmatmul.mubr.f32.gmra.mrb[0].mxu0 %v3563
      %v3722 = vpop.f32.mrb[0].mxu0
      %v3723 = vadd.f32 0.0, %v3722
      %v3724 = vpop.f32.mrb[0].mxu0
      %3725 = vmatprep.mubr.f32.mxu0 0.0
      %3726 = vmatmul.mubr.f32.gmra.mrb[0].mxu0 %v3565
      %v3727 = vpop.f32.mrb[0].mxu0
      %v3728 = vadd.f32 0.0, %v3727
      %v3729 = vpop.f32.mrb[0].mxu0
      %3730 = vmatprep.mubr.f32.mxu0 0.0
      %3731 = vmatmul.mubr.f32.gmra.mrb[0].mxu0 %v3567
      %v3732 = vpop.f32.mrb[0].mxu0
      %v3733 = vadd.f32 0.0, %v3732
      %v3734 = vpop.f32.mrb[0].mxu0
      %3735 = vmatprep.mubr.f32.mxu0 0.0
      %3736 = vmatmul.mubr.f32.gmra.mrb[0].mxu0 %v3569
      %v3737 = vpop.f32.mrb[0].mxu0
      %v3738 = vadd.f32 0.0, %v3737
      %v3739 = vpop.f32.mrb[0].mxu0
      %3740 = vmatprep.mubr.f32.mxu0 0.0
      %3741 = vmatmul.mubr.f32.gmra.mrb[0].mxu0 %v3571
      %v3742 = vpop.f32.mrb[0].mxu0
      %v3743 = vadd.f32 0.0, %v3742
      %v3744 = vpop.f32.mrb[0].mxu0
      %3745 = vmatprep.mubr.f32.mxu0 0.0
      %3746 = vmatmul.mubr.f32.gmra.mrb[0].mxu0 %v3573
      %v3747 = vpop.f32.mrb[0].mxu0
      %v3748 = vadd.f32 0.0, %v3747
      %v3749 = vpop.f32.mrb[0].mxu0
      %3750 = vmatprep.mubr.f32.mxu0 0.0
      %3751 = vmatmul.mubr.f32.gmra.mrb[0].mxu0 %v3575
      %v3752 = vpop.f32.mrb[0].mxu0
      %v3753 = vadd.f32 0.0, %v3752
      %v3754 = vpop.f32.mrb[0].mxu0
      %3755 = vmatprep.mubr.f32.mxu0 0.0
      %3756 = vmatmul.mubr.f32.gmra.mrb[0].mxu0 %v3577
      %v3757 = vpop.f32.mrb[0].mxu0
      %v3758 = vadd.f32 0.0, %v3757
      %v3759 = vpop.f32.mrb[0].mxu0
      %3760 = vmatprep.mubr.f32.mxu0 0.0
      %3761 = vmatmul.mubr.f32.gmra.mrb[0].mxu0 %v3579
      %v3762 = vpop.f32.mrb[0].mxu0
      %v3763 = vadd.f32 0.0, %v3762
      %v3764 = vpop.f32.mrb[0].mxu0
      %3765 = vmatprep.mubr.f32.mxu0 0.0
      %3766 = vmatmul.mubr.f32.gmra.mrb[0].mxu0 %v3581
      %v3767 = vpop.f32.mrb[0].mxu0
      %v3768 = vadd.f32 0.0, %v3767
      %v3769 = vpop.f32.mrb[0].mxu0
      %3770 = vmatprep.mubr.f32.mxu0 0.0
      %3771 = vmatmul.mubr.f32.gmra.mrb[0].mxu0 %v3583
      %v3772 = vpop.f32.mrb[0].mxu0
      %v3773 = vadd.f32 0.0, %v3772
      %v3774 = vpop.f32.mrb[0].mxu0
      %3775 = vmatprep.mubr.f32.mxu0 0.0
      %3776 = vmatmul.mubr.f32.gmra.mrb[0].mxu0 %v3585
      %v3777 = vpop.f32.mrb[0].mxu0
      %v3778 = vadd.f32 0.0, %v3777
      %v3779 = vpop.f32.mrb[0].mxu0
      %3780 = vmatprep.mubr.f32.mxu0 0.0
      %3781 = vmatmul.mubr.f32.gmra.mrb[0].mxu0 %v3587
      %v3782 = vpop.f32.mrb[0].mxu0
      %v3783 = vadd.f32 0.0, %v3782
      %v3784 = vpop.f32.mrb[0].mxu0
      %3785 = vmatprep.mubr.f32.mxu0 0.0
      %3786 = vmatmul.mubr.f32.gmra.mrb[0].mxu0 %v3589
      %v3787 = vpop.f32.mrb[0].mxu0
      %v3788 = vadd.f32 0.0, %v3787
      %v3789 = vpop.f32.mrb[0].mxu0
      %3790 = vmatprep.mubr.f32.mxu0 0.0
      %3791 = vmatmul.mubr.f32.gmra.mrb[0].mxu0 %v3591
      %v3792 = vpop.f32.mrb[0].mxu0
      %v3793 = vadd.f32 0.0, %v3792
      %v3794 = vpop.f32.mrb[0].mxu0
      %3795 = vmatprep.mubr.f32.mxu0 0.0
      %3796 = vmatmul.mubr.f32.gmra.mrb[0].mxu0 %v3593
      %v3797 = vpop.f32.mrb[0].mxu0
      %v3798 = vadd.f32 0.0, %v3797
      %v3799 = vpop.f32.mrb[0].mxu0
      %3800 = vmatprep.mubr.f32.mxu0 0.0
      %3801 = vmatmul.mubr.f32.gmra.mrb[0].mxu0 %v3595
      %v3802 = vpop.f32.mrb[0].mxu0
      %v3803 = vadd.f32 0.0, %v3802
      %v3804 = vpop.f32.mrb[0].mxu0
      %3805 = vmatprep.mubr.f32.mxu0 0.0
      %3806 = vmatmul.mubr.f32.gmra.mrb[0].mxu0 %v3597
      %v3807 = vpop.f32.mrb[0].mxu0
      %v3808 = vadd.f32 0.0, %v3807
      %v3809 = vpop.f32.mrb[0].mxu0
      %3810 = vmatprep.mubr.f32.mxu0 0.0
      %3811 = vmatmul.mubr.f32.gmra.mrb[0].mxu0 %v3599
      %v3812 = vpop.f32.mrb[0].mxu0
      %v3813 = vadd.f32 0.0, %v3812
      %v3814 = vpop.f32.mrb[0].mxu0
      %3815 = vmatprep.mubr.f32.mxu0 0.0
      %3816 = vmatmul.mubr.f32.gmra.mrb[0].mxu0 %v3601
      %v3817 = vpop.f32.mrb[0].mxu0
      %v3818 = vadd.f32 0.0, %v3817
      %v3819 = vpop.f32.mrb[0].mxu0
      %3820 = vmatprep.mubr.f32.mxu0 0.0
      %3821 = vmatmul.mubr.f32.gmra.mrb[0].mxu0 %v3603
      %v3822 = vpop.f32.mrb[0].mxu0
      %v3823 = vadd.f32 0.0, %v3822
      %v3824 = vpop.f32.mrb[0].mxu0
      %3825 = vmatprep.mubr.f32.mxu0 0.0
      %3826 = vmatmul.mubr.f32.gmra.mrb[0].mxu0 %v3605
      %v3827 = vpop.f32.mrb[0].mxu0
      %v3828 = vadd.f32 0.0, %v3827
      %v3829 = vpop.f32.mrb[0].mxu0
      %3830 = vmatprep.mubr.f32.mxu0 0.0
      %3831 = vmatmul.mubr.f32.gmra.mrb[0].mxu0 %v3607
      %v3832 = vpop.f32.mrb[0].mxu0
      %v3833 = vadd.f32 0.0, %v3832
      %v3834 = vpop.f32.mrb[0].mxu0
      %3835 = vmatprep.mubr.f32.mxu0 0.0
      %3836 = vmatmul.mubr.f32.gmra.mrb[0].mxu0 %v3609
      %v3837 = vpop.f32.mrb[0].mxu0
      %v3838 = vadd.f32 0.0, %v3837
      %v3839 = vpop.f32.mrb[0].mxu0
      %3840 = vmatprep.mubr.f32.mxu0 0.0
      %3841 = vmatmul.mubr.f32.gmra.mrb[0].mxu0 %v3611
      %v3842 = vpop.f32.mrb[0].mxu0
      %v3843 = vadd.f32 0.0, %v3842
      %v3844 = vpop.f32.mrb[0].mxu0
      %3845 = vmatprep.mubr.f32.mxu0 0.0
      %3846 = vmatmul.mubr.f32.gmra.mrb[0].mxu0 %v3613
      %v3847 = vpop.f32.mrb[0].mxu0
      %v3848 = vadd.f32 0.0, %v3847
      %v3849 = vpop.f32.mrb[0].mxu0
      %3850 = vmatprep.mubr.f32.mxu0 0.0
      %3851 = vmatmul.mubr.f32.gmra.mrb[0].mxu0 %v3615
      %v3852 = vpop.f32.mrb[0].mxu0
      %v3853 = vadd.f32 0.0, %v3852
      %v3854 = vpop.f32.mrb[0].mxu0
      %3855 = vmatprep.mubr.f32.mxu0 0.0
      %3856 = vmatmul.mubr.f32.gmra.mrb[0].mxu0 %v3617
      %v3857 = vpop.f32.mrb[0].mxu0
      %v3858 = vadd.f32 0.0, %v3857
      %v3859 = vpop.f32.mrb[0].mxu0
      %3860 = vmatprep.mubr.f32.mxu0 0.0
      %3861 = vmatmul.mubr.f32.gmra.mrb[0].mxu0 %v3619
      %v3862 = vpop.f32.mrb[0].mxu0
      %v3863 = vadd.f32 0.0, %v3862
      %v3864 = vpop.f32.mrb[0].mxu0
      %3865 = vmatprep.mubr.f32.mxu0 0.0
      %3866 = vmatmul.mubr.f32.gmra.mrb[0].mxu0 %v3621
      %v3867 = vpop.f32.mrb[0].mxu0
      %v3868 = vadd.f32 0.0, %v3867
      %v3869 = vpop.f32.mrb[0].mxu0
      %3870 = vdwg.mxu0
      %v3871 = vadd.f32 %v3219, %v3693
      %v3872 = vadd.f32 %v3224, %v3698
      %v3873 = vadd.f32 %v3229, %v3703
      %v3874 = vadd.f32 %v3234, %v3708
      %v3875 = vadd.f32 %v3239, %v3713
      %v3876 = vadd.f32 %v3244, %v3718
      %v3877 = vadd.f32 %v3249, %v3723
      %v3878 = vadd.f32 %v3254, %v3728
      %v3879 = vadd.f32 %v3259, %v3733
      %v3880 = vadd.f32 %v3264, %v3738
      %v3881 = vadd.f32 %v3269, %v3743
      %v3882 = vadd.f32 %v3274, %v3748
      %v3883 = vadd.f32 %v3279, %v3753
      %v3884 = vadd.f32 %v3284, %v3758
      %v3885 = vadd.f32 %v3289, %v3763
      %v3886 = vadd.f32 %v3294, %v3768
      %v3887 = vadd.f32 %v3299, %v3773
      %v3888 = vadd.f32 %v3304, %v3778
      %v3889 = vadd.f32 %v3309, %v3783
      %v3890 = vadd.f32 %v3314, %v3788
      %v3891 = vadd.f32 %v3319, %v3793
      %v3892 = vadd.f32 %v3324, %v3798
      %v3893 = vadd.f32 %v3329, %v3803
      %v3894 = vadd.f32 %v3334, %v3808
      %v3895 = vadd.f32 %v3339, %v3813
      %v3896 = vadd.f32 %v3344, %v3818
      %v3897 = vadd.f32 %v3349, %v3823
      %v3898 = vadd.f32 %v3354, %v3828
      %v3899 = vadd.f32 %v3359, %v3833
      %v3900 = vadd.f32 %v3364, %v3838
      %v3901 = vadd.f32 %v3369, %v3843
      %v3902 = vadd.f32 %v3374, %v3848
      %v3903 = vadd.f32 %v3379, %v3853
      %v3904 = vadd.f32 %v3384, %v3858
      %v3905 = vadd.f32 %v3389, %v3863
      %v3906 = vadd.f32 %v3394, %v3868
      %v3955 = vcombine.high %v726, %v726
      %v3957 = vunpack.c.l.s4 1983009808
      %v3958 = vunpack.c.0.s8 %v3957
      %v3959 = vlaneseq
      %v3960 = vshrl.u32 %v3959, 7
      %v3961 = vsub.s32 %v3958, %v3960
      %v3962 = vrot.slane %v726, %v3961
      %v3964 = vunpack.c.l.s4 1983009808
      %v3965 = vunpack.c.0.s8 %v3964
      %v3966 = vlaneseq
      %v3967 = vshrl.u32 %v3966, 7
      %v3968 = vsub.s32 %v3965, %v3967
      %v3969 = vrot.slane %v3955, %v3968
      %v3970 = vcombine.high %v3962, %v3962
      %v3971 = vcombine.high %v3969, %v3969
      %v3972 = vcombine.high %v727, %v727
      %v3974 = vunpack.c.l.s4 1983009808
      %v3975 = vunpack.c.0.s8 %v3974
      %v3976 = vlaneseq
      %v3977 = vshrl.u32 %v3976, 7
      %v3978 = vsub.s32 %v3975, %v3977
      %v3979 = vrot.slane %v727, %v3978
      %v3981 = vunpack.c.l.s4 1983009808
      %v3982 = vunpack.c.0.s8 %v3981
      %v3983 = vlaneseq
      %v3984 = vshrl.u32 %v3983, 7
      %v3985 = vsub.s32 %v3982, %v3984
      %v3986 = vrot.slane %v3972, %v3985
      %v3987 = vcombine.high %v3979, %v3979
      %v3988 = vcombine.high %v3986, %v3986
      %v3990 = vunpack.c.l.s4 1983009808
      %v3991 = vunpack.c.0.s8 %v3990
      %v3992 = vlaneseq
      %v3993 = vshrl.u32 %v3992, 7
      %v3994 = vsub.s32 %v3991, %v3993
      %v3995 = vrot.slane %v728, %v3994
      %v3996 = vcombine.high %v729, %v729
      %v3998 = vunpack.c.l.s4 1983009808
      %v3999 = vunpack.c.0.s8 %v3998
      %v4000 = vlaneseq
      %v4001 = vshrl.u32 %v4000, 7
      %v4002 = vsub.s32 %v3999, %v4001
      %v4003 = vrot.slane %v729, %v4002
      %v4005 = vunpack.c.l.s4 1983009808
      %v4006 = vunpack.c.0.s8 %v4005
      %v4007 = vlaneseq
      %v4008 = vshrl.u32 %v4007, 7
      %v4009 = vsub.s32 %v4006, %v4008
      %v4010 = vrot.slane %v3996, %v4009
      %v4011 = vcombine.high %v4003, %v4003
      %v4012 = vcombine.high %v4010, %v4010
      %v4013 = vcombine.high %v730, %v730
      %v4015 = vunpack.c.l.s4 1983009808
      %v4016 = vunpack.c.0.s8 %v4015
      %v4017 = vlaneseq
      %v4018 = vshrl.u32 %v4017, 7
      %v4019 = vsub.s32 %v4016, %v4018
      %v4020 = vrot.slane %v730, %v4019
      %v4022 = vunpack.c.l.s4 1983009808
      %v4023 = vunpack.c.0.s8 %v4022
      %v4024 = vlaneseq
      %v4025 = vshrl.u32 %v4024, 7
      %v4026 = vsub.s32 %v4023, %v4025
      %v4027 = vrot.slane %v4013, %v4026
      %v4028 = vcombine.high %v4020, %v4020
      %v4029 = vcombine.high %v4027, %v4027
      %v4031 = vunpack.c.l.s4 1983009808
      %v4032 = vunpack.c.0.s8 %v4031
      %v4033 = vlaneseq
      %v4034 = vshrl.u32 %v4033, 7
      %v4035 = vsub.s32 %v4032, %v4034
      %v4036 = vrot.slane %v731, %v4035
      %v4037 = vcombine.high %v732, %v732
      %v4039 = vunpack.c.l.s4 1983009808
      %v4040 = vunpack.c.0.s8 %v4039
      %v4041 = vlaneseq
      %v4042 = vshrl.u32 %v4041, 7
      %v4043 = vsub.s32 %v4040, %v4042
      %v4044 = vrot.slane %v732, %v4043
      %v4046 = vunpack.c.l.s4 1983009808
      %v4047 = vunpack.c.0.s8 %v4046
      %v4048 = vlaneseq
      %v4049 = vshrl.u32 %v4048, 7
      %v4050 = vsub.s32 %v4047, %v4049
      %v4051 = vrot.slane %v4037, %v4050
      %v4052 = vcombine.high %v4044, %v4044
      %v4053 = vcombine.high %v4051, %v4051
      %v4054 = vcombine.high %v733, %v733
      %v4056 = vunpack.c.l.s4 1983009808
      %v4057 = vunpack.c.0.s8 %v4056
      %v4058 = vlaneseq
      %v4059 = vshrl.u32 %v4058, 7
      %v4060 = vsub.s32 %v4057, %v4059
      %v4061 = vrot.slane %v733, %v4060
      %v4063 = vunpack.c.l.s4 1983009808
      %v4064 = vunpack.c.0.s8 %v4063
      %v4065 = vlaneseq
      %v4066 = vshrl.u32 %v4065, 7
      %v4067 = vsub.s32 %v4064, %v4066
      %v4068 = vrot.slane %v4054, %v4067
      %v4069 = vcombine.high %v4061, %v4061
      %v4070 = vcombine.high %v4068, %v4068
      %v4072 = vunpack.c.l.s4 1983009808
      %v4073 = vunpack.c.0.s8 %v4072
      %v4074 = vlaneseq
      %v4075 = vshrl.u32 %v4074, 7
      %v4076 = vsub.s32 %v4073, %v4075
      %v4077 = vrot.slane %v734, %v4076
      %v4078 = vcombine.high %v735, %v735
      %v4080 = vunpack.c.l.s4 1983009808
      %v4081 = vunpack.c.0.s8 %v4080
      %v4082 = vlaneseq
      %v4083 = vshrl.u32 %v4082, 7
      %v4084 = vsub.s32 %v4081, %v4083
      %v4085 = vrot.slane %v735, %v4084
      %v4087 = vunpack.c.l.s4 1983009808
      %v4088 = vunpack.c.0.s8 %v4087
      %v4089 = vlaneseq
      %v4090 = vshrl.u32 %v4089, 7
      %v4091 = vsub.s32 %v4088, %v4090
      %v4092 = vrot.slane %v4078, %v4091
      %v4093 = vcombine.high %v4085, %v4085
      %v4094 = vcombine.high %v4092, %v4092
      %v4095 = vcombine.high %v736, %v736
      %v4097 = vunpack.c.l.s4 1983009808
      %v4098 = vunpack.c.0.s8 %v4097
      %v4099 = vlaneseq
      %v4100 = vshrl.u32 %v4099, 7
      %v4101 = vsub.s32 %v4098, %v4100
      %v4102 = vrot.slane %v736, %v4101
      %v4104 = vunpack.c.l.s4 1983009808
      %v4105 = vunpack.c.0.s8 %v4104
      %v4106 = vlaneseq
      %v4107 = vshrl.u32 %v4106, 7
      %v4108 = vsub.s32 %v4105, %v4107
      %v4109 = vrot.slane %v4095, %v4108
      %v4110 = vcombine.high %v4102, %v4102
      %v4111 = vcombine.high %v4109, %v4109
      %v4113 = vunpack.c.l.s4 1983009808
      %v4114 = vunpack.c.0.s8 %v4113
      %v4115 = vlaneseq
      %v4116 = vshrl.u32 %v4115, 7
      %v4117 = vsub.s32 %v4114, %v4116
      %v4118 = vrot.slane %v737, %v4117
      %v4119 = vcombine.high %v738, %v738
      %v4121 = vunpack.c.l.s4 1983009808
      %v4122 = vunpack.c.0.s8 %v4121
      %v4123 = vlaneseq
      %v4124 = vshrl.u32 %v4123, 7
      %v4125 = vsub.s32 %v4122, %v4124
      %v4126 = vrot.slane %v738, %v4125
      %v4128 = vunpack.c.l.s4 1983009808
      %v4129 = vunpack.c.0.s8 %v4128
      %v4130 = vlaneseq
      %v4131 = vshrl.u32 %v4130, 7
      %v4132 = vsub.s32 %v4129, %v4131
      %v4133 = vrot.slane %v4119, %v4132
      %v4134 = vcombine.high %v4126, %v4126
      %v4135 = vcombine.high %v4133, %v4133
      %v4136 = vcombine.high %v739, %v739
      %v4138 = vunpack.c.l.s4 1983009808
      %v4139 = vunpack.c.0.s8 %v4138
      %v4140 = vlaneseq
      %v4141 = vshrl.u32 %v4140, 7
      %v4142 = vsub.s32 %v4139, %v4141
      %v4143 = vrot.slane %v739, %v4142
      %v4145 = vunpack.c.l.s4 1983009808
      %v4146 = vunpack.c.0.s8 %v4145
      %v4147 = vlaneseq
      %v4148 = vshrl.u32 %v4147, 7
      %v4149 = vsub.s32 %v4146, %v4148
      %v4150 = vrot.slane %v4136, %v4149
      %v4151 = vcombine.high %v4143, %v4143
      %v4152 = vcombine.high %v4150, %v4150
      %v4154 = vunpack.c.l.s4 1983009808
      %v4155 = vunpack.c.0.s8 %v4154
      %v4156 = vlaneseq
      %v4157 = vshrl.u32 %v4156, 7
      %v4158 = vsub.s32 %v4155, %v4157
      %v4159 = vrot.slane %v740, %v4158
      %v4160 = vcombine.high %v741, %v741
      %v4162 = vunpack.c.l.s4 1983009808
      %v4163 = vunpack.c.0.s8 %v4162
      %v4164 = vlaneseq
      %v4165 = vshrl.u32 %v4164, 7
      %v4166 = vsub.s32 %v4163, %v4165
      %v4167 = vrot.slane %v741, %v4166
      %v4169 = vunpack.c.l.s4 1983009808
      %v4170 = vunpack.c.0.s8 %v4169
      %v4171 = vlaneseq
      %v4172 = vshrl.u32 %v4171, 7
      %v4173 = vsub.s32 %v4170, %v4172
      %v4174 = vrot.slane %v4160, %v4173
      %v4175 = vcombine.high %v4167, %v4167
      %v4176 = vcombine.high %v4174, %v4174
      %v4177 = vcombine.high %v742, %v742
      %v4179 = vunpack.c.l.s4 1983009808
      %v4180 = vunpack.c.0.s8 %v4179
      %v4181 = vlaneseq
      %v4182 = vshrl.u32 %v4181, 7
      %v4183 = vsub.s32 %v4180, %v4182
      %v4184 = vrot.slane %v742, %v4183
      %v4186 = vunpack.c.l.s4 1983009808
      %v4187 = vunpack.c.0.s8 %v4186
      %v4188 = vlaneseq
      %v4189 = vshrl.u32 %v4188, 7
      %v4190 = vsub.s32 %v4187, %v4189
      %v4191 = vrot.slane %v4177, %v4190
      %v4192 = vcombine.high %v4184, %v4184
      %v4193 = vcombine.high %v4191, %v4191
      %v4195 = vunpack.c.l.s4 1983009808
      %v4196 = vunpack.c.0.s8 %v4195
      %v4197 = vlaneseq
      %v4198 = vshrl.u32 %v4197, 7
      %v4199 = vsub.s32 %v4196, %v4198
      %v4200 = vrot.slane %v743, %v4199
      %v4201 = vcombine.high %v744, %v744
      %v4203 = vunpack.c.l.s4 1983009808
      %v4204 = vunpack.c.0.s8 %v4203
      %v4205 = vlaneseq
      %v4206 = vshrl.u32 %v4205, 7
      %v4207 = vsub.s32 %v4204, %v4206
      %v4208 = vrot.slane %v744, %v4207
      %v4210 = vunpack.c.l.s4 1983009808
      %v4211 = vunpack.c.0.s8 %v4210
      %v4212 = vlaneseq
      %v4213 = vshrl.u32 %v4212, 7
      %v4214 = vsub.s32 %v4211, %v4213
      %v4215 = vrot.slane %v4201, %v4214
      %v4216 = vcombine.high %v4208, %v4208
      %v4217 = vcombine.high %v4215, %v4215
      %v4218 = vcombine.high %v745, %v745
      %v4220 = vunpack.c.l.s4 1983009808
      %v4221 = vunpack.c.0.s8 %v4220
      %v4222 = vlaneseq
      %v4223 = vshrl.u32 %v4222, 7
      %v4224 = vsub.s32 %v4221, %v4223
      %v4225 = vrot.slane %v745, %v4224
      %v4227 = vunpack.c.l.s4 1983009808
      %v4228 = vunpack.c.0.s8 %v4227
      %v4229 = vlaneseq
      %v4230 = vshrl.u32 %v4229, 7
      %v4231 = vsub.s32 %v4228, %v4230
      %v4232 = vrot.slane %v4218, %v4231
      %v4233 = vcombine.high %v4225, %v4225
      %v4234 = vcombine.high %v4232, %v4232
      %v4236 = vunpack.c.l.s4 1983009808
      %v4237 = vunpack.c.0.s8 %v4236
      %v4238 = vlaneseq
      %v4239 = vshrl.u32 %v4238, 7
      %v4240 = vsub.s32 %v4237, %v4239
      %v4241 = vrot.slane %v746, %v4240
      %v4242 = vcombine.high %v747, %v747
      %v4244 = vunpack.c.l.s4 1983009808
      %v4245 = vunpack.c.0.s8 %v4244
      %v4246 = vlaneseq
      %v4247 = vshrl.u32 %v4246, 7
      %v4248 = vsub.s32 %v4245, %v4247
      %v4249 = vrot.slane %v747, %v4248
      %v4251 = vunpack.c.l.s4 1983009808
      %v4252 = vunpack.c.0.s8 %v4251
      %v4253 = vlaneseq
      %v4254 = vshrl.u32 %v4253, 7
      %v4255 = vsub.s32 %v4252, %v4254
      %v4256 = vrot.slane %v4242, %v4255
      %v4257 = vcombine.high %v4249, %v4249
      %v4258 = vcombine.high %v4256, %v4256
      %v4259 = vcombine.high %v748, %v748
      %v4261 = vunpack.c.l.s4 1983009808
      %v4262 = vunpack.c.0.s8 %v4261
      %v4263 = vlaneseq
      %v4264 = vshrl.u32 %v4263, 7
      %v4265 = vsub.s32 %v4262, %v4264
      %v4266 = vrot.slane %v748, %v4265
      %v4268 = vunpack.c.l.s4 1983009808
      %v4269 = vunpack.c.0.s8 %v4268
      %v4270 = vlaneseq
      %v4271 = vshrl.u32 %v4270, 7
      %v4272 = vsub.s32 %v4269, %v4271
      %v4273 = vrot.slane %v4259, %v4272
      %v4274 = vcombine.high %v4266, %v4266
      %v4275 = vcombine.high %v4273, %v4273
      %v4277 = vunpack.c.l.s4 1983009808
      %v4278 = vunpack.c.0.s8 %v4277
      %v4279 = vlaneseq
      %v4280 = vshrl.u32 %v4279, 7
      %v4281 = vsub.s32 %v4278, %v4280
      %v4282 = vrot.slane %v749, %v4281
      %v4283 = vcombine.high %v750, %v750
      %v4285 = vunpack.c.l.s4 1983009808
      %v4286 = vunpack.c.0.s8 %v4285
      %v4287 = vlaneseq
      %v4288 = vshrl.u32 %v4287, 7
      %v4289 = vsub.s32 %v4286, %v4288
      %v4290 = vrot.slane %v750, %v4289
      %v4292 = vunpack.c.l.s4 1983009808
      %v4293 = vunpack.c.0.s8 %v4292
      %v4294 = vlaneseq
      %v4295 = vshrl.u32 %v4294, 7
      %v4296 = vsub.s32 %v4293, %v4295
      %v4297 = vrot.slane %v4283, %v4296
      %v4298 = vcombine.high %v4290, %v4290
      %v4299 = vcombine.high %v4297, %v4297
      %v4300 = vcombine.high %v751, %v751
      %v4302 = vunpack.c.l.s4 1983009808
      %v4303 = vunpack.c.0.s8 %v4302
      %v4304 = vlaneseq
      %v4305 = vshrl.u32 %v4304, 7
      %v4306 = vsub.s32 %v4303, %v4305
      %v4307 = vrot.slane %v751, %v4306
      %v4309 = vunpack.c.l.s4 1983009808
      %v4310 = vunpack.c.0.s8 %v4309
      %v4311 = vlaneseq
      %v4312 = vshrl.u32 %v4311, 7
      %v4313 = vsub.s32 %v4310, %v4312
      %v4314 = vrot.slane %v4300, %v4313
      %v4315 = vcombine.high %v4307, %v4307
      %v4316 = vcombine.high %v4314, %v4314
      %v4318 = vunpack.c.l.s4 1983009808
      %v4319 = vunpack.c.0.s8 %v4318
      %v4320 = vlaneseq
      %v4321 = vshrl.u32 %v4320, 7
      %v4322 = vsub.s32 %v4319, %v4321
      %v4323 = vrot.slane %v752, %v4322
      %v4324 = vcombine.high %v753, %v753
      %v4326 = vunpack.c.l.s4 1983009808
      %v4327 = vunpack.c.0.s8 %v4326
      %v4328 = vlaneseq
      %v4329 = vshrl.u32 %v4328, 7
      %v4330 = vsub.s32 %v4327, %v4329
      %v4331 = vrot.slane %v753, %v4330
      %v4333 = vunpack.c.l.s4 1983009808
      %v4334 = vunpack.c.0.s8 %v4333
      %v4335 = vlaneseq
      %v4336 = vshrl.u32 %v4335, 7
      %v4337 = vsub.s32 %v4334, %v4336
      %v4338 = vrot.slane %v4324, %v4337
      %v4339 = vcombine.high %v4331, %v4331
      %v4340 = vcombine.high %v4338, %v4338
      %v4341 = vcombine.high %v754, %v754
      %v4343 = vunpack.c.l.s4 1983009808
      %v4344 = vunpack.c.0.s8 %v4343
      %v4345 = vlaneseq
      %v4346 = vshrl.u32 %v4345, 7
      %v4347 = vsub.s32 %v4344, %v4346
      %v4348 = vrot.slane %v754, %v4347
      %v4350 = vunpack.c.l.s4 1983009808
      %v4351 = vunpack.c.0.s8 %v4350
      %v4352 = vlaneseq
      %v4353 = vshrl.u32 %v4352, 7
      %v4354 = vsub.s32 %v4351, %v4353
      %v4355 = vrot.slane %v4341, %v4354
      %v4356 = vcombine.high %v4348, %v4348
      %v4357 = vcombine.high %v4355, %v4355
      %v4359 = vunpack.c.l.s4 1983009808
      %v4360 = vunpack.c.0.s8 %v4359
      %v4361 = vlaneseq
      %v4362 = vshrl.u32 %v4361, 7
      %v4363 = vsub.s32 %v4360, %v4362
      %v4364 = vrot.slane %v755, %v4363
      %v4365 = vcombine.high %v756, %v756
      %v4367 = vunpack.c.l.s4 1983009808
      %v4368 = vunpack.c.0.s8 %v4367
      %v4369 = vlaneseq
      %v4370 = vshrl.u32 %v4369, 7
      %v4371 = vsub.s32 %v4368, %v4370
      %v4372 = vrot.slane %v756, %v4371
      %v4374 = vunpack.c.l.s4 1983009808
      %v4375 = vunpack.c.0.s8 %v4374
      %v4376 = vlaneseq
      %v4377 = vshrl.u32 %v4376, 7
      %v4378 = vsub.s32 %v4375, %v4377
      %v4379 = vrot.slane %v4365, %v4378
      %v4380 = vcombine.high %v4372, %v4372
      %v4381 = vcombine.high %v4379, %v4379
      %v4382 = vcombine.high %v757, %v757
      %v4384 = vunpack.c.l.s4 1983009808
      %v4385 = vunpack.c.0.s8 %v4384
      %v4386 = vlaneseq
      %v4387 = vshrl.u32 %v4386, 7
      %v4388 = vsub.s32 %v4385, %v4387
      %v4389 = vrot.slane %v757, %v4388
      %v4391 = vunpack.c.l.s4 1983009808
      %v4392 = vunpack.c.0.s8 %v4391
      %v4393 = vlaneseq
      %v4394 = vshrl.u32 %v4393, 7
      %v4395 = vsub.s32 %v4392, %v4394
      %v4396 = vrot.slane %v4382, %v4395
      %v4397 = vcombine.high %v4389, %v4389
      %v4398 = vcombine.high %v4396, %v4396
      %v4400 = vunpack.c.l.s4 1983009808
      %v4401 = vunpack.c.0.s8 %v4400
      %v4402 = vlaneseq
      %v4403 = vshrl.u32 %v4402, 7
      %v4404 = vsub.s32 %v4401, %v4403
      %v4405 = vrot.slane %v758, %v4404
      %v4406 = vcombine.high %v759, %v759
      %v4408 = vunpack.c.l.s4 1983009808
      %v4409 = vunpack.c.0.s8 %v4408
      %v4410 = vlaneseq
      %v4411 = vshrl.u32 %v4410, 7
      %v4412 = vsub.s32 %v4409, %v4411
      %v4413 = vrot.slane %v759, %v4412
      %v4415 = vunpack.c.l.s4 1983009808
      %v4416 = vunpack.c.0.s8 %v4415
      %v4417 = vlaneseq
      %v4418 = vshrl.u32 %v4417, 7
      %v4419 = vsub.s32 %v4416, %v4418
      %v4420 = vrot.slane %v4406, %v4419
      %v4421 = vcombine.high %v4413, %v4413
      %v4422 = vcombine.high %v4420, %v4420
      %v4423 = vcombine.high %v760, %v760
      %v4425 = vunpack.c.l.s4 1983009808
      %v4426 = vunpack.c.0.s8 %v4425
      %v4427 = vlaneseq
      %v4428 = vshrl.u32 %v4427, 7
      %v4429 = vsub.s32 %v4426, %v4428
      %v4430 = vrot.slane %v760, %v4429
      %v4432 = vunpack.c.l.s4 1983009808
      %v4433 = vunpack.c.0.s8 %v4432
      %v4434 = vlaneseq
      %v4435 = vshrl.u32 %v4434, 7
      %v4436 = vsub.s32 %v4433, %v4435
      %v4437 = vrot.slane %v4423, %v4436
      %v4438 = vcombine.high %v4430, %v4430
      %v4439 = vcombine.high %v4437, %v4437
      %v4441 = vunpack.c.l.s4 1983009808
      %v4442 = vunpack.c.0.s8 %v4441
      %v4443 = vlaneseq
      %v4444 = vshrl.u32 %v4443, 7
      %v4445 = vsub.s32 %v4442, %v4444
      %v4446 = vrot.slane %v761, %v4445
      %v4447 = vcombine.high %v762, %v762
      %v4449 = vunpack.c.l.s4 1983009808
      %v4450 = vunpack.c.0.s8 %v4449
      %v4451 = vlaneseq
      %v4452 = vshrl.u32 %v4451, 7
      %v4453 = vsub.s32 %v4450, %v4452
      %v4454 = vrot.slane %v762, %v4453
      %v4456 = vunpack.c.l.s4 1983009808
      %v4457 = vunpack.c.0.s8 %v4456
      %v4458 = vlaneseq
      %v4459 = vshrl.u32 %v4458, 7
      %v4460 = vsub.s32 %v4457, %v4459
      %v4461 = vrot.slane %v4447, %v4460
      %v4462 = vcombine.high %v4454, %v4454
      %v4463 = vcombine.high %v4461, %v4461
      %v4464 = vcombine.high %v763, %v763
      %v4466 = vunpack.c.l.s4 1983009808
      %v4467 = vunpack.c.0.s8 %v4466
      %v4468 = vlaneseq
      %v4469 = vshrl.u32 %v4468, 7
      %v4470 = vsub.s32 %v4467, %v4469
      %v4471 = vrot.slane %v763, %v4470
      %v4473 = vunpack.c.l.s4 1983009808
      %v4474 = vunpack.c.0.s8 %v4473
      %v4475 = vlaneseq
      %v4476 = vshrl.u32 %v4475, 7
      %v4477 = vsub.s32 %v4474, %v4476
      %v4478 = vrot.slane %v4464, %v4477
      %v4479 = vcombine.high %v4471, %v4471
      %v4480 = vcombine.high %v4478, %v4478
      %v4482 = vunpack.c.l.s4 1983009808
      %v4483 = vunpack.c.0.s8 %v4482
      %v4484 = vlaneseq
      %v4485 = vshrl.u32 %v4484, 7
      %v4486 = vsub.s32 %v4483, %v4485
      %v4487 = vrot.slane %v764, %v4486
      %v4488 = vcombine.high %v765, %v765
      %v4490 = vunpack.c.l.s4 1983009808
      %v4491 = vunpack.c.0.s8 %v4490
      %v4492 = vlaneseq
      %v4493 = vshrl.u32 %v4492, 7
      %v4494 = vsub.s32 %v4491, %v4493
      %v4495 = vrot.slane %v765, %v4494
      %v4497 = vunpack.c.l.s4 1983009808
      %v4498 = vunpack.c.0.s8 %v4497
      %v4499 = vlaneseq
      %v4500 = vshrl.u32 %v4499, 7
      %v4501 = vsub.s32 %v4498, %v4500
      %v4502 = vrot.slane %v4488, %v4501
      %v4503 = vcombine.high %v4495, %v4495
      %v4504 = vcombine.high %v4502, %v4502
      %v4505 = vcombine.high %v766, %v766
      %v4507 = vunpack.c.l.s4 1983009808
      %v4508 = vunpack.c.0.s8 %v4507
      %v4509 = vlaneseq
      %v4510 = vshrl.u32 %v4509, 7
      %v4511 = vsub.s32 %v4508, %v4510
      %v4512 = vrot.slane %v766, %v4511
      %v4514 = vunpack.c.l.s4 1983009808
      %v4515 = vunpack.c.0.s8 %v4514
      %v4516 = vlaneseq
      %v4517 = vshrl.u32 %v4516, 7
      %v4518 = vsub.s32 %v4515, %v4517
      %v4519 = vrot.slane %v4505, %v4518
      %v4520 = vcombine.high %v4512, %v4512
      %v4521 = vcombine.high %v4519, %v4519
      %v4523 = vunpack.c.l.s4 1983009808
      %v4524 = vunpack.c.0.s8 %v4523
      %v4525 = vlaneseq
      %v4526 = vshrl.u32 %v4525, 7
      %v4527 = vsub.s32 %v4524, %v4526
      %v4528 = vrot.slane %v767, %v4527
      %v4529 = vcombine.high %v768, %v768
      %v4531 = vunpack.c.l.s4 1983009808
      %v4532 = vunpack.c.0.s8 %v4531
      %v4533 = vlaneseq
      %v4534 = vshrl.u32 %v4533, 7
      %v4535 = vsub.s32 %v4532, %v4534
      %v4536 = vrot.slane %v768, %v4535
      %v4538 = vunpack.c.l.s4 1983009808
      %v4539 = vunpack.c.0.s8 %v4538
      %v4540 = vlaneseq
      %v4541 = vshrl.u32 %v4540, 7
      %v4542 = vsub.s32 %v4539, %v4541
      %v4543 = vrot.slane %v4529, %v4542
      %v4544 = vcombine.high %v4536, %v4536
      %v4545 = vcombine.high %v4543, %v4543
      %v4546 = vcombine.high %v769, %v769
      %v4548 = vunpack.c.l.s4 1983009808
      %v4549 = vunpack.c.0.s8 %v4548
      %v4550 = vlaneseq
      %v4551 = vshrl.u32 %v4550, 7
      %v4552 = vsub.s32 %v4549, %v4551
      %v4553 = vrot.slane %v769, %v4552
      %v4555 = vunpack.c.l.s4 1983009808
      %v4556 = vunpack.c.0.s8 %v4555
      %v4557 = vlaneseq
      %v4558 = vshrl.u32 %v4557, 7
      %v4559 = vsub.s32 %v4556, %v4558
      %v4560 = vrot.slane %v4546, %v4559
      %v4561 = vcombine.high %v4553, %v4553
      %v4562 = vcombine.high %v4560, %v4560
      %v4564 = vunpack.c.l.s4 1983009808
      %v4565 = vunpack.c.0.s8 %v4564
      %v4566 = vlaneseq
      %v4567 = vshrl.u32 %v4566, 7
      %v4568 = vsub.s32 %v4565, %v4567
      %v4569 = vrot.slane %v770, %v4568
      %v4570 = vcombine.high %v771, %v771
      %v4572 = vunpack.c.l.s4 1983009808
      %v4573 = vunpack.c.0.s8 %v4572
      %v4574 = vlaneseq
      %v4575 = vshrl.u32 %v4574, 7
      %v4576 = vsub.s32 %v4573, %v4575
      %v4577 = vrot.slane %v771, %v4576
      %v4579 = vunpack.c.l.s4 1983009808
      %v4580 = vunpack.c.0.s8 %v4579
      %v4581 = vlaneseq
      %v4582 = vshrl.u32 %v4581, 7
      %v4583 = vsub.s32 %v4580, %v4582
      %v4584 = vrot.slane %v4570, %v4583
      %v4585 = vcombine.high %v4577, %v4577
      %v4586 = vcombine.high %v4584, %v4584
      %v4587 = vcombine.high %v772, %v772
      %v4589 = vunpack.c.l.s4 1983009808
      %v4590 = vunpack.c.0.s8 %v4589
      %v4591 = vlaneseq
      %v4592 = vshrl.u32 %v4591, 7
      %v4593 = vsub.s32 %v4590, %v4592
      %v4594 = vrot.slane %v772, %v4593
      %v4596 = vunpack.c.l.s4 1983009808
      %v4597 = vunpack.c.0.s8 %v4596
      %v4598 = vlaneseq
      %v4599 = vshrl.u32 %v4598, 7
      %v4600 = vsub.s32 %v4597, %v4599
      %v4601 = vrot.slane %v4587, %v4600
      %v4602 = vcombine.high %v4594, %v4594
      %v4603 = vcombine.high %v4601, %v4601
      %v4605 = vunpack.c.l.s4 1983009808
      %v4606 = vunpack.c.0.s8 %v4605
      %v4607 = vlaneseq
      %v4608 = vshrl.u32 %v4607, 7
      %v4609 = vsub.s32 %v4606, %v4608
      %v4610 = vrot.slane %v773, %v4609
      %v4611 = vld [vmem:[%s7] sm:$0x3]
      %v4612 = vcombine.low %v3962, %v3970
      %v4613 = vcombine.low %v3969, %v3971
      %v4615 = vunpack.c.l.s4 1983009808
      %v4616 = vunpack.c.0.s8 %v4615
      %v4617 = vlaneseq
      %v4618 = vshrl.u32 %v4617, 7
      %v4619 = vsub.s32 %v4616, %v4618
      %v4620 = vrot.slane %v4612, %v4619
      %v4622 = vunpack.c.l.s4 1983009808
      %v4623 = vunpack.c.0.s8 %v4622
      %v4624 = vlaneseq
      %v4625 = vshrl.u32 %v4624, 7
      %v4626 = vsub.s32 %v4623, %v4625
      %v4627 = vrot.slane %v4613, %v4626
      %v4628 = vcombine.low %v4620, %v4627
      %v4629 = vcombine.low %v3979, %v3987
      %v4630 = vcombine.low %v3986, %v3988
      %v4632 = vunpack.c.l.s4 1983009808
      %v4633 = vunpack.c.0.s8 %v4632
      %v4634 = vlaneseq
      %v4635 = vshrl.u32 %v4634, 7
      %v4636 = vsub.s32 %v4633, %v4635
      %v4637 = vrot.slane %v4629, %v4636
      %v4639 = vunpack.c.l.s4 1983009808
      %v4640 = vunpack.c.0.s8 %v4639
      %v4641 = vlaneseq
      %v4642 = vshrl.u32 %v4641, 7
      %v4643 = vsub.s32 %v4640, %v4642
      %v4644 = vrot.slane %v4630, %v4643
      %v4645 = vcombine.low %v4637, %v4644
      %v4646 = vcombine.low %v3995, %v4003
      %v4647 = vcombine.low %v4011, %v4010
      %v4649 = vunpack.c.l.s4 1983009808
      %v4650 = vunpack.c.0.s8 %v4649
      %v4651 = vlaneseq
      %v4652 = vshrl.u32 %v4651, 7
      %v4653 = vsub.s32 %v4650, %v4652
      %v4654 = vrot.slane %v4646, %v4653
      %v4656 = vunpack.c.l.s4 1983009808
      %v4657 = vunpack.c.0.s8 %v4656
      %v4658 = vlaneseq
      %v4659 = vshrl.u32 %v4658, 7
      %v4660 = vsub.s32 %v4657, %v4659
      %v4661 = vrot.slane %v4647, %v4660
      %v4662 = vcombine.low %v4654, %v4661
      %v4663 = vcombine.low %v4012, %v4020
      %v4664 = vcombine.low %v4028, %v4027
      %v4666 = vunpack.c.l.s4 1983009808
      %v4667 = vunpack.c.0.s8 %v4666
      %v4668 = vlaneseq
      %v4669 = vshrl.u32 %v4668, 7
      %v4670 = vsub.s32 %v4667, %v4669
      %v4671 = vrot.slane %v4663, %v4670
      %v4673 = vunpack.c.l.s4 1983009808
      %v4674 = vunpack.c.0.s8 %v4673
      %v4675 = vlaneseq
      %v4676 = vshrl.u32 %v4675, 7
      %v4677 = vsub.s32 %v4674, %v4676
      %v4678 = vrot.slane %v4664, %v4677
      %v4679 = vcombine.low %v4671, %v4678
      %v4680 = vcombine.low %v4029, %v4036
      %v4681 = vcombine.low %v4044, %v4052
      %v4683 = vunpack.c.l.s4 1983009808
      %v4684 = vunpack.c.0.s8 %v4683
      %v4685 = vlaneseq
      %v4686 = vshrl.u32 %v4685, 7
      %v4687 = vsub.s32 %v4684, %v4686
      %v4688 = vrot.slane %v4680, %v4687
      %v4690 = vunpack.c.l.s4 1983009808
      %v4691 = vunpack.c.0.s8 %v4690
      %v4692 = vlaneseq
      %v4693 = vshrl.u32 %v4692, 7
      %v4694 = vsub.s32 %v4691, %v4693
      %v4695 = vrot.slane %v4681, %v4694
      %v4696 = vcombine.low %v4688, %v4695
      %v4697 = vcombine.low %v4051, %v4053
      %v4698 = vcombine.low %v4061, %v4069
      %v4700 = vunpack.c.l.s4 1983009808
      %v4701 = vunpack.c.0.s8 %v4700
      %v4702 = vlaneseq
      %v4703 = vshrl.u32 %v4702, 7
      %v4704 = vsub.s32 %v4701, %v4703
      %v4705 = vrot.slane %v4697, %v4704
      %v4707 = vunpack.c.l.s4 1983009808
      %v4708 = vunpack.c.0.s8 %v4707
      %v4709 = vlaneseq
      %v4710 = vshrl.u32 %v4709, 7
      %v4711 = vsub.s32 %v4708, %v4710
      %v4712 = vrot.slane %v4698, %v4711
      %v4713 = vcombine.low %v4705, %v4712
      %v4714 = vcombine.low %v4068, %v4070
      %v4715 = vcombine.low %v4077, %v4085
      %v4717 = vunpack.c.l.s4 1983009808
      %v4718 = vunpack.c.0.s8 %v4717
      %v4719 = vlaneseq
      %v4720 = vshrl.u32 %v4719, 7
      %v4721 = vsub.s32 %v4718, %v4720
      %v4722 = vrot.slane %v4714, %v4721
      %v4724 = vunpack.c.l.s4 1983009808
      %v4725 = vunpack.c.0.s8 %v4724
      %v4726 = vlaneseq
      %v4727 = vshrl.u32 %v4726, 7
      %v4728 = vsub.s32 %v4725, %v4727
      %v4729 = vrot.slane %v4715, %v4728
      %v4730 = vcombine.low %v4722, %v4729
      %v4731 = vcombine.low %v4093, %v4092
      %v4732 = vcombine.low %v4094, %v4102
      %v4734 = vunpack.c.l.s4 1983009808
      %v4735 = vunpack.c.0.s8 %v4734
      %v4736 = vlaneseq
      %v4737 = vshrl.u32 %v4736, 7
      %v4738 = vsub.s32 %v4735, %v4737
      %v4739 = vrot.slane %v4731, %v4738
      %v4741 = vunpack.c.l.s4 1983009808
      %v4742 = vunpack.c.0.s8 %v4741
      %v4743 = vlaneseq
      %v4744 = vshrl.u32 %v4743, 7
      %v4745 = vsub.s32 %v4742, %v4744
      %v4746 = vrot.slane %v4732, %v4745
      %v4747 = vcombine.low %v4739, %v4746
      %v4748 = vcombine.low %v4110, %v4109
      %v4749 = vcombine.low %v4111, %v4118
      %v4751 = vunpack.c.l.s4 1983009808
      %v4752 = vunpack.c.0.s8 %v4751
      %v4753 = vlaneseq
      %v4754 = vshrl.u32 %v4753, 7
      %v4755 = vsub.s32 %v4752, %v4754
      %v4756 = vrot.slane %v4748, %v4755
      %v4758 = vunpack.c.l.s4 1983009808
      %v4759 = vunpack.c.0.s8 %v4758
      %v4760 = vlaneseq
      %v4761 = vshrl.u32 %v4760, 7
      %v4762 = vsub.s32 %v4759, %v4761
      %v4763 = vrot.slane %v4749, %v4762
      %v4764 = vcombine.low %v4756, %v4763
      %v4765 = vcombine.low %v4126, %v4134
      %v4766 = vcombine.low %v4133, %v4135
      %v4768 = vunpack.c.l.s4 1983009808
      %v4769 = vunpack.c.0.s8 %v4768
      %v4770 = vlaneseq
      %v4771 = vshrl.u32 %v4770, 7
      %v4772 = vsub.s32 %v4769, %v4771
      %v4773 = vrot.slane %v4765, %v4772
      %v4775 = vunpack.c.l.s4 1983009808
      %v4776 = vunpack.c.0.s8 %v4775
      %v4777 = vlaneseq
      %v4778 = vshrl.u32 %v4777, 7
      %v4779 = vsub.s32 %v4776, %v4778
      %v4780 = vrot.slane %v4766, %v4779
      %v4781 = vcombine.low %v4773, %v4780
      %v4782 = vcombine.low %v4143, %v4151
      %v4783 = vcombine.low %v4150, %v4152
      %v4785 = vunpack.c.l.s4 1983009808
      %v4786 = vunpack.c.0.s8 %v4785
      %v4787 = vlaneseq
      %v4788 = vshrl.u32 %v4787, 7
      %v4789 = vsub.s32 %v4786, %v4788
      %v4790 = vrot.slane %v4782, %v4789
      %v4792 = vunpack.c.l.s4 1983009808
      %v4793 = vunpack.c.0.s8 %v4792
      %v4794 = vlaneseq
      %v4795 = vshrl.u32 %v4794, 7
      %v4796 = vsub.s32 %v4793, %v4795
      %v4797 = vrot.slane %v4783, %v4796
      %v4798 = vcombine.low %v4790, %v4797
      %v4799 = vcombine.low %v4159, %v4167
      %v4800 = vcombine.low %v4175, %v4174
      %v4802 = vunpack.c.l.s4 1983009808
      %v4803 = vunpack.c.0.s8 %v4802
      %v4804 = vlaneseq
      %v4805 = vshrl.u32 %v4804, 7
      %v4806 = vsub.s32 %v4803, %v4805
      %v4807 = vrot.slane %v4799, %v4806
      %v4809 = vunpack.c.l.s4 1983009808
      %v4810 = vunpack.c.0.s8 %v4809
      %v4811 = vlaneseq
      %v4812 = vshrl.u32 %v4811, 7
      %v4813 = vsub.s32 %v4810, %v4812
      %v4814 = vrot.slane %v4800, %v4813
      %v4815 = vcombine.low %v4807, %v4814
      %v4816 = vcombine.low %v4176, %v4184
      %v4817 = vcombine.low %v4192, %v4191
      %v4819 = vunpack.c.l.s4 1983009808
      %v4820 = vunpack.c.0.s8 %v4819
      %v4821 = vlaneseq
      %v4822 = vshrl.u32 %v4821, 7
      %v4823 = vsub.s32 %v4820, %v4822
      %v4824 = vrot.slane %v4816, %v4823
      %v4826 = vunpack.c.l.s4 1983009808
      %v4827 = vunpack.c.0.s8 %v4826
      %v4828 = vlaneseq
      %v4829 = vshrl.u32 %v4828, 7
      %v4830 = vsub.s32 %v4827, %v4829
      %v4831 = vrot.slane %v4817, %v4830
      %v4832 = vcombine.low %v4824, %v4831
      %v4833 = vcombine.low %v4193, %v4200
      %v4834 = vcombine.low %v4208, %v4216
      %v4836 = vunpack.c.l.s4 1983009808
      %v4837 = vunpack.c.0.s8 %v4836
      %v4838 = vlaneseq
      %v4839 = vshrl.u32 %v4838, 7
      %v4840 = vsub.s32 %v4837, %v4839
      %v4841 = vrot.slane %v4833, %v4840
      %v4843 = vunpack.c.l.s4 1983009808
      %v4844 = vunpack.c.0.s8 %v4843
      %v4845 = vlaneseq
      %v4846 = vshrl.u32 %v4845, 7
      %v4847 = vsub.s32 %v4844, %v4846
      %v4848 = vrot.slane %v4834, %v4847
      %v4849 = vcombine.low %v4841, %v4848
      %v4850 = vcombine.low %v4215, %v4217
      %v4851 = vcombine.low %v4225, %v4233
      %v4853 = vunpack.c.l.s4 1983009808
      %v4854 = vunpack.c.0.s8 %v4853
      %v4855 = vlaneseq
      %v4856 = vshrl.u32 %v4855, 7
      %v4857 = vsub.s32 %v4854, %v4856
      %v4858 = vrot.slane %v4850, %v4857
      %v4860 = vunpack.c.l.s4 1983009808
      %v4861 = vunpack.c.0.s8 %v4860
      %v4862 = vlaneseq
      %v4863 = vshrl.u32 %v4862, 7
      %v4864 = vsub.s32 %v4861, %v4863
      %v4865 = vrot.slane %v4851, %v4864
      %v4866 = vcombine.low %v4858, %v4865
      %v4867 = vcombine.low %v4232, %v4234
      %v4868 = vcombine.low %v4241, %v4249
      %v4870 = vunpack.c.l.s4 1983009808
      %v4871 = vunpack.c.0.s8 %v4870
      %v4872 = vlaneseq
      %v4873 = vshrl.u32 %v4872, 7
      %v4874 = vsub.s32 %v4871, %v4873
      %v4875 = vrot.slane %v4867, %v4874
      %v4877 = vunpack.c.l.s4 1983009808
      %v4878 = vunpack.c.0.s8 %v4877
      %v4879 = vlaneseq
      %v4880 = vshrl.u32 %v4879, 7
      %v4881 = vsub.s32 %v4878, %v4880
      %v4882 = vrot.slane %v4868, %v4881
      %v4883 = vcombine.low %v4875, %v4882
      %v4884 = vcombine.low %v4257, %v4256
      %v4885 = vcombine.low %v4258, %v4266
      %v4887 = vunpack.c.l.s4 1983009808
      %v4888 = vunpack.c.0.s8 %v4887
      %v4889 = vlaneseq
      %v4890 = vshrl.u32 %v4889, 7
      %v4891 = vsub.s32 %v4888, %v4890
      %v4892 = vrot.slane %v4884, %v4891
      %v4894 = vunpack.c.l.s4 1983009808
      %v4895 = vunpack.c.0.s8 %v4894
      %v4896 = vlaneseq
      %v4897 = vshrl.u32 %v4896, 7
      %v4898 = vsub.s32 %v4895, %v4897
      %v4899 = vrot.slane %v4885, %v4898
      %v4900 = vcombine.low %v4892, %v4899
      %v4901 = vcombine.low %v4274, %v4273
      %v4902 = vcombine.low %v4275, %v4282
      %v4904 = vunpack.c.l.s4 1983009808
      %v4905 = vunpack.c.0.s8 %v4904
      %v4906 = vlaneseq
      %v4907 = vshrl.u32 %v4906, 7
      %v4908 = vsub.s32 %v4905, %v4907
      %v4909 = vrot.slane %v4901, %v4908
      %v4911 = vunpack.c.l.s4 1983009808
      %v4912 = vunpack.c.0.s8 %v4911
      %v4913 = vlaneseq
      %v4914 = vshrl.u32 %v4913, 7
      %v4915 = vsub.s32 %v4912, %v4914
      %v4916 = vrot.slane %v4902, %v4915
      %v4917 = vcombine.low %v4909, %v4916
      %v4918 = vcombine.low %v4290, %v4298
      %v4919 = vcombine.low %v4297, %v4299
      %v4921 = vunpack.c.l.s4 1983009808
      %v4922 = vunpack.c.0.s8 %v4921
      %v4923 = vlaneseq
      %v4924 = vshrl.u32 %v4923, 7
      %v4925 = vsub.s32 %v4922, %v4924
      %v4926 = vrot.slane %v4918, %v4925
      %v4928 = vunpack.c.l.s4 1983009808
      %v4929 = vunpack.c.0.s8 %v4928
      %v4930 = vlaneseq
      %v4931 = vshrl.u32 %v4930, 7
      %v4932 = vsub.s32 %v4929, %v4931
      %v4933 = vrot.slane %v4919, %v4932
      %v4934 = vcombine.low %v4926, %v4933
      %v4935 = vcombine.low %v4307, %v4315
      %v4936 = vcombine.low %v4314, %v4316
      %v4938 = vunpack.c.l.s4 1983009808
      %v4939 = vunpack.c.0.s8 %v4938
      %v4940 = vlaneseq
      %v4941 = vshrl.u32 %v4940, 7
      %v4942 = vsub.s32 %v4939, %v4941
      %v4943 = vrot.slane %v4935, %v4942
      %v4945 = vunpack.c.l.s4 1983009808
      %v4946 = vunpack.c.0.s8 %v4945
      %v4947 = vlaneseq
      %v4948 = vshrl.u32 %v4947, 7
      %v4949 = vsub.s32 %v4946, %v4948
      %v4950 = vrot.slane %v4936, %v4949
      %v4951 = vcombine.low %v4943, %v4950
      %v4952 = vcombine.low %v4323, %v4331
      %v4953 = vcombine.low %v4339, %v4338
      %v4955 = vunpack.c.l.s4 1983009808
      %v4956 = vunpack.c.0.s8 %v4955
      %v4957 = vlaneseq
      %v4958 = vshrl.u32 %v4957, 7
      %v4959 = vsub.s32 %v4956, %v4958
      %v4960 = vrot.slane %v4952, %v4959
      %v4962 = vunpack.c.l.s4 1983009808
      %v4963 = vunpack.c.0.s8 %v4962
      %v4964 = vlaneseq
      %v4965 = vshrl.u32 %v4964, 7
      %v4966 = vsub.s32 %v4963, %v4965
      %v4967 = vrot.slane %v4953, %v4966
      %v4968 = vcombine.low %v4960, %v4967
      %v4969 = vcombine.low %v4340, %v4348
      %v4970 = vcombine.low %v4356, %v4355
      %v4972 = vunpack.c.l.s4 1983009808
      %v4973 = vunpack.c.0.s8 %v4972
      %v4974 = vlaneseq
      %v4975 = vshrl.u32 %v4974, 7
      %v4976 = vsub.s32 %v4973, %v4975
      %v4977 = vrot.slane %v4969, %v4976
      %v4979 = vunpack.c.l.s4 1983009808
      %v4980 = vunpack.c.0.s8 %v4979
      %v4981 = vlaneseq
      %v4982 = vshrl.u32 %v4981, 7
      %v4983 = vsub.s32 %v4980, %v4982
      %v4984 = vrot.slane %v4970, %v4983
      %v4985 = vcombine.low %v4977, %v4984
      %v4986 = vcombine.low %v4357, %v4364
      %v4987 = vcombine.low %v4372, %v4380
      %v4989 = vunpack.c.l.s4 1983009808
      %v4990 = vunpack.c.0.s8 %v4989
      %v4991 = vlaneseq
      %v4992 = vshrl.u32 %v4991, 7
      %v4993 = vsub.s32 %v4990, %v4992
      %v4994 = vrot.slane %v4986, %v4993
      %v4996 = vunpack.c.l.s4 1983009808
      %v4997 = vunpack.c.0.s8 %v4996
      %v4998 = vlaneseq
      %v4999 = vshrl.u32 %v4998, 7
      %v5000 = vsub.s32 %v4997, %v4999
      %v5001 = vrot.slane %v4987, %v5000
      %v5002 = vcombine.low %v4994, %v5001
      %v5003 = vcombine.low %v4379, %v4381
      %v5004 = vcombine.low %v4389, %v4397
      %v5006 = vunpack.c.l.s4 1983009808
      %v5007 = vunpack.c.0.s8 %v5006
      %v5008 = vlaneseq
      %v5009 = vshrl.u32 %v5008, 7
      %v5010 = vsub.s32 %v5007, %v5009
      %v5011 = vrot.slane %v5003, %v5010
      %v5013 = vunpack.c.l.s4 1983009808
      %v5014 = vunpack.c.0.s8 %v5013
      %v5015 = vlaneseq
      %v5016 = vshrl.u32 %v5015, 7
      %v5017 = vsub.s32 %v5014, %v5016
      %v5018 = vrot.slane %v5004, %v5017
      %v5019 = vcombine.low %v5011, %v5018
      %v5020 = vcombine.low %v4396, %v4398
      %v5021 = vcombine.low %v4405, %v4413
      %v5023 = vunpack.c.l.s4 1983009808
      %v5024 = vunpack.c.0.s8 %v5023
      %v5025 = vlaneseq
      %v5026 = vshrl.u32 %v5025, 7
      %v5027 = vsub.s32 %v5024, %v5026
      %v5028 = vrot.slane %v5020, %v5027
      %v5030 = vunpack.c.l.s4 1983009808
      %v5031 = vunpack.c.0.s8 %v5030
      %v5032 = vlaneseq
      %v5033 = vshrl.u32 %v5032, 7
      %v5034 = vsub.s32 %v5031, %v5033
      %v5035 = vrot.slane %v5021, %v5034
      %v5036 = vcombine.low %v5028, %v5035
      %v5037 = vcombine.low %v4421, %v4420
      %v5038 = vcombine.low %v4422, %v4430
      %v5040 = vunpack.c.l.s4 1983009808
      %v5041 = vunpack.c.0.s8 %v5040
      %v5042 = vlaneseq
      %v5043 = vshrl.u32 %v5042, 7
      %v5044 = vsub.s32 %v5041, %v5043
      %v5045 = vrot.slane %v5037, %v5044
      %v5047 = vunpack.c.l.s4 1983009808
      %v5048 = vunpack.c.0.s8 %v5047
      %v5049 = vlaneseq
      %v5050 = vshrl.u32 %v5049, 7
      %v5051 = vsub.s32 %v5048, %v5050
      %v5052 = vrot.slane %v5038, %v5051
      %v5053 = vcombine.low %v5045, %v5052
      %v5054 = vcombine.low %v4438, %v4437
      %v5055 = vcombine.low %v4439, %v4446
      %v5057 = vunpack.c.l.s4 1983009808
      %v5058 = vunpack.c.0.s8 %v5057
      %v5059 = vlaneseq
      %v5060 = vshrl.u32 %v5059, 7
      %v5061 = vsub.s32 %v5058, %v5060
      %v5062 = vrot.slane %v5054, %v5061
      %v5064 = vunpack.c.l.s4 1983009808
      %v5065 = vunpack.c.0.s8 %v5064
      %v5066 = vlaneseq
      %v5067 = vshrl.u32 %v5066, 7
      %v5068 = vsub.s32 %v5065, %v5067
      %v5069 = vrot.slane %v5055, %v5068
      %v5070 = vcombine.low %v5062, %v5069
      %v5071 = vcombine.low %v4454, %v4462
      %v5072 = vcombine.low %v4461, %v4463
      %v5074 = vunpack.c.l.s4 1983009808
      %v5075 = vunpack.c.0.s8 %v5074
      %v5076 = vlaneseq
      %v5077 = vshrl.u32 %v5076, 7
      %v5078 = vsub.s32 %v5075, %v5077
      %v5079 = vrot.slane %v5071, %v5078
      %v5081 = vunpack.c.l.s4 1983009808
      %v5082 = vunpack.c.0.s8 %v5081
      %v5083 = vlaneseq
      %v5084 = vshrl.u32 %v5083, 7
      %v5085 = vsub.s32 %v5082, %v5084
      %v5086 = vrot.slane %v5072, %v5085
      %v5087 = vcombine.low %v5079, %v5086
      %v5088 = vcombine.low %v4471, %v4479
      %v5089 = vcombine.low %v4478, %v4480
      %v5091 = vunpack.c.l.s4 1983009808
      %v5092 = vunpack.c.0.s8 %v5091
      %v5093 = vlaneseq
      %v5094 = vshrl.u32 %v5093, 7
      %v5095 = vsub.s32 %v5092, %v5094
      %v5096 = vrot.slane %v5088, %v5095
      %v5098 = vunpack.c.l.s4 1983009808
      %v5099 = vunpack.c.0.s8 %v5098
      %v5100 = vlaneseq
      %v5101 = vshrl.u32 %v5100, 7
      %v5102 = vsub.s32 %v5099, %v5101
      %v5103 = vrot.slane %v5089, %v5102
      %v5104 = vcombine.low %v5096, %v5103
      %v5105 = vcombine.low %v4487, %v4495
      %v5106 = vcombine.low %v4503, %v4502
      %v5108 = vunpack.c.l.s4 1983009808
      %v5109 = vunpack.c.0.s8 %v5108
      %v5110 = vlaneseq
      %v5111 = vshrl.u32 %v5110, 7
      %v5112 = vsub.s32 %v5109, %v5111
      %v5113 = vrot.slane %v5105, %v5112
      %v5115 = vunpack.c.l.s4 1983009808
      %v5116 = vunpack.c.0.s8 %v5115
      %v5117 = vlaneseq
      %v5118 = vshrl.u32 %v5117, 7
      %v5119 = vsub.s32 %v5116, %v5118
      %v5120 = vrot.slane %v5106, %v5119
      %v5121 = vcombine.low %v5113, %v5120
      %v5122 = vcombine.low %v4504, %v4512
      %v5123 = vcombine.low %v4520, %v4519
      %v5125 = vunpack.c.l.s4 1983009808
      %v5126 = vunpack.c.0.s8 %v5125
      %v5127 = vlaneseq
      %v5128 = vshrl.u32 %v5127, 7
      %v5129 = vsub.s32 %v5126, %v5128
      %v5130 = vrot.slane %v5122, %v5129
      %v5132 = vunpack.c.l.s4 1983009808
      %v5133 = vunpack.c.0.s8 %v5132
      %v5134 = vlaneseq
      %v5135 = vshrl.u32 %v5134, 7
      %v5136 = vsub.s32 %v5133, %v5135
      %v5137 = vrot.slane %v5123, %v5136
      %v5138 = vcombine.low %v5130, %v5137
      %v5139 = vcombine.low %v4521, %v4528
      %v5140 = vcombine.low %v4536, %v4544
      %v5142 = vunpack.c.l.s4 1983009808
      %v5143 = vunpack.c.0.s8 %v5142
      %v5144 = vlaneseq
      %v5145 = vshrl.u32 %v5144, 7
      %v5146 = vsub.s32 %v5143, %v5145
      %v5147 = vrot.slane %v5139, %v5146
      %v5149 = vunpack.c.l.s4 1983009808
      %v5150 = vunpack.c.0.s8 %v5149
      %v5151 = vlaneseq
      %v5152 = vshrl.u32 %v5151, 7
      %v5153 = vsub.s32 %v5150, %v5152
      %v5154 = vrot.slane %v5140, %v5153
      %v5155 = vcombine.low %v5147, %v5154
      %v5156 = vcombine.low %v4543, %v4545
      %v5157 = vcombine.low %v4553, %v4561
      %v5159 = vunpack.c.l.s4 1983009808
      %v5160 = vunpack.c.0.s8 %v5159
      %v5161 = vlaneseq
      %v5162 = vshrl.u32 %v5161, 7
      %v5163 = vsub.s32 %v5160, %v5162
      %v5164 = vrot.slane %v5156, %v5163
      %v5166 = vunpack.c.l.s4 1983009808
      %v5167 = vunpack.c.0.s8 %v5166
      %v5168 = vlaneseq
      %v5169 = vshrl.u32 %v5168, 7
      %v5170 = vsub.s32 %v5167, %v5169
      %v5171 = vrot.slane %v5157, %v5170
      %v5172 = vcombine.low %v5164, %v5171
      %v5173 = vcombine.low %v4560, %v4562
      %v5174 = vcombine.low %v4569, %v4577
      %v5176 = vunpack.c.l.s4 1983009808
      %v5177 = vunpack.c.0.s8 %v5176
      %v5178 = vlaneseq
      %v5179 = vshrl.u32 %v5178, 7
      %v5180 = vsub.s32 %v5177, %v5179
      %v5181 = vrot.slane %v5173, %v5180
      %v5183 = vunpack.c.l.s4 1983009808
      %v5184 = vunpack.c.0.s8 %v5183
      %v5185 = vlaneseq
      %v5186 = vshrl.u32 %v5185, 7
      %v5187 = vsub.s32 %v5184, %v5186
      %v5188 = vrot.slane %v5174, %v5187
      %v5189 = vcombine.low %v5181, %v5188
      %v5190 = vcombine.low %v4585, %v4584
      %v5191 = vcombine.low %v4586, %v4594
      %v5193 = vunpack.c.l.s4 1983009808
      %v5194 = vunpack.c.0.s8 %v5193
      %v5195 = vlaneseq
      %v5196 = vshrl.u32 %v5195, 7
      %v5197 = vsub.s32 %v5194, %v5196
      %v5198 = vrot.slane %v5190, %v5197
      %v5200 = vunpack.c.l.s4 1983009808
      %v5201 = vunpack.c.0.s8 %v5200
      %v5202 = vlaneseq
      %v5203 = vshrl.u32 %v5202, 7
      %v5204 = vsub.s32 %v5201, %v5203
      %v5205 = vrot.slane %v5191, %v5204
      %v5206 = vcombine.low %v5198, %v5205
      %v5207 = vcombine.low %v4602, %v4601
      %v5208 = vcombine.low %v4603, %v4610
      %v5210 = vunpack.c.l.s4 1983009808
      %v5211 = vunpack.c.0.s8 %v5210
      %v5212 = vlaneseq
      %v5213 = vshrl.u32 %v5212, 7
      %v5214 = vsub.s32 %v5211, %v5213
      %v5215 = vrot.slane %v5207, %v5214
      %v5217 = vunpack.c.l.s4 1983009808
      %v5218 = vunpack.c.0.s8 %v5217
      %v5219 = vlaneseq
      %v5220 = vshrl.u32 %v5219, 7
      %v5221 = vsub.s32 %v5218, %v5220
      %v5222 = vrot.slane %v5208, %v5221
      %v5223 = vcombine.low %v5215, %v5222
      %vm5224 = vcmask 15360
      %v5225 = vsel %vm5224, %v4628, 0
      %v5227 = vsel %vm5224, %v4645, 0
      %v5229 = vsel %vm5224, %v4662, 0
      %v5231 = vsel %vm5224, %v4679, 0
      %v5233 = vsel %vm5224, %v4696, 0
      %v5235 = vsel %vm5224, %v4713, 0
      %v5237 = vsel %vm5224, %v4730, 0
      %v5239 = vsel %vm5224, %v4747, 0
      %v5241 = vsel %vm5224, %v4764, 0
      %v5243 = vsel %vm5224, %v4781, 0
      %v5245 = vsel %vm5224, %v4798, 0
      %v5247 = vsel %vm5224, %v4815, 0
      %v5249 = vsel %vm5224, %v4832, 0
      %v5251 = vsel %vm5224, %v4849, 0
      %v5253 = vsel %vm5224, %v4866, 0
      %v5255 = vsel %vm5224, %v4883, 0
      %v5257 = vsel %vm5224, %v4900, 0
      %v5259 = vsel %vm5224, %v4917, 0
      %v5261 = vsel %vm5224, %v4934, 0
      %v5263 = vsel %vm5224, %v4951, 0
      %v5265 = vsel %vm5224, %v4968, 0
      %v5267 = vsel %vm5224, %v4985, 0
      %v5269 = vsel %vm5224, %v5002, 0
      %v5271 = vsel %vm5224, %v5019, 0
      %v5273 = vsel %vm5224, %v5036, 0
      %v5275 = vsel %vm5224, %v5053, 0
      %v5277 = vsel %vm5224, %v5070, 0
      %v5279 = vsel %vm5224, %v5087, 0
      %v5281 = vsel %vm5224, %v5104, 0
      %v5283 = vsel %vm5224, %v5121, 0
      %v5285 = vsel %vm5224, %v5138, 0
      %v5287 = vsel %vm5224, %v5155, 0
      %v5289 = vsel %vm5224, %v5172, 0
      %v5291 = vsel %vm5224, %v5189, 0
      %v5293 = vsel %vm5224, %v5206, 0
      %v5295 = vsel %vm5224, %v5223, 0
      %vm5297 = vcmask 1041408
      %v5299 = vsel %vm5297, %v4611, 0
      %5301 = vmatprep.subr.mxu0 0.0
      %5302 = vmatpush1.msra.mxu0 %v5299
      %5303 = vmatprep.subr.mxu0 0.0
      %5304 = vmatpush1.msra.mxu0 0.0
      %5305 = vmatprep.subr.mxu0 0.0
      %5306 = vmatpush1.msra.mxu0 0.0
      %5307 = vmatprep.subr.mxu0 0.0
      %5308 = vmatpush1.msra.mxu0 0.0
      %5309 = vmatprep.subr.mxu0 0.0
      %5310 = vmatpush1.msra.mxu0 0.0
      %5311 = vmatprep.subr.mxu0 0.0
      %5312 = vmatpush1.msra.mxu0 0.0
      %5313 = vmatprep.subr.mxu0 0.0
      %5314 = vmatpush1.msra.mxu0 0.0
      %5315 = vmatprep.subr.mxu0 0.0
      %5316 = vmatpush1.msra.mxu0 0.0
      %5317 = vmatprep.subr.mxu0 0.0
      %5318 = vmatpush1.msra.mxu0 0.0
      %5319 = vmatprep.subr.mxu0 0.0
      %5320 = vmatpush1.msra.mxu0 0.0
      %5321 = vmatprep.subr.mxu0 0.0
      %5322 = vmatpush1.msra.mxu0 0.0
      %5323 = vmatprep.subr.mxu0 0.0
      %5324 = vmatpush1.msra.mxu0 0.0
      %5325 = vmatprep.subr.mxu0 0.0
      %5326 = vmatpush1.msra.mxu0 0.0
      %5327 = vmatprep.subr.mxu0 0.0
      %5328 = vmatpush1.msra.mxu0 0.0
      %5329 = vmatprep.subr.mxu0 0.0
      %5330 = vmatpush1.msra.mxu0 0.0
      %5331 = vmatprep.subr.mxu0 0.0
      %5332 = vmatpush1.msra.mxu0 0.0
      %5333 = vmatprep.subr.mxu0 0.0
      %5334 = vmatpush1.msra.mxu0 0.0
      %5335 = vmatprep.subr.mxu0 0.0
      %5336 = vmatpush1.msra.mxu0 0.0
      %5337 = vmatprep.subr.mxu0 0.0
      %5338 = vmatpush1.msra.mxu0 0.0
      %5339 = vmatprep.subr.mxu0 0.0
      %5340 = vmatpush1.msra.mxu0 0.0
      %5341 = vmatprep.subr.mxu0 0.0
      %5342 = vmatpush1.msra.mxu0 0.0
      %5343 = vmatprep.subr.mxu0 0.0
      %5344 = vmatpush1.msra.mxu0 0.0
      %5345 = vmatprep.subr.mxu0 0.0
      %5346 = vmatpush1.msra.mxu0 0.0
      %5347 = vmatprep.subr.mxu0 0.0
      %5348 = vmatpush1.msra.mxu0 0.0
      %5349 = vmatprep.subr.mxu0 0.0
      %5350 = vmatpush1.msra.mxu0 0.0
      %5351 = vmatprep.subr.mxu0 0.0
      %5352 = vmatpush1.msra.mxu0 0.0
      %5353 = vmatprep.subr.mxu0 0.0
      %5354 = vmatpush1.msra.mxu0 0.0
      %5355 = vmatprep.subr.mxu0 0.0
      %5356 = vmatpush1.msra.mxu0 0.0
      %5357 = vmatprep.subr.mxu0 0.0
      %5358 = vmatpush1.msra.mxu0 0.0
      %5359 = vmatprep.subr.mxu0 0.0
      %5360 = vmatpush1.msra.mxu0 0.0
      %5361 = vmatprep.subr.mxu0 0.0
      %5362 = vmatpush1.msra.mxu0 0.0
      %5363 = vmatprep.subr.mxu0 0.0
      %5364 = vmatpush1.msra.mxu0 0.0
      %5365 = vmatprep.mubr.f32.mxu0 0.0
      %5366 = vmatmul.mubr.f32.gmra.mrb[0].mxu0 %v5225
      %v5367 = vpop.f32.mrb[0].mxu0
      %v5368 = vadd.f32 0.0, %v5367
      %v5369 = vpop.f32.mrb[0].mxu0
      %5370 = vmatprep.mubr.f32.mxu0 0.0
      %5371 = vmatmul.mubr.f32.gmra.mrb[0].mxu0 %v5227
      %v5372 = vpop.f32.mrb[0].mxu0
      %v5373 = vadd.f32 0.0, %v5372
      %v5374 = vpop.f32.mrb[0].mxu0
      %5375 = vmatprep.mubr.f32.mxu0 0.0
      %5376 = vmatmul.mubr.f32.gmra.mrb[0].mxu0 %v5229
      %v5377 = vpop.f32.mrb[0].mxu0
      %v5378 = vadd.f32 0.0, %v5377
      %v5379 = vpop.f32.mrb[0].mxu0
      %5380 = vmatprep.mubr.f32.mxu0 0.0
      %5381 = vmatmul.mubr.f32.gmra.mrb[0].mxu0 %v5231
      %v5382 = vpop.f32.mrb[0].mxu0
      %v5383 = vadd.f32 0.0, %v5382
      %v5384 = vpop.f32.mrb[0].mxu0
      %5385 = vmatprep.mubr.f32.mxu0 0.0
      %5386 = vmatmul.mubr.f32.gmra.mrb[0].mxu0 %v5233
      %v5387 = vpop.f32.mrb[0].mxu0
      %v5388 = vadd.f32 0.0, %v5387
      %v5389 = vpop.f32.mrb[0].mxu0
      %5390 = vmatprep.mubr.f32.mxu0 0.0
      %5391 = vmatmul.mubr.f32.gmra.mrb[0].mxu0 %v5235
      %v5392 = vpop.f32.mrb[0].mxu0
      %v5393 = vadd.f32 0.0, %v5392
      %v5394 = vpop.f32.mrb[0].mxu0
      %5395 = vmatprep.mubr.f32.mxu0 0.0
      %5396 = vmatmul.mubr.f32.gmra.mrb[0].mxu0 %v5237
      %v5397 = vpop.f32.mrb[0].mxu0
      %v5398 = vadd.f32 0.0, %v5397
      %v5399 = vpop.f32.mrb[0].mxu0
      %5400 = vmatprep.mubr.f32.mxu0 0.0
      %5401 = vmatmul.mubr.f32.gmra.mrb[0].mxu0 %v5239
      %v5402 = vpop.f32.mrb[0].mxu0
      %v5403 = vadd.f32 0.0, %v5402
      %v5404 = vpop.f32.mrb[0].mxu0
      %5405 = vmatprep.mubr.f32.mxu0 0.0
      %5406 = vmatmul.mubr.f32.gmra.mrb[0].mxu0 %v5241
      %v5407 = vpop.f32.mrb[0].mxu0
      %v5408 = vadd.f32 0.0, %v5407
      %v5409 = vpop.f32.mrb[0].mxu0
      %5410 = vmatprep.mubr.f32.mxu0 0.0
      %5411 = vmatmul.mubr.f32.gmra.mrb[0].mxu0 %v5243
      %v5412 = vpop.f32.mrb[0].mxu0
      %v5413 = vadd.f32 0.0, %v5412
      %v5414 = vpop.f32.mrb[0].mxu0
      %5415 = vmatprep.mubr.f32.mxu0 0.0
      %5416 = vmatmul.mubr.f32.gmra.mrb[0].mxu0 %v5245
      %v5417 = vpop.f32.mrb[0].mxu0
      %v5418 = vadd.f32 0.0, %v5417
      %v5419 = vpop.f32.mrb[0].mxu0
      %5420 = vmatprep.mubr.f32.mxu0 0.0
      %5421 = vmatmul.mubr.f32.gmra.mrb[0].mxu0 %v5247
      %v5422 = vpop.f32.mrb[0].mxu0
      %v5423 = vadd.f32 0.0, %v5422
      %v5424 = vpop.f32.mrb[0].mxu0
      %5425 = vmatprep.mubr.f32.mxu0 0.0
      %5426 = vmatmul.mubr.f32.gmra.mrb[0].mxu0 %v5249
      %v5427 = vpop.f32.mrb[0].mxu0
      %v5428 = vadd.f32 0.0, %v5427
      %v5429 = vpop.f32.mrb[0].mxu0
      %5430 = vmatprep.mubr.f32.mxu0 0.0
      %5431 = vmatmul.mubr.f32.gmra.mrb[0].mxu0 %v5251
      %v5432 = vpop.f32.mrb[0].mxu0
      %v5433 = vadd.f32 0.0, %v5432
      %v5434 = vpop.f32.mrb[0].mxu0
      %5435 = vmatprep.mubr.f32.mxu0 0.0
      %5436 = vmatmul.mubr.f32.gmra.mrb[0].mxu0 %v5253
      %v5437 = vpop.f32.mrb[0].mxu0
      %v5438 = vadd.f32 0.0, %v5437
      %v5439 = vpop.f32.mrb[0].mxu0
      %5440 = vmatprep.mubr.f32.mxu0 0.0
      %5441 = vmatmul.mubr.f32.gmra.mrb[0].mxu0 %v5255
      %v5442 = vpop.f32.mrb[0].mxu0
      %v5443 = vadd.f32 0.0, %v5442
      %v5444 = vpop.f32.mrb[0].mxu0
      %5445 = vmatprep.mubr.f32.mxu0 0.0
      %5446 = vmatmul.mubr.f32.gmra.mrb[0].mxu0 %v5257
      %v5447 = vpop.f32.mrb[0].mxu0
      %v5448 = vadd.f32 0.0, %v5447
      %v5449 = vpop.f32.mrb[0].mxu0
      %5450 = vmatprep.mubr.f32.mxu0 0.0
      %5451 = vmatmul.mubr.f32.gmra.mrb[0].mxu0 %v5259
      %v5452 = vpop.f32.mrb[0].mxu0
      %v5453 = vadd.f32 0.0, %v5452
      %v5454 = vpop.f32.mrb[0].mxu0
      %5455 = vmatprep.mubr.f32.mxu0 0.0
      %5456 = vmatmul.mubr.f32.gmra.mrb[0].mxu0 %v5261
      %v5457 = vpop.f32.mrb[0].mxu0
      %v5458 = vadd.f32 0.0, %v5457
      %v5459 = vpop.f32.mrb[0].mxu0
      %5460 = vmatprep.mubr.f32.mxu0 0.0
      %5461 = vmatmul.mubr.f32.gmra.mrb[0].mxu0 %v5263
      %v5462 = vpop.f32.mrb[0].mxu0
      %v5463 = vadd.f32 0.0, %v5462
      %v5464 = vpop.f32.mrb[0].mxu0
      %5465 = vmatprep.mubr.f32.mxu0 0.0
      %5466 = vmatmul.mubr.f32.gmra.mrb[0].mxu0 %v5265
      %v5467 = vpop.f32.mrb[0].mxu0
      %v5468 = vadd.f32 0.0, %v5467
      %v5469 = vpop.f32.mrb[0].mxu0
      %5470 = vmatprep.mubr.f32.mxu0 0.0
      %5471 = vmatmul.mubr.f32.gmra.mrb[0].mxu0 %v5267
      %v5472 = vpop.f32.mrb[0].mxu0
      %v5473 = vadd.f32 0.0, %v5472
      %v5474 = vpop.f32.mrb[0].mxu0
      %5475 = vmatprep.mubr.f32.mxu0 0.0
      %5476 = vmatmul.mubr.f32.gmra.mrb[0].mxu0 %v5269
      %v5477 = vpop.f32.mrb[0].mxu0
      %v5478 = vadd.f32 0.0, %v5477
      %v5479 = vpop.f32.mrb[0].mxu0
      %5480 = vmatprep.mubr.f32.mxu0 0.0
      %5481 = vmatmul.mubr.f32.gmra.mrb[0].mxu0 %v5271
      %v5482 = vpop.f32.mrb[0].mxu0
      %v5483 = vadd.f32 0.0, %v5482
      %v5484 = vpop.f32.mrb[0].mxu0
      %5485 = vmatprep.mubr.f32.mxu0 0.0
      %5486 = vmatmul.mubr.f32.gmra.mrb[0].mxu0 %v5273
      %v5487 = vpop.f32.mrb[0].mxu0
      %v5488 = vadd.f32 0.0, %v5487
      %v5489 = vpop.f32.mrb[0].mxu0
      %5490 = vmatprep.mubr.f32.mxu0 0.0
      %5491 = vmatmul.mubr.f32.gmra.mrb[0].mxu0 %v5275
      %v5492 = vpop.f32.mrb[0].mxu0
      %v5493 = vadd.f32 0.0, %v5492
      %v5494 = vpop.f32.mrb[0].mxu0
      %5495 = vmatprep.mubr.f32.mxu0 0.0
      %5496 = vmatmul.mubr.f32.gmra.mrb[0].mxu0 %v5277
      %v5497 = vpop.f32.mrb[0].mxu0
      %v5498 = vadd.f32 0.0, %v5497
      %v5499 = vpop.f32.mrb[0].mxu0
      %5500 = vmatprep.mubr.f32.mxu0 0.0
      %5501 = vmatmul.mubr.f32.gmra.mrb[0].mxu0 %v5279
      %v5502 = vpop.f32.mrb[0].mxu0
      %v5503 = vadd.f32 0.0, %v5502
      %v5504 = vpop.f32.mrb[0].mxu0
      %5505 = vmatprep.mubr.f32.mxu0 0.0
      %5506 = vmatmul.mubr.f32.gmra.mrb[0].mxu0 %v5281
      %v5507 = vpop.f32.mrb[0].mxu0
      %v5508 = vadd.f32 0.0, %v5507
      %v5509 = vpop.f32.mrb[0].mxu0
      %5510 = vmatprep.mubr.f32.mxu0 0.0
      %5511 = vmatmul.mubr.f32.gmra.mrb[0].mxu0 %v5283
      %v5512 = vpop.f32.mrb[0].mxu0
      %v5513 = vadd.f32 0.0, %v5512
      %v5514 = vpop.f32.mrb[0].mxu0
      %5515 = vmatprep.mubr.f32.mxu0 0.0
      %5516 = vmatmul.mubr.f32.gmra.mrb[0].mxu0 %v5285
      %v5517 = vpop.f32.mrb[0].mxu0
      %v5518 = vadd.f32 0.0, %v5517
      %v5519 = vpop.f32.mrb[0].mxu0
      %5520 = vmatprep.mubr.f32.mxu0 0.0
      %5521 = vmatmul.mubr.f32.gmra.mrb[0].mxu0 %v5287
      %v5522 = vpop.f32.mrb[0].mxu0
      %v5523 = vadd.f32 0.0, %v5522
      %v5524 = vpop.f32.mrb[0].mxu0
      %5525 = vmatprep.mubr.f32.mxu0 0.0
      %5526 = vmatmul.mubr.f32.gmra.mrb[0].mxu0 %v5289
      %v5527 = vpop.f32.mrb[0].mxu0
      %v5528 = vadd.f32 0.0, %v5527
      %v5529 = vpop.f32.mrb[0].mxu0
      %5530 = vmatprep.mubr.f32.mxu0 0.0
      %5531 = vmatmul.mubr.f32.gmra.mrb[0].mxu0 %v5291
      %v5532 = vpop.f32.mrb[0].mxu0
      %v5533 = vadd.f32 0.0, %v5532
      %v5534 = vpop.f32.mrb[0].mxu0
      %5535 = vmatprep.mubr.f32.mxu0 0.0
      %5536 = vmatmul.mubr.f32.gmra.mrb[0].mxu0 %v5293
      %v5537 = vpop.f32.mrb[0].mxu0
      %v5538 = vadd.f32 0.0, %v5537
      %v5539 = vpop.f32.mrb[0].mxu0
      %5540 = vmatprep.mubr.f32.mxu0 0.0
      %5541 = vmatmul.mubr.f32.gmra.mrb[0].mxu0 %v5295
      %v5542 = vpop.f32.mrb[0].mxu0
      %v5543 = vadd.f32 0.0, %v5542
      %v5544 = vpop.f32.mrb[0].mxu0
      %5545 = vdwg.mxu0
      %v5546 = vadd.f32 %v3871, %v5368
      %v5547 = vadd.f32 %v3872, %v5373
      %v5548 = vadd.f32 %v3873, %v5378
      %v5549 = vadd.f32 %v3874, %v5383
      %v5550 = vadd.f32 %v3875, %v5388
      %v5551 = vadd.f32 %v3876, %v5393
      %v5552 = vadd.f32 %v3877, %v5398
      %v5553 = vadd.f32 %v3878, %v5403
      %v5554 = vadd.f32 %v3879, %v5408
      %v5555 = vadd.f32 %v3880, %v5413
      %v5556 = vadd.f32 %v3881, %v5418
      %v5557 = vadd.f32 %v3882, %v5423
      %v5558 = vadd.f32 %v3883, %v5428
      %v5559 = vadd.f32 %v3884, %v5433
      %v5560 = vadd.f32 %v3885, %v5438
      %v5561 = vadd.f32 %v3886, %v5443
      %v5562 = vadd.f32 %v3887, %v5448
      %v5563 = vadd.f32 %v3888, %v5453
      %v5564 = vadd.f32 %v3889, %v5458
      %v5565 = vadd.f32 %v3890, %v5463
      %v5566 = vadd.f32 %v3891, %v5468
      %v5567 = vadd.f32 %v3892, %v5473
      %v5568 = vadd.f32 %v3893, %v5478
      %v5569 = vadd.f32 %v3894, %v5483
      %v5570 = vadd.f32 %v3895, %v5488
      %v5571 = vadd.f32 %v3896, %v5493
      %v5572 = vadd.f32 %v3897, %v5498
      %v5573 = vadd.f32 %v3898, %v5503
      %v5574 = vadd.f32 %v3899, %v5508
      %v5575 = vadd.f32 %v3900, %v5513
      %v5576 = vadd.f32 %v3901, %v5518
      %v5577 = vadd.f32 %v3902, %v5523
      %v5578 = vadd.f32 %v3903, %v5528
      %v5579 = vadd.f32 %v3904, %v5533
      %v5580 = vadd.f32 %v3905, %v5538
      %v5581 = vadd.f32 %v3906, %v5543
      %v5585 = vcombine.high %v774, %v774
      %v5587 = vunpack.c.l.s4 1983009808
      %v5588 = vunpack.c.0.s8 %v5587
      %v5589 = vlaneseq
      %v5590 = vshrl.u32 %v5589, 7
      %v5591 = vsub.s32 %v5588, %v5590
      %v5592 = vrot.slane %v774, %v5591
      %v5594 = vunpack.c.l.s4 1983009808
      %v5595 = vunpack.c.0.s8 %v5594
      %v5596 = vlaneseq
      %v5597 = vshrl.u32 %v5596, 7
      %v5598 = vsub.s32 %v5595, %v5597
      %v5599 = vrot.slane %v5585, %v5598
      %v5600 = vcombine.high %v5592, %v5592
      %v5601 = vcombine.high %v5599, %v5599
      %v5602 = vcombine.high %v775, %v775
      %v5604 = vunpack.c.l.s4 1983009808
      %v5605 = vunpack.c.0.s8 %v5604
      %v5606 = vlaneseq
      %v5607 = vshrl.u32 %v5606, 7
      %v5608 = vsub.s32 %v5605, %v5607
      %v5609 = vrot.slane %v775, %v5608
      %v5611 = vunpack.c.l.s4 1983009808
      %v5612 = vunpack.c.0.s8 %v5611
      %v5613 = vlaneseq
      %v5614 = vshrl.u32 %v5613, 7
      %v5615 = vsub.s32 %v5612, %v5614
      %v5616 = vrot.slane %v5602, %v5615
      %v5617 = vcombine.high %v5609, %v5609
      %v5618 = vcombine.high %v5616, %v5616
      %v5620 = vunpack.c.l.s4 1983009808
      %v5621 = vunpack.c.0.s8 %v5620
      %v5622 = vlaneseq
      %v5623 = vshrl.u32 %v5622, 7
      %v5624 = vsub.s32 %v5621, %v5623
      %v5625 = vrot.slane %v776, %v5624
      %s5626 = scalar_lea.vmem %s7, 2
      %v5627 = vld [vmem:[%s5626] sm:$0x3]
      %v5628 = vcombine.low %v4003, %v4011
      %v5629 = vcombine.low %v4010, %v4012
      %v5631 = vunpack.c.l.s4 1983009808
      %v5632 = vunpack.c.0.s8 %v5631
      %v5633 = vlaneseq
      %v5634 = vshrl.u32 %v5633, 7
      %v5635 = vsub.s32 %v5632, %v5634
      %v5636 = vrot.slane %v5628, %v5635
      %v5638 = vunpack.c.l.s4 1983009808
      %v5639 = vunpack.c.0.s8 %v5638
      %v5640 = vlaneseq
      %v5641 = vshrl.u32 %v5640, 7
      %v5642 = vsub.s32 %v5639, %v5641
      %v5643 = vrot.slane %v5629, %v5642
      %v5644 = vcombine.low %v5636, %v5643
      %v5645 = vcombine.low %v4020, %v4028
      %v5646 = vcombine.low %v4027, %v4029
      %v5648 = vunpack.c.l.s4 1983009808
      %v5649 = vunpack.c.0.s8 %v5648
      %v5650 = vlaneseq
      %v5651 = vshrl.u32 %v5650, 7
      %v5652 = vsub.s32 %v5649, %v5651
      %v5653 = vrot.slane %v5645, %v5652
      %v5655 = vunpack.c.l.s4 1983009808
      %v5656 = vunpack.c.0.s8 %v5655
      %v5657 = vlaneseq
      %v5658 = vshrl.u32 %v5657, 7
      %v5659 = vsub.s32 %v5656, %v5658
      %v5660 = vrot.slane %v5646, %v5659
      %v5661 = vcombine.low %v5653, %v5660
      %v5662 = vcombine.low %v4036, %v4044
      %v5663 = vcombine.low %v4052, %v4051
      %v5665 = vunpack.c.l.s4 1983009808
      %v5666 = vunpack.c.0.s8 %v5665
      %v5667 = vlaneseq
      %v5668 = vshrl.u32 %v5667, 7
      %v5669 = vsub.s32 %v5666, %v5668
      %v5670 = vrot.slane %v5662, %v5669
      %v5672 = vunpack.c.l.s4 1983009808
      %v5673 = vunpack.c.0.s8 %v5672
      %v5674 = vlaneseq
      %v5675 = vshrl.u32 %v5674, 7
      %v5676 = vsub.s32 %v5673, %v5675
      %v5677 = vrot.slane %v5663, %v5676
      %v5678 = vcombine.low %v5670, %v5677
      %v5679 = vcombine.low %v4053, %v4061
      %v5680 = vcombine.low %v4069, %v4068
      %v5682 = vunpack.c.l.s4 1983009808
      %v5683 = vunpack.c.0.s8 %v5682
      %v5684 = vlaneseq
      %v5685 = vshrl.u32 %v5684, 7
      %v5686 = vsub.s32 %v5683, %v5685
      %v5687 = vrot.slane %v5679, %v5686
      %v5689 = vunpack.c.l.s4 1983009808
      %v5690 = vunpack.c.0.s8 %v5689
      %v5691 = vlaneseq
      %v5692 = vshrl.u32 %v5691, 7
      %v5693 = vsub.s32 %v5690, %v5692
      %v5694 = vrot.slane %v5680, %v5693
      %v5695 = vcombine.low %v5687, %v5694
      %v5696 = vcombine.low %v4070, %v4077
      %v5697 = vcombine.low %v4085, %v4093
      %v5699 = vunpack.c.l.s4 1983009808
      %v5700 = vunpack.c.0.s8 %v5699
      %v5701 = vlaneseq
      %v5702 = vshrl.u32 %v5701, 7
      %v5703 = vsub.s32 %v5700, %v5702
      %v5704 = vrot.slane %v5696, %v5703
      %v5706 = vunpack.c.l.s4 1983009808
      %v5707 = vunpack.c.0.s8 %v5706
      %v5708 = vlaneseq
      %v5709 = vshrl.u32 %v5708, 7
      %v5710 = vsub.s32 %v5707, %v5709
      %v5711 = vrot.slane %v5697, %v5710
      %v5712 = vcombine.low %v5704, %v5711
      %v5713 = vcombine.low %v4092, %v4094
      %v5714 = vcombine.low %v4102, %v4110
      %v5716 = vunpack.c.l.s4 1983009808
      %v5717 = vunpack.c.0.s8 %v5716
      %v5718 = vlaneseq
      %v5719 = vshrl.u32 %v5718, 7
      %v5720 = vsub.s32 %v5717, %v5719
      %v5721 = vrot.slane %v5713, %v5720
      %v5723 = vunpack.c.l.s4 1983009808
      %v5724 = vunpack.c.0.s8 %v5723
      %v5725 = vlaneseq
      %v5726 = vshrl.u32 %v5725, 7
      %v5727 = vsub.s32 %v5724, %v5726
      %v5728 = vrot.slane %v5714, %v5727
      %v5729 = vcombine.low %v5721, %v5728
      %v5730 = vcombine.low %v4109, %v4111
      %v5731 = vcombine.low %v4118, %v4126
      %v5733 = vunpack.c.l.s4 1983009808
      %v5734 = vunpack.c.0.s8 %v5733
      %v5735 = vlaneseq
      %v5736 = vshrl.u32 %v5735, 7
      %v5737 = vsub.s32 %v5734, %v5736
      %v5738 = vrot.slane %v5730, %v5737
      %v5740 = vunpack.c.l.s4 1983009808
      %v5741 = vunpack.c.0.s8 %v5740
      %v5742 = vlaneseq
      %v5743 = vshrl.u32 %v5742, 7
      %v5744 = vsub.s32 %v5741, %v5743
      %v5745 = vrot.slane %v5731, %v5744
      %v5746 = vcombine.low %v5738, %v5745
      %v5747 = vcombine.low %v4134, %v4133
      %v5748 = vcombine.low %v4135, %v4143
      %v5750 = vunpack.c.l.s4 1983009808
      %v5751 = vunpack.c.0.s8 %v5750
      %v5752 = vlaneseq
      %v5753 = vshrl.u32 %v5752, 7
      %v5754 = vsub.s32 %v5751, %v5753
      %v5755 = vrot.slane %v5747, %v5754
      %v5757 = vunpack.c.l.s4 1983009808
      %v5758 = vunpack.c.0.s8 %v5757
      %v5759 = vlaneseq
      %v5760 = vshrl.u32 %v5759, 7
      %v5761 = vsub.s32 %v5758, %v5760
      %v5762 = vrot.slane %v5748, %v5761
      %v5763 = vcombine.low %v5755, %v5762
      %v5764 = vcombine.low %v4151, %v4150
      %v5765 = vcombine.low %v4152, %v4159
      %v5767 = vunpack.c.l.s4 1983009808
      %v5768 = vunpack.c.0.s8 %v5767
      %v5769 = vlaneseq
      %v5770 = vshrl.u32 %v5769, 7
      %v5771 = vsub.s32 %v5768, %v5770
      %v5772 = vrot.slane %v5764, %v5771
      %v5774 = vunpack.c.l.s4 1983009808
      %v5775 = vunpack.c.0.s8 %v5774
      %v5776 = vlaneseq
      %v5777 = vshrl.u32 %v5776, 7
      %v5778 = vsub.s32 %v5775, %v5777
      %v5779 = vrot.slane %v5765, %v5778
      %v5780 = vcombine.low %v5772, %v5779
      %v5781 = vcombine.low %v4167, %v4175
      %v5782 = vcombine.low %v4174, %v4176
      %v5784 = vunpack.c.l.s4 1983009808
      %v5785 = vunpack.c.0.s8 %v5784
      %v5786 = vlaneseq
      %v5787 = vshrl.u32 %v5786, 7
      %v5788 = vsub.s32 %v5785, %v5787
      %v5789 = vrot.slane %v5781, %v5788
      %v5791 = vunpack.c.l.s4 1983009808
      %v5792 = vunpack.c.0.s8 %v5791
      %v5793 = vlaneseq
      %v5794 = vshrl.u32 %v5793, 7
      %v5795 = vsub.s32 %v5792, %v5794
      %v5796 = vrot.slane %v5782, %v5795
      %v5797 = vcombine.low %v5789, %v5796
      %v5798 = vcombine.low %v4184, %v4192
      %v5799 = vcombine.low %v4191, %v4193
      %v5801 = vunpack.c.l.s4 1983009808
      %v5802 = vunpack.c.0.s8 %v5801
      %v5803 = vlaneseq
      %v5804 = vshrl.u32 %v5803, 7
      %v5805 = vsub.s32 %v5802, %v5804
      %v5806 = vrot.slane %v5798, %v5805
      %v5808 = vunpack.c.l.s4 1983009808
      %v5809 = vunpack.c.0.s8 %v5808
      %v5810 = vlaneseq
      %v5811 = vshrl.u32 %v5810, 7
      %v5812 = vsub.s32 %v5809, %v5811
      %v5813 = vrot.slane %v5799, %v5812
      %v5814 = vcombine.low %v5806, %v5813
      %v5815 = vcombine.low %v4200, %v4208
      %v5816 = vcombine.low %v4216, %v4215
      %v5818 = vunpack.c.l.s4 1983009808
      %v5819 = vunpack.c.0.s8 %v5818
      %v5820 = vlaneseq
      %v5821 = vshrl.u32 %v5820, 7
      %v5822 = vsub.s32 %v5819, %v5821
      %v5823 = vrot.slane %v5815, %v5822
      %v5825 = vunpack.c.l.s4 1983009808
      %v5826 = vunpack.c.0.s8 %v5825
      %v5827 = vlaneseq
      %v5828 = vshrl.u32 %v5827, 7
      %v5829 = vsub.s32 %v5826, %v5828
      %v5830 = vrot.slane %v5816, %v5829
      %v5831 = vcombine.low %v5823, %v5830
      %v5832 = vcombine.low %v4217, %v4225
      %v5833 = vcombine.low %v4233, %v4232
      %v5835 = vunpack.c.l.s4 1983009808
      %v5836 = vunpack.c.0.s8 %v5835
      %v5837 = vlaneseq
      %v5838 = vshrl.u32 %v5837, 7
      %v5839 = vsub.s32 %v5836, %v5838
      %v5840 = vrot.slane %v5832, %v5839
      %v5842 = vunpack.c.l.s4 1983009808
      %v5843 = vunpack.c.0.s8 %v5842
      %v5844 = vlaneseq
      %v5845 = vshrl.u32 %v5844, 7
      %v5846 = vsub.s32 %v5843, %v5845
      %v5847 = vrot.slane %v5833, %v5846
      %v5848 = vcombine.low %v5840, %v5847
      %v5849 = vcombine.low %v4234, %v4241
      %v5850 = vcombine.low %v4249, %v4257
      %v5852 = vunpack.c.l.s4 1983009808
      %v5853 = vunpack.c.0.s8 %v5852
      %v5854 = vlaneseq
      %v5855 = vshrl.u32 %v5854, 7
      %v5856 = vsub.s32 %v5853, %v5855
      %v5857 = vrot.slane %v5849, %v5856
      %v5859 = vunpack.c.l.s4 1983009808
      %v5860 = vunpack.c.0.s8 %v5859
      %v5861 = vlaneseq
      %v5862 = vshrl.u32 %v5861, 7
      %v5863 = vsub.s32 %v5860, %v5862
      %v5864 = vrot.slane %v5850, %v5863
      %v5865 = vcombine.low %v5857, %v5864
      %v5866 = vcombine.low %v4256, %v4258
      %v5867 = vcombine.low %v4266, %v4274
      %v5869 = vunpack.c.l.s4 1983009808
      %v5870 = vunpack.c.0.s8 %v5869
      %v5871 = vlaneseq
      %v5872 = vshrl.u32 %v5871, 7
      %v5873 = vsub.s32 %v5870, %v5872
      %v5874 = vrot.slane %v5866, %v5873
      %v5876 = vunpack.c.l.s4 1983009808
      %v5877 = vunpack.c.0.s8 %v5876
      %v5878 = vlaneseq
      %v5879 = vshrl.u32 %v5878, 7
      %v5880 = vsub.s32 %v5877, %v5879
      %v5881 = vrot.slane %v5867, %v5880
      %v5882 = vcombine.low %v5874, %v5881
      %v5883 = vcombine.low %v4273, %v4275
      %v5884 = vcombine.low %v4282, %v4290
      %v5886 = vunpack.c.l.s4 1983009808
      %v5887 = vunpack.c.0.s8 %v5886
      %v5888 = vlaneseq
      %v5889 = vshrl.u32 %v5888, 7
      %v5890 = vsub.s32 %v5887, %v5889
      %v5891 = vrot.slane %v5883, %v5890
      %v5893 = vunpack.c.l.s4 1983009808
      %v5894 = vunpack.c.0.s8 %v5893
      %v5895 = vlaneseq
      %v5896 = vshrl.u32 %v5895, 7
      %v5897 = vsub.s32 %v5894, %v5896
      %v5898 = vrot.slane %v5884, %v5897
      %v5899 = vcombine.low %v5891, %v5898
      %v5900 = vcombine.low %v4298, %v4297
      %v5901 = vcombine.low %v4299, %v4307
      %v5903 = vunpack.c.l.s4 1983009808
      %v5904 = vunpack.c.0.s8 %v5903
      %v5905 = vlaneseq
      %v5906 = vshrl.u32 %v5905, 7
      %v5907 = vsub.s32 %v5904, %v5906
      %v5908 = vrot.slane %v5900, %v5907
      %v5910 = vunpack.c.l.s4 1983009808
      %v5911 = vunpack.c.0.s8 %v5910
      %v5912 = vlaneseq
      %v5913 = vshrl.u32 %v5912, 7
      %v5914 = vsub.s32 %v5911, %v5913
      %v5915 = vrot.slane %v5901, %v5914
      %v5916 = vcombine.low %v5908, %v5915
      %v5917 = vcombine.low %v4315, %v4314
      %v5918 = vcombine.low %v4316, %v4323
      %v5920 = vunpack.c.l.s4 1983009808
      %v5921 = vunpack.c.0.s8 %v5920
      %v5922 = vlaneseq
      %v5923 = vshrl.u32 %v5922, 7
      %v5924 = vsub.s32 %v5921, %v5923
      %v5925 = vrot.slane %v5917, %v5924
      %v5927 = vunpack.c.l.s4 1983009808
      %v5928 = vunpack.c.0.s8 %v5927
      %v5929 = vlaneseq
      %v5930 = vshrl.u32 %v5929, 7
      %v5931 = vsub.s32 %v5928, %v5930
      %v5932 = vrot.slane %v5918, %v5931
      %v5933 = vcombine.low %v5925, %v5932
      %v5934 = vcombine.low %v4331, %v4339
      %v5935 = vcombine.low %v4338, %v4340
      %v5937 = vunpack.c.l.s4 1983009808
      %v5938 = vunpack.c.0.s8 %v5937
      %v5939 = vlaneseq
      %v5940 = vshrl.u32 %v5939, 7
      %v5941 = vsub.s32 %v5938, %v5940
      %v5942 = vrot.slane %v5934, %v5941
      %v5944 = vunpack.c.l.s4 1983009808
      %v5945 = vunpack.c.0.s8 %v5944
      %v5946 = vlaneseq
      %v5947 = vshrl.u32 %v5946, 7
      %v5948 = vsub.s32 %v5945, %v5947
      %v5949 = vrot.slane %v5935, %v5948
      %v5950 = vcombine.low %v5942, %v5949
      %v5951 = vcombine.low %v4348, %v4356
      %v5952 = vcombine.low %v4355, %v4357
      %v5954 = vunpack.c.l.s4 1983009808
      %v5955 = vunpack.c.0.s8 %v5954
      %v5956 = vlaneseq
      %v5957 = vshrl.u32 %v5956, 7
      %v5958 = vsub.s32 %v5955, %v5957
      %v5959 = vrot.slane %v5951, %v5958
      %v5961 = vunpack.c.l.s4 1983009808
      %v5962 = vunpack.c.0.s8 %v5961
      %v5963 = vlaneseq
      %v5964 = vshrl.u32 %v5963, 7
      %v5965 = vsub.s32 %v5962, %v5964
      %v5966 = vrot.slane %v5952, %v5965
      %v5967 = vcombine.low %v5959, %v5966
      %v5968 = vcombine.low %v4364, %v4372
      %v5969 = vcombine.low %v4380, %v4379
      %v5971 = vunpack.c.l.s4 1983009808
      %v5972 = vunpack.c.0.s8 %v5971
      %v5973 = vlaneseq
      %v5974 = vshrl.u32 %v5973, 7
      %v5975 = vsub.s32 %v5972, %v5974
      %v5976 = vrot.slane %v5968, %v5975
      %v5978 = vunpack.c.l.s4 1983009808
      %v5979 = vunpack.c.0.s8 %v5978
      %v5980 = vlaneseq
      %v5981 = vshrl.u32 %v5980, 7
      %v5982 = vsub.s32 %v5979, %v5981
      %v5983 = vrot.slane %v5969, %v5982
      %v5984 = vcombine.low %v5976, %v5983
      %v5985 = vcombine.low %v4381, %v4389
      %v5986 = vcombine.low %v4397, %v4396
      %v5988 = vunpack.c.l.s4 1983009808
      %v5989 = vunpack.c.0.s8 %v5988
      %v5990 = vlaneseq
      %v5991 = vshrl.u32 %v5990, 7
      %v5992 = vsub.s32 %v5989, %v5991
      %v5993 = vrot.slane %v5985, %v5992
      %v5995 = vunpack.c.l.s4 1983009808
      %v5996 = vunpack.c.0.s8 %v5995
      %v5997 = vlaneseq
      %v5998 = vshrl.u32 %v5997, 7
      %v5999 = vsub.s32 %v5996, %v5998
      %v6000 = vrot.slane %v5986, %v5999
      %v6001 = vcombine.low %v5993, %v6000
      %v6002 = vcombine.low %v4398, %v4405
      %v6003 = vcombine.low %v4413, %v4421
      %v6005 = vunpack.c.l.s4 1983009808
      %v6006 = vunpack.c.0.s8 %v6005
      %v6007 = vlaneseq
      %v6008 = vshrl.u32 %v6007, 7
      %v6009 = vsub.s32 %v6006, %v6008
      %v6010 = vrot.slane %v6002, %v6009
      %v6012 = vunpack.c.l.s4 1983009808
      %v6013 = vunpack.c.0.s8 %v6012
      %v6014 = vlaneseq
      %v6015 = vshrl.u32 %v6014, 7
      %v6016 = vsub.s32 %v6013, %v6015
      %v6017 = vrot.slane %v6003, %v6016
      %v6018 = vcombine.low %v6010, %v6017
      %v6019 = vcombine.low %v4420, %v4422
      %v6020 = vcombine.low %v4430, %v4438
      %v6022 = vunpack.c.l.s4 1983009808
      %v6023 = vunpack.c.0.s8 %v6022
      %v6024 = vlaneseq
      %v6025 = vshrl.u32 %v6024, 7
      %v6026 = vsub.s32 %v6023, %v6025
      %v6027 = vrot.slane %v6019, %v6026
      %v6029 = vunpack.c.l.s4 1983009808
      %v6030 = vunpack.c.0.s8 %v6029
      %v6031 = vlaneseq
      %v6032 = vshrl.u32 %v6031, 7
      %v6033 = vsub.s32 %v6030, %v6032
      %v6034 = vrot.slane %v6020, %v6033
      %v6035 = vcombine.low %v6027, %v6034
      %v6036 = vcombine.low %v4437, %v4439
      %v6037 = vcombine.low %v4446, %v4454
      %v6039 = vunpack.c.l.s4 1983009808
      %v6040 = vunpack.c.0.s8 %v6039
      %v6041 = vlaneseq
      %v6042 = vshrl.u32 %v6041, 7
      %v6043 = vsub.s32 %v6040, %v6042
      %v6044 = vrot.slane %v6036, %v6043
      %v6046 = vunpack.c.l.s4 1983009808
      %v6047 = vunpack.c.0.s8 %v6046
      %v6048 = vlaneseq
      %v6049 = vshrl.u32 %v6048, 7
      %v6050 = vsub.s32 %v6047, %v6049
      %v6051 = vrot.slane %v6037, %v6050
      %v6052 = vcombine.low %v6044, %v6051
      %v6053 = vcombine.low %v4462, %v4461
      %v6054 = vcombine.low %v4463, %v4471
      %v6056 = vunpack.c.l.s4 1983009808
      %v6057 = vunpack.c.0.s8 %v6056
      %v6058 = vlaneseq
      %v6059 = vshrl.u32 %v6058, 7
      %v6060 = vsub.s32 %v6057, %v6059
      %v6061 = vrot.slane %v6053, %v6060
      %v6063 = vunpack.c.l.s4 1983009808
      %v6064 = vunpack.c.0.s8 %v6063
      %v6065 = vlaneseq
      %v6066 = vshrl.u32 %v6065, 7
      %v6067 = vsub.s32 %v6064, %v6066
      %v6068 = vrot.slane %v6054, %v6067
      %v6069 = vcombine.low %v6061, %v6068
      %v6070 = vcombine.low %v4479, %v4478
      %v6071 = vcombine.low %v4480, %v4487
      %v6073 = vunpack.c.l.s4 1983009808
      %v6074 = vunpack.c.0.s8 %v6073
      %v6075 = vlaneseq
      %v6076 = vshrl.u32 %v6075, 7
      %v6077 = vsub.s32 %v6074, %v6076
      %v6078 = vrot.slane %v6070, %v6077
      %v6080 = vunpack.c.l.s4 1983009808
      %v6081 = vunpack.c.0.s8 %v6080
      %v6082 = vlaneseq
      %v6083 = vshrl.u32 %v6082, 7
      %v6084 = vsub.s32 %v6081, %v6083
      %v6085 = vrot.slane %v6071, %v6084
      %v6086 = vcombine.low %v6078, %v6085
      %v6087 = vcombine.low %v4495, %v4503
      %v6088 = vcombine.low %v4502, %v4504
      %v6090 = vunpack.c.l.s4 1983009808
      %v6091 = vunpack.c.0.s8 %v6090
      %v6092 = vlaneseq
      %v6093 = vshrl.u32 %v6092, 7
      %v6094 = vsub.s32 %v6091, %v6093
      %v6095 = vrot.slane %v6087, %v6094
      %v6097 = vunpack.c.l.s4 1983009808
      %v6098 = vunpack.c.0.s8 %v6097
      %v6099 = vlaneseq
      %v6100 = vshrl.u32 %v6099, 7
      %v6101 = vsub.s32 %v6098, %v6100
      %v6102 = vrot.slane %v6088, %v6101
      %v6103 = vcombine.low %v6095, %v6102
      %v6104 = vcombine.low %v4512, %v4520
      %v6105 = vcombine.low %v4519, %v4521
      %v6107 = vunpack.c.l.s4 1983009808
      %v6108 = vunpack.c.0.s8 %v6107
      %v6109 = vlaneseq
      %v6110 = vshrl.u32 %v6109, 7
      %v6111 = vsub.s32 %v6108, %v6110
      %v6112 = vrot.slane %v6104, %v6111
      %v6114 = vunpack.c.l.s4 1983009808
      %v6115 = vunpack.c.0.s8 %v6114
      %v6116 = vlaneseq
      %v6117 = vshrl.u32 %v6116, 7
      %v6118 = vsub.s32 %v6115, %v6117
      %v6119 = vrot.slane %v6105, %v6118
      %v6120 = vcombine.low %v6112, %v6119
      %v6121 = vcombine.low %v4528, %v4536
      %v6122 = vcombine.low %v4544, %v4543
      %v6124 = vunpack.c.l.s4 1983009808
      %v6125 = vunpack.c.0.s8 %v6124
      %v6126 = vlaneseq
      %v6127 = vshrl.u32 %v6126, 7
      %v6128 = vsub.s32 %v6125, %v6127
      %v6129 = vrot.slane %v6121, %v6128
      %v6131 = vunpack.c.l.s4 1983009808
      %v6132 = vunpack.c.0.s8 %v6131
      %v6133 = vlaneseq
      %v6134 = vshrl.u32 %v6133, 7
      %v6135 = vsub.s32 %v6132, %v6134
      %v6136 = vrot.slane %v6122, %v6135
      %v6137 = vcombine.low %v6129, %v6136
      %v6138 = vcombine.low %v4545, %v4553
      %v6139 = vcombine.low %v4561, %v4560
      %v6141 = vunpack.c.l.s4 1983009808
      %v6142 = vunpack.c.0.s8 %v6141
      %v6143 = vlaneseq
      %v6144 = vshrl.u32 %v6143, 7
      %v6145 = vsub.s32 %v6142, %v6144
      %v6146 = vrot.slane %v6138, %v6145
      %v6148 = vunpack.c.l.s4 1983009808
      %v6149 = vunpack.c.0.s8 %v6148
      %v6150 = vlaneseq
      %v6151 = vshrl.u32 %v6150, 7
      %v6152 = vsub.s32 %v6149, %v6151
      %v6153 = vrot.slane %v6139, %v6152
      %v6154 = vcombine.low %v6146, %v6153
      %v6155 = vcombine.low %v4562, %v4569
      %v6156 = vcombine.low %v4577, %v4585
      %v6158 = vunpack.c.l.s4 1983009808
      %v6159 = vunpack.c.0.s8 %v6158
      %v6160 = vlaneseq
      %v6161 = vshrl.u32 %v6160, 7
      %v6162 = vsub.s32 %v6159, %v6161
      %v6163 = vrot.slane %v6155, %v6162
      %v6165 = vunpack.c.l.s4 1983009808
      %v6166 = vunpack.c.0.s8 %v6165
      %v6167 = vlaneseq
      %v6168 = vshrl.u32 %v6167, 7
      %v6169 = vsub.s32 %v6166, %v6168
      %v6170 = vrot.slane %v6156, %v6169
      %v6171 = vcombine.low %v6163, %v6170
      %v6172 = vcombine.low %v4584, %v4586
      %v6173 = vcombine.low %v4594, %v4602
      %v6175 = vunpack.c.l.s4 1983009808
      %v6176 = vunpack.c.0.s8 %v6175
      %v6177 = vlaneseq
      %v6178 = vshrl.u32 %v6177, 7
      %v6179 = vsub.s32 %v6176, %v6178
      %v6180 = vrot.slane %v6172, %v6179
      %v6182 = vunpack.c.l.s4 1983009808
      %v6183 = vunpack.c.0.s8 %v6182
      %v6184 = vlaneseq
      %v6185 = vshrl.u32 %v6184, 7
      %v6186 = vsub.s32 %v6183, %v6185
      %v6187 = vrot.slane %v6173, %v6186
      %v6188 = vcombine.low %v6180, %v6187
      %v6189 = vcombine.low %v4601, %v4603
      %v6190 = vcombine.low %v4610, %v5592
      %v6192 = vunpack.c.l.s4 1983009808
      %v6193 = vunpack.c.0.s8 %v6192
      %v6194 = vlaneseq
      %v6195 = vshrl.u32 %v6194, 7
      %v6196 = vsub.s32 %v6193, %v6195
      %v6197 = vrot.slane %v6189, %v6196
      %v6199 = vunpack.c.l.s4 1983009808
      %v6200 = vunpack.c.0.s8 %v6199
      %v6201 = vlaneseq
      %v6202 = vshrl.u32 %v6201, 7
      %v6203 = vsub.s32 %v6200, %v6202
      %v6204 = vrot.slane %v6190, %v6203
      %v6205 = vcombine.low %v6197, %v6204
      %v6206 = vcombine.low %v5600, %v5599
      %v6207 = vcombine.low %v5601, %v5609
      %v6209 = vunpack.c.l.s4 1983009808
      %v6210 = vunpack.c.0.s8 %v6209
      %v6211 = vlaneseq
      %v6212 = vshrl.u32 %v6211, 7
      %v6213 = vsub.s32 %v6210, %v6212
      %v6214 = vrot.slane %v6206, %v6213
      %v6216 = vunpack.c.l.s4 1983009808
      %v6217 = vunpack.c.0.s8 %v6216
      %v6218 = vlaneseq
      %v6219 = vshrl.u32 %v6218, 7
      %v6220 = vsub.s32 %v6217, %v6219
      %v6221 = vrot.slane %v6207, %v6220
      %v6222 = vcombine.low %v6214, %v6221
      %v6223 = vcombine.low %v5617, %v5616
      %v6224 = vcombine.low %v5618, %v5625
      %v6226 = vunpack.c.l.s4 1983009808
      %v6227 = vunpack.c.0.s8 %v6226
      %v6228 = vlaneseq
      %v6229 = vshrl.u32 %v6228, 7
      %v6230 = vsub.s32 %v6227, %v6229
      %v6231 = vrot.slane %v6223, %v6230
      %v6233 = vunpack.c.l.s4 1983009808
      %v6234 = vunpack.c.0.s8 %v6233
      %v6235 = vlaneseq
      %v6236 = vshrl.u32 %v6235, 7
      %v6237 = vsub.s32 %v6234, %v6236
      %v6238 = vrot.slane %v6224, %v6237
      %v6239 = vcombine.low %v6231, %v6238
      %v6240 = vsel %vm5224, %v5644, 0
      %v6242 = vsel %vm5224, %v5661, 0
      %v6244 = vsel %vm5224, %v5678, 0
      %v6246 = vsel %vm5224, %v5695, 0
      %v6248 = vsel %vm5224, %v5712, 0
      %v6250 = vsel %vm5224, %v5729, 0
      %v6252 = vsel %vm5224, %v5746, 0
      %v6254 = vsel %vm5224, %v5763, 0
      %v6256 = vsel %vm5224, %v5780, 0
      %v6258 = vsel %vm5224, %v5797, 0
      %v6260 = vsel %vm5224, %v5814, 0
      %v6262 = vsel %vm5224, %v5831, 0
      %v6264 = vsel %vm5224, %v5848, 0
      %v6266 = vsel %vm5224, %v5865, 0
      %v6268 = vsel %vm5224, %v5882, 0
      %v6270 = vsel %vm5224, %v5899, 0
      %v6272 = vsel %vm5224, %v5916, 0
      %v6274 = vsel %vm5224, %v5933, 0
      %v6276 = vsel %vm5224, %v5950, 0
      %v6278 = vsel %vm5224, %v5967, 0
      %v6280 = vsel %vm5224, %v5984, 0
      %v6282 = vsel %vm5224, %v6001, 0
      %v6284 = vsel %vm5224, %v6018, 0
      %v6286 = vsel %vm5224, %v6035, 0
      %v6288 = vsel %vm5224, %v6052, 0
      %v6290 = vsel %vm5224, %v6069, 0
      %v6292 = vsel %vm5224, %v6086, 0
      %v6294 = vsel %vm5224, %v6103, 0
      %v6296 = vsel %vm5224, %v6120, 0
      %v6298 = vsel %vm5224, %v6137, 0
      %v6300 = vsel %vm5224, %v6154, 0
      %v6302 = vsel %vm5224, %v6171, 0
      %v6304 = vsel %vm5224, %v6188, 0
      %v6306 = vsel %vm5224, %v6205, 0
      %v6308 = vsel %vm5224, %v6222, 0
      %v6310 = vsel %vm5224, %v6239, 0
      %v6313 = vsel %vm5297, %v5627, 0
      %6315 = vmatprep.subr.mxu0 0.0
      %6316 = vmatpush1.msra.mxu0 %v6313
      %6317 = vmatprep.subr.mxu0 0.0
      %6318 = vmatpush1.msra.mxu0 0.0
      %6319 = vmatprep.subr.mxu0 0.0
      %6320 = vmatpush1.msra.mxu0 0.0
      %6321 = vmatprep.subr.mxu0 0.0
      %6322 = vmatpush1.msra.mxu0 0.0
      %6323 = vmatprep.subr.mxu0 0.0
      %6324 = vmatpush1.msra.mxu0 0.0
      %6325 = vmatprep.subr.mxu0 0.0
      %6326 = vmatpush1.msra.mxu0 0.0
      %6327 = vmatprep.subr.mxu0 0.0
      %6328 = vmatpush1.msra.mxu0 0.0
      %6329 = vmatprep.subr.mxu0 0.0
      %6330 = vmatpush1.msra.mxu0 0.0
      %6331 = vmatprep.subr.mxu0 0.0
      %6332 = vmatpush1.msra.mxu0 0.0
      %6333 = vmatprep.subr.mxu0 0.0
      %6334 = vmatpush1.msra.mxu0 0.0
      %6335 = vmatprep.subr.mxu0 0.0
      %6336 = vmatpush1.msra.mxu0 0.0
      %6337 = vmatprep.subr.mxu0 0.0
      %6338 = vmatpush1.msra.mxu0 0.0
      %6339 = vmatprep.subr.mxu0 0.0
      %6340 = vmatpush1.msra.mxu0 0.0
      %6341 = vmatprep.subr.mxu0 0.0
      %6342 = vmatpush1.msra.mxu0 0.0
      %6343 = vmatprep.subr.mxu0 0.0
      %6344 = vmatpush1.msra.mxu0 0.0
      %6345 = vmatprep.subr.mxu0 0.0
      %6346 = vmatpush1.msra.mxu0 0.0
      %6347 = vmatprep.subr.mxu0 0.0
      %6348 = vmatpush1.msra.mxu0 0.0
      %6349 = vmatprep.subr.mxu0 0.0
      %6350 = vmatpush1.msra.mxu0 0.0
      %6351 = vmatprep.subr.mxu0 0.0
      %6352 = vmatpush1.msra.mxu0 0.0
      %6353 = vmatprep.subr.mxu0 0.0
      %6354 = vmatpush1.msra.mxu0 0.0
      %6355 = vmatprep.subr.mxu0 0.0
      %6356 = vmatpush1.msra.mxu0 0.0
      %6357 = vmatprep.subr.mxu0 0.0
      %6358 = vmatpush1.msra.mxu0 0.0
      %6359 = vmatprep.subr.mxu0 0.0
      %6360 = vmatpush1.msra.mxu0 0.0
      %6361 = vmatprep.subr.mxu0 0.0
      %6362 = vmatpush1.msra.mxu0 0.0
      %6363 = vmatprep.subr.mxu0 0.0
      %6364 = vmatpush1.msra.mxu0 0.0
      %6365 = vmatprep.subr.mxu0 0.0
      %6366 = vmatpush1.msra.mxu0 0.0
      %6367 = vmatprep.subr.mxu0 0.0
      %6368 = vmatpush1.msra.mxu0 0.0
      %6369 = vmatprep.subr.mxu0 0.0
      %6370 = vmatpush1.msra.mxu0 0.0
      %6371 = vmatprep.subr.mxu0 0.0
      %6372 = vmatpush1.msra.mxu0 0.0
      %6373 = vmatprep.subr.mxu0 0.0
      %6374 = vmatpush1.msra.mxu0 0.0
      %6375 = vmatprep.subr.mxu0 0.0
      %6376 = vmatpush1.msra.mxu0 0.0
      %6377 = vmatprep.subr.mxu0 0.0
      %6378 = vmatpush1.msra.mxu0 0.0
      %6379 = vmatprep.mubr.f32.mxu0 0.0
      %6380 = vmatmul.mubr.f32.gmra.mrb[0].mxu0 %v6240
      %v6381 = vpop.f32.mrb[0].mxu0
      %v6382 = vadd.f32 0.0, %v6381
      %v6383 = vpop.f32.mrb[0].mxu0
      %6384 = vmatprep.mubr.f32.mxu0 0.0
      %6385 = vmatmul.mubr.f32.gmra.mrb[0].mxu0 %v6242
      %v6386 = vpop.f32.mrb[0].mxu0
      %v6387 = vadd.f32 0.0, %v6386
      %v6388 = vpop.f32.mrb[0].mxu0
      %6389 = vmatprep.mubr.f32.mxu0 0.0
      %6390 = vmatmul.mubr.f32.gmra.mrb[0].mxu0 %v6244
      %v6391 = vpop.f32.mrb[0].mxu0
      %v6392 = vadd.f32 0.0, %v6391
      %v6393 = vpop.f32.mrb[0].mxu0
      %6394 = vmatprep.mubr.f32.mxu0 0.0
      %6395 = vmatmul.mubr.f32.gmra.mrb[0].mxu0 %v6246
      %v6396 = vpop.f32.mrb[0].mxu0
      %v6397 = vadd.f32 0.0, %v6396
      %v6398 = vpop.f32.mrb[0].mxu0
      %6399 = vmatprep.mubr.f32.mxu0 0.0
      %6400 = vmatmul.mubr.f32.gmra.mrb[0].mxu0 %v6248
      %v6401 = vpop.f32.mrb[0].mxu0
      %v6402 = vadd.f32 0.0, %v6401
      %v6403 = vpop.f32.mrb[0].mxu0
      %6404 = vmatprep.mubr.f32.mxu0 0.0
      %6405 = vmatmul.mubr.f32.gmra.mrb[0].mxu0 %v6250
      %v6406 = vpop.f32.mrb[0].mxu0
      %v6407 = vadd.f32 0.0, %v6406
      %v6408 = vpop.f32.mrb[0].mxu0
      %6409 = vmatprep.mubr.f32.mxu0 0.0
      %6410 = vmatmul.mubr.f32.gmra.mrb[0].mxu0 %v6252
      %v6411 = vpop.f32.mrb[0].mxu0
      %v6412 = vadd.f32 0.0, %v6411
      %v6413 = vpop.f32.mrb[0].mxu0
      %6414 = vmatprep.mubr.f32.mxu0 0.0
      %6415 = vmatmul.mubr.f32.gmra.mrb[0].mxu0 %v6254
      %v6416 = vpop.f32.mrb[0].mxu0
      %v6417 = vadd.f32 0.0, %v6416
      %v6418 = vpop.f32.mrb[0].mxu0
      %6419 = vmatprep.mubr.f32.mxu0 0.0
      %6420 = vmatmul.mubr.f32.gmra.mrb[0].mxu0 %v6256
      %v6421 = vpop.f32.mrb[0].mxu0
      %v6422 = vadd.f32 0.0, %v6421
      %v6423 = vpop.f32.mrb[0].mxu0
      %6424 = vmatprep.mubr.f32.mxu0 0.0
      %6425 = vmatmul.mubr.f32.gmra.mrb[0].mxu0 %v6258
      %v6426 = vpop.f32.mrb[0].mxu0
      %v6427 = vadd.f32 0.0, %v6426
      %v6428 = vpop.f32.mrb[0].mxu0
      %6429 = vmatprep.mubr.f32.mxu0 0.0
      %6430 = vmatmul.mubr.f32.gmra.mrb[0].mxu0 %v6260
      %v6431 = vpop.f32.mrb[0].mxu0
      %v6432 = vadd.f32 0.0, %v6431
      %v6433 = vpop.f32.mrb[0].mxu0
      %6434 = vmatprep.mubr.f32.mxu0 0.0
      %6435 = vmatmul.mubr.f32.gmra.mrb[0].mxu0 %v6262
      %v6436 = vpop.f32.mrb[0].mxu0
      %v6437 = vadd.f32 0.0, %v6436
      %v6438 = vpop.f32.mrb[0].mxu0
      %6439 = vmatprep.mubr.f32.mxu0 0.0
      %6440 = vmatmul.mubr.f32.gmra.mrb[0].mxu0 %v6264
      %v6441 = vpop.f32.mrb[0].mxu0
      %v6442 = vadd.f32 0.0, %v6441
      %v6443 = vpop.f32.mrb[0].mxu0
      %6444 = vmatprep.mubr.f32.mxu0 0.0
      %6445 = vmatmul.mubr.f32.gmra.mrb[0].mxu0 %v6266
      %v6446 = vpop.f32.mrb[0].mxu0
      %v6447 = vadd.f32 0.0, %v6446
      %v6448 = vpop.f32.mrb[0].mxu0
      %6449 = vmatprep.mubr.f32.mxu0 0.0
      %6450 = vmatmul.mubr.f32.gmra.mrb[0].mxu0 %v6268
      %v6451 = vpop.f32.mrb[0].mxu0
      %v6452 = vadd.f32 0.0, %v6451
      %v6453 = vpop.f32.mrb[0].mxu0
      %6454 = vmatprep.mubr.f32.mxu0 0.0
      %6455 = vmatmul.mubr.f32.gmra.mrb[0].mxu0 %v6270
      %v6456 = vpop.f32.mrb[0].mxu0
      %v6457 = vadd.f32 0.0, %v6456
      %v6458 = vpop.f32.mrb[0].mxu0
      %6459 = vmatprep.mubr.f32.mxu0 0.0
      %6460 = vmatmul.mubr.f32.gmra.mrb[0].mxu0 %v6272
      %v6461 = vpop.f32.mrb[0].mxu0
      %v6462 = vadd.f32 0.0, %v6461
      %v6463 = vpop.f32.mrb[0].mxu0
      %6464 = vmatprep.mubr.f32.mxu0 0.0
      %6465 = vmatmul.mubr.f32.gmra.mrb[0].mxu0 %v6274
      %v6466 = vpop.f32.mrb[0].mxu0
      %v6467 = vadd.f32 0.0, %v6466
      %v6468 = vpop.f32.mrb[0].mxu0
      %6469 = vmatprep.mubr.f32.mxu0 0.0
      %6470 = vmatmul.mubr.f32.gmra.mrb[0].mxu0 %v6276
      %v6471 = vpop.f32.mrb[0].mxu0
      %v6472 = vadd.f32 0.0, %v6471
      %v6473 = vpop.f32.mrb[0].mxu0
      %6474 = vmatprep.mubr.f32.mxu0 0.0
      %6475 = vmatmul.mubr.f32.gmra.mrb[0].mxu0 %v6278
      %v6476 = vpop.f32.mrb[0].mxu0
      %v6477 = vadd.f32 0.0, %v6476
      %v6478 = vpop.f32.mrb[0].mxu0
      %6479 = vmatprep.mubr.f32.mxu0 0.0
      %6480 = vmatmul.mubr.f32.gmra.mrb[0].mxu0 %v6280
      %v6481 = vpop.f32.mrb[0].mxu0
      %v6482 = vadd.f32 0.0, %v6481
      %v6483 = vpop.f32.mrb[0].mxu0
      %6484 = vmatprep.mubr.f32.mxu0 0.0
      %6485 = vmatmul.mubr.f32.gmra.mrb[0].mxu0 %v6282
      %v6486 = vpop.f32.mrb[0].mxu0
      %v6487 = vadd.f32 0.0, %v6486
      %v6488 = vpop.f32.mrb[0].mxu0
      %6489 = vmatprep.mubr.f32.mxu0 0.0
      %6490 = vmatmul.mubr.f32.gmra.mrb[0].mxu0 %v6284
      %v6491 = vpop.f32.mrb[0].mxu0
      %v6492 = vadd.f32 0.0, %v6491
      %v6493 = vpop.f32.mrb[0].mxu0
      %6494 = vmatprep.mubr.f32.mxu0 0.0
      %6495 = vmatmul.mubr.f32.gmra.mrb[0].mxu0 %v6286
      %v6496 = vpop.f32.mrb[0].mxu0
      %v6497 = vadd.f32 0.0, %v6496
      %v6498 = vpop.f32.mrb[0].mxu0
      %6499 = vmatprep.mubr.f32.mxu0 0.0
      %6500 = vmatmul.mubr.f32.gmra.mrb[0].mxu0 %v6288
      %v6501 = vpop.f32.mrb[0].mxu0
      %v6502 = vadd.f32 0.0, %v6501
      %v6503 = vpop.f32.mrb[0].mxu0
      %6504 = vmatprep.mubr.f32.mxu0 0.0
      %6505 = vmatmul.mubr.f32.gmra.mrb[0].mxu0 %v6290
      %v6506 = vpop.f32.mrb[0].mxu0
      %v6507 = vadd.f32 0.0, %v6506
      %v6508 = vpop.f32.mrb[0].mxu0
      %6509 = vmatprep.mubr.f32.mxu0 0.0
      %6510 = vmatmul.mubr.f32.gmra.mrb[0].mxu0 %v6292
      %v6511 = vpop.f32.mrb[0].mxu0
      %v6512 = vadd.f32 0.0, %v6511
      %v6513 = vpop.f32.mrb[0].mxu0
      %6514 = vmatprep.mubr.f32.mxu0 0.0
      %6515 = vmatmul.mubr.f32.gmra.mrb[0].mxu0 %v6294
      %v6516 = vpop.f32.mrb[0].mxu0
      %v6517 = vadd.f32 0.0, %v6516
      %v6518 = vpop.f32.mrb[0].mxu0
      %6519 = vmatprep.mubr.f32.mxu0 0.0
      %6520 = vmatmul.mubr.f32.gmra.mrb[0].mxu0 %v6296
      %v6521 = vpop.f32.mrb[0].mxu0
      %v6522 = vadd.f32 0.0, %v6521
      %v6523 = vpop.f32.mrb[0].mxu0
      %6524 = vmatprep.mubr.f32.mxu0 0.0
      %6525 = vmatmul.mubr.f32.gmra.mrb[0].mxu0 %v6298
      %v6526 = vpop.f32.mrb[0].mxu0
      %v6527 = vadd.f32 0.0, %v6526
      %v6528 = vpop.f32.mrb[0].mxu0
      %6529 = vmatprep.mubr.f32.mxu0 0.0
      %6530 = vmatmul.mubr.f32.gmra.mrb[0].mxu0 %v6300
      %v6531 = vpop.f32.mrb[0].mxu0
      %v6532 = vadd.f32 0.0, %v6531
      %v6533 = vpop.f32.mrb[0].mxu0
      %6534 = vmatprep.mubr.f32.mxu0 0.0
      %6535 = vmatmul.mubr.f32.gmra.mrb[0].mxu0 %v6302
      %v6536 = vpop.f32.mrb[0].mxu0
      %v6537 = vadd.f32 0.0, %v6536
      %v6538 = vpop.f32.mrb[0].mxu0
      %6539 = vmatprep.mubr.f32.mxu0 0.0
      %6540 = vmatmul.mubr.f32.gmra.mrb[0].mxu0 %v6304
      %v6541 = vpop.f32.mrb[0].mxu0
      %v6542 = vadd.f32 0.0, %v6541
      %v6543 = vpop.f32.mrb[0].mxu0
      %6544 = vmatprep.mubr.f32.mxu0 0.0
      %6545 = vmatmul.mubr.f32.gmra.mrb[0].mxu0 %v6306
      %v6546 = vpop.f32.mrb[0].mxu0
      %v6547 = vadd.f32 0.0, %v6546
      %v6548 = vpop.f32.mrb[0].mxu0
      %6549 = vmatprep.mubr.f32.mxu0 0.0
      %6550 = vmatmul.mubr.f32.gmra.mrb[0].mxu0 %v6308
      %v6551 = vpop.f32.mrb[0].mxu0
      %v6552 = vadd.f32 0.0, %v6551
      %v6553 = vpop.f32.mrb[0].mxu0
      %6554 = vmatprep.mubr.f32.mxu0 0.0
      %6555 = vmatmul.mubr.f32.gmra.mrb[0].mxu0 %v6310
      %v6556 = vpop.f32.mrb[0].mxu0
      %v6557 = vadd.f32 0.0, %v6556
      %v6558 = vpop.f32.mrb[0].mxu0
      %6559 = vdwg.mxu0
      %v6560 = vadd.f32 %v5546, %v6382
      %v6561 = vadd.f32 %v5547, %v6387
      %v6562 = vadd.f32 %v5548, %v6392
      %v6563 = vadd.f32 %v5549, %v6397
      %v6564 = vadd.f32 %v5550, %v6402
      %v6565 = vadd.f32 %v5551, %v6407
      %v6566 = vadd.f32 %v5552, %v6412
      %v6567 = vadd.f32 %v5553, %v6417
      %v6568 = vadd.f32 %v5554, %v6422
      %v6569 = vadd.f32 %v5555, %v6427
      %v6570 = vadd.f32 %v5556, %v6432
      %v6571 = vadd.f32 %v5557, %v6437
      %v6572 = vadd.f32 %v5558, %v6442
      %v6573 = vadd.f32 %v5559, %v6447
      %v6574 = vadd.f32 %v5560, %v6452
      %v6575 = vadd.f32 %v5561, %v6457
      %v6576 = vadd.f32 %v5562, %v6462
      %v6577 = vadd.f32 %v5563, %v6467
      %v6578 = vadd.f32 %v5564, %v6472
      %v6579 = vadd.f32 %v5565, %v6477
      %v6580 = vadd.f32 %v5566, %v6482
      %v6581 = vadd.f32 %v5567, %v6487
      %v6582 = vadd.f32 %v5568, %v6492
      %v6583 = vadd.f32 %v5569, %v6497
      %v6584 = vadd.f32 %v5570, %v6502
      %v6585 = vadd.f32 %v5571, %v6507
      %v6586 = vadd.f32 %v5572, %v6512
      %v6587 = vadd.f32 %v5573, %v6517
      %v6588 = vadd.f32 %v5574, %v6522
      %v6589 = vadd.f32 %v5575, %v6527
      %v6590 = vadd.f32 %v5576, %v6532
      %v6591 = vadd.f32 %v5577, %v6537
      %v6592 = vadd.f32 %v5578, %v6542
      %v6593 = vadd.f32 %v5579, %v6547
      %v6594 = vadd.f32 %v5580, %v6552
      %v6595 = vadd.f32 %v5581, %v6557
      %v6599 = vcombine.high %v777, %v777
      %v6601 = vunpack.c.l.s4 1983009808
      %v6602 = vunpack.c.0.s8 %v6601
      %v6603 = vlaneseq
      %v6604 = vshrl.u32 %v6603, 7
      %v6605 = vsub.s32 %v6602, %v6604
      %v6606 = vrot.slane %v777, %v6605
      %v6608 = vunpack.c.l.s4 1983009808
      %v6609 = vunpack.c.0.s8 %v6608
      %v6610 = vlaneseq
      %v6611 = vshrl.u32 %v6610, 7
      %v6612 = vsub.s32 %v6609, %v6611
      %v6613 = vrot.slane %v6599, %v6612
      %v6614 = vcombine.high %v6606, %v6606
      %v6615 = vcombine.high %v6613, %v6613
      %v6616 = vcombine.high %v778, %v778
      %v6618 = vunpack.c.l.s4 1983009808
      %v6619 = vunpack.c.0.s8 %v6618
      %v6620 = vlaneseq
      %v6621 = vshrl.u32 %v6620, 7
      %v6622 = vsub.s32 %v6619, %v6621
      %v6623 = vrot.slane %v778, %v6622
      %v6625 = vunpack.c.l.s4 1983009808
      %v6626 = vunpack.c.0.s8 %v6625
      %v6627 = vlaneseq
      %v6628 = vshrl.u32 %v6627, 7
      %v6629 = vsub.s32 %v6626, %v6628
      %v6630 = vrot.slane %v6616, %v6629
      %v6631 = vcombine.high %v6623, %v6623
      %v6632 = vcombine.high %v6630, %v6630
      %v6634 = vunpack.c.l.s4 1983009808
      %v6635 = vunpack.c.0.s8 %v6634
      %v6636 = vlaneseq
      %v6637 = vshrl.u32 %v6636, 7
      %v6638 = vsub.s32 %v6635, %v6637
      %v6639 = vrot.slane %v779, %v6638
      %s6640 = scalar_lea.vmem %s7, 4
      %v6641 = vld [vmem:[%s6640] sm:$0x3]
      %v6642 = vcombine.low %v4695, %v4705
      %v6643 = vcombine.low %v4712, %v4722
      %v6644 = vcombine.low %v4729, %v4739
      %v6645 = vcombine.low %v4746, %v4756
      %v6646 = vcombine.low %v4763, %v4773
      %v6647 = vcombine.low %v4780, %v4790
      %v6648 = vcombine.low %v4797, %v4807
      %v6649 = vcombine.low %v4814, %v4824
      %v6650 = vcombine.low %v4831, %v4841
      %v6651 = vcombine.low %v4848, %v4858
      %v6652 = vcombine.low %v4865, %v4875
      %v6653 = vcombine.low %v4882, %v4892
      %v6654 = vcombine.low %v4899, %v4909
      %v6655 = vcombine.low %v4916, %v4926
      %v6656 = vcombine.low %v4933, %v4943
      %v6657 = vcombine.low %v4950, %v4960
      %v6658 = vcombine.low %v4967, %v4977
      %v6659 = vcombine.low %v4984, %v4994
      %v6660 = vcombine.low %v5001, %v5011
      %v6661 = vcombine.low %v5018, %v5028
      %v6662 = vcombine.low %v5035, %v5045
      %v6663 = vcombine.low %v5052, %v5062
      %v6664 = vcombine.low %v5069, %v5079
      %v6665 = vcombine.low %v5086, %v5096
      %v6666 = vcombine.low %v5103, %v5113
      %v6667 = vcombine.low %v5120, %v5130
      %v6668 = vcombine.low %v5137, %v5147
      %v6669 = vcombine.low %v5154, %v5164
      %v6670 = vcombine.low %v5171, %v5181
      %v6671 = vcombine.low %v5188, %v5198
      %v6672 = vcombine.low %v5205, %v5215
      %v6673 = vcombine.low %v5592, %v5600
      %v6675 = vunpack.c.l.s4 1983009808
      %v6676 = vunpack.c.0.s8 %v6675
      %v6677 = vlaneseq
      %v6678 = vshrl.u32 %v6677, 7
      %v6679 = vsub.s32 %v6676, %v6678
      %v6680 = vrot.slane %v6673, %v6679
      %v6681 = vcombine.low %v5222, %v6680
      %v6682 = vcombine.low %v5599, %v5601
      %v6683 = vcombine.low %v5609, %v5617
      %v6685 = vunpack.c.l.s4 1983009808
      %v6686 = vunpack.c.0.s8 %v6685
      %v6687 = vlaneseq
      %v6688 = vshrl.u32 %v6687, 7
      %v6689 = vsub.s32 %v6686, %v6688
      %v6690 = vrot.slane %v6682, %v6689
      %v6692 = vunpack.c.l.s4 1983009808
      %v6693 = vunpack.c.0.s8 %v6692
      %v6694 = vlaneseq
      %v6695 = vshrl.u32 %v6694, 7
      %v6696 = vsub.s32 %v6693, %v6695
      %v6697 = vrot.slane %v6683, %v6696
      %v6698 = vcombine.low %v6690, %v6697
      %v6699 = vcombine.low %v5616, %v5618
      %v6700 = vcombine.low %v5625, %v6606
      %v6702 = vunpack.c.l.s4 1983009808
      %v6703 = vunpack.c.0.s8 %v6702
      %v6704 = vlaneseq
      %v6705 = vshrl.u32 %v6704, 7
      %v6706 = vsub.s32 %v6703, %v6705
      %v6707 = vrot.slane %v6699, %v6706
      %v6709 = vunpack.c.l.s4 1983009808
      %v6710 = vunpack.c.0.s8 %v6709
      %v6711 = vlaneseq
      %v6712 = vshrl.u32 %v6711, 7
      %v6713 = vsub.s32 %v6710, %v6712
      %v6714 = vrot.slane %v6700, %v6713
      %v6715 = vcombine.low %v6707, %v6714
      %v6716 = vcombine.low %v6614, %v6613
      %v6717 = vcombine.low %v6615, %v6623
      %v6719 = vunpack.c.l.s4 1983009808
      %v6720 = vunpack.c.0.s8 %v6719
      %v6721 = vlaneseq
      %v6722 = vshrl.u32 %v6721, 7
      %v6723 = vsub.s32 %v6720, %v6722
      %v6724 = vrot.slane %v6716, %v6723
      %v6726 = vunpack.c.l.s4 1983009808
      %v6727 = vunpack.c.0.s8 %v6726
      %v6728 = vlaneseq
      %v6729 = vshrl.u32 %v6728, 7
      %v6730 = vsub.s32 %v6727, %v6729
      %v6731 = vrot.slane %v6717, %v6730
      %v6732 = vcombine.low %v6724, %v6731
      %v6733 = vcombine.low %v6631, %v6630
      %v6734 = vcombine.low %v6632, %v6639
      %v6736 = vunpack.c.l.s4 1983009808
      %v6737 = vunpack.c.0.s8 %v6736
      %v6738 = vlaneseq
      %v6739 = vshrl.u32 %v6738, 7
      %v6740 = vsub.s32 %v6737, %v6739
      %v6741 = vrot.slane %v6733, %v6740
      %v6743 = vunpack.c.l.s4 1983009808
      %v6744 = vunpack.c.0.s8 %v6743
      %v6745 = vlaneseq
      %v6746 = vshrl.u32 %v6745, 7
      %v6747 = vsub.s32 %v6744, %v6746
      %v6748 = vrot.slane %v6734, %v6747
      %v6749 = vcombine.low %v6741, %v6748
      %v6750 = vsel %vm5224, %v6642, 0
      %v6752 = vsel %vm5224, %v6643, 0
      %v6754 = vsel %vm5224, %v6644, 0
      %v6756 = vsel %vm5224, %v6645, 0
      %v6758 = vsel %vm5224, %v6646, 0
      %v6760 = vsel %vm5224, %v6647, 0
      %v6762 = vsel %vm5224, %v6648, 0
      %v6764 = vsel %vm5224, %v6649, 0
      %v6766 = vsel %vm5224, %v6650, 0
      %v6768 = vsel %vm5224, %v6651, 0
      %v6770 = vsel %vm5224, %v6652, 0
      %v6772 = vsel %vm5224, %v6653, 0
      %v6774 = vsel %vm5224, %v6654, 0
      %v6776 = vsel %vm5224, %v6655, 0
      %v6778 = vsel %vm5224, %v6656, 0
      %v6780 = vsel %vm5224, %v6657, 0
      %v6782 = vsel %vm5224, %v6658, 0
      %v6784 = vsel %vm5224, %v6659, 0
      %v6786 = vsel %vm5224, %v6660, 0
      %v6788 = vsel %vm5224, %v6661, 0
      %v6790 = vsel %vm5224, %v6662, 0
      %v6792 = vsel %vm5224, %v6663, 0
      %v6794 = vsel %vm5224, %v6664, 0
      %v6796 = vsel %vm5224, %v6665, 0
      %v6798 = vsel %vm5224, %v6666, 0
      %v6800 = vsel %vm5224, %v6667, 0
      %v6802 = vsel %vm5224, %v6668, 0
      %v6804 = vsel %vm5224, %v6669, 0
      %v6806 = vsel %vm5224, %v6670, 0
      %v6808 = vsel %vm5224, %v6671, 0
      %v6810 = vsel %vm5224, %v6672, 0
      %v6812 = vsel %vm5224, %v6681, 0
      %v6814 = vsel %vm5224, %v6698, 0
      %v6816 = vsel %vm5224, %v6715, 0
      %v6818 = vsel %vm5224, %v6732, 0
      %v6820 = vsel %vm5224, %v6749, 0
      %v6823 = vsel %vm5297, %v6641, 0
      %6825 = vmatprep.subr.mxu0 0.0
      %6826 = vmatpush1.msra.mxu0 %v6823
      %6827 = vmatprep.subr.mxu0 0.0
      %6828 = vmatpush1.msra.mxu0 0.0
      %6829 = vmatprep.subr.mxu0 0.0
      %6830 = vmatpush1.msra.mxu0 0.0
      %6831 = vmatprep.subr.mxu0 0.0
      %6832 = vmatpush1.msra.mxu0 0.0
      %6833 = vmatprep.subr.mxu0 0.0
      %6834 = vmatpush1.msra.mxu0 0.0
      %6835 = vmatprep.subr.mxu0 0.0
      %6836 = vmatpush1.msra.mxu0 0.0
      %6837 = vmatprep.subr.mxu0 0.0
      %6838 = vmatpush1.msra.mxu0 0.0
      %6839 = vmatprep.subr.mxu0 0.0
      %6840 = vmatpush1.msra.mxu0 0.0
      %6841 = vmatprep.subr.mxu0 0.0
      %6842 = vmatpush1.msra.mxu0 0.0
      %6843 = vmatprep.subr.mxu0 0.0
      %6844 = vmatpush1.msra.mxu0 0.0
      %6845 = vmatprep.subr.mxu0 0.0
      %6846 = vmatpush1.msra.mxu0 0.0
      %6847 = vmatprep.subr.mxu0 0.0
      %6848 = vmatpush1.msra.mxu0 0.0
      %6849 = vmatprep.subr.mxu0 0.0
      %6850 = vmatpush1.msra.mxu0 0.0
      %6851 = vmatprep.subr.mxu0 0.0
      %6852 = vmatpush1.msra.mxu0 0.0
      %6853 = vmatprep.subr.mxu0 0.0
      %6854 = vmatpush1.msra.mxu0 0.0
      %6855 = vmatprep.subr.mxu0 0.0
      %6856 = vmatpush1.msra.mxu0 0.0
      %6857 = vmatprep.subr.mxu0 0.0
      %6858 = vmatpush1.msra.mxu0 0.0
      %6859 = vmatprep.subr.mxu0 0.0
      %6860 = vmatpush1.msra.mxu0 0.0
      %6861 = vmatprep.subr.mxu0 0.0
      %6862 = vmatpush1.msra.mxu0 0.0
      %6863 = vmatprep.subr.mxu0 0.0
      %6864 = vmatpush1.msra.mxu0 0.0
      %6865 = vmatprep.subr.mxu0 0.0
      %6866 = vmatpush1.msra.mxu0 0.0
      %6867 = vmatprep.subr.mxu0 0.0
      %6868 = vmatpush1.msra.mxu0 0.0
      %6869 = vmatprep.subr.mxu0 0.0
      %6870 = vmatpush1.msra.mxu0 0.0
      %6871 = vmatprep.subr.mxu0 0.0
      %6872 = vmatpush1.msra.mxu0 0.0
      %6873 = vmatprep.subr.mxu0 0.0
      %6874 = vmatpush1.msra.mxu0 0.0
      %6875 = vmatprep.subr.mxu0 0.0
      %6876 = vmatpush1.msra.mxu0 0.0
      %6877 = vmatprep.subr.mxu0 0.0
      %6878 = vmatpush1.msra.mxu0 0.0
      %6879 = vmatprep.subr.mxu0 0.0
      %6880 = vmatpush1.msra.mxu0 0.0
      %6881 = vmatprep.subr.mxu0 0.0
      %6882 = vmatpush1.msra.mxu0 0.0
      %6883 = vmatprep.subr.mxu0 0.0
      %6884 = vmatpush1.msra.mxu0 0.0
      %6885 = vmatprep.subr.mxu0 0.0
      %6886 = vmatpush1.msra.mxu0 0.0
      %6887 = vmatprep.subr.mxu0 0.0
      %6888 = vmatpush1.msra.mxu0 0.0
      %6889 = vmatprep.mubr.f32.mxu0 0.0
      %6890 = vmatmul.mubr.f32.gmra.mrb[0].mxu0 %v6750
      %v6891 = vpop.f32.mrb[0].mxu0
      %v6892 = vadd.f32 0.0, %v6891
      %v6893 = vpop.f32.mrb[0].mxu0
      %6894 = vmatprep.mubr.f32.mxu0 0.0
      %6895 = vmatmul.mubr.f32.gmra.mrb[0].mxu0 %v6752
      %v6896 = vpop.f32.mrb[0].mxu0
      %v6897 = vadd.f32 0.0, %v6896
      %v6898 = vpop.f32.mrb[0].mxu0
      %6899 = vmatprep.mubr.f32.mxu0 0.0
      %6900 = vmatmul.mubr.f32.gmra.mrb[0].mxu0 %v6754
      %v6901 = vpop.f32.mrb[0].mxu0
      %v6902 = vadd.f32 0.0, %v6901
      %v6903 = vpop.f32.mrb[0].mxu0
      %6904 = vmatprep.mubr.f32.mxu0 0.0
      %6905 = vmatmul.mubr.f32.gmra.mrb[0].mxu0 %v6756
      %v6906 = vpop.f32.mrb[0].mxu0
      %v6907 = vadd.f32 0.0, %v6906
      %v6908 = vpop.f32.mrb[0].mxu0
      %6909 = vmatprep.mubr.f32.mxu0 0.0
      %6910 = vmatmul.mubr.f32.gmra.mrb[0].mxu0 %v6758
      %v6911 = vpop.f32.mrb[0].mxu0
      %v6912 = vadd.f32 0.0, %v6911
      %v6913 = vpop.f32.mrb[0].mxu0
      %6914 = vmatprep.mubr.f32.mxu0 0.0
      %6915 = vmatmul.mubr.f32.gmra.mrb[0].mxu0 %v6760
      %v6916 = vpop.f32.mrb[0].mxu0
      %v6917 = vadd.f32 0.0, %v6916
      %v6918 = vpop.f32.mrb[0].mxu0
      %6919 = vmatprep.mubr.f32.mxu0 0.0
      %6920 = vmatmul.mubr.f32.gmra.mrb[0].mxu0 %v6762
      %v6921 = vpop.f32.mrb[0].mxu0
      %v6922 = vadd.f32 0.0, %v6921
      %v6923 = vpop.f32.mrb[0].mxu0
      %6924 = vmatprep.mubr.f32.mxu0 0.0
      %6925 = vmatmul.mubr.f32.gmra.mrb[0].mxu0 %v6764
      %v6926 = vpop.f32.mrb[0].mxu0
      %v6927 = vadd.f32 0.0, %v6926
      %v6928 = vpop.f32.mrb[0].mxu0
      %6929 = vmatprep.mubr.f32.mxu0 0.0
      %6930 = vmatmul.mubr.f32.gmra.mrb[0].mxu0 %v6766
      %v6931 = vpop.f32.mrb[0].mxu0
      %v6932 = vadd.f32 0.0, %v6931
      %v6933 = vpop.f32.mrb[0].mxu0
      %6934 = vmatprep.mubr.f32.mxu0 0.0
      %6935 = vmatmul.mubr.f32.gmra.mrb[0].mxu0 %v6768
      %v6936 = vpop.f32.mrb[0].mxu0
      %v6937 = vadd.f32 0.0, %v6936
      %v6938 = vpop.f32.mrb[0].mxu0
      %6939 = vmatprep.mubr.f32.mxu0 0.0
      %6940 = vmatmul.mubr.f32.gmra.mrb[0].mxu0 %v6770
      %v6941 = vpop.f32.mrb[0].mxu0
      %v6942 = vadd.f32 0.0, %v6941
      %v6943 = vpop.f32.mrb[0].mxu0
      %6944 = vmatprep.mubr.f32.mxu0 0.0
      %6945 = vmatmul.mubr.f32.gmra.mrb[0].mxu0 %v6772
      %v6946 = vpop.f32.mrb[0].mxu0
      %v6947 = vadd.f32 0.0, %v6946
      %v6948 = vpop.f32.mrb[0].mxu0
      %6949 = vmatprep.mubr.f32.mxu0 0.0
      %6950 = vmatmul.mubr.f32.gmra.mrb[0].mxu0 %v6774
      %v6951 = vpop.f32.mrb[0].mxu0
      %v6952 = vadd.f32 0.0, %v6951
      %v6953 = vpop.f32.mrb[0].mxu0
      %6954 = vmatprep.mubr.f32.mxu0 0.0
      %6955 = vmatmul.mubr.f32.gmra.mrb[0].mxu0 %v6776
      %v6956 = vpop.f32.mrb[0].mxu0
      %v6957 = vadd.f32 0.0, %v6956
      %v6958 = vpop.f32.mrb[0].mxu0
      %6959 = vmatprep.mubr.f32.mxu0 0.0
      %6960 = vmatmul.mubr.f32.gmra.mrb[0].mxu0 %v6778
      %v6961 = vpop.f32.mrb[0].mxu0
      %v6962 = vadd.f32 0.0, %v6961
      %v6963 = vpop.f32.mrb[0].mxu0
      %6964 = vmatprep.mubr.f32.mxu0 0.0
      %6965 = vmatmul.mubr.f32.gmra.mrb[0].mxu0 %v6780
      %v6966 = vpop.f32.mrb[0].mxu0
      %v6967 = vadd.f32 0.0, %v6966
      %v6968 = vpop.f32.mrb[0].mxu0
      %6969 = vmatprep.mubr.f32.mxu0 0.0
      %6970 = vmatmul.mubr.f32.gmra.mrb[0].mxu0 %v6782
      %v6971 = vpop.f32.mrb[0].mxu0
      %v6972 = vadd.f32 0.0, %v6971
      %v6973 = vpop.f32.mrb[0].mxu0
      %6974 = vmatprep.mubr.f32.mxu0 0.0
      %6975 = vmatmul.mubr.f32.gmra.mrb[0].mxu0 %v6784
      %v6976 = vpop.f32.mrb[0].mxu0
      %v6977 = vadd.f32 0.0, %v6976
      %v6978 = vpop.f32.mrb[0].mxu0
      %6979 = vmatprep.mubr.f32.mxu0 0.0
      %6980 = vmatmul.mubr.f32.gmra.mrb[0].mxu0 %v6786
      %v6981 = vpop.f32.mrb[0].mxu0
      %v6982 = vadd.f32 0.0, %v6981
      %v6983 = vpop.f32.mrb[0].mxu0
      %6984 = vmatprep.mubr.f32.mxu0 0.0
      %6985 = vmatmul.mubr.f32.gmra.mrb[0].mxu0 %v6788
      %v6986 = vpop.f32.mrb[0].mxu0
      %v6987 = vadd.f32 0.0, %v6986
      %v6988 = vpop.f32.mrb[0].mxu0
      %6989 = vmatprep.mubr.f32.mxu0 0.0
      %6990 = vmatmul.mubr.f32.gmra.mrb[0].mxu0 %v6790
      %v6991 = vpop.f32.mrb[0].mxu0
      %v6992 = vadd.f32 0.0, %v6991
      %v6993 = vpop.f32.mrb[0].mxu0
      %6994 = vmatprep.mubr.f32.mxu0 0.0
      %6995 = vmatmul.mubr.f32.gmra.mrb[0].mxu0 %v6792
      %v6996 = vpop.f32.mrb[0].mxu0
      %v6997 = vadd.f32 0.0, %v6996
      %v6998 = vpop.f32.mrb[0].mxu0
      %6999 = vmatprep.mubr.f32.mxu0 0.0
      %7000 = vmatmul.mubr.f32.gmra.mrb[0].mxu0 %v6794
      %v7001 = vpop.f32.mrb[0].mxu0
      %v7002 = vadd.f32 0.0, %v7001
      %v7003 = vpop.f32.mrb[0].mxu0
      %7004 = vmatprep.mubr.f32.mxu0 0.0
      %7005 = vmatmul.mubr.f32.gmra.mrb[0].mxu0 %v6796
      %v7006 = vpop.f32.mrb[0].mxu0
      %v7007 = vadd.f32 0.0, %v7006
      %v7008 = vpop.f32.mrb[0].mxu0
      %7009 = vmatprep.mubr.f32.mxu0 0.0
      %7010 = vmatmul.mubr.f32.gmra.mrb[0].mxu0 %v6798
      %v7011 = vpop.f32.mrb[0].mxu0
      %v7012 = vadd.f32 0.0, %v7011
      %v7013 = vpop.f32.mrb[0].mxu0
      %7014 = vmatprep.mubr.f32.mxu0 0.0
      %7015 = vmatmul.mubr.f32.gmra.mrb[0].mxu0 %v6800
      %v7016 = vpop.f32.mrb[0].mxu0
      %v7017 = vadd.f32 0.0, %v7016
      %v7018 = vpop.f32.mrb[0].mxu0
      %7019 = vmatprep.mubr.f32.mxu0 0.0
      %7020 = vmatmul.mubr.f32.gmra.mrb[0].mxu0 %v6802
      %v7021 = vpop.f32.mrb[0].mxu0
      %v7022 = vadd.f32 0.0, %v7021
      %v7023 = vpop.f32.mrb[0].mxu0
      %7024 = vmatprep.mubr.f32.mxu0 0.0
      %7025 = vmatmul.mubr.f32.gmra.mrb[0].mxu0 %v6804
      %v7026 = vpop.f32.mrb[0].mxu0
      %v7027 = vadd.f32 0.0, %v7026
      %v7028 = vpop.f32.mrb[0].mxu0
      %7029 = vmatprep.mubr.f32.mxu0 0.0
      %7030 = vmatmul.mubr.f32.gmra.mrb[0].mxu0 %v6806
      %v7031 = vpop.f32.mrb[0].mxu0
      %v7032 = vadd.f32 0.0, %v7031
      %v7033 = vpop.f32.mrb[0].mxu0
      %7034 = vmatprep.mubr.f32.mxu0 0.0
      %7035 = vmatmul.mubr.f32.gmra.mrb[0].mxu0 %v6808
      %v7036 = vpop.f32.mrb[0].mxu0
      %v7037 = vadd.f32 0.0, %v7036
      %v7038 = vpop.f32.mrb[0].mxu0
      %7039 = vmatprep.mubr.f32.mxu0 0.0
      %7040 = vmatmul.mubr.f32.gmra.mrb[0].mxu0 %v6810
      %v7041 = vpop.f32.mrb[0].mxu0
      %v7042 = vadd.f32 0.0, %v7041
      %v7043 = vpop.f32.mrb[0].mxu0
      %7044 = vmatprep.mubr.f32.mxu0 0.0
      %7045 = vmatmul.mubr.f32.gmra.mrb[0].mxu0 %v6812
      %v7046 = vpop.f32.mrb[0].mxu0
      %v7047 = vadd.f32 0.0, %v7046
      %v7048 = vpop.f32.mrb[0].mxu0
      %7049 = vmatprep.mubr.f32.mxu0 0.0
      %7050 = vmatmul.mubr.f32.gmra.mrb[0].mxu0 %v6814
      %v7051 = vpop.f32.mrb[0].mxu0
      %v7052 = vadd.f32 0.0, %v7051
      %v7053 = vpop.f32.mrb[0].mxu0
      %7054 = vmatprep.mubr.f32.mxu0 0.0
      %7055 = vmatmul.mubr.f32.gmra.mrb[0].mxu0 %v6816
      %v7056 = vpop.f32.mrb[0].mxu0
      %v7057 = vadd.f32 0.0, %v7056
      %v7058 = vpop.f32.mrb[0].mxu0
      %7059 = vmatprep.mubr.f32.mxu0 0.0
      %7060 = vmatmul.mubr.f32.gmra.mrb[0].mxu0 %v6818
      %v7061 = vpop.f32.mrb[0].mxu0
      %v7062 = vadd.f32 0.0, %v7061
      %v7063 = vpop.f32.mrb[0].mxu0
      %7064 = vmatprep.mubr.f32.mxu0 0.0
      %7065 = vmatmul.mubr.f32.gmra.mrb[0].mxu0 %v6820
      %v7066 = vpop.f32.mrb[0].mxu0
      %v7067 = vadd.f32 0.0, %v7066
      %v7068 = vpop.f32.mrb[0].mxu0
      %7069 = vdwg.mxu0
      %v7070 = vadd.f32 %v6560, %v6892
      %v7071 = vadd.f32 %v6561, %v6897
      %v7072 = vadd.f32 %v6562, %v6902
      %v7073 = vadd.f32 %v6563, %v6907
      %v7074 = vadd.f32 %v6564, %v6912
      %v7075 = vadd.f32 %v6565, %v6917
      %v7076 = vadd.f32 %v6566, %v6922
      %v7077 = vadd.f32 %v6567, %v6927
      %v7078 = vadd.f32 %v6568, %v6932
      %v7079 = vadd.f32 %v6569, %v6937
      %v7080 = vadd.f32 %v6570, %v6942
      %v7081 = vadd.f32 %v6571, %v6947
      %v7082 = vadd.f32 %v6572, %v6952
      %v7083 = vadd.f32 %v6573, %v6957
      %v7084 = vadd.f32 %v6574, %v6962
      %v7085 = vadd.f32 %v6575, %v6967
      %v7086 = vadd.f32 %v6576, %v6972
      %v7087 = vadd.f32 %v6577, %v6977
      %v7088 = vadd.f32 %v6578, %v6982
      %v7089 = vadd.f32 %v6579, %v6987
      %v7090 = vadd.f32 %v6580, %v6992
      %v7091 = vadd.f32 %v6581, %v6997
      %v7092 = vadd.f32 %v6582, %v7002
      %v7093 = vadd.f32 %v6583, %v7007
      %v7094 = vadd.f32 %v6584, %v7012
      %v7095 = vadd.f32 %v6585, %v7017
      %v7096 = vadd.f32 %v6586, %v7022
      %v7097 = vadd.f32 %v6587, %v7027
      %v7098 = vadd.f32 %v6588, %v7032
      %v7099 = vadd.f32 %v6589, %v7037
      %v7100 = vadd.f32 %v6590, %v7042
      %v7101 = vadd.f32 %v6591, %v7047
      %v7102 = vadd.f32 %v6592, %v7052
      %v7103 = vadd.f32 %v6593, %v7057
      %v7104 = vadd.f32 %v6594, %v7062
      %v7105 = vadd.f32 %v6595, %v7067
      %7142 = vrot.lane.b32.xlu0 %v7070, 126
      %v7143 = vpop.permute.xlu0 %7142
      %7144 = vrot.lane.b32.xlu0 %v7071, 126
      %v7145 = vpop.permute.xlu0 %7144
      %7146 = vrot.lane.b32.xlu0 %v7072, 126
      %v7147 = vpop.permute.xlu0 %7146
      %7148 = vrot.lane.b32.xlu0 %v7073, 126
      %v7149 = vpop.permute.xlu0 %7148
      %7150 = vrot.lane.b32.xlu0 %v7074, 126
      %v7151 = vpop.permute.xlu0 %7150
      %7152 = vrot.lane.b32.xlu0 %v7075, 126
      %v7153 = vpop.permute.xlu0 %7152
      %7154 = vrot.lane.b32.xlu0 %v7076, 126
      %v7155 = vpop.permute.xlu0 %7154
      %7156 = vrot.lane.b32.xlu0 %v7077, 126
      %v7157 = vpop.permute.xlu0 %7156
      %7158 = vrot.lane.b32.xlu0 %v7078, 126
      %v7159 = vpop.permute.xlu0 %7158
      %7160 = vrot.lane.b32.xlu0 %v7079, 126
      %v7161 = vpop.permute.xlu0 %7160
      %7162 = vrot.lane.b32.xlu0 %v7080, 126
      %v7163 = vpop.permute.xlu0 %7162
      %7164 = vrot.lane.b32.xlu0 %v7081, 126
      %v7165 = vpop.permute.xlu0 %7164
      %7166 = vrot.lane.b32.xlu0 %v7082, 126
      %v7167 = vpop.permute.xlu0 %7166
      %7168 = vrot.lane.b32.xlu0 %v7083, 126
      %v7169 = vpop.permute.xlu0 %7168
      %7170 = vrot.lane.b32.xlu0 %v7084, 126
      %v7171 = vpop.permute.xlu0 %7170
      %7172 = vrot.lane.b32.xlu0 %v7085, 126
      %v7173 = vpop.permute.xlu0 %7172
      %7174 = vrot.lane.b32.xlu0 %v7086, 126
      %v7175 = vpop.permute.xlu0 %7174
      %7176 = vrot.lane.b32.xlu0 %v7087, 126
      %v7177 = vpop.permute.xlu0 %7176
      %7178 = vrot.lane.b32.xlu0 %v7088, 126
      %v7179 = vpop.permute.xlu0 %7178
      %7180 = vrot.lane.b32.xlu0 %v7089, 126
      %v7181 = vpop.permute.xlu0 %7180
      %7182 = vrot.lane.b32.xlu0 %v7090, 126
      %v7183 = vpop.permute.xlu0 %7182
      %7184 = vrot.lane.b32.xlu0 %v7091, 126
      %v7185 = vpop.permute.xlu0 %7184
      %7186 = vrot.lane.b32.xlu0 %v7092, 126
      %v7187 = vpop.permute.xlu0 %7186
      %7188 = vrot.lane.b32.xlu0 %v7093, 126
      %v7189 = vpop.permute.xlu0 %7188
      %7190 = vrot.lane.b32.xlu0 %v7094, 126
      %v7191 = vpop.permute.xlu0 %7190
      %7192 = vrot.lane.b32.xlu0 %v7095, 126
      %v7193 = vpop.permute.xlu0 %7192
      %7194 = vrot.lane.b32.xlu0 %v7096, 126
      %v7195 = vpop.permute.xlu0 %7194
      %7196 = vrot.lane.b32.xlu0 %v7097, 126
      %v7197 = vpop.permute.xlu0 %7196
      %7198 = vrot.lane.b32.xlu0 %v7098, 126
      %v7199 = vpop.permute.xlu0 %7198
      %7200 = vrot.lane.b32.xlu0 %v7099, 126
      %v7201 = vpop.permute.xlu0 %7200
      %7202 = vrot.lane.b32.xlu0 %v7100, 126
      %v7203 = vpop.permute.xlu0 %7202
      %7204 = vrot.lane.b32.xlu0 %v7101, 126
      %v7205 = vpop.permute.xlu0 %7204
      %7206 = vrot.lane.b32.xlu0 %v7102, 126
      %v7207 = vpop.permute.xlu0 %7206
      %7208 = vrot.lane.b32.xlu0 %v7103, 126
      %v7209 = vpop.permute.xlu0 %7208
      %7210 = vrot.lane.b32.xlu0 %v7104, 126
      %v7211 = vpop.permute.xlu0 %7210
      %7212 = vrot.lane.b32.xlu0 %v7105, 126
      %v7213 = vpop.permute.xlu0 %7212
      %v7250 = vrot.slane %v7143, 1
      %v7251 = vrot.slane %v7145, 1
      %v7252 = vrot.slane %v7147, 1
      %v7253 = vrot.slane %v7149, 1
      %v7254 = vrot.slane %v7151, 1
      %v7255 = vrot.slane %v7153, 1
      %v7256 = vrot.slane %v7155, 1
      %v7257 = vrot.slane %v7157, 1
      %v7258 = vrot.slane %v7159, 1
      %v7259 = vrot.slane %v7161, 1
      %v7260 = vrot.slane %v7163, 1
      %v7261 = vrot.slane %v7165, 1
      %v7262 = vrot.slane %v7167, 1
      %v7263 = vrot.slane %v7169, 1
      %v7264 = vrot.slane %v7171, 1
      %v7265 = vrot.slane %v7173, 1
      %v7266 = vrot.slane %v7175, 1
      %v7267 = vrot.slane %v7177, 1
      %v7268 = vrot.slane %v7179, 1
      %v7269 = vrot.slane %v7181, 1
      %v7270 = vrot.slane %v7183, 1
      %v7271 = vrot.slane %v7185, 1
      %v7272 = vrot.slane %v7187, 1
      %v7273 = vrot.slane %v7189, 1
      %v7274 = vrot.slane %v7191, 1
      %v7275 = vrot.slane %v7193, 1
      %v7276 = vrot.slane %v7195, 1
      %v7277 = vrot.slane %v7197, 1
      %v7278 = vrot.slane %v7199, 1
      %v7279 = vrot.slane %v7201, 1
      %v7280 = vrot.slane %v7203, 1
      %v7281 = vrot.slane %v7205, 1
      %v7282 = vrot.slane %v7207, 1
      %v7283 = vrot.slane %v7209, 1
      %v7284 = vrot.slane %v7211, 1
      %v7285 = vrot.slane %v7213, 1
      %v7286 = vlaneseq
      %v7287 = vshrl.u32 %v7286, 7
      %vm7288 = vcmp.lt.s32.totalorder %v7287, 7
      %v7289 = vsel %vm7288, %v7284, %v7285
      %v7290 = vsel %vm7288, %v7283, %v7284
      %v7291 = vsel %vm7288, %v7282, %v7283
      %v7292 = vsel %vm7288, %v7281, %v7282
      %v7293 = vsel %vm7288, %v7280, %v7281
      %v7294 = vsel %vm7288, %v7279, %v7280
      %v7295 = vsel %vm7288, %v7278, %v7279
      %v7296 = vsel %vm7288, %v7277, %v7278
      %v7297 = vsel %vm7288, %v7276, %v7277
      %v7298 = vsel %vm7288, %v7275, %v7276
      %v7299 = vsel %vm7288, %v7274, %v7275
      %v7300 = vsel %vm7288, %v7273, %v7274
      %v7301 = vsel %vm7288, %v7272, %v7273
      %v7302 = vsel %vm7288, %v7271, %v7272
      %v7303 = vsel %vm7288, %v7270, %v7271
      %v7304 = vsel %vm7288, %v7269, %v7270
      %v7305 = vsel %vm7288, %v7268, %v7269
      %v7306 = vsel %vm7288, %v7267, %v7268
      %v7307 = vsel %vm7288, %v7266, %v7267
      %v7308 = vsel %vm7288, %v7265, %v7266
      %v7309 = vsel %vm7288, %v7264, %v7265
      %v7310 = vsel %vm7288, %v7263, %v7264
      %v7311 = vsel %vm7288, %v7262, %v7263
      %v7312 = vsel %vm7288, %v7261, %v7262
      %v7313 = vsel %vm7288, %v7260, %v7261
      %v7314 = vsel %vm7288, %v7259, %v7260
      %v7315 = vsel %vm7288, %v7258, %v7259
      %v7316 = vsel %vm7288, %v7257, %v7258
      %v7317 = vsel %vm7288, %v7256, %v7257
      %v7318 = vsel %vm7288, %v7255, %v7256
      %v7319 = vsel %vm7288, %v7254, %v7255
      %v7320 = vsel %vm7288, %v7253, %v7254
      %v7321 = vsel %vm7288, %v7252, %v7253
      %v7322 = vsel %vm7288, %v7251, %v7252
      %v7323 = vsel %vm7288, %v7250, %v7251
      %v7324 = vsel %vm7288, %v7285, %v7250
      %v7325 = vadd.f32 %v7070, %v7323
      %v7326 = vadd.f32 %v7071, %v7322
      %v7327 = vadd.f32 %v7072, %v7321
      %v7328 = vadd.f32 %v7073, %v7320
      %v7329 = vadd.f32 %v7074, %v7319
      %v7330 = vadd.f32 %v7075, %v7318
      %v7331 = vadd.f32 %v7076, %v7317
      %v7332 = vadd.f32 %v7077, %v7316
      %v7333 = vadd.f32 %v7078, %v7315
      %v7334 = vadd.f32 %v7079, %v7314
      %v7335 = vadd.f32 %v7080, %v7313
      %v7336 = vadd.f32 %v7081, %v7312
      %v7337 = vadd.f32 %v7082, %v7311
      %v7338 = vadd.f32 %v7083, %v7310
      %v7339 = vadd.f32 %v7084, %v7309
      %v7340 = vadd.f32 %v7085, %v7308
      %v7341 = vadd.f32 %v7086, %v7307
      %v7342 = vadd.f32 %v7087, %v7306
      %v7343 = vadd.f32 %v7088, %v7305
      %v7344 = vadd.f32 %v7089, %v7304
      %v7345 = vadd.f32 %v7090, %v7303
      %v7346 = vadd.f32 %v7091, %v7302
      %v7347 = vadd.f32 %v7092, %v7301
      %v7348 = vadd.f32 %v7093, %v7300
      %v7349 = vadd.f32 %v7094, %v7299
      %v7350 = vadd.f32 %v7095, %v7298
      %v7351 = vadd.f32 %v7096, %v7297
      %v7352 = vadd.f32 %v7097, %v7296
      %v7353 = vadd.f32 %v7098, %v7295
      %v7354 = vadd.f32 %v7099, %v7294
      %v7355 = vadd.f32 %v7100, %v7293
      %v7356 = vadd.f32 %v7101, %v7292
      %v7357 = vadd.f32 %v7102, %v7291
      %v7358 = vadd.f32 %v7103, %v7290
      %v7359 = vadd.f32 %v7104, %v7289
      %v7360 = vadd.f32 %v7105, %v7324
      %7361 = vrot.lane.b32.xlu0 %v7070, 124
      %v7362 = vpop.permute.xlu0 %7361
      %7363 = vrot.lane.b32.xlu0 %v7071, 124
      %v7364 = vpop.permute.xlu0 %7363
      %7365 = vrot.lane.b32.xlu0 %v7072, 124
      %v7366 = vpop.permute.xlu0 %7365
      %7367 = vrot.lane.b32.xlu0 %v7073, 124
      %v7368 = vpop.permute.xlu0 %7367
      %7369 = vrot.lane.b32.xlu0 %v7074, 124
      %v7370 = vpop.permute.xlu0 %7369
      %7371 = vrot.lane.b32.xlu0 %v7075, 124
      %v7372 = vpop.permute.xlu0 %7371
      %7373 = vrot.lane.b32.xlu0 %v7076, 124
      %v7374 = vpop.permute.xlu0 %7373
      %7375 = vrot.lane.b32.xlu0 %v7077, 124
      %v7376 = vpop.permute.xlu0 %7375
      %7377 = vrot.lane.b32.xlu0 %v7078, 124
      %v7378 = vpop.permute.xlu0 %7377
      %7379 = vrot.lane.b32.xlu0 %v7079, 124
      %v7380 = vpop.permute.xlu0 %7379
      %7381 = vrot.lane.b32.xlu0 %v7080, 124
      %v7382 = vpop.permute.xlu0 %7381
      %7383 = vrot.lane.b32.xlu0 %v7081, 124
      %v7384 = vpop.permute.xlu0 %7383
      %7385 = vrot.lane.b32.xlu0 %v7082, 124
      %v7386 = vpop.permute.xlu0 %7385
      %7387 = vrot.lane.b32.xlu0 %v7083, 124
      %v7388 = vpop.permute.xlu0 %7387
      %7389 = vrot.lane.b32.xlu0 %v7084, 124
      %v7390 = vpop.permute.xlu0 %7389
      %7391 = vrot.lane.b32.xlu0 %v7085, 124
      %v7392 = vpop.permute.xlu0 %7391
      %7393 = vrot.lane.b32.xlu0 %v7086, 124
      %v7394 = vpop.permute.xlu0 %7393
      %7395 = vrot.lane.b32.xlu0 %v7087, 124
      %v7396 = vpop.permute.xlu0 %7395
      %7397 = vrot.lane.b32.xlu0 %v7088, 124
      %v7398 = vpop.permute.xlu0 %7397
      %7399 = vrot.lane.b32.xlu0 %v7089, 124
      %v7400 = vpop.permute.xlu0 %7399
      %7401 = vrot.lane.b32.xlu0 %v7090, 124
      %v7402 = vpop.permute.xlu0 %7401
      %7403 = vrot.lane.b32.xlu0 %v7091, 124
      %v7404 = vpop.permute.xlu0 %7403
      %7405 = vrot.lane.b32.xlu0 %v7092, 124
      %v7406 = vpop.permute.xlu0 %7405
      %7407 = vrot.lane.b32.xlu0 %v7093, 124
      %v7408 = vpop.permute.xlu0 %7407
      %7409 = vrot.lane.b32.xlu0 %v7094, 124
      %v7410 = vpop.permute.xlu0 %7409
      %7411 = vrot.lane.b32.xlu0 %v7095, 124
      %v7412 = vpop.permute.xlu0 %7411
      %7413 = vrot.lane.b32.xlu0 %v7096, 124
      %v7414 = vpop.permute.xlu0 %7413
      %7415 = vrot.lane.b32.xlu0 %v7097, 124
      %v7416 = vpop.permute.xlu0 %7415
      %7417 = vrot.lane.b32.xlu0 %v7098, 124
      %v7418 = vpop.permute.xlu0 %7417
      %7419 = vrot.lane.b32.xlu0 %v7099, 124
      %v7420 = vpop.permute.xlu0 %7419
      %7421 = vrot.lane.b32.xlu0 %v7100, 124
      %v7422 = vpop.permute.xlu0 %7421
      %7423 = vrot.lane.b32.xlu0 %v7101, 124
      %v7424 = vpop.permute.xlu0 %7423
      %7425 = vrot.lane.b32.xlu0 %v7102, 124
      %v7426 = vpop.permute.xlu0 %7425
      %7427 = vrot.lane.b32.xlu0 %v7103, 124
      %v7428 = vpop.permute.xlu0 %7427
      %7429 = vrot.lane.b32.xlu0 %v7104, 124
      %v7430 = vpop.permute.xlu0 %7429
      %7431 = vrot.lane.b32.xlu0 %v7105, 124
      %v7432 = vpop.permute.xlu0 %7431
      %v7469 = vrot.slane %v7362, 2
      %v7470 = vrot.slane %v7364, 2
      %v7471 = vrot.slane %v7366, 2
      %v7472 = vrot.slane %v7368, 2
      %v7473 = vrot.slane %v7370, 2
      %v7474 = vrot.slane %v7372, 2
      %v7475 = vrot.slane %v7374, 2
      %v7476 = vrot.slane %v7376, 2
      %v7477 = vrot.slane %v7378, 2
      %v7478 = vrot.slane %v7380, 2
      %v7479 = vrot.slane %v7382, 2
      %v7480 = vrot.slane %v7384, 2
      %v7481 = vrot.slane %v7386, 2
      %v7482 = vrot.slane %v7388, 2
      %v7483 = vrot.slane %v7390, 2
      %v7484 = vrot.slane %v7392, 2
      %v7485 = vrot.slane %v7394, 2
      %v7486 = vrot.slane %v7396, 2
      %v7487 = vrot.slane %v7398, 2
      %v7488 = vrot.slane %v7400, 2
      %v7489 = vrot.slane %v7402, 2
      %v7490 = vrot.slane %v7404, 2
      %v7491 = vrot.slane %v7406, 2
      %v7492 = vrot.slane %v7408, 2
      %v7493 = vrot.slane %v7410, 2
      %v7494 = vrot.slane %v7412, 2
      %v7495 = vrot.slane %v7414, 2
      %v7496 = vrot.slane %v7416, 2
      %v7497 = vrot.slane %v7418, 2
      %v7498 = vrot.slane %v7420, 2
      %v7499 = vrot.slane %v7422, 2
      %v7500 = vrot.slane %v7424, 2
      %v7501 = vrot.slane %v7426, 2
      %v7502 = vrot.slane %v7428, 2
      %v7503 = vrot.slane %v7430, 2
      %v7504 = vrot.slane %v7432, 2
      %vm7505 = vcmp.lt.s32.totalorder %v7287, 6
      %v7506 = vsel %vm7505, %v7503, %v7504
      %v7507 = vsel %vm7505, %v7502, %v7503
      %v7508 = vsel %vm7505, %v7501, %v7502
      %v7509 = vsel %vm7505, %v7500, %v7501
      %v7510 = vsel %vm7505, %v7499, %v7500
      %v7511 = vsel %vm7505, %v7498, %v7499
      %v7512 = vsel %vm7505, %v7497, %v7498
      %v7513 = vsel %vm7505, %v7496, %v7497
      %v7514 = vsel %vm7505, %v7495, %v7496
      %v7515 = vsel %vm7505, %v7494, %v7495
      %v7516 = vsel %vm7505, %v7493, %v7494
      %v7517 = vsel %vm7505, %v7492, %v7493
      %v7518 = vsel %vm7505, %v7491, %v7492
      %v7519 = vsel %vm7505, %v7490, %v7491
      %v7520 = vsel %vm7505, %v7489, %v7490
      %v7521 = vsel %vm7505, %v7488, %v7489
      %v7522 = vsel %vm7505, %v7487, %v7488
      %v7523 = vsel %vm7505, %v7486, %v7487
      %v7524 = vsel %vm7505, %v7485, %v7486
      %v7525 = vsel %vm7505, %v7484, %v7485
      %v7526 = vsel %vm7505, %v7483, %v7484
      %v7527 = vsel %vm7505, %v7482, %v7483
      %v7528 = vsel %vm7505, %v7481, %v7482
      %v7529 = vsel %vm7505, %v7480, %v7481
      %v7530 = vsel %vm7505, %v7479, %v7480
      %v7531 = vsel %vm7505, %v7478, %v7479
      %v7532 = vsel %vm7505, %v7477, %v7478
      %v7533 = vsel %vm7505, %v7476, %v7477
      %v7534 = vsel %vm7505, %v7475, %v7476
      %v7535 = vsel %vm7505, %v7474, %v7475
      %v7536 = vsel %vm7505, %v7473, %v7474
      %v7537 = vsel %vm7505, %v7472, %v7473
      %v7538 = vsel %vm7505, %v7471, %v7472
      %v7539 = vsel %vm7505, %v7470, %v7471
      %v7540 = vsel %vm7505, %v7469, %v7470
      %v7541 = vsel %vm7505, %v7504, %v7469
      %v7542 = vadd.f32 %v7325, %v7540
      %v7543 = vadd.f32 %v7326, %v7539
      %v7544 = vadd.f32 %v7327, %v7538
      %v7545 = vadd.f32 %v7328, %v7537
      %v7546 = vadd.f32 %v7329, %v7536
      %v7547 = vadd.f32 %v7330, %v7535
      %v7548 = vadd.f32 %v7331, %v7534
      %v7549 = vadd.f32 %v7332, %v7533
      %v7550 = vadd.f32 %v7333, %v7532
      %v7551 = vadd.f32 %v7334, %v7531
      %v7552 = vadd.f32 %v7335, %v7530
      %v7553 = vadd.f32 %v7336, %v7529
      %v7554 = vadd.f32 %v7337, %v7528
      %v7555 = vadd.f32 %v7338, %v7527
      %v7556 = vadd.f32 %v7339, %v7526
      %v7557 = vadd.f32 %v7340, %v7525
      %v7558 = vadd.f32 %v7341, %v7524
      %v7559 = vadd.f32 %v7342, %v7523
      %v7560 = vadd.f32 %v7343, %v7522
      %v7561 = vadd.f32 %v7344, %v7521
      %v7562 = vadd.f32 %v7345, %v7520
      %v7563 = vadd.f32 %v7346, %v7519
      %v7564 = vadd.f32 %v7347, %v7518
      %v7565 = vadd.f32 %v7348, %v7517
      %v7566 = vadd.f32 %v7349, %v7516
      %v7567 = vadd.f32 %v7350, %v7515
      %v7568 = vadd.f32 %v7351, %v7514
      %v7569 = vadd.f32 %v7352, %v7513
      %v7570 = vadd.f32 %v7353, %v7512
      %v7571 = vadd.f32 %v7354, %v7511
      %v7572 = vadd.f32 %v7355, %v7510
      %v7573 = vadd.f32 %v7356, %v7509
      %v7574 = vadd.f32 %v7357, %v7508
      %v7575 = vadd.f32 %v7358, %v7507
      %v7576 = vadd.f32 %v7359, %v7506
      %v7577 = vadd.f32 %v7360, %v7541
      %v7578 = vld [vmem:[%s8] sm:$0x1]
      %v7580 = vlaneseq
      %v7581 = vshrl.u32 %v7580, 7
      %v7582 = vsub.s32 0, %v7581
      %v7583 = vrot.slane %v7578, %v7582
      %v7585 = vadd.f32 %v7542, %v7583
      %v7586 = vadd.f32 %v7543, %v7583
      %v7587 = vadd.f32 %v7544, %v7583
      %v7588 = vadd.f32 %v7545, %v7583
      %v7589 = vadd.f32 %v7546, %v7583
      %v7590 = vadd.f32 %v7547, %v7583
      %v7591 = vadd.f32 %v7548, %v7583
      %v7592 = vadd.f32 %v7549, %v7583
      %v7593 = vadd.f32 %v7550, %v7583
      %v7594 = vadd.f32 %v7551, %v7583
      %v7595 = vadd.f32 %v7552, %v7583
      %v7596 = vadd.f32 %v7553, %v7583
      %v7597 = vadd.f32 %v7554, %v7583
      %v7598 = vadd.f32 %v7555, %v7583
      %v7599 = vadd.f32 %v7556, %v7583
      %v7600 = vadd.f32 %v7557, %v7583
      %v7601 = vadd.f32 %v7558, %v7583
      %v7602 = vadd.f32 %v7559, %v7583
      %v7603 = vadd.f32 %v7560, %v7583
      %v7604 = vadd.f32 %v7561, %v7583
      %v7605 = vadd.f32 %v7562, %v7583
      %v7606 = vadd.f32 %v7563, %v7583
      %v7607 = vadd.f32 %v7564, %v7583
      %v7608 = vadd.f32 %v7565, %v7583
      %v7609 = vadd.f32 %v7566, %v7583
      %v7610 = vadd.f32 %v7567, %v7583
      %v7611 = vadd.f32 %v7568, %v7583
      %v7612 = vadd.f32 %v7569, %v7583
      %v7613 = vadd.f32 %v7570, %v7583
      %v7614 = vadd.f32 %v7571, %v7583
      %v7615 = vadd.f32 %v7572, %v7583
      %v7616 = vadd.f32 %v7573, %v7583
      %v7617 = vadd.f32 %v7574, %v7583
      %v7618 = vadd.f32 %v7575, %v7583
      %v7619 = vadd.f32 %v7576, %v7583
      %v7620 = vadd.f32 %v7577, %v7583
      %v7657 = vcombine.high %v7585, %v7585
      %v7659 = vunpack.c.l.s4 1983009808
      %v7660 = vunpack.c.0.s8 %v7659
      %v7661 = vlaneseq
      %v7662 = vshrl.u32 %v7661, 7
      %v7663 = vsub.s32 %v7660, %v7662
      %v7664 = vrot.slane %v7585, %v7663
      %v7666 = vunpack.c.l.s4 1983009808
      %v7667 = vunpack.c.0.s8 %v7666
      %v7668 = vlaneseq
      %v7669 = vshrl.u32 %v7668, 7
      %v7670 = vsub.s32 %v7667, %v7669
      %v7671 = vrot.slane %v7657, %v7670
      %v7672 = vcombine.high %v7664, %v7664
      %v7673 = vcombine.high %v7671, %v7671
      %v7674 = vcombine.high %v7586, %v7586
      %v7676 = vunpack.c.l.s4 1983009808
      %v7677 = vunpack.c.0.s8 %v7676
      %v7678 = vlaneseq
      %v7679 = vshrl.u32 %v7678, 7
      %v7680 = vsub.s32 %v7677, %v7679
      %v7681 = vrot.slane %v7586, %v7680
      %v7683 = vunpack.c.l.s4 1983009808
      %v7684 = vunpack.c.0.s8 %v7683
      %v7685 = vlaneseq
      %v7686 = vshrl.u32 %v7685, 7
      %v7687 = vsub.s32 %v7684, %v7686
      %v7688 = vrot.slane %v7674, %v7687
      %v7689 = vcombine.high %v7681, %v7681
      %v7690 = vcombine.high %v7688, %v7688
      %v7691 = vcombine.high %v7587, %v7587
      %v7693 = vunpack.c.l.s4 1983009808
      %v7694 = vunpack.c.0.s8 %v7693
      %v7695 = vlaneseq
      %v7696 = vshrl.u32 %v7695, 7
      %v7697 = vsub.s32 %v7694, %v7696
      %v7698 = vrot.slane %v7587, %v7697
      %v7700 = vunpack.c.l.s4 1983009808
      %v7701 = vunpack.c.0.s8 %v7700
      %v7702 = vlaneseq
      %v7703 = vshrl.u32 %v7702, 7
      %v7704 = vsub.s32 %v7701, %v7703
      %v7705 = vrot.slane %v7691, %v7704
      %v7706 = vcombine.high %v7698, %v7698
      %v7707 = vcombine.high %v7705, %v7705
      %v7708 = vcombine.high %v7588, %v7588
      %v7710 = vunpack.c.l.s4 1983009808
      %v7711 = vunpack.c.0.s8 %v7710
      %v7712 = vlaneseq
      %v7713 = vshrl.u32 %v7712, 7
      %v7714 = vsub.s32 %v7711, %v7713
      %v7715 = vrot.slane %v7588, %v7714
      %v7717 = vunpack.c.l.s4 1983009808
      %v7718 = vunpack.c.0.s8 %v7717
      %v7719 = vlaneseq
      %v7720 = vshrl.u32 %v7719, 7
      %v7721 = vsub.s32 %v7718, %v7720
      %v7722 = vrot.slane %v7708, %v7721
      %v7723 = vcombine.high %v7715, %v7715
      %v7724 = vcombine.high %v7722, %v7722
      %v7725 = vcombine.high %v7589, %v7589
      %v7727 = vunpack.c.l.s4 1983009808
      %v7728 = vunpack.c.0.s8 %v7727
      %v7729 = vlaneseq
      %v7730 = vshrl.u32 %v7729, 7
      %v7731 = vsub.s32 %v7728, %v7730
      %v7732 = vrot.slane %v7589, %v7731
      %v7734 = vunpack.c.l.s4 1983009808
      %v7735 = vunpack.c.0.s8 %v7734
      %v7736 = vlaneseq
      %v7737 = vshrl.u32 %v7736, 7
      %v7738 = vsub.s32 %v7735, %v7737
      %v7739 = vrot.slane %v7725, %v7738
      %v7740 = vcombine.high %v7739, %v7739
      %v7741 = vcombine.high %v7590, %v7590
      %v7743 = vunpack.c.l.s4 1983009808
      %v7744 = vunpack.c.0.s8 %v7743
      %v7745 = vlaneseq
      %v7746 = vshrl.u32 %v7745, 7
      %v7747 = vsub.s32 %v7744, %v7746
      %v7748 = vrot.slane %v7590, %v7747
      %v7750 = vunpack.c.l.s4 1983009808
      %v7751 = vunpack.c.0.s8 %v7750
      %v7752 = vlaneseq
      %v7753 = vshrl.u32 %v7752, 7
      %v7754 = vsub.s32 %v7751, %v7753
      %v7755 = vrot.slane %v7741, %v7754
      %v7756 = vcombine.high %v7748, %v7748
      %v7757 = vcombine.high %v7755, %v7755
      %v7758 = vcombine.high %v7591, %v7591
      %v7760 = vunpack.c.l.s4 1983009808
      %v7761 = vunpack.c.0.s8 %v7760
      %v7762 = vlaneseq
      %v7763 = vshrl.u32 %v7762, 7
      %v7764 = vsub.s32 %v7761, %v7763
      %v7765 = vrot.slane %v7591, %v7764
      %v7767 = vunpack.c.l.s4 1983009808
      %v7768 = vunpack.c.0.s8 %v7767
      %v7769 = vlaneseq
      %v7770 = vshrl.u32 %v7769, 7
      %v7771 = vsub.s32 %v7768, %v7770
      %v7772 = vrot.slane %v7758, %v7771
      %v7773 = vcombine.high %v7765, %v7765
      %v7774 = vcombine.high %v7772, %v7772
      %v7775 = vcombine.high %v7592, %v7592
      %v7777 = vunpack.c.l.s4 1983009808
      %v7778 = vunpack.c.0.s8 %v7777
      %v7779 = vlaneseq
      %v7780 = vshrl.u32 %v7779, 7
      %v7781 = vsub.s32 %v7778, %v7780
      %v7782 = vrot.slane %v7592, %v7781
      %v7784 = vunpack.c.l.s4 1983009808
      %v7785 = vunpack.c.0.s8 %v7784
      %v7786 = vlaneseq
      %v7787 = vshrl.u32 %v7786, 7
      %v7788 = vsub.s32 %v7785, %v7787
      %v7789 = vrot.slane %v7775, %v7788
      %v7790 = vcombine.high %v7782, %v7782
      %v7791 = vcombine.high %v7789, %v7789
      %v7792 = vcombine.high %v7593, %v7593
      %v7794 = vunpack.c.l.s4 1983009808
      %v7795 = vunpack.c.0.s8 %v7794
      %v7796 = vlaneseq
      %v7797 = vshrl.u32 %v7796, 7
      %v7798 = vsub.s32 %v7795, %v7797
      %v7799 = vrot.slane %v7593, %v7798
      %v7801 = vunpack.c.l.s4 1983009808
      %v7802 = vunpack.c.0.s8 %v7801
      %v7803 = vlaneseq
      %v7804 = vshrl.u32 %v7803, 7
      %v7805 = vsub.s32 %v7802, %v7804
      %v7806 = vrot.slane %v7792, %v7805
      %v7807 = vcombine.high %v7799, %v7799
      %v7808 = vcombine.high %v7594, %v7594
      %v7810 = vunpack.c.l.s4 1983009808
      %v7811 = vunpack.c.0.s8 %v7810
      %v7812 = vlaneseq
      %v7813 = vshrl.u32 %v7812, 7
      %v7814 = vsub.s32 %v7811, %v7813
      %v7815 = vrot.slane %v7594, %v7814
      %v7817 = vunpack.c.l.s4 1983009808
      %v7818 = vunpack.c.0.s8 %v7817
      %v7819 = vlaneseq
      %v7820 = vshrl.u32 %v7819, 7
      %v7821 = vsub.s32 %v7818, %v7820
      %v7822 = vrot.slane %v7808, %v7821
      %v7823 = vcombine.high %v7815, %v7815
      %v7824 = vcombine.high %v7822, %v7822
      %v7825 = vcombine.high %v7595, %v7595
      %v7827 = vunpack.c.l.s4 1983009808
      %v7828 = vunpack.c.0.s8 %v7827
      %v7829 = vlaneseq
      %v7830 = vshrl.u32 %v7829, 7
      %v7831 = vsub.s32 %v7828, %v7830
      %v7832 = vrot.slane %v7595, %v7831
      %v7834 = vunpack.c.l.s4 1983009808
      %v7835 = vunpack.c.0.s8 %v7834
      %v7836 = vlaneseq
      %v7837 = vshrl.u32 %v7836, 7
      %v7838 = vsub.s32 %v7835, %v7837
      %v7839 = vrot.slane %v7825, %v7838
      %v7840 = vcombine.high %v7832, %v7832
      %v7841 = vcombine.high %v7839, %v7839
      %v7842 = vcombine.high %v7596, %v7596
      %v7844 = vunpack.c.l.s4 1983009808
      %v7845 = vunpack.c.0.s8 %v7844
      %v7846 = vlaneseq
      %v7847 = vshrl.u32 %v7846, 7
      %v7848 = vsub.s32 %v7845, %v7847
      %v7849 = vrot.slane %v7596, %v7848
      %v7851 = vunpack.c.l.s4 1983009808
      %v7852 = vunpack.c.0.s8 %v7851
      %v7853 = vlaneseq
      %v7854 = vshrl.u32 %v7853, 7
      %v7855 = vsub.s32 %v7852, %v7854
      %v7856 = vrot.slane %v7842, %v7855
      %v7857 = vcombine.high %v7849, %v7849
      %v7858 = vcombine.high %v7856, %v7856
      %v7859 = vcombine.high %v7597, %v7597
      %v7861 = vunpack.c.l.s4 1983009808
      %v7862 = vunpack.c.0.s8 %v7861
      %v7863 = vlaneseq
      %v7864 = vshrl.u32 %v7863, 7
      %v7865 = vsub.s32 %v7862, %v7864
      %v7866 = vrot.slane %v7597, %v7865
      %v7868 = vunpack.c.l.s4 1983009808
      %v7869 = vunpack.c.0.s8 %v7868
      %v7870 = vlaneseq
      %v7871 = vshrl.u32 %v7870, 7
      %v7872 = vsub.s32 %v7869, %v7871
      %v7873 = vrot.slane %v7859, %v7872
      %v7874 = vcombine.high %v7866, %v7866
      %v7875 = vcombine.high %v7873, %v7873
      %v7876 = vcombine.high %v7598, %v7598
      %v7878 = vunpack.c.l.s4 1983009808
      %v7879 = vunpack.c.0.s8 %v7878
      %v7880 = vlaneseq
      %v7881 = vshrl.u32 %v7880, 7
      %v7882 = vsub.s32 %v7879, %v7881
      %v7883 = vrot.slane %v7598, %v7882
      %v7885 = vunpack.c.l.s4 1983009808
      %v7886 = vunpack.c.0.s8 %v7885
      %v7887 = vlaneseq
      %v7888 = vshrl.u32 %v7887, 7
      %v7889 = vsub.s32 %v7886, %v7888
      %v7890 = vrot.slane %v7876, %v7889
      %v7891 = vcombine.high %v7890, %v7890
      %v7892 = vcombine.high %v7599, %v7599
      %v7894 = vunpack.c.l.s4 1983009808
      %v7895 = vunpack.c.0.s8 %v7894
      %v7896 = vlaneseq
      %v7897 = vshrl.u32 %v7896, 7
      %v7898 = vsub.s32 %v7895, %v7897
      %v7899 = vrot.slane %v7599, %v7898
      %v7901 = vunpack.c.l.s4 1983009808
      %v7902 = vunpack.c.0.s8 %v7901
      %v7903 = vlaneseq
      %v7904 = vshrl.u32 %v7903, 7
      %v7905 = vsub.s32 %v7902, %v7904
      %v7906 = vrot.slane %v7892, %v7905
      %v7907 = vcombine.high %v7899, %v7899
      %v7908 = vcombine.high %v7906, %v7906
      %v7909 = vcombine.high %v7600, %v7600
      %v7911 = vunpack.c.l.s4 1983009808
      %v7912 = vunpack.c.0.s8 %v7911
      %v7913 = vlaneseq
      %v7914 = vshrl.u32 %v7913, 7
      %v7915 = vsub.s32 %v7912, %v7914
      %v7916 = vrot.slane %v7600, %v7915
      %v7918 = vunpack.c.l.s4 1983009808
      %v7919 = vunpack.c.0.s8 %v7918
      %v7920 = vlaneseq
      %v7921 = vshrl.u32 %v7920, 7
      %v7922 = vsub.s32 %v7919, %v7921
      %v7923 = vrot.slane %v7909, %v7922
      %v7924 = vcombine.high %v7916, %v7916
      %v7925 = vcombine.high %v7923, %v7923
      %v7926 = vcombine.high %v7601, %v7601
      %v7928 = vunpack.c.l.s4 1983009808
      %v7929 = vunpack.c.0.s8 %v7928
      %v7930 = vlaneseq
      %v7931 = vshrl.u32 %v7930, 7
      %v7932 = vsub.s32 %v7929, %v7931
      %v7933 = vrot.slane %v7601, %v7932
      %v7935 = vunpack.c.l.s4 1983009808
      %v7936 = vunpack.c.0.s8 %v7935
      %v7937 = vlaneseq
      %v7938 = vshrl.u32 %v7937, 7
      %v7939 = vsub.s32 %v7936, %v7938
      %v7940 = vrot.slane %v7926, %v7939
      %v7941 = vcombine.high %v7933, %v7933
      %v7942 = vcombine.high %v7940, %v7940
      %v7943 = vcombine.high %v7602, %v7602
      %v7945 = vunpack.c.l.s4 1983009808
      %v7946 = vunpack.c.0.s8 %v7945
      %v7947 = vlaneseq
      %v7948 = vshrl.u32 %v7947, 7
      %v7949 = vsub.s32 %v7946, %v7948
      %v7950 = vrot.slane %v7602, %v7949
      %v7952 = vunpack.c.l.s4 1983009808
      %v7953 = vunpack.c.0.s8 %v7952
      %v7954 = vlaneseq
      %v7955 = vshrl.u32 %v7954, 7
      %v7956 = vsub.s32 %v7953, %v7955
      %v7957 = vrot.slane %v7943, %v7956
      %v7958 = vcombine.high %v7950, %v7950
      %v7959 = vcombine.high %v7603, %v7603
      %v7961 = vunpack.c.l.s4 1983009808
      %v7962 = vunpack.c.0.s8 %v7961
      %v7963 = vlaneseq
      %v7964 = vshrl.u32 %v7963, 7
      %v7965 = vsub.s32 %v7962, %v7964
      %v7966 = vrot.slane %v7603, %v7965
      %v7968 = vunpack.c.l.s4 1983009808
      %v7969 = vunpack.c.0.s8 %v7968
      %v7970 = vlaneseq
      %v7971 = vshrl.u32 %v7970, 7
      %v7972 = vsub.s32 %v7969, %v7971
      %v7973 = vrot.slane %v7959, %v7972
      %v7974 = vcombine.high %v7966, %v7966
      %v7975 = vcombine.high %v7973, %v7973
      %v7976 = vcombine.high %v7604, %v7604
      %v7978 = vunpack.c.l.s4 1983009808
      %v7979 = vunpack.c.0.s8 %v7978
      %v7980 = vlaneseq
      %v7981 = vshrl.u32 %v7980, 7
      %v7982 = vsub.s32 %v7979, %v7981
      %v7983 = vrot.slane %v7604, %v7982
      %v7985 = vunpack.c.l.s4 1983009808
      %v7986 = vunpack.c.0.s8 %v7985
      %v7987 = vlaneseq
      %v7988 = vshrl.u32 %v7987, 7
      %v7989 = vsub.s32 %v7986, %v7988
      %v7990 = vrot.slane %v7976, %v7989
      %v7991 = vcombine.high %v7983, %v7983
      %v7992 = vcombine.high %v7990, %v7990
      %v7993 = vcombine.high %v7605, %v7605
      %v7995 = vunpack.c.l.s4 1983009808
      %v7996 = vunpack.c.0.s8 %v7995
      %v7997 = vlaneseq
      %v7998 = vshrl.u32 %v7997, 7
      %v7999 = vsub.s32 %v7996, %v7998
      %v8000 = vrot.slane %v7605, %v7999
      %v8002 = vunpack.c.l.s4 1983009808
      %v8003 = vunpack.c.0.s8 %v8002
      %v8004 = vlaneseq
      %v8005 = vshrl.u32 %v8004, 7
      %v8006 = vsub.s32 %v8003, %v8005
      %v8007 = vrot.slane %v7993, %v8006
      %v8008 = vcombine.high %v8000, %v8000
      %v8009 = vcombine.high %v8007, %v8007
      %v8010 = vcombine.high %v7606, %v7606
      %v8012 = vunpack.c.l.s4 1983009808
      %v8013 = vunpack.c.0.s8 %v8012
      %v8014 = vlaneseq
      %v8015 = vshrl.u32 %v8014, 7
      %v8016 = vsub.s32 %v8013, %v8015
      %v8017 = vrot.slane %v7606, %v8016
      %v8019 = vunpack.c.l.s4 1983009808
      %v8020 = vunpack.c.0.s8 %v8019
      %v8021 = vlaneseq
      %v8022 = vshrl.u32 %v8021, 7
      %v8023 = vsub.s32 %v8020, %v8022
      %v8024 = vrot.slane %v8010, %v8023
      %v8025 = vcombine.high %v8017, %v8017
      %v8026 = vcombine.high %v8024, %v8024
      %v8027 = vcombine.high %v7607, %v7607
      %v8029 = vunpack.c.l.s4 1983009808
      %v8030 = vunpack.c.0.s8 %v8029
      %v8031 = vlaneseq
      %v8032 = vshrl.u32 %v8031, 7
      %v8033 = vsub.s32 %v8030, %v8032
      %v8034 = vrot.slane %v7607, %v8033
      %v8036 = vunpack.c.l.s4 1983009808
      %v8037 = vunpack.c.0.s8 %v8036
      %v8038 = vlaneseq
      %v8039 = vshrl.u32 %v8038, 7
      %v8040 = vsub.s32 %v8037, %v8039
      %v8041 = vrot.slane %v8027, %v8040
      %v8042 = vcombine.high %v8041, %v8041
      %v8043 = vcombine.high %v7608, %v7608
      %v8045 = vunpack.c.l.s4 1983009808
      %v8046 = vunpack.c.0.s8 %v8045
      %v8047 = vlaneseq
      %v8048 = vshrl.u32 %v8047, 7
      %v8049 = vsub.s32 %v8046, %v8048
      %v8050 = vrot.slane %v7608, %v8049
      %v8052 = vunpack.c.l.s4 1983009808
      %v8053 = vunpack.c.0.s8 %v8052
      %v8054 = vlaneseq
      %v8055 = vshrl.u32 %v8054, 7
      %v8056 = vsub.s32 %v8053, %v8055
      %v8057 = vrot.slane %v8043, %v8056
      %v8058 = vcombine.high %v8050, %v8050
      %v8059 = vcombine.high %v8057, %v8057
      %v8060 = vcombine.high %v7609, %v7609
      %v8062 = vunpack.c.l.s4 1983009808
      %v8063 = vunpack.c.0.s8 %v8062
      %v8064 = vlaneseq
      %v8065 = vshrl.u32 %v8064, 7
      %v8066 = vsub.s32 %v8063, %v8065
      %v8067 = vrot.slane %v7609, %v8066
      %v8069 = vunpack.c.l.s4 1983009808
      %v8070 = vunpack.c.0.s8 %v8069
      %v8071 = vlaneseq
      %v8072 = vshrl.u32 %v8071, 7
      %v8073 = vsub.s32 %v8070, %v8072
      %v8074 = vrot.slane %v8060, %v8073
      %v8075 = vcombine.high %v8067, %v8067
      %v8076 = vcombine.high %v8074, %v8074
      %v8077 = vcombine.high %v7610, %v7610
      %v8079 = vunpack.c.l.s4 1983009808
      %v8080 = vunpack.c.0.s8 %v8079
      %v8081 = vlaneseq
      %v8082 = vshrl.u32 %v8081, 7
      %v8083 = vsub.s32 %v8080, %v8082
      %v8084 = vrot.slane %v7610, %v8083
      %v8086 = vunpack.c.l.s4 1983009808
      %v8087 = vunpack.c.0.s8 %v8086
      %v8088 = vlaneseq
      %v8089 = vshrl.u32 %v8088, 7
      %v8090 = vsub.s32 %v8087, %v8089
      %v8091 = vrot.slane %v8077, %v8090
      %v8092 = vcombine.high %v8084, %v8084
      %v8093 = vcombine.high %v8091, %v8091
      %v8094 = vcombine.high %v7611, %v7611
      %v8096 = vunpack.c.l.s4 1983009808
      %v8097 = vunpack.c.0.s8 %v8096
      %v8098 = vlaneseq
      %v8099 = vshrl.u32 %v8098, 7
      %v8100 = vsub.s32 %v8097, %v8099
      %v8101 = vrot.slane %v7611, %v8100
      %v8103 = vunpack.c.l.s4 1983009808
      %v8104 = vunpack.c.0.s8 %v8103
      %v8105 = vlaneseq
      %v8106 = vshrl.u32 %v8105, 7
      %v8107 = vsub.s32 %v8104, %v8106
      %v8108 = vrot.slane %v8094, %v8107
      %v8109 = vcombine.high %v8101, %v8101
      %v8110 = vcombine.high %v7612, %v7612
      %v8112 = vunpack.c.l.s4 1983009808
      %v8113 = vunpack.c.0.s8 %v8112
      %v8114 = vlaneseq
      %v8115 = vshrl.u32 %v8114, 7
      %v8116 = vsub.s32 %v8113, %v8115
      %v8117 = vrot.slane %v7612, %v8116
      %v8119 = vunpack.c.l.s4 1983009808
      %v8120 = vunpack.c.0.s8 %v8119
      %v8121 = vlaneseq
      %v8122 = vshrl.u32 %v8121, 7
      %v8123 = vsub.s32 %v8120, %v8122
      %v8124 = vrot.slane %v8110, %v8123
      %v8125 = vcombine.high %v8117, %v8117
      %v8126 = vcombine.high %v8124, %v8124
      %v8127 = vcombine.high %v7613, %v7613
      %v8129 = vunpack.c.l.s4 1983009808
      %v8130 = vunpack.c.0.s8 %v8129
      %v8131 = vlaneseq
      %v8132 = vshrl.u32 %v8131, 7
      %v8133 = vsub.s32 %v8130, %v8132
      %v8134 = vrot.slane %v7613, %v8133
      %v8136 = vunpack.c.l.s4 1983009808
      %v8137 = vunpack.c.0.s8 %v8136
      %v8138 = vlaneseq
      %v8139 = vshrl.u32 %v8138, 7
      %v8140 = vsub.s32 %v8137, %v8139
      %v8141 = vrot.slane %v8127, %v8140
      %v8142 = vcombine.high %v8134, %v8134
      %v8143 = vcombine.high %v8141, %v8141
      %v8144 = vcombine.high %v7614, %v7614
      %v8146 = vunpack.c.l.s4 1983009808
      %v8147 = vunpack.c.0.s8 %v8146
      %v8148 = vlaneseq
      %v8149 = vshrl.u32 %v8148, 7
      %v8150 = vsub.s32 %v8147, %v8149
      %v8151 = vrot.slane %v7614, %v8150
      %v8153 = vunpack.c.l.s4 1983009808
      %v8154 = vunpack.c.0.s8 %v8153
      %v8155 = vlaneseq
      %v8156 = vshrl.u32 %v8155, 7
      %v8157 = vsub.s32 %v8154, %v8156
      %v8158 = vrot.slane %v8144, %v8157
      %v8159 = vcombine.high %v8151, %v8151
      %v8160 = vcombine.high %v8158, %v8158
      %v8161 = vcombine.high %v7615, %v7615
      %v8163 = vunpack.c.l.s4 1983009808
      %v8164 = vunpack.c.0.s8 %v8163
      %v8165 = vlaneseq
      %v8166 = vshrl.u32 %v8165, 7
      %v8167 = vsub.s32 %v8164, %v8166
      %v8168 = vrot.slane %v7615, %v8167
      %v8170 = vunpack.c.l.s4 1983009808
      %v8171 = vunpack.c.0.s8 %v8170
      %v8172 = vlaneseq
      %v8173 = vshrl.u32 %v8172, 7
      %v8174 = vsub.s32 %v8171, %v8173
      %v8175 = vrot.slane %v8161, %v8174
      %v8176 = vcombine.high %v8168, %v8168
      %v8177 = vcombine.high %v8175, %v8175
      %v8178 = vcombine.high %v7616, %v7616
      %v8180 = vunpack.c.l.s4 1983009808
      %v8181 = vunpack.c.0.s8 %v8180
      %v8182 = vlaneseq
      %v8183 = vshrl.u32 %v8182, 7
      %v8184 = vsub.s32 %v8181, %v8183
      %v8185 = vrot.slane %v7616, %v8184
      %v8187 = vunpack.c.l.s4 1983009808
      %v8188 = vunpack.c.0.s8 %v8187
      %v8189 = vlaneseq
      %v8190 = vshrl.u32 %v8189, 7
      %v8191 = vsub.s32 %v8188, %v8190
      %v8192 = vrot.slane %v8178, %v8191
      %v8193 = vcombine.high %v8192, %v8192
      %v8194 = vcombine.high %v7617, %v7617
      %v8196 = vunpack.c.l.s4 1983009808
      %v8197 = vunpack.c.0.s8 %v8196
      %v8198 = vlaneseq
      %v8199 = vshrl.u32 %v8198, 7
      %v8200 = vsub.s32 %v8197, %v8199
      %v8201 = vrot.slane %v7617, %v8200
      %v8203 = vunpack.c.l.s4 1983009808
      %v8204 = vunpack.c.0.s8 %v8203
      %v8205 = vlaneseq
      %v8206 = vshrl.u32 %v8205, 7
      %v8207 = vsub.s32 %v8204, %v8206
      %v8208 = vrot.slane %v8194, %v8207
      %v8209 = vcombine.high %v8201, %v8201
      %v8210 = vcombine.high %v8208, %v8208
      %v8211 = vcombine.high %v7618, %v7618
      %v8213 = vunpack.c.l.s4 1983009808
      %v8214 = vunpack.c.0.s8 %v8213
      %v8215 = vlaneseq
      %v8216 = vshrl.u32 %v8215, 7
      %v8217 = vsub.s32 %v8214, %v8216
      %v8218 = vrot.slane %v7618, %v8217
      %v8220 = vunpack.c.l.s4 1983009808
      %v8221 = vunpack.c.0.s8 %v8220
      %v8222 = vlaneseq
      %v8223 = vshrl.u32 %v8222, 7
      %v8224 = vsub.s32 %v8221, %v8223
      %v8225 = vrot.slane %v8211, %v8224
      %v8226 = vcombine.high %v8218, %v8218
      %v8227 = vcombine.high %v8225, %v8225
      %v8228 = vcombine.high %v7619, %v7619
      %v8230 = vunpack.c.l.s4 1983009808
      %v8231 = vunpack.c.0.s8 %v8230
      %v8232 = vlaneseq
      %v8233 = vshrl.u32 %v8232, 7
      %v8234 = vsub.s32 %v8231, %v8233
      %v8235 = vrot.slane %v7619, %v8234
      %v8237 = vunpack.c.l.s4 1983009808
      %v8238 = vunpack.c.0.s8 %v8237
      %v8239 = vlaneseq
      %v8240 = vshrl.u32 %v8239, 7
      %v8241 = vsub.s32 %v8238, %v8240
      %v8242 = vrot.slane %v8228, %v8241
      %v8243 = vcombine.high %v8235, %v8235
      %v8244 = vcombine.high %v8242, %v8242
      %v8245 = vcombine.high %v7620, %v7620
      %v8247 = vunpack.c.l.s4 1983009808
      %v8248 = vunpack.c.0.s8 %v8247
      %v8249 = vlaneseq
      %v8250 = vshrl.u32 %v8249, 7
      %v8251 = vsub.s32 %v8248, %v8250
      %v8252 = vrot.slane %v7620, %v8251
      %v8254 = vunpack.c.l.s4 1983009808
      %v8255 = vunpack.c.0.s8 %v8254
      %v8256 = vlaneseq
      %v8257 = vshrl.u32 %v8256, 7
      %v8258 = vsub.s32 %v8255, %v8257
      %v8259 = vrot.slane %v8245, %v8258
      %v8260 = vcombine.high %v8252, %v8252
      %v8261 = vcombine.low %v7664, %v7672
      %v8262 = vcombine.low %v7671, %v7673
      %v8264 = vunpack.c.l.s4 1983009808
      %v8265 = vunpack.c.0.s8 %v8264
      %v8266 = vlaneseq
      %v8267 = vshrl.u32 %v8266, 7
      %v8268 = vsub.s32 %v8265, %v8267
      %v8269 = vrot.slane %v8261, %v8268
      %v8271 = vunpack.c.l.s4 1983009808
      %v8272 = vunpack.c.0.s8 %v8271
      %v8273 = vlaneseq
      %v8274 = vshrl.u32 %v8273, 7
      %v8275 = vsub.s32 %v8272, %v8274
      %v8276 = vrot.slane %v8262, %v8275
      %v8277 = vcombine.low %v8269, %v8276
      %v8278 = vcombine.low %v7681, %v7689
      %v8279 = vcombine.low %v7688, %v7690
      %v8281 = vunpack.c.l.s4 1983009808
      %v8282 = vunpack.c.0.s8 %v8281
      %v8283 = vlaneseq
      %v8284 = vshrl.u32 %v8283, 7
      %v8285 = vsub.s32 %v8282, %v8284
      %v8286 = vrot.slane %v8278, %v8285
      %v8288 = vunpack.c.l.s4 1983009808
      %v8289 = vunpack.c.0.s8 %v8288
      %v8290 = vlaneseq
      %v8291 = vshrl.u32 %v8290, 7
      %v8292 = vsub.s32 %v8289, %v8291
      %v8293 = vrot.slane %v8279, %v8292
      %v8294 = vcombine.low %v8286, %v8293
      %v8295 = vcombine.low %v7706, %v7705
      %v8296 = vcombine.low %v7707, %v7715
      %v8298 = vunpack.c.l.s4 1983009808
      %v8299 = vunpack.c.0.s8 %v8298
      %v8300 = vlaneseq
      %v8301 = vshrl.u32 %v8300, 7
      %v8302 = vsub.s32 %v8299, %v8301
      %v8303 = vrot.slane %v8295, %v8302
      %v8305 = vunpack.c.l.s4 1983009808
      %v8306 = vunpack.c.0.s8 %v8305
      %v8307 = vlaneseq
      %v8308 = vshrl.u32 %v8307, 7
      %v8309 = vsub.s32 %v8306, %v8308
      %v8310 = vrot.slane %v8296, %v8309
      %v8311 = vcombine.low %v8303, %v8310
      %v8312 = vcombine.low %v7723, %v7722
      %v8313 = vcombine.low %v7724, %v7732
      %v8315 = vunpack.c.l.s4 1983009808
      %v8316 = vunpack.c.0.s8 %v8315
      %v8317 = vlaneseq
      %v8318 = vshrl.u32 %v8317, 7
      %v8319 = vsub.s32 %v8316, %v8318
      %v8320 = vrot.slane %v8312, %v8319
      %v8322 = vunpack.c.l.s4 1983009808
      %v8323 = vunpack.c.0.s8 %v8322
      %v8324 = vlaneseq
      %v8325 = vshrl.u32 %v8324, 7
      %v8326 = vsub.s32 %v8323, %v8325
      %v8327 = vrot.slane %v8313, %v8326
      %v8328 = vcombine.low %v8320, %v8327
      %v8329 = vcombine.low %v7739, %v7740
      %v8330 = vcombine.low %v7748, %v7756
      %v8332 = vunpack.c.l.s4 1983009808
      %v8333 = vunpack.c.0.s8 %v8332
      %v8334 = vlaneseq
      %v8335 = vshrl.u32 %v8334, 7
      %v8336 = vsub.s32 %v8333, %v8335
      %v8337 = vrot.slane %v8329, %v8336
      %v8339 = vunpack.c.l.s4 1983009808
      %v8340 = vunpack.c.0.s8 %v8339
      %v8341 = vlaneseq
      %v8342 = vshrl.u32 %v8341, 7
      %v8343 = vsub.s32 %v8340, %v8342
      %v8344 = vrot.slane %v8330, %v8343
      %v8345 = vcombine.low %v8337, %v8344
      %v8346 = vcombine.low %v7755, %v7757
      %v8347 = vcombine.low %v7765, %v7773
      %v8349 = vunpack.c.l.s4 1983009808
      %v8350 = vunpack.c.0.s8 %v8349
      %v8351 = vlaneseq
      %v8352 = vshrl.u32 %v8351, 7
      %v8353 = vsub.s32 %v8350, %v8352
      %v8354 = vrot.slane %v8346, %v8353
      %v8356 = vunpack.c.l.s4 1983009808
      %v8357 = vunpack.c.0.s8 %v8356
      %v8358 = vlaneseq
      %v8359 = vshrl.u32 %v8358, 7
      %v8360 = vsub.s32 %v8357, %v8359
      %v8361 = vrot.slane %v8347, %v8360
      %v8362 = vcombine.low %v8354, %v8361
      %v8363 = vcombine.low %v7774, %v7782
      %v8364 = vcombine.low %v7790, %v7789
      %v8366 = vunpack.c.l.s4 1983009808
      %v8367 = vunpack.c.0.s8 %v8366
      %v8368 = vlaneseq
      %v8369 = vshrl.u32 %v8368, 7
      %v8370 = vsub.s32 %v8367, %v8369
      %v8371 = vrot.slane %v8363, %v8370
      %v8373 = vunpack.c.l.s4 1983009808
      %v8374 = vunpack.c.0.s8 %v8373
      %v8375 = vlaneseq
      %v8376 = vshrl.u32 %v8375, 7
      %v8377 = vsub.s32 %v8374, %v8376
      %v8378 = vrot.slane %v8364, %v8377
      %v8379 = vcombine.low %v8371, %v8378
      %v8380 = vcombine.low %v7791, %v7799
      %v8381 = vcombine.low %v7807, %v7806
      %v8383 = vunpack.c.l.s4 1983009808
      %v8384 = vunpack.c.0.s8 %v8383
      %v8385 = vlaneseq
      %v8386 = vshrl.u32 %v8385, 7
      %v8387 = vsub.s32 %v8384, %v8386
      %v8388 = vrot.slane %v8380, %v8387
      %v8390 = vunpack.c.l.s4 1983009808
      %v8391 = vunpack.c.0.s8 %v8390
      %v8392 = vlaneseq
      %v8393 = vshrl.u32 %v8392, 7
      %v8394 = vsub.s32 %v8391, %v8393
      %v8395 = vrot.slane %v8381, %v8394
      %v8396 = vcombine.low %v8388, %v8395
      %v8397 = vcombine.low %v7815, %v7823
      %v8398 = vcombine.low %v7822, %v7824
      %v8400 = vunpack.c.l.s4 1983009808
      %v8401 = vunpack.c.0.s8 %v8400
      %v8402 = vlaneseq
      %v8403 = vshrl.u32 %v8402, 7
      %v8404 = vsub.s32 %v8401, %v8403
      %v8405 = vrot.slane %v8397, %v8404
      %v8407 = vunpack.c.l.s4 1983009808
      %v8408 = vunpack.c.0.s8 %v8407
      %v8409 = vlaneseq
      %v8410 = vshrl.u32 %v8409, 7
      %v8411 = vsub.s32 %v8408, %v8410
      %v8412 = vrot.slane %v8398, %v8411
      %v8413 = vcombine.low %v8405, %v8412
      %v8414 = vcombine.low %v7832, %v7840
      %v8415 = vcombine.low %v7839, %v7841
      %v8417 = vunpack.c.l.s4 1983009808
      %v8418 = vunpack.c.0.s8 %v8417
      %v8419 = vlaneseq
      %v8420 = vshrl.u32 %v8419, 7
      %v8421 = vsub.s32 %v8418, %v8420
      %v8422 = vrot.slane %v8414, %v8421
      %v8424 = vunpack.c.l.s4 1983009808
      %v8425 = vunpack.c.0.s8 %v8424
      %v8426 = vlaneseq
      %v8427 = vshrl.u32 %v8426, 7
      %v8428 = vsub.s32 %v8425, %v8427
      %v8429 = vrot.slane %v8415, %v8428
      %v8430 = vcombine.low %v8422, %v8429
      %v8431 = vcombine.low %v7857, %v7856
      %v8432 = vcombine.low %v7858, %v7866
      %v8434 = vunpack.c.l.s4 1983009808
      %v8435 = vunpack.c.0.s8 %v8434
      %v8436 = vlaneseq
      %v8437 = vshrl.u32 %v8436, 7
      %v8438 = vsub.s32 %v8435, %v8437
      %v8439 = vrot.slane %v8431, %v8438
      %v8441 = vunpack.c.l.s4 1983009808
      %v8442 = vunpack.c.0.s8 %v8441
      %v8443 = vlaneseq
      %v8444 = vshrl.u32 %v8443, 7
      %v8445 = vsub.s32 %v8442, %v8444
      %v8446 = vrot.slane %v8432, %v8445
      %v8447 = vcombine.low %v8439, %v8446
      %v8448 = vcombine.low %v7874, %v7873
      %v8449 = vcombine.low %v7875, %v7883
      %v8451 = vunpack.c.l.s4 1983009808
      %v8452 = vunpack.c.0.s8 %v8451
      %v8453 = vlaneseq
      %v8454 = vshrl.u32 %v8453, 7
      %v8455 = vsub.s32 %v8452, %v8454
      %v8456 = vrot.slane %v8448, %v8455
      %v8458 = vunpack.c.l.s4 1983009808
      %v8459 = vunpack.c.0.s8 %v8458
      %v8460 = vlaneseq
      %v8461 = vshrl.u32 %v8460, 7
      %v8462 = vsub.s32 %v8459, %v8461
      %v8463 = vrot.slane %v8449, %v8462
      %v8464 = vcombine.low %v8456, %v8463
      %v8465 = vcombine.low %v7890, %v7891
      %v8466 = vcombine.low %v7899, %v7907
      %v8468 = vunpack.c.l.s4 1983009808
      %v8469 = vunpack.c.0.s8 %v8468
      %v8470 = vlaneseq
      %v8471 = vshrl.u32 %v8470, 7
      %v8472 = vsub.s32 %v8469, %v8471
      %v8473 = vrot.slane %v8465, %v8472
      %v8475 = vunpack.c.l.s4 1983009808
      %v8476 = vunpack.c.0.s8 %v8475
      %v8477 = vlaneseq
      %v8478 = vshrl.u32 %v8477, 7
      %v8479 = vsub.s32 %v8476, %v8478
      %v8480 = vrot.slane %v8466, %v8479
      %v8481 = vcombine.low %v8473, %v8480
      %v8482 = vcombine.low %v7906, %v7908
      %v8483 = vcombine.low %v7916, %v7924
      %v8485 = vunpack.c.l.s4 1983009808
      %v8486 = vunpack.c.0.s8 %v8485
      %v8487 = vlaneseq
      %v8488 = vshrl.u32 %v8487, 7
      %v8489 = vsub.s32 %v8486, %v8488
      %v8490 = vrot.slane %v8482, %v8489
      %v8492 = vunpack.c.l.s4 1983009808
      %v8493 = vunpack.c.0.s8 %v8492
      %v8494 = vlaneseq
      %v8495 = vshrl.u32 %v8494, 7
      %v8496 = vsub.s32 %v8493, %v8495
      %v8497 = vrot.slane %v8483, %v8496
      %v8498 = vcombine.low %v8490, %v8497
      %v8499 = vcombine.low %v7925, %v7933
      %v8500 = vcombine.low %v7941, %v7940
      %v8502 = vunpack.c.l.s4 1983009808
      %v8503 = vunpack.c.0.s8 %v8502
      %v8504 = vlaneseq
      %v8505 = vshrl.u32 %v8504, 7
      %v8506 = vsub.s32 %v8503, %v8505
      %v8507 = vrot.slane %v8499, %v8506
      %v8509 = vunpack.c.l.s4 1983009808
      %v8510 = vunpack.c.0.s8 %v8509
      %v8511 = vlaneseq
      %v8512 = vshrl.u32 %v8511, 7
      %v8513 = vsub.s32 %v8510, %v8512
      %v8514 = vrot.slane %v8500, %v8513
      %v8515 = vcombine.low %v8507, %v8514
      %v8516 = vcombine.low %v7942, %v7950
      %v8517 = vcombine.low %v7958, %v7957
      %v8519 = vunpack.c.l.s4 1983009808
      %v8520 = vunpack.c.0.s8 %v8519
      %v8521 = vlaneseq
      %v8522 = vshrl.u32 %v8521, 7
      %v8523 = vsub.s32 %v8520, %v8522
      %v8524 = vrot.slane %v8516, %v8523
      %v8526 = vunpack.c.l.s4 1983009808
      %v8527 = vunpack.c.0.s8 %v8526
      %v8528 = vlaneseq
      %v8529 = vshrl.u32 %v8528, 7
      %v8530 = vsub.s32 %v8527, %v8529
      %v8531 = vrot.slane %v8517, %v8530
      %v8532 = vcombine.low %v8524, %v8531
      %v8533 = vcombine.low %v7966, %v7974
      %v8534 = vcombine.low %v7973, %v7975
      %v8536 = vunpack.c.l.s4 1983009808
      %v8537 = vunpack.c.0.s8 %v8536
      %v8538 = vlaneseq
      %v8539 = vshrl.u32 %v8538, 7
      %v8540 = vsub.s32 %v8537, %v8539
      %v8541 = vrot.slane %v8533, %v8540
      %v8543 = vunpack.c.l.s4 1983009808
      %v8544 = vunpack.c.0.s8 %v8543
      %v8545 = vlaneseq
      %v8546 = vshrl.u32 %v8545, 7
      %v8547 = vsub.s32 %v8544, %v8546
      %v8548 = vrot.slane %v8534, %v8547
      %v8549 = vcombine.low %v8541, %v8548
      %v8550 = vcombine.low %v7983, %v7991
      %v8551 = vcombine.low %v7990, %v7992
      %v8553 = vunpack.c.l.s4 1983009808
      %v8554 = vunpack.c.0.s8 %v8553
      %v8555 = vlaneseq
      %v8556 = vshrl.u32 %v8555, 7
      %v8557 = vsub.s32 %v8554, %v8556
      %v8558 = vrot.slane %v8550, %v8557
      %v8560 = vunpack.c.l.s4 1983009808
      %v8561 = vunpack.c.0.s8 %v8560
      %v8562 = vlaneseq
      %v8563 = vshrl.u32 %v8562, 7
      %v8564 = vsub.s32 %v8561, %v8563
      %v8565 = vrot.slane %v8551, %v8564
      %v8566 = vcombine.low %v8558, %v8565
      %v8567 = vcombine.low %v8008, %v8007
      %v8568 = vcombine.low %v8009, %v8017
      %v8570 = vunpack.c.l.s4 1983009808
      %v8571 = vunpack.c.0.s8 %v8570
      %v8572 = vlaneseq
      %v8573 = vshrl.u32 %v8572, 7
      %v8574 = vsub.s32 %v8571, %v8573
      %v8575 = vrot.slane %v8567, %v8574
      %v8577 = vunpack.c.l.s4 1983009808
      %v8578 = vunpack.c.0.s8 %v8577
      %v8579 = vlaneseq
      %v8580 = vshrl.u32 %v8579, 7
      %v8581 = vsub.s32 %v8578, %v8580
      %v8582 = vrot.slane %v8568, %v8581
      %v8583 = vcombine.low %v8575, %v8582
      %v8584 = vcombine.low %v8025, %v8024
      %v8585 = vcombine.low %v8026, %v8034
      %v8587 = vunpack.c.l.s4 1983009808
      %v8588 = vunpack.c.0.s8 %v8587
      %v8589 = vlaneseq
      %v8590 = vshrl.u32 %v8589, 7
      %v8591 = vsub.s32 %v8588, %v8590
      %v8592 = vrot.slane %v8584, %v8591
      %v8594 = vunpack.c.l.s4 1983009808
      %v8595 = vunpack.c.0.s8 %v8594
      %v8596 = vlaneseq
      %v8597 = vshrl.u32 %v8596, 7
      %v8598 = vsub.s32 %v8595, %v8597
      %v8599 = vrot.slane %v8585, %v8598
      %v8600 = vcombine.low %v8592, %v8599
      %v8601 = vcombine.low %v8041, %v8042
      %v8602 = vcombine.low %v8050, %v8058
      %v8604 = vunpack.c.l.s4 1983009808
      %v8605 = vunpack.c.0.s8 %v8604
      %v8606 = vlaneseq
      %v8607 = vshrl.u32 %v8606, 7
      %v8608 = vsub.s32 %v8605, %v8607
      %v8609 = vrot.slane %v8601, %v8608
      %v8611 = vunpack.c.l.s4 1983009808
      %v8612 = vunpack.c.0.s8 %v8611
      %v8613 = vlaneseq
      %v8614 = vshrl.u32 %v8613, 7
      %v8615 = vsub.s32 %v8612, %v8614
      %v8616 = vrot.slane %v8602, %v8615
      %v8617 = vcombine.low %v8609, %v8616
      %v8618 = vcombine.low %v8057, %v8059
      %v8619 = vcombine.low %v8067, %v8075
      %v8621 = vunpack.c.l.s4 1983009808
      %v8622 = vunpack.c.0.s8 %v8621
      %v8623 = vlaneseq
      %v8624 = vshrl.u32 %v8623, 7
      %v8625 = vsub.s32 %v8622, %v8624
      %v8626 = vrot.slane %v8618, %v8625
      %v8628 = vunpack.c.l.s4 1983009808
      %v8629 = vunpack.c.0.s8 %v8628
      %v8630 = vlaneseq
      %v8631 = vshrl.u32 %v8630, 7
      %v8632 = vsub.s32 %v8629, %v8631
      %v8633 = vrot.slane %v8619, %v8632
      %v8634 = vcombine.low %v8626, %v8633
      %v8635 = vcombine.low %v8076, %v8084
      %v8636 = vcombine.low %v8092, %v8091
      %v8638 = vunpack.c.l.s4 1983009808
      %v8639 = vunpack.c.0.s8 %v8638
      %v8640 = vlaneseq
      %v8641 = vshrl.u32 %v8640, 7
      %v8642 = vsub.s32 %v8639, %v8641
      %v8643 = vrot.slane %v8635, %v8642
      %v8645 = vunpack.c.l.s4 1983009808
      %v8646 = vunpack.c.0.s8 %v8645
      %v8647 = vlaneseq
      %v8648 = vshrl.u32 %v8647, 7
      %v8649 = vsub.s32 %v8646, %v8648
      %v8650 = vrot.slane %v8636, %v8649
      %v8651 = vcombine.low %v8643, %v8650
      %v8652 = vcombine.low %v8093, %v8101
      %v8653 = vcombine.low %v8109, %v8108
      %v8655 = vunpack.c.l.s4 1983009808
      %v8656 = vunpack.c.0.s8 %v8655
      %v8657 = vlaneseq
      %v8658 = vshrl.u32 %v8657, 7
      %v8659 = vsub.s32 %v8656, %v8658
      %v8660 = vrot.slane %v8652, %v8659
      %v8662 = vunpack.c.l.s4 1983009808
      %v8663 = vunpack.c.0.s8 %v8662
      %v8664 = vlaneseq
      %v8665 = vshrl.u32 %v8664, 7
      %v8666 = vsub.s32 %v8663, %v8665
      %v8667 = vrot.slane %v8653, %v8666
      %v8668 = vcombine.low %v8660, %v8667
      %v8669 = vcombine.low %v8117, %v8125
      %v8670 = vcombine.low %v8124, %v8126
      %v8672 = vunpack.c.l.s4 1983009808
      %v8673 = vunpack.c.0.s8 %v8672
      %v8674 = vlaneseq
      %v8675 = vshrl.u32 %v8674, 7
      %v8676 = vsub.s32 %v8673, %v8675
      %v8677 = vrot.slane %v8669, %v8676
      %v8679 = vunpack.c.l.s4 1983009808
      %v8680 = vunpack.c.0.s8 %v8679
      %v8681 = vlaneseq
      %v8682 = vshrl.u32 %v8681, 7
      %v8683 = vsub.s32 %v8680, %v8682
      %v8684 = vrot.slane %v8670, %v8683
      %v8685 = vcombine.low %v8677, %v8684
      %v8686 = vcombine.low %v8134, %v8142
      %v8687 = vcombine.low %v8141, %v8143
      %v8689 = vunpack.c.l.s4 1983009808
      %v8690 = vunpack.c.0.s8 %v8689
      %v8691 = vlaneseq
      %v8692 = vshrl.u32 %v8691, 7
      %v8693 = vsub.s32 %v8690, %v8692
      %v8694 = vrot.slane %v8686, %v8693
      %v8696 = vunpack.c.l.s4 1983009808
      %v8697 = vunpack.c.0.s8 %v8696
      %v8698 = vlaneseq
      %v8699 = vshrl.u32 %v8698, 7
      %v8700 = vsub.s32 %v8697, %v8699
      %v8701 = vrot.slane %v8687, %v8700
      %v8702 = vcombine.low %v8694, %v8701
      %v8703 = vcombine.low %v8159, %v8158
      %v8704 = vcombine.low %v8160, %v8168
      %v8706 = vunpack.c.l.s4 1983009808
      %v8707 = vunpack.c.0.s8 %v8706
      %v8708 = vlaneseq
      %v8709 = vshrl.u32 %v8708, 7
      %v8710 = vsub.s32 %v8707, %v8709
      %v8711 = vrot.slane %v8703, %v8710
      %v8713 = vunpack.c.l.s4 1983009808
      %v8714 = vunpack.c.0.s8 %v8713
      %v8715 = vlaneseq
      %v8716 = vshrl.u32 %v8715, 7
      %v8717 = vsub.s32 %v8714, %v8716
      %v8718 = vrot.slane %v8704, %v8717
      %v8719 = vcombine.low %v8711, %v8718
      %v8720 = vcombine.low %v8176, %v8175
      %v8721 = vcombine.low %v8177, %v8185
      %v8723 = vunpack.c.l.s4 1983009808
      %v8724 = vunpack.c.0.s8 %v8723
      %v8725 = vlaneseq
      %v8726 = vshrl.u32 %v8725, 7
      %v8727 = vsub.s32 %v8724, %v8726
      %v8728 = vrot.slane %v8720, %v8727
      %v8730 = vunpack.c.l.s4 1983009808
      %v8731 = vunpack.c.0.s8 %v8730
      %v8732 = vlaneseq
      %v8733 = vshrl.u32 %v8732, 7
      %v8734 = vsub.s32 %v8731, %v8733
      %v8735 = vrot.slane %v8721, %v8734
      %v8736 = vcombine.low %v8728, %v8735
      %v8737 = vcombine.low %v8192, %v8193
      %v8738 = vcombine.low %v8201, %v8209
      %v8740 = vunpack.c.l.s4 1983009808
      %v8741 = vunpack.c.0.s8 %v8740
      %v8742 = vlaneseq
      %v8743 = vshrl.u32 %v8742, 7
      %v8744 = vsub.s32 %v8741, %v8743
      %v8745 = vrot.slane %v8737, %v8744
      %v8747 = vunpack.c.l.s4 1983009808
      %v8748 = vunpack.c.0.s8 %v8747
      %v8749 = vlaneseq
      %v8750 = vshrl.u32 %v8749, 7
      %v8751 = vsub.s32 %v8748, %v8750
      %v8752 = vrot.slane %v8738, %v8751
      %v8753 = vcombine.low %v8745, %v8752
      %v8754 = vcombine.low %v8208, %v8210
      %v8755 = vcombine.low %v8218, %v8226
      %v8757 = vunpack.c.l.s4 1983009808
      %v8758 = vunpack.c.0.s8 %v8757
      %v8759 = vlaneseq
      %v8760 = vshrl.u32 %v8759, 7
      %v8761 = vsub.s32 %v8758, %v8760
      %v8762 = vrot.slane %v8754, %v8761
      %v8764 = vunpack.c.l.s4 1983009808
      %v8765 = vunpack.c.0.s8 %v8764
      %v8766 = vlaneseq
      %v8767 = vshrl.u32 %v8766, 7
      %v8768 = vsub.s32 %v8765, %v8767
      %v8769 = vrot.slane %v8755, %v8768
      %v8770 = vcombine.low %v8762, %v8769
      %v8771 = vcombine.low %v8227, %v8235
      %v8772 = vcombine.low %v8243, %v8242
      %v8774 = vunpack.c.l.s4 1983009808
      %v8775 = vunpack.c.0.s8 %v8774
      %v8776 = vlaneseq
      %v8777 = vshrl.u32 %v8776, 7
      %v8778 = vsub.s32 %v8775, %v8777
      %v8779 = vrot.slane %v8771, %v8778
      %v8781 = vunpack.c.l.s4 1983009808
      %v8782 = vunpack.c.0.s8 %v8781
      %v8783 = vlaneseq
      %v8784 = vshrl.u32 %v8783, 7
      %v8785 = vsub.s32 %v8782, %v8784
      %v8786 = vrot.slane %v8772, %v8785
      %v8787 = vcombine.low %v8779, %v8786
      %v8788 = vcombine.low %v8244, %v8252
      %v8789 = vcombine.low %v8260, %v8259
      %v8791 = vunpack.c.l.s4 1983009808
      %v8792 = vunpack.c.0.s8 %v8791
      %v8793 = vlaneseq
      %v8794 = vshrl.u32 %v8793, 7
      %v8795 = vsub.s32 %v8792, %v8794
      %v8796 = vrot.slane %v8788, %v8795
      %v8798 = vunpack.c.l.s4 1983009808
      %v8799 = vunpack.c.0.s8 %v8798
      %v8800 = vlaneseq
      %v8801 = vshrl.u32 %v8800, 7
      %v8802 = vsub.s32 %v8799, %v8801
      %v8803 = vrot.slane %v8789, %v8802
      %v8804 = vcombine.low %v8796, %v8803
      %8837 = vst.msk [vmem:[%s670] sm:$0xff] %vm5224, %v8277
      %8838 = vst.msk [vmem:[%s670 + $0x8] sm:$0xff] %vm5224, %v8294
      %8839 = vst.msk [vmem:[%s670 + $0x10] sm:$0xff] %vm5224, %v8311
      %8840 = vst.msk [vmem:[%s670 + $0x18] sm:$0xff] %vm5224, %v8328
      %8841 = vst.msk [vmem:[%s670 + $0x20] sm:$0xff] %vm5224, %v8345
      %8842 = vst.msk [vmem:[%s670 + $0x28] sm:$0xff] %vm5224, %v8362
      %8843 = vst.msk [vmem:[%s670 + $0x30] sm:$0xff] %vm5224, %v8379
      %8844 = vst.msk [vmem:[%s670 + $0x38] sm:$0xff] %vm5224, %v8396
      %8845 = vst.msk [vmem:[%s670 + $0x40] sm:$0xff] %vm5224, %v8413
      %8846 = vst.msk [vmem:[%s670 + $0x48] sm:$0xff] %vm5224, %v8430
      %8847 = vst.msk [vmem:[%s670 + $0x50] sm:$0xff] %vm5224, %v8447
      %8848 = vst.msk [vmem:[%s670 + $0x58] sm:$0xff] %vm5224, %v8464
      %8849 = vst.msk [vmem:[%s670 + $0x60] sm:$0xff] %vm5224, %v8481
      %8850 = vst.msk [vmem:[%s670 + $0x68] sm:$0xff] %vm5224, %v8498
      %8851 = vst.msk [vmem:[%s670 + $0x70] sm:$0xff] %vm5224, %v8515
      %8852 = vst.msk [vmem:[%s670 + $0x78] sm:$0xff] %vm5224, %v8532
      %8853 = vst.msk [vmem:[%s670 + $0x80] sm:$0xff] %vm5224, %v8549
      %8854 = vst.msk [vmem:[%s670 + $0x88] sm:$0xff] %vm5224, %v8566
      %8855 = vst.msk [vmem:[%s670 + $0x90] sm:$0xff] %vm5224, %v8583
      %8856 = vst.msk [vmem:[%s670 + $0x98] sm:$0xff] %vm5224, %v8600
      %8857 = vst.msk [vmem:[%s670 + $0xa0] sm:$0xff] %vm5224, %v8617
      %8858 = vst.msk [vmem:[%s670 + $0xa8] sm:$0xff] %vm5224, %v8634
      %8859 = vst.msk [vmem:[%s670 + $0xb0] sm:$0xff] %vm5224, %v8651
      %8860 = vst.msk [vmem:[%s670 + $0xb8] sm:$0xff] %vm5224, %v8668
      %8861 = vst.msk [vmem:[%s670 + $0xc0] sm:$0xff] %vm5224, %v8685
      %8862 = vst.msk [vmem:[%s670 + $0xc8] sm:$0xff] %vm5224, %v8702
      %8863 = vst.msk [vmem:[%s670 + $0xd0] sm:$0xff] %vm5224, %v8719
      %8864 = vst.msk [vmem:[%s670 + $0xd8] sm:$0xff] %vm5224, %v8736
      %8865 = vst.msk [vmem:[%s670 + $0xe0] sm:$0xff] %vm5224, %v8753
      %8866 = vst.msk [vmem:[%s670 + $0xe8] sm:$0xff] %vm5224, %v8770
      %8867 = vst.msk [vmem:[%s670 + $0xf0] sm:$0xff] %vm5224, %v8787
      %8868 = vst.msk [vmem:[%s670 + $0xf8] sm:$0xff] %vm5224, %v8804
      %s8869 = smul.u32 16, %s25
      %p8870 = scmp.lt.s32.totalorder %s24, 1
      %s8871 = scalar_select %p8870, %s24, 1
      %p8872 = scmp.lt.s32.totalorder %s8869, 15
      %s8873 = scalar_select %p8872, %s8869, 15
      %s8874 = smul.addr %s8873, 2
      %s8875 = smul.addr %s8871, 32
      %s8876 = sadd.s32 %s8874, %s8875
      %s8877 = smul.addr %s8876, 8
      %s8878 = scalar_lea.vmem %s9, %s8877
      // Predicated region
      $region57: #{upconv_forward.3} parent=55 // pred_check
        %p8879 = pneg %p303
      $region58: #{upconv_forward.3} parent=55 // pred_check_branch
        %8881 = sbr.rel (%p8879) target = $region60
      $region59: #{upconv_forward.3} parent=55 // pred_region
        %s8882 = smul.u32 16, %s25
      $region60: #{upconv_forward.3} parent=55 // pred_fallthru
        _
    $region56: #{upconv_forward.3} parent=5 // pred_fallthru
      _
    %p8883 = scmp.le.s32.totalorder 2, %s15
    // Predicated region
    $region61: #{upconv_forward.3} parent=5 // pred_check
      %p8884 = pneg %p8883
    $region62: #{upconv_forward.3} parent=5 // pred_check_branch
      %8886 = sbr.rel (%p8884) target = $region64
    $region63: #{upconv_forward.3} parent=5 // pred_region
      %s8887 = ssub.s32 %s15, 2
      // Predicated region
      $region65: #{upconv_forward.3} parent=63 // pred_check
        %p8888 = pneg %p309
      $region66: #{upconv_forward.3} parent=63 // pred_check_branch
        %8890 = sbr.rel (%p8888) target = $region68
      $region67: #{upconv_forward.3} parent=63 // pred_region
        %s8891 = smul.u32 16, %s27
        %p8892 = scmp.lt.s32.totalorder %s26, 1
        %s8893 = scalar_select %p8892, %s26, 1
        %p8894 = scmp.lt.s32.totalorder %s8891, 15
        %s8895 = scalar_select %p8894, %s8891, 15
        %s8896 = smul.addr %s8895, 2
        %s8897 = smul.addr %s8893, 32
        %s8898 = sadd.s32 %s8896, %s8897
        %s8899 = smul.addr %s8898, 8
        %s8900 = scalar_lea.vmem %s9, %s8899
      $region68: #{upconv_forward.3} parent=63 // pred_fallthru
        _
    $region64: #{upconv_forward.3} parent=5 // pred_fallthru
      _
  $region6: #{upconv_forward.3} parent=0 // loop_footer
    %s19 = sadd.s32 1, %s15
  $region7: #{upconv_forward.3} parent=0 // loop_footer_branch
    %14 = sbr.rel target = $region3
  $region8: #{upconv_forward.3} parent=0 // loop_exit
    _

</llo_original>
